<compile_context>
chip_gen: v5e
topology: v5e:2x2
jax: 0.10.0
libtpu: 0.0.40
codegen_flags: <defaults>
</compile_context>

<pallas_src>
import numpy as np
import jax
import jax.numpy as jnp
from jax.experimental import pallas as pl
from jax.experimental.pallas import tpu as pltpu

BOARD_H, BOARD_W = 6, 7
PADDED_H, PADDED_W = BOARD_H + 2, BOARD_W + 2          # 8, 9
CELLS = BOARD_H * BOARD_W                              # 42
PADDED_CELLS = PADDED_H * PADDED_W                     # 72
FILTERS = 256
NUM_LAYERS = 8                                         # 4 residual blocks x 2 convs
ACTION_DIM = 7
GUARD = 16                                             # >= max |tap offset| (10), mult of 8
BN_EPS = 1e-5
F32_MIN = float(np.finfo(np.float32).min)


# ----------------------------------------------------------------------------
# Fused forward kernel: grid = (NUM_LAYERS,), one layer's conv weights per step
# ----------------------------------------------------------------------------
def _fused_forward_kernel(
    x_ref,       # (Mp, 2)    f32  input planes in padded-row layout
    mask_ref,    # (Mp, 1)    f32  1 at interior cells, 0 at halo cells
    c1w_ref,     # (2, 256)   f32  conv1 (1x1) weight (cin, cout)
    c1b_ref,     # (1, 256)   f32  conv1 bias
    w_ref,       # (1, 9, 256, 256) bf16  this layer's 3x3 conv taps (cin, cout)
    s_ref,       # (1, 1, 256) f32  folded BN scale
    t_ref,       # (1, 1, 256) f32  folded BN shift (incl. conv bias)
    wpv_ref,     # (256, 3)   bf16 [policy-conv(2) | value-conv(1)] 1x1 weights
    spv_ref,     # (1, 3)     f32  head BN scale
    tpv_ref,     # (1, 3)     f32  head BN shift
    wl0_ref,     # (Mp, 7)    f32  policy Linear(84,7) rows, channel 0
    wl1_ref,     # (Mp, 7)    f32  policy Linear(84,7) rows, channel 1
    sel_ref,     # (B, Mp)    f32  board selector (1 at interior rows of board b)
    plb_ref,     # (1, 7)     f32  policy Linear bias
    vm_ref,      # (B, 7)     f32  valid moves
    w1r_ref,     # (Mp, 256)  f32  value Linear(42,256) rows
    v1b_ref,     # (1, 256)   f32  value Linear(42,256) bias
    w2_ref,      # (256, 1)   f32  value Linear(256,1) weight
    v2b_ref,     # (1, 1)     f32  value Linear(256,1) bias
    pol_ref,     # out (B, 7) f32
    val_ref,     # out (B, 1) f32
    hp_ref,      # scratch (Mp + 2*GUARD, 256) f32  padded activation slab
    res_ref,     # scratch (Mp, 256)           f32  residual
):
    layer = pl.program_id(0)
    mp = res_ref.shape[0]
    mask = mask_ref[...]                                   # (Mp, 1)

    # --- first grid step: conv1 (1x1, Cin=2) on the VPU, zero the guard/halo ---
    @pl.when(layer == 0)
    def _init():
        hp_ref[...] = jnp.zeros(hp_ref.shape, jnp.float32)
        x = x_ref[...]
        w01 = c1w_ref[...]
        h0 = x[:, 0:1] * w01[0:1, :] + x[:, 1:2] * w01[1:2, :] + c1b_ref[...]
        hp_ref[GUARD:GUARD + mp, :] = h0 * mask

    # --- save residual at the first conv of every block ---
    @pl.when(layer % 2 == 0)
    def _save_residual():
        res_ref[...] = hp_ref[GUARD:GUARD + mp, :]

    # --- 3x3 conv as 9 shifted MXU matmuls, bf16 operands, f32 accumulation ---
    acc = jnp.zeros((mp, FILTERS), jnp.float32)
    for t in range(9):
        dy, dx = t // 3, t % 3
        off = (dy - 1) * PADDED_W + (dx - 1)
        tap = hp_ref[GUARD + off:GUARD + off + mp, :].astype(jnp.bfloat16)
        acc = acc + jnp.dot(tap, w_ref[0, t],
                            preferred_element_type=jnp.float32)

    y = acc * s_ref[0] + t_ref[0]                          # folded BatchNorm
    y = y + res_ref[...] * (layer % 2).astype(jnp.float32)  # residual on 2nd conv
    hp_ref[GUARD:GUARD + mp, :] = jnp.maximum(y, 0.0) * mask  # ReLU + re-zero halo

    # --- last grid step: both heads, consuming the VMEM-resident trunk output ---
    @pl.when(layer == NUM_LAYERS - 1)
    def _heads():
        h = hp_ref[GUARD:GUARD + mp, :]
        # fused policy-conv (2 ch) + value-conv (1 ch): (Mp,256)@(256,3) + BN + ReLU
        phv = jnp.dot(h.astype(jnp.bfloat16), wpv_ref[...],
                      preferred_element_type=jnp.float32)
        phv = jnp.maximum(phv * spv_ref[...] + tpv_ref[...], 0.0)
        p0 = phv[:, 0:1]
        p1 = phv[:, 1:2]
        v0 = phv[:, 2:3]
        sel = sel_ref[...]

        # policy: per-cell Linear(84,7) contributions, board-summed on the MXU,
        # then the valid-move mask (== logits + max(log(vm), f32_min)).
        g = p0 * wl0_ref[...] + p1 * wl1_ref[...]          # (Mp, 7)
        logits = jnp.dot(sel, g, preferred_element_type=jnp.float32) + plb_ref[...]
        logits = logits + jnp.where(vm_ref[...] > 0.0, 0.0, F32_MIN)
        pol_ref[...] = logits.astype(pol_ref.dtype)

        # value: Linear(42,256) via per-cell rows + board sum, ReLU, Linear(256,1), tanh
        c = v0 * w1r_ref[...]                              # (Mp, 256)
        v1 = jnp.dot(sel, c, preferred_element_type=jnp.float32) + v1b_ref[...]
        v1 = jnp.maximum(v1, 0.0)
        v2 = jnp.dot(v1, w2_ref[...], preferred_element_type=jnp.float32) + v2b_ref[...]
        val_ref[...] = jnp.tanh(v2).astype(val_ref.dtype)


def _build_forward(batch):
    mp = batch * PADDED_CELLS
    mtot = mp + 2 * GUARD
    F = FILTERS
    c2 = lambda l: (0, 0)

    grid_spec = pltpu.PrefetchScalarGridSpec(
        num_scalar_prefetch=0,
        grid=(NUM_LAYERS,),
        in_specs=[
            pl.BlockSpec((mp, 2), c2),                          # x (padded rows)
            pl.BlockSpec((mp, 1), c2),                          # interior mask
            pl.BlockSpec((2, F), c2),                           # conv1 weight
            pl.BlockSpec((1, F), c2),                           # conv1 bias
            pl.BlockSpec((1, 9, F, F), lambda l: (l, 0, 0, 0)),  # streamed 3x3 weights
            pl.BlockSpec((1, 1, F), lambda l: (l, 0, 0)),        # BN scale
            pl.BlockSpec((1, 1, F), lambda l: (l, 0, 0)),        # BN shift
            pl.BlockSpec((F, 3), c2),                           # head 1x1 weights
            pl.BlockSpec((1, 3), c2),                           # head BN scale
            pl.BlockSpec((1, 3), c2),                           # head BN shift
            pl.BlockSpec((mp, ACTION_DIM), c2),                 # policy rows ch0
            pl.BlockSpec((mp, ACTION_DIM), c2),                 # policy rows ch1
            pl.BlockSpec((batch, mp), c2),                      # board selector
            pl.BlockSpec((1, ACTION_DIM), c2),                  # policy bias
            pl.BlockSpec((batch, ACTION_DIM), c2),              # valid moves
            pl.BlockSpec((mp, F), c2),                          # value L1 rows
            pl.BlockSpec((1, F), c2),                           # value L1 bias
            pl.BlockSpec((F, 1), c2),                           # value L2 weight
            pl.BlockSpec((1, 1), c2),                           # value L2 bias
        ],
        out_specs=[
            pl.BlockSpec((batch, ACTION_DIM), c2),
            pl.BlockSpec((batch, 1), c2),
        ],
        scratch_shapes=[
            pltpu.VMEM((mtot, F), jnp.float32),                 # padded activation slab
            pltpu.VMEM((mp, F), jnp.float32),                   # residual
        ],
    )
    return pl.pallas_call(
        _fused_forward_kernel,
        out_shape=(jax.ShapeDtypeStruct((batch, ACTION_DIM), jnp.float32),
                   jax.ShapeDtypeStruct((batch, 1), jnp.float32)),
        grid_spec=grid_spec,
        compiler_params=pltpu.CompilerParams(
            dimension_semantics=("arbitrary",)),
    )


# ----------------------------------------------------------------------------
# Parameter construction / folding (plain JAX, outside the hot path)
# ----------------------------------------------------------------------------
def fold_bn(bias, gamma, beta, mean, var, eps=BN_EPS):
    """Fold conv bias + eval-mode BatchNorm into per-channel scale/shift."""
    s = gamma / jnp.sqrt(var + eps)
    t = (bias - mean) * s + beta
    return s, t


def _to_padded_rows(table_42xn):
    """(42, N) per-cell table -> (72, N) padded-board-row table (zeros at halo)."""
    t = table_42xn.reshape(BOARD_H, BOARD_W, -1)
    t = jnp.pad(t, ((1, 1), (1, 1), (0, 0)))
    return t.reshape(PADDED_CELLS, -1)


def init_params(key):
    keys = jax.random.split(key, 64)
    it = iter(keys)
    F = FILTERS

    def nrm(shape, fan_in):
        return jax.random.normal(next(it), shape, jnp.float32) / np.sqrt(fan_in)

    def bn_params(n):
        g = 1.0 + 0.1 * jax.random.normal(next(it), (n,), jnp.float32)
        b = 0.1 * jax.random.normal(next(it), (n,), jnp.float32)
        return g, b

    p = {}

    # conv1: Conv2d(2, 256, 1) -- no BN, no activation.
    c1w = nrm((F, 2), 2)                                  # torch (out, in)
    p["c1w"] = c1w.T                                      # (2, F)
    p["c1b"] = nrm((F,), 2).reshape(1, F)

    # trunk: 4 residual blocks x [Conv3x3 + BN + ReLU, Conv3x3 + BN, +res, ReLU]
    w_list, s_list, t_list = [], [], []
    for _ in range(NUM_LAYERS):
        w = nrm((F, F, 3, 3), 9 * F)                      # torch (out, in, kh, kw)
        b = nrm((F,), 9 * F)
        g, beta = bn_params(F)
        s, t = fold_bn(b, g, beta, jnp.zeros((F,)), jnp.ones((F,)))
        w_list.append(jnp.transpose(w, (2, 3, 1, 0)).reshape(9, F, F))  # (tap, cin, cout)
        s_list.append(s)
        t_list.append(t)
    p["w_all"] = jnp.stack(w_list).astype(jnp.bfloat16)   # (8, 9, F, F)
    p["s_all"] = jnp.stack(s_list).reshape(NUM_LAYERS, 1, F)
    p["t_all"] = jnp.stack(t_list).reshape(NUM_LAYERS, 1, F)

    # policy head conv: Conv2d(256,2,1)+BN(2);  value head conv: Conv2d(256,1,1)+BN(1)
    pw = nrm((2, F), F); pb = nrm((2,), F); pg, pbe = bn_params(2)
    ps, pt = fold_bn(pb, pg, pbe, jnp.zeros((2,)), jnp.ones((2,)))
    vw = nrm((1, F), F); vb = nrm((1,), F); vg, vbe = bn_params(1)
    vs, vt = fold_bn(vb, vg, vbe, jnp.zeros((1,)), jnp.ones((1,)))
    p["wpv"] = jnp.concatenate([pw.T, vw.T], axis=1).astype(jnp.bfloat16)  # (F, 3)
    p["spv"] = jnp.concatenate([ps, vs]).reshape(1, 3)
    p["tpv"] = jnp.concatenate([pt, vt]).reshape(1, 3)

    # policy linear: Linear(84, 7), torch NCHW-flatten column order c*42 + h*7 + w.
    p["plin_w_t"] = nrm((ACTION_DIM, 2 * CELLS), 2 * CELLS)
    p["plin_b"] = nrm((ACTION_DIM,), 2 * CELLS).reshape(1, ACTION_DIM)
    # value linears: Linear(42, 256), Linear(256, 1)
    p["vlin1_w_t"] = nrm((256, CELLS), CELLS)
    p["v1b"] = nrm((256,), CELLS).reshape(1, 256)
    p["vlin2_w"] = nrm((1, 256), 256).T                   # (256, 1)
    p["v2b"] = nrm((1,), 256).reshape(1, 1)

    # Per-cell tables in the padded-board (8x9) row layout consumed by the kernel.
    p["wl0_72"] = _to_padded_rows(p["plin_w_t"][:, :CELLS].T)          # (72, 7)
    p["wl1_72"] = _to_padded_rows(p["plin_w_t"][:, CELLS:].T)          # (72, 7)
    p["w1r_72"] = _to_padded_rows(p["vlin1_w_t"].T)                    # (72, 256)
    p["interior_72"] = _to_padded_rows(jnp.ones((CELLS, 1), jnp.float32))  # (72, 1)
    return p


# ----------------------------------------------------------------------------
# Forward pass (matches ActorCriticAgent.forward semantics, eval-mode BN)
# ----------------------------------------------------------------------------
def actor_critic_forward(params, x_nchw, valid_moves):
    """x_nchw: (B, 2, 6, 7) float32; valid_moves: (B, 7) in {0, 1}."""
    batch = x_nchw.shape[0]
    mp = batch * PADDED_CELLS

    x_nhwc = jnp.transpose(x_nchw, (0, 2, 3, 1)).astype(jnp.float32)   # (B,6,7,2)
    x_pad = jnp.pad(x_nhwc, ((0, 0), (1, 1), (1, 1), (0, 0))).reshape(mp, 2)

    mask = jnp.tile(params["interior_72"], (batch, 1))                 # (mp, 1)
    wl0 = jnp.tile(params["wl0_72"], (batch, 1))
    wl1 = jnp.tile(params["wl1_72"], (batch, 1))
    w1r = jnp.tile(params["w1r_72"], (batch, 1))
    board_id = jnp.arange(mp, dtype=jnp.int32) // PADDED_CELLS
    sel = (board_id[None, :] == jnp.arange(batch, dtype=jnp.int32)[:, None])
    sel = sel.astype(jnp.float32) * mask[:, 0][None, :]                # (batch, mp)

    return _build_forward(batch)(
        x_pad, mask, params["c1w"], params["c1b"],
        params["w_all"], params["s_all"], params["t_all"],
        params["wpv"], params["spv"], params["tpv"],
        wl0, wl1, sel, params["plin_b"], valid_moves.astype(jnp.float32),
        w1r, params["v1b"], params["vlin2_w"], params["v2b"])


# ----------------------------------------------------------------------------
# Pure-JAX reference (same folded/bf16 weights) for a correctness check
# ----------------------------------------------------------------------------
def reference_forward(params, x_nchw, valid_moves):
    hi = jax.lax.Precision.HIGHEST
    batch = x_nchw.shape[0]
    x = jnp.transpose(x_nchw, (0, 2, 3, 1)).astype(jnp.float32)        # (B,6,7,2)
    c1w = params["c1w"]
    h = x[..., 0:1] * c1w[0] + x[..., 1:2] * c1w[1] + params["c1b"][0]
    for blk in range(NUM_LAYERS // 2):
        res = h
        for j in range(2):
            layer = 2 * blk + j
            hp = jnp.pad(h, ((0, 0), (1, 1), (1, 1), (0, 0)))
            acc = jnp.zeros_like(h)
            for t in range(9):
                dy, dx = t // 3, t % 3
                tap = hp[:, dy:dy + BOARD_H, dx:dx + BOARD_W, :].astype(jnp.bfloat16)
                acc = acc + jnp.einsum("bhwc,cd->bhwd", tap, params["w_all"][layer, t],
                                       preferred_element_type=jnp.float32)
            y = acc * params["s_all"][layer, 0] + params["t_all"][layer, 0]
            if j == 1:
                y = y + res
            h = jnp.maximum(y, 0.0)
    phv = jnp.einsum("bhwc,cd->bhwd", h.astype(jnp.bfloat16), params["wpv"],
                     preferred_element_type=jnp.float32)
    phv = jnp.maximum(phv * params["spv"][0] + params["tpv"][0], 0.0)
    pflat = jnp.transpose(phv[..., 0:2], (0, 3, 1, 2)).reshape(batch, 2 * CELLS)
    logits = jnp.matmul(pflat, params["plin_w_t"].T, precision=hi) + params["plin_b"]
    logits = logits + jnp.where(valid_moves > 0.0, 0.0, F32_MIN)
    vflat = phv[..., 2].reshape(batch, CELLS)
    v1 = jnp.maximum(jnp.matmul(vflat, params["vlin1_w_t"].T, precision=hi)
                     + params["v1b"], 0.0)
    value = jnp.tanh(jnp.matmul(v1, params["vlin2_w"], precision=hi) + params["v2b"])
    return logits, value


if __name__ == "__main__":
    key = jax.random.PRNGKey(0)
    pkey, bkey = jax.random.split(key)
    params = init_params(pkey)

    B = 2
    # Raw Connect-Four boards in {-1, 0, 1}; preprocess like _preprocess_state.
    board = jax.random.randint(bkey, (B, BOARD_H, BOARD_W), -1, 2)
    x = jnp.stack([(board == 1), (board == -1)], axis=1).astype(jnp.float32)   # (B,2,6,7)
    valid_moves = (board[:, 0, :] == 0).astype(jnp.float32)                    # (B,7)

    fwd = jax.jit(actor_critic_forward)
    policy, value = fwd(params, x, valid_moves)
    jax.block_until_ready((policy, value))

    pol_ref, val_ref = reference_forward(params, x, valid_moves)
    np.testing.assert_allclose(np.asarray(policy), np.asarray(pol_ref),
                               rtol=5e-2, atol=5e-2)
    np.testing.assert_allclose(np.asarray(value), np.asarray(val_ref),
                               rtol=5e-2, atol=5e-2)

    assert policy.shape == (B, ACTION_DIM) and policy.dtype == jnp.float32
    assert value.shape == (B, 1) and value.dtype == jnp.float32
    print("KERNEL_OK")
</pallas_src>

<mosaic_0001>
module attributes {stable_mosaic.version = 11 : i64} {
  func.func @_fused_forward_kernel(%arg0: i32, %arg1: memref<144x2xf32, #tpu.memory_space<vmem>>, %arg2: memref<144x1xf32, #tpu.memory_space<vmem>>, %arg3: memref<2x256xf32, #tpu.memory_space<vmem>>, %arg4: memref<1x256xf32, #tpu.memory_space<vmem>>, %arg5: memref<1x9x256x256xbf16, #tpu.memory_space<vmem>>, %arg6: memref<1x1x256xf32, #tpu.memory_space<vmem>>, %arg7: memref<1x1x256xf32, #tpu.memory_space<vmem>>, %arg8: memref<256x3xbf16, #tpu.memory_space<vmem>>, %arg9: memref<1x3xf32, #tpu.memory_space<vmem>>, %arg10: memref<1x3xf32, #tpu.memory_space<vmem>>, %arg11: memref<144x7xf32, #tpu.memory_space<vmem>>, %arg12: memref<144x7xf32, #tpu.memory_space<vmem>>, %arg13: memref<2x144xf32, #tpu.memory_space<vmem>>, %arg14: memref<1x7xf32, #tpu.memory_space<vmem>>, %arg15: memref<2x7xf32, #tpu.memory_space<vmem>>, %arg16: memref<144x256xf32, #tpu.memory_space<vmem>>, %arg17: memref<1x256xf32, #tpu.memory_space<vmem>>, %arg18: memref<256x1xf32, #tpu.memory_space<vmem>>, %arg19: memref<1x1xf32, #tpu.memory_space<vmem>>, %arg20: memref<2x7xf32, #tpu.memory_space<vmem>>, %arg21: memref<2x1xf32, #tpu.memory_space<vmem>>, %arg22: memref<176x256xf32, #tpu.memory_space<vmem>>, %arg23: memref<144x256xf32, #tpu.memory_space<vmem>>) attributes {dimension_semantics = [#tpu.dimension_semantics<arbitrary>], iteration_bounds = array<i64: 8>, scalar_prefetch = 0 : i64, scratch_operands = 2 : i64, tpu.core_type = #tpu.core_type<tc>, window_params = [{pipeline_mode = #tpu.pipeline_mode<synchronous>, transform_indices = @transform_0, window_bounds = array<i64: 144, 2>}, {pipeline_mode = #tpu.pipeline_mode<synchronous>, transform_indices = @transform_1, window_bounds = array<i64: 144, 1>}, {pipeline_mode = #tpu.pipeline_mode<synchronous>, transform_indices = @transform_2, window_bounds = array<i64: 2, 256>}, {pipeline_mode = #tpu.pipeline_mode<synchronous>, transform_indices = @transform_3, window_bounds = array<i64: 1, 256>}, {transform_indices = @transform_4, window_bounds = array<i64: 1, 9, 256, 256>}, {transform_indices = @transform_5, window_bounds = array<i64: 1, 1, 256>}, {transform_indices = @transform_6, window_bounds = array<i64: 1, 1, 256>}, {pipeline_mode = #tpu.pipeline_mode<synchronous>, transform_indices = @transform_7, window_bounds = array<i64: 256, 3>}, {pipeline_mode = #tpu.pipeline_mode<synchronous>, transform_indices = @transform_8, window_bounds = array<i64: 1, 3>}, {pipeline_mode = #tpu.pipeline_mode<synchronous>, transform_indices = @transform_9, window_bounds = array<i64: 1, 3>}, {pipeline_mode = #tpu.pipeline_mode<synchronous>, transform_indices = @transform_10, window_bounds = array<i64: 144, 7>}, {pipeline_mode = #tpu.pipeline_mode<synchronous>, transform_indices = @transform_11, window_bounds = array<i64: 144, 7>}, {pipeline_mode = #tpu.pipeline_mode<synchronous>, transform_indices = @transform_12, window_bounds = array<i64: 2, 144>}, {pipeline_mode = #tpu.pipeline_mode<synchronous>, transform_indices = @transform_13, window_bounds = array<i64: 1, 7>}, {pipeline_mode = #tpu.pipeline_mode<synchronous>, transform_indices = @transform_14, window_bounds = array<i64: 2, 7>}, {pipeline_mode = #tpu.pipeline_mode<synchronous>, transform_indices = @transform_15, window_bounds = array<i64: 144, 256>}, {pipeline_mode = #tpu.pipeline_mode<synchronous>, transform_indices = @transform_16, window_bounds = array<i64: 1, 256>}, {pipeline_mode = #tpu.pipeline_mode<synchronous>, transform_indices = @transform_17, window_bounds = array<i64: 256, 1>}, {pipeline_mode = #tpu.pipeline_mode<synchronous>, transform_indices = @transform_18, window_bounds = array<i64: 1, 1>}, {pipeline_mode = #tpu.pipeline_mode<synchronous>, transform_indices = @transform_19, window_bounds = array<i64: 2, 7>}, {pipeline_mode = #tpu.pipeline_mode<synchronous>, transform_indices = @transform_20, window_bounds = array<i64: 2, 1>}]} {
    %c0 = arith.constant 0 : index
    %c0_0 = arith.constant 0 : index
    %0 = vector.load %arg2[%c0, %c0_0] : memref<144x1xf32, #tpu.memory_space<vmem>>, vector<144x1xf32>
    %c0_i32 = arith.constant 0 : i32
    %1 = arith.cmpi eq, %arg0, %c0_i32 : i32
    %2 = arith.extui %1 : i1 to i32
    %c0_i32_1 = arith.constant 0 : i32
    %3 = arith.cmpi ne, %2, %c0_i32_1 : i32
    scf.if %3 {
      %cst_75 = arith.constant 0.000000e+00 : f32
      %103 = vector.broadcast %cst_75 : f32 to vector<176x256xf32>
      %c0_76 = arith.constant 0 : index
      %c0_77 = arith.constant 0 : index
      %104 = vector.load %arg22[%c0_76, %c0_77] : memref<176x256xf32, #tpu.memory_space<vmem>>, vector<176x256xf32>
      tpu.vector_store %arg22[%c0_76, %c0_77], %103 {strides = array<i32>} : memref<176x256xf32, #tpu.memory_space<vmem>>, vector<176x256xf32>,
      %c0_78 = arith.constant 0 : index
      %c0_79 = arith.constant 0 : index
      %105 = vector.load %arg1[%c0_78, %c0_79] : memref<144x2xf32, #tpu.memory_space<vmem>>, vector<144x2xf32>
      %c0_80 = arith.constant 0 : index
      %c0_81 = arith.constant 0 : index
      %106 = vector.load %arg3[%c0_80, %c0_81] : memref<2x256xf32, #tpu.memory_space<vmem>>, vector<2x256xf32>
      %107 = vector.extract_strided_slice %105 {offsets = [0, 0], sizes = [144, 1], strides = [1, 1]} : vector<144x2xf32> to vector<144x1xf32>
      %108 = vector.extract_strided_slice %106 {offsets = [0, 0], sizes = [1, 256], strides = [1, 1]} : vector<2x256xf32> to vector<1x256xf32>
      %109 = vector.broadcast %107 : vector<144x1xf32> to vector<144x256xf32>
      %110 = vector.broadcast %108 : vector<1x256xf32> to vector<144x256xf32>
      %111 = arith.mulf %109, %110 : vector<144x256xf32>
      %112 = vector.extract_strided_slice %105 {offsets = [0, 1], sizes = [144, 1], strides = [1, 1]} : vector<144x2xf32> to vector<144x1xf32>
      %113 = vector.extract_strided_slice %106 {offsets = [1, 0], sizes = [1, 256], strides = [1, 1]} : vector<2x256xf32> to vector<1x256xf32>
      %114 = vector.broadcast %112 : vector<144x1xf32> to vector<144x256xf32>
      %115 = vector.broadcast %113 : vector<1x256xf32> to vector<144x256xf32>
      %116 = arith.mulf %114, %115 : vector<144x256xf32>
      %117 = arith.addf %111, %116 : vector<144x256xf32>
      %c0_82 = arith.constant 0 : index
      %c0_83 = arith.constant 0 : index
      %118 = vector.load %arg4[%c0_82, %c0_83] : memref<1x256xf32, #tpu.memory_space<vmem>>, vector<1x256xf32>
      %119 = vector.broadcast %118 : vector<1x256xf32> to vector<144x256xf32>
      %120 = arith.addf %117, %119 : vector<144x256xf32>
      %121 = vector.broadcast %0 : vector<144x1xf32> to vector<144x256xf32>
      %122 = arith.mulf %120, %121 : vector<144x256xf32>
      %c16_84 = arith.constant 16 : index
      %c0_85 = arith.constant 0 : index
      %123 = vector.load %arg22[%c16_84, %c0_85] : memref<176x256xf32, #tpu.memory_space<vmem>>, vector<144x256xf32>
      tpu.vector_store %arg22[%c16_84, %c0_85], %122 {strides = array<i32>} : memref<176x256xf32, #tpu.memory_space<vmem>>, vector<144x256xf32>,
    } else {
    }
    %c2_i32 = arith.constant 2 : i32
    %c0_i32_2 = arith.constant 0 : i32
    %4 = arith.cmpi eq, %c2_i32, %c0_i32_2 : i32
    %c1_i32 = arith.constant 1 : i32
    %5 = arith.select %4, %c1_i32, %c2_i32 : i32
    %6 = arith.remsi %arg0, %5 : i32
    %c0_i32_3 = arith.constant 0 : i32
    %7 = arith.cmpi ne, %6, %c0_i32_3 : i32
    %c0_i32_4 = arith.constant 0 : i32
    %8 = arith.cmpi slt, %6, %c0_i32_4 : i32
    %c0_i32_5 = arith.constant 0 : i32
    %9 = arith.cmpi slt, %5, %c0_i32_5 : i32
    %10 = arith.xori %8, %9 : i1
    %11 = arith.andi %10, %7 : i1
    %12 = arith.addi %6, %5 : i32
    %13 = arith.select %11, %12, %6 : i32
    %c0_i32_6 = arith.constant 0 : i32
    %14 = arith.cmpi eq, %13, %c0_i32_6 : i32
    %15 = arith.extui %14 : i1 to i32
    %c0_i32_7 = arith.constant 0 : i32
    %16 = arith.cmpi ne, %15, %c0_i32_7 : i32
    scf.if %16 {
      %c16_75 = arith.constant 16 : index
      %c0_76 = arith.constant 0 : index
      %103 = vector.load %arg22[%c16_75, %c0_76] : memref<176x256xf32, #tpu.memory_space<vmem>>, vector<144x256xf32>
      %c0_77 = arith.constant 0 : index
      %c0_78 = arith.constant 0 : index
      %104 = vector.load %arg23[%c0_77, %c0_78] : memref<144x256xf32, #tpu.memory_space<vmem>>, vector<144x256xf32>
      tpu.vector_store %arg23[%c0_77, %c0_78], %103 {strides = array<i32>} : memref<144x256xf32, #tpu.memory_space<vmem>>, vector<144x256xf32>,
    } else {
    }
    %cst = arith.constant 0.000000e+00 : f32
    %17 = vector.broadcast %cst : f32 to vector<144x256xf32>
    %c6 = arith.constant 6 : index
    %c0_8 = arith.constant 0 : index
    %18 = vector.load %arg22[%c6, %c0_8] : memref<176x256xf32, #tpu.memory_space<vmem>>, vector<144x256xf32>
    %19 = arith.truncf %18 : vector<144x256xf32> to vector<144x256xbf16>
    %c0_9 = arith.constant 0 : index
    %c0_10 = arith.constant 0 : index
    %c0_11 = arith.constant 0 : index
    %c0_12 = arith.constant 0 : index
    %20 = vector.load %arg5[%c0_9, %c0_10, %c0_11, %c0_12] : memref<1x9x256x256xbf16, #tpu.memory_space<vmem>>, vector<1x1x256x256xbf16>
    %21 = vector.shape_cast %20 : vector<1x1x256x256xbf16> to vector<256x256xbf16>
    %cst_13 = arith.constant dense<0.000000e+00> : vector<144x256xf32>
    %22 = tpu.matmul %19, %21, %cst_13 {dimension_numbers = #tpu.dot_dimension_numbers<[1], [0], [0], [1], [0, 0, 1, 1], [], []>} : vector<144x256xbf16>, vector<256x256xbf16>, vector<144x256xf32> -> vector<144x256xf32>
    %23 = arith.addf %17, %22 : vector<144x256xf32>
    %c7 = arith.constant 7 : index
    %c0_14 = arith.constant 0 : index
    %24 = vector.load %arg22[%c7, %c0_14] : memref<176x256xf32, #tpu.memory_space<vmem>>, vector<144x256xf32>
    %25 = arith.truncf %24 : vector<144x256xf32> to vector<144x256xbf16>
    %c0_15 = arith.constant 0 : index
    %c1 = arith.constant 1 : index
    %c0_16 = arith.constant 0 : index
    %c0_17 = arith.constant 0 : index
    %26 = vector.load %arg5[%c0_15, %c1, %c0_16, %c0_17] : memref<1x9x256x256xbf16, #tpu.memory_space<vmem>>, vector<1x1x256x256xbf16>
    %27 = vector.shape_cast %26 : vector<1x1x256x256xbf16> to vector<256x256xbf16>
    %cst_18 = arith.constant dense<0.000000e+00> : vector<144x256xf32>
    %28 = tpu.matmul %25, %27, %cst_18 {dimension_numbers = #tpu.dot_dimension_numbers<[1], [0], [0], [1], [0, 0, 1, 1], [], []>} : vector<144x256xbf16>, vector<256x256xbf16>, vector<144x256xf32> -> vector<144x256xf32>
    %29 = arith.addf %23, %28 : vector<144x256xf32>
    %c8 = arith.constant 8 : index
    %c0_19 = arith.constant 0 : index
    %30 = vector.load %arg22[%c8, %c0_19] : memref<176x256xf32, #tpu.memory_space<vmem>>, vector<144x256xf32>
    %31 = arith.truncf %30 : vector<144x256xf32> to vector<144x256xbf16>
    %c0_20 = arith.constant 0 : index
    %c2 = arith.constant 2 : index
    %c0_21 = arith.constant 0 : index
    %c0_22 = arith.constant 0 : index
    %32 = vector.load %arg5[%c0_20, %c2, %c0_21, %c0_22] : memref<1x9x256x256xbf16, #tpu.memory_space<vmem>>, vector<1x1x256x256xbf16>
    %33 = vector.shape_cast %32 : vector<1x1x256x256xbf16> to vector<256x256xbf16>
    %cst_23 = arith.constant dense<0.000000e+00> : vector<144x256xf32>
    %34 = tpu.matmul %31, %33, %cst_23 {dimension_numbers = #tpu.dot_dimension_numbers<[1], [0], [0], [1], [0, 0, 1, 1], [], []>} : vector<144x256xbf16>, vector<256x256xbf16>, vector<144x256xf32> -> vector<144x256xf32>
    %35 = arith.addf %29, %34 : vector<144x256xf32>
    %c15 = arith.constant 15 : index
    %c0_24 = arith.constant 0 : index
    %36 = vector.load %arg22[%c15, %c0_24] : memref<176x256xf32, #tpu.memory_space<vmem>>, vector<144x256xf32>
    %37 = arith.truncf %36 : vector<144x256xf32> to vector<144x256xbf16>
    %c0_25 = arith.constant 0 : index
    %c3 = arith.constant 3 : index
    %c0_26 = arith.constant 0 : index
    %c0_27 = arith.constant 0 : index
    %38 = vector.load %arg5[%c0_25, %c3, %c0_26, %c0_27] : memref<1x9x256x256xbf16, #tpu.memory_space<vmem>>, vector<1x1x256x256xbf16>
    %39 = vector.shape_cast %38 : vector<1x1x256x256xbf16> to vector<256x256xbf16>
    %cst_28 = arith.constant dense<0.000000e+00> : vector<144x256xf32>
    %40 = tpu.matmul %37, %39, %cst_28 {dimension_numbers = #tpu.dot_dimension_numbers<[1], [0], [0], [1], [0, 0, 1, 1], [], []>} : vector<144x256xbf16>, vector<256x256xbf16>, vector<144x256xf32> -> vector<144x256xf32>
    %41 = arith.addf %35, %40 : vector<144x256xf32>
    %c16 = arith.constant 16 : index
    %c0_29 = arith.constant 0 : index
    %42 = vector.load %arg22[%c16, %c0_29] : memref<176x256xf32, #tpu.memory_space<vmem>>, vector<144x256xf32>
    %43 = arith.truncf %42 : vector<144x256xf32> to vector<144x256xbf16>
    %c0_30 = arith.constant 0 : index
    %c4 = arith.constant 4 : index
    %c0_31 = arith.constant 0 : index
    %c0_32 = arith.constant 0 : index
    %44 = vector.load %arg5[%c0_30, %c4, %c0_31, %c0_32] : memref<1x9x256x256xbf16, #tpu.memory_space<vmem>>, vector<1x1x256x256xbf16>
    %45 = vector.shape_cast %44 : vector<1x1x256x256xbf16> to vector<256x256xbf16>
    %cst_33 = arith.constant dense<0.000000e+00> : vector<144x256xf32>
    %46 = tpu.matmul %43, %45, %cst_33 {dimension_numbers = #tpu.dot_dimension_numbers<[1], [0], [0], [1], [0, 0, 1, 1], [], []>} : vector<144x256xbf16>, vector<256x256xbf16>, vector<144x256xf32> -> vector<144x256xf32>
    %47 = arith.addf %41, %46 : vector<144x256xf32>
    %c17 = arith.constant 17 : index
    %c0_34 = arith.constant 0 : index
    %48 = vector.load %arg22[%c17, %c0_34] : memref<176x256xf32, #tpu.memory_space<vmem>>, vector<144x256xf32>
    %49 = arith.truncf %48 : vector<144x256xf32> to vector<144x256xbf16>
    %c0_35 = arith.constant 0 : index
    %c5 = arith.constant 5 : index
    %c0_36 = arith.constant 0 : index
    %c0_37 = arith.constant 0 : index
    %50 = vector.load %arg5[%c0_35, %c5, %c0_36, %c0_37] : memref<1x9x256x256xbf16, #tpu.memory_space<vmem>>, vector<1x1x256x256xbf16>
    %51 = vector.shape_cast %50 : vector<1x1x256x256xbf16> to vector<256x256xbf16>
    %cst_38 = arith.constant dense<0.000000e+00> : vector<144x256xf32>
    %52 = tpu.matmul %49, %51, %cst_38 {dimension_numbers = #tpu.dot_dimension_numbers<[1], [0], [0], [1], [0, 0, 1, 1], [], []>} : vector<144x256xbf16>, vector<256x256xbf16>, vector<144x256xf32> -> vector<144x256xf32>
    %53 = arith.addf %47, %52 : vector<144x256xf32>
    %c24 = arith.constant 24 : index
    %c0_39 = arith.constant 0 : index
    %54 = vector.load %arg22[%c24, %c0_39] : memref<176x256xf32, #tpu.memory_space<vmem>>, vector<144x256xf32>
    %55 = arith.truncf %54 : vector<144x256xf32> to vector<144x256xbf16>
    %c0_40 = arith.constant 0 : index
    %c6_41 = arith.constant 6 : index
    %c0_42 = arith.constant 0 : index
    %c0_43 = arith.constant 0 : index
    %56 = vector.load %arg5[%c0_40, %c6_41, %c0_42, %c0_43] : memref<1x9x256x256xbf16, #tpu.memory_space<vmem>>, vector<1x1x256x256xbf16>
    %57 = vector.shape_cast %56 : vector<1x1x256x256xbf16> to vector<256x256xbf16>
    %cst_44 = arith.constant dense<0.000000e+00> : vector<144x256xf32>
    %58 = tpu.matmul %55, %57, %cst_44 {dimension_numbers = #tpu.dot_dimension_numbers<[1], [0], [0], [1], [0, 0, 1, 1], [], []>} : vector<144x256xbf16>, vector<256x256xbf16>, vector<144x256xf32> -> vector<144x256xf32>
    %59 = arith.addf %53, %58 : vector<144x256xf32>
    %c25 = arith.constant 25 : index
    %c0_45 = arith.constant 0 : index
    %60 = vector.load %arg22[%c25, %c0_45] : memref<176x256xf32, #tpu.memory_space<vmem>>, vector<144x256xf32>
    %61 = arith.truncf %60 : vector<144x256xf32> to vector<144x256xbf16>
    %c0_46 = arith.constant 0 : index
    %c7_47 = arith.constant 7 : index
    %c0_48 = arith.constant 0 : index
    %c0_49 = arith.constant 0 : index
    %62 = vector.load %arg5[%c0_46, %c7_47, %c0_48, %c0_49] : memref<1x9x256x256xbf16, #tpu.memory_space<vmem>>, vector<1x1x256x256xbf16>
    %63 = vector.shape_cast %62 : vector<1x1x256x256xbf16> to vector<256x256xbf16>
    %cst_50 = arith.constant dense<0.000000e+00> : vector<144x256xf32>
    %64 = tpu.matmul %61, %63, %cst_50 {dimension_numbers = #tpu.dot_dimension_numbers<[1], [0], [0], [1], [0, 0, 1, 1], [], []>} : vector<144x256xbf16>, vector<256x256xbf16>, vector<144x256xf32> -> vector<144x256xf32>
    %65 = arith.addf %59, %64 : vector<144x256xf32>
    %c26 = arith.constant 26 : index
    %c0_51 = arith.constant 0 : index
    %66 = vector.load %arg22[%c26, %c0_51] : memref<176x256xf32, #tpu.memory_space<vmem>>, vector<144x256xf32>
    %67 = arith.truncf %66 : vector<144x256xf32> to vector<144x256xbf16>
    %c0_52 = arith.constant 0 : index
    %c8_53 = arith.constant 8 : index
    %c0_54 = arith.constant 0 : index
    %c0_55 = arith.constant 0 : index
    %68 = vector.load %arg5[%c0_52, %c8_53, %c0_54, %c0_55] : memref<1x9x256x256xbf16, #tpu.memory_space<vmem>>, vector<1x1x256x256xbf16>
    %69 = vector.shape_cast %68 : vector<1x1x256x256xbf16> to vector<256x256xbf16>
    %cst_56 = arith.constant dense<0.000000e+00> : vector<144x256xf32>
    %70 = tpu.matmul %67, %69, %cst_56 {dimension_numbers = #tpu.dot_dimension_numbers<[1], [0], [0], [1], [0, 0, 1, 1], [], []>} : vector<144x256xbf16>, vector<256x256xbf16>, vector<144x256xf32> -> vector<144x256xf32>
    %71 = arith.addf %65, %70 : vector<144x256xf32>
    %c0_57 = arith.constant 0 : index
    %c0_58 = arith.constant 0 : index
    %c0_59 = arith.constant 0 : index
    %72 = vector.load %arg6[%c0_57, %c0_58, %c0_59] : memref<1x1x256xf32, #tpu.memory_space<vmem>>, vector<1x1x256xf32>
    %73 = vector.shape_cast %72 : vector<1x1x256xf32> to vector<1x256xf32>
    %74 = vector.broadcast %73 : vector<1x256xf32> to vector<144x256xf32>
    %75 = arith.mulf %71, %74 : vector<144x256xf32>
    %c0_60 = arith.constant 0 : index
    %c0_61 = arith.constant 0 : index
    %c0_62 = arith.constant 0 : index
    %76 = vector.load %arg7[%c0_60, %c0_61, %c0_62] : memref<1x1x256xf32, #tpu.memory_space<vmem>>, vector<1x1x256xf32>
    %77 = vector.shape_cast %76 : vector<1x1x256xf32> to vector<1x256xf32>
    %78 = vector.broadcast %77 : vector<1x256xf32> to vector<144x256xf32>
    %79 = arith.addf %75, %78 : vector<144x256xf32>
    %c0_63 = arith.constant 0 : index
    %c0_64 = arith.constant 0 : index
    %80 = vector.load %arg23[%c0_63, %c0_64] : memref<144x256xf32, #tpu.memory_space<vmem>>, vector<144x256xf32>
    %c2_i32_65 = arith.constant 2 : i32
    %c0_i32_66 = arith.constant 0 : i32
    %81 = arith.cmpi eq, %c2_i32_65, %c0_i32_66 : i32
    %c1_i32_67 = arith.constant 1 : i32
    %82 = arith.select %81, %c1_i32_67, %c2_i32_65 : i32
    %83 = arith.remsi %arg0, %82 : i32
    %c0_i32_68 = arith.constant 0 : i32
    %84 = arith.cmpi ne, %83, %c0_i32_68 : i32
    %c0_i32_69 = arith.constant 0 : i32
    %85 = arith.cmpi slt, %83, %c0_i32_69 : i32
    %c0_i32_70 = arith.constant 0 : i32
    %86 = arith.cmpi slt, %82, %c0_i32_70 : i32
    %87 = arith.xori %85, %86 : i1
    %88 = arith.andi %87, %84 : i1
    %89 = arith.addi %83, %82 : i32
    %90 = arith.select %88, %89, %83 : i32
    %91 = arith.sitofp %90 : i32 to f32
    %92 = vector.broadcast %91 : f32 to vector<144x256xf32>
    %93 = arith.mulf %80, %92 : vector<144x256xf32>
    %94 = arith.addf %79, %93 : vector<144x256xf32>
    %cst_71 = arith.constant 0.000000e+00 : f32
    %95 = vector.broadcast %cst_71 : f32 to vector<144x256xf32>
    %96 = arith.maximumf %94, %95 : vector<144x256xf32>
    %97 = vector.broadcast %0 : vector<144x1xf32> to vector<144x256xf32>
    %98 = arith.mulf %96, %97 : vector<144x256xf32>
    %c16_72 = arith.constant 16 : index
    %c0_73 = arith.constant 0 : index
    %99 = vector.load %arg22[%c16_72, %c0_73] : memref<176x256xf32, #tpu.memory_space<vmem>>, vector<144x256xf32>
    tpu.vector_store %arg22[%c16_72, %c0_73], %98 {strides = array<i32>} : memref<176x256xf32, #tpu.memory_space<vmem>>, vector<144x256xf32>,
    %c7_i32 = arith.constant 7 : i32
    %100 = arith.cmpi eq, %arg0, %c7_i32 : i32
    %101 = arith.extui %100 : i1 to i32
    %c0_i32_74 = arith.constant 0 : i32
    %102 = arith.cmpi ne, %101, %c0_i32_74 : i32
    scf.if %102 {
      %c16_75 = arith.constant 16 : index
      %c0_76 = arith.constant 0 : index
      %103 = vector.load %arg22[%c16_75, %c0_76] : memref<176x256xf32, #tpu.memory_space<vmem>>, vector<144x256xf32>
      %104 = arith.truncf %103 : vector<144x256xf32> to vector<144x256xbf16>
      %c0_77 = arith.constant 0 : index
      %c0_78 = arith.constant 0 : index
      %105 = vector.load %arg8[%c0_77, %c0_78] : memref<256x3xbf16, #tpu.memory_space<vmem>>, vector<256x3xbf16>
      %cst_79 = arith.constant dense<0.000000e+00> : vector<144x3xf32>
      %106 = tpu.matmul %104, %105, %cst_79 {dimension_numbers = #tpu.dot_dimension_numbers<[1], [0], [0], [1], [0, 0, 1, 1], [], []>} : vector<144x256xbf16>, vector<256x3xbf16>, vector<144x3xf32> -> vector<144x3xf32>
      %c0_80 = arith.constant 0 : index
      %c0_81 = arith.constant 0 : index
      %107 = vector.load %arg9[%c0_80, %c0_81] : memref<1x3xf32, #tpu.memory_space<vmem>>, vector<1x3xf32>
      %108 = vector.broadcast %107 : vector<1x3xf32> to vector<144x3xf32>
      %109 = arith.mulf %106, %108 : vector<144x3xf32>
      %c0_82 = arith.constant 0 : index
      %c0_83 = arith.constant 0 : index
      %110 = vector.load %arg10[%c0_82, %c0_83] : memref<1x3xf32, #tpu.memory_space<vmem>>, vector<1x3xf32>
      %111 = vector.broadcast %110 : vector<1x3xf32> to vector<144x3xf32>
      %112 = arith.addf %109, %111 : vector<144x3xf32>
      %cst_84 = arith.constant 0.000000e+00 : f32
      %113 = vector.broadcast %cst_84 : f32 to vector<144x3xf32>
      %114 = arith.maximumf %112, %113 : vector<144x3xf32>
      %115 = vector.extract_strided_slice %114 {offsets = [0, 0], sizes = [144, 1], strides = [1, 1]} : vector<144x3xf32> to vector<144x1xf32>
      %116 = vector.extract_strided_slice %114 {offsets = [0, 1], sizes = [144, 1], strides = [1, 1]} : vector<144x3xf32> to vector<144x1xf32>
      %117 = vector.extract_strided_slice %114 {offsets = [0, 2], sizes = [144, 1], strides = [1, 1]} : vector<144x3xf32> to vector<144x1xf32>
      %c0_85 = arith.constant 0 : index
      %c0_86 = arith.constant 0 : index
      %118 = vector.load %arg13[%c0_85, %c0_86] : memref<2x144xf32, #tpu.memory_space<vmem>>, vector<2x144xf32>
      %c0_87 = arith.constant 0 : index
      %c0_88 = arith.constant 0 : index
      %119 = vector.load %arg11[%c0_87, %c0_88] : memref<144x7xf32, #tpu.memory_space<vmem>>, vector<144x7xf32>
      %120 = vector.broadcast %115 : vector<144x1xf32> to vector<144x7xf32>
      %121 = arith.mulf %120, %119 : vector<144x7xf32>
      %c0_89 = arith.constant 0 : index
      %c0_90 = arith.constant 0 : index
      %122 = vector.load %arg12[%c0_89, %c0_90] : memref<144x7xf32, #tpu.memory_space<vmem>>, vector<144x7xf32>
      %123 = vector.broadcast %116 : vector<144x1xf32> to vector<144x7xf32>
      %124 = arith.mulf %123, %122 : vector<144x7xf32>
      %125 = arith.addf %121, %124 : vector<144x7xf32>
      %cst_91 = arith.constant dense<0.000000e+00> : vector<2x7xf32>
      %126 = tpu.matmul %118, %125, %cst_91 {dimension_numbers = #tpu.dot_dimension_numbers<[1], [0], [0], [1], [0, 0, 1, 1], [], []>} : vector<2x144xf32>, vector<144x7xf32>, vector<2x7xf32> -> vector<2x7xf32>
      %c0_92 = arith.constant 0 : index
      %c0_93 = arith.constant 0 : index
      %127 = vector.load %arg14[%c0_92, %c0_93] : memref<1x7xf32, #tpu.memory_space<vmem>>, vector<1x7xf32>
      %128 = vector.broadcast %127 : vector<1x7xf32> to vector<2x7xf32>
      %129 = arith.addf %126, %128 : vector<2x7xf32>
      %c0_94 = arith.constant 0 : index
      %c0_95 = arith.constant 0 : index
      %130 = vector.load %arg15[%c0_94, %c0_95] : memref<2x7xf32, #tpu.memory_space<vmem>>, vector<2x7xf32>
      %cst_96 = arith.constant 0.000000e+00 : f32
      %131 = vector.broadcast %cst_96 : f32 to vector<2x7xf32>
      %132 = arith.cmpf ogt, %130, %131 : vector<2x7xf32>
      %cst_97 = arith.constant 0.000000e+00 : f32
      %cst_98 = arith.constant -3.40282347E+38 : f32
      %133 = vector.broadcast %cst_97 : f32 to vector<2x7xf32>
      %134 = vector.broadcast %cst_98 : f32 to vector<2x7xf32>
      %135 = arith.select %132, %133, %134 : vector<2x7xi1>, vector<2x7xf32>
      %136 = arith.addf %129, %135 : vector<2x7xf32>
      %c0_99 = arith.constant 0 : index
      %c0_100 = arith.constant 0 : index
      %137 = vector.load %arg20[%c0_99, %c0_100] : memref<2x7xf32, #tpu.memory_space<vmem>>, vector<2x7xf32>
      tpu.vector_store %arg20[%c0_99, %c0_100], %136 {strides = array<i32>} : memref<2x7xf32, #tpu.memory_space<vmem>>, vector<2x7xf32>,
      %c0_101 = arith.constant 0 : index
      %c0_102 = arith.constant 0 : index
      %138 = vector.load %arg16[%c0_101, %c0_102] : memref<144x256xf32, #tpu.memory_space<vmem>>, vector<144x256xf32>
      %139 = vector.broadcast %117 : vector<144x1xf32> to vector<144x256xf32>
      %140 = arith.mulf %139, %138 : vector<144x256xf32>
      %cst_103 = arith.constant dense<0.000000e+00> : vector<2x256xf32>
      %141 = tpu.matmul %118, %140, %cst_103 {dimension_numbers = #tpu.dot_dimension_numbers<[1], [0], [0], [1], [0, 0, 1, 1], [], []>} : vector<2x144xf32>, vector<144x256xf32>, vector<2x256xf32> -> vector<2x256xf32>
      %c0_104 = arith.constant 0 : index
      %c0_105 = arith.constant 0 : index
      %142 = vector.load %arg17[%c0_104, %c0_105] : memref<1x256xf32, #tpu.memory_space<vmem>>, vector<1x256xf32>
      %143 = vector.broadcast %142 : vector<1x256xf32> to vector<2x256xf32>
      %144 = arith.addf %141, %143 : vector<2x256xf32>
      %cst_106 = arith.constant 0.000000e+00 : f32
      %145 = vector.broadcast %cst_106 : f32 to vector<2x256xf32>
      %146 = arith.maximumf %144, %145 : vector<2x256xf32>
      %c0_107 = arith.constant 0 : index
      %c0_108 = arith.constant 0 : index
      %147 = vector.load %arg18[%c0_107, %c0_108] : memref<256x1xf32, #tpu.memory_space<vmem>>, vector<256x1xf32>
      %cst_109 = arith.constant dense<0.000000e+00> : vector<2x1xf32>
      %148 = tpu.matmul %146, %147, %cst_109 {dimension_numbers = #tpu.dot_dimension_numbers<[1], [0], [0], [1], [0, 0, 1, 1], [], []>} : vector<2x256xf32>, vector<256x1xf32>, vector<2x1xf32> -> vector<2x1xf32>
      %c0_110 = arith.constant 0 : index
      %c0_111 = arith.constant 0 : index
      %149 = vector.load %arg19[%c0_110, %c0_111] : memref<1x1xf32, #tpu.memory_space<vmem>>, vector<1x1xf32>
      %150 = vector.broadcast %149 : vector<1x1xf32> to vector<2x1xf32>
      %151 = arith.addf %148, %150 : vector<2x1xf32>
      %152 = math.tanh %151 : vector<2x1xf32>
      %c0_112 = arith.constant 0 : index
      %c0_113 = arith.constant 0 : index
      %153 = vector.load %arg21[%c0_112, %c0_113] : memref<2x1xf32, #tpu.memory_space<vmem>>, vector<2x1xf32>
      tpu.vector_store %arg21[%c0_112, %c0_113], %152 {strides = array<i32>} : memref<2x1xf32, #tpu.memory_space<vmem>>, vector<2x1xf32>,
    } else {
    }
    return
  }
  func.func @transform_0(%arg0: i32) -> (i32, i32) {
    %c0_i32 = arith.constant 0 : i32
    %c0_i32_0 = arith.constant 0 : i32
    %c0_i32_1 = arith.constant 0 : i32
    return %c0_i32, %c0_i32_0 : i32, i32
  }
  func.func @transform_1(%arg0: i32) -> (i32, i32) {
    %c0_i32 = arith.constant 0 : i32
    %c0_i32_0 = arith.constant 0 : i32
    %c0_i32_1 = arith.constant 0 : i32
    return %c0_i32, %c0_i32_0 : i32, i32
  }
  func.func @transform_2(%arg0: i32) -> (i32, i32) {
    %c0_i32 = arith.constant 0 : i32
    %c0_i32_0 = arith.constant 0 : i32
    %c0_i32_1 = arith.constant 0 : i32
    return %c0_i32, %c0_i32_0 : i32, i32
  }
  func.func @transform_3(%arg0: i32) -> (i32, i32) {
    %c0_i32 = arith.constant 0 : i32
    %c0_i32_0 = arith.constant 0 : i32
    %c0_i32_1 = arith.constant 0 : i32
    return %c0_i32, %c0_i32_0 : i32, i32
  }
  func.func @transform_4(%arg0: i32) -> (i32, i32, i32, i32) {
    %c0_i32 = arith.constant 0 : i32
    %c0_i32_0 = arith.constant 0 : i32
    %c0_i32_1 = arith.constant 0 : i32
    %c0_i32_2 = arith.constant 0 : i32
    return %arg0, %c0_i32, %c0_i32_0, %c0_i32_1 : i32, i32, i32, i32
  }
  func.func @transform_5(%arg0: i32) -> (i32, i32, i32) {
    %c0_i32 = arith.constant 0 : i32
    %c0_i32_0 = arith.constant 0 : i32
    %c0_i32_1 = arith.constant 0 : i32
    return %arg0, %c0_i32, %c0_i32_0 : i32, i32, i32
  }
  func.func @transform_6(%arg0: i32) -> (i32, i32, i32) {
    %c0_i32 = arith.constant 0 : i32
    %c0_i32_0 = arith.constant 0 : i32
    %c0_i32_1 = arith.constant 0 : i32
    return %arg0, %c0_i32, %c0_i32_0 : i32, i32, i32
  }
  func.func @transform_7(%arg0: i32) -> (i32, i32) {
    %c0_i32 = arith.constant 0 : i32
    %c0_i32_0 = arith.constant 0 : i32
    %c0_i32_1 = arith.constant 0 : i32
    return %c0_i32, %c0_i32_0 : i32, i32
  }
  func.func @transform_8(%arg0: i32) -> (i32, i32) {
    %c0_i32 = arith.constant 0 : i32
    %c0_i32_0 = arith.constant 0 : i32
    %c0_i32_1 = arith.constant 0 : i32
    return %c0_i32, %c0_i32_0 : i32, i32
  }
  func.func @transform_9(%arg0: i32) -> (i32, i32) {
    %c0_i32 = arith.constant 0 : i32
    %c0_i32_0 = arith.constant 0 : i32
    %c0_i32_1 = arith.constant 0 : i32
    return %c0_i32, %c0_i32_0 : i32, i32
  }
  func.func @transform_10(%arg0: i32) -> (i32, i32) {
    %c0_i32 = arith.constant 0 : i32
    %c0_i32_0 = arith.constant 0 : i32
    %c0_i32_1 = arith.constant 0 : i32
    return %c0_i32, %c0_i32_0 : i32, i32
  }
  func.func @transform_11(%arg0: i32) -> (i32, i32) {
    %c0_i32 = arith.constant 0 : i32
    %c0_i32_0 = arith.constant 0 : i32
    %c0_i32_1 = arith.constant 0 : i32
    return %c0_i32, %c0_i32_0 : i32, i32
  }
  func.func @transform_12(%arg0: i32) -> (i32, i32) {
    %c0_i32 = arith.constant 0 : i32
    %c0_i32_0 = arith.constant 0 : i32
    %c0_i32_1 = arith.constant 0 : i32
    return %c0_i32, %c0_i32_0 : i32, i32
  }
  func.func @transform_13(%arg0: i32) -> (i32, i32) {
    %c0_i32 = arith.constant 0 : i32
    %c0_i32_0 = arith.constant 0 : i32
    %c0_i32_1 = arith.constant 0 : i32
    return %c0_i32, %c0_i32_0 : i32, i32
  }
  func.func @transform_14(%arg0: i32) -> (i32, i32) {
    %c0_i32 = arith.constant 0 : i32
    %c0_i32_0 = arith.constant 0 : i32
    %c0_i32_1 = arith.constant 0 : i32
    return %c0_i32, %c0_i32_0 : i32, i32
  }
  func.func @transform_15(%arg0: i32) -> (i32, i32) {
    %c0_i32 = arith.constant 0 : i32
    %c0_i32_0 = arith.constant 0 : i32
    %c0_i32_1 = arith.constant 0 : i32
    return %c0_i32, %c0_i32_0 : i32, i32
  }
  func.func @transform_16(%arg0: i32) -> (i32, i32) {
    %c0_i32 = arith.constant 0 : i32
    %c0_i32_0 = arith.constant 0 : i32
    %c0_i32_1 = arith.constant 0 : i32
    return %c0_i32, %c0_i32_0 : i32, i32
  }
  func.func @transform_17(%arg0: i32) -> (i32, i32) {
    %c0_i32 = arith.constant 0 : i32
    %c0_i32_0 = arith.constant 0 : i32
    %c0_i32_1 = arith.constant 0 : i32
    return %c0_i32, %c0_i32_0 : i32, i32
  }
  func.func @transform_18(%arg0: i32) -> (i32, i32) {
    %c0_i32 = arith.constant 0 : i32
    %c0_i32_0 = arith.constant 0 : i32
    %c0_i32_1 = arith.constant 0 : i32
    return %c0_i32, %c0_i32_0 : i32, i32
  }
  func.func @transform_19(%arg0: i32) -> (i32, i32) {
    %c0_i32 = arith.constant 0 : i32
    %c0_i32_0 = arith.constant 0 : i32
    %c0_i32_1 = arith.constant 0 : i32
    return %c0_i32, %c0_i32_0 : i32, i32
  }
  func.func @transform_20(%arg0: i32) -> (i32, i32) {
    %c0_i32 = arith.constant 0 : i32
    %c0_i32_0 = arith.constant 0 : i32
    %c0_i32_1 = arith.constant 0 : i32
    return %c0_i32, %c0_i32_0 : i32, i32
  }
}

</mosaic_0001>

<llo_original>
// kernel: actor_critic_forward.1
$region0: #{actor_critic_forward.1}
  #allocation0 [shape = 'u32[]', space=smem, size = 0x4, offset = 0x4, fixed_abs, tag = 'smem constant byte address 0x4 - core index']
  #allocation1 [shape = 'u32[72,128]{1,0:T(1,128)}', space=vmem, size = 0x9000, scoped, tag = 'internal scratch']
  #allocation2 [shape = 'f32[176,256]{1,0:T(8,128)}', space=vmem, size = 0x2c000, scoped, tag = 'scratch operand']
  #allocation3 [shape = 'f32[144,256]{1,0:T(8,128)}', space=vmem, size = 0x24000, scoped, tag = 'scratch operand']
  #allocation4 [shape = 'f32[1,1]{1,0:T(1,128)S(1)}', space=vmem, size = 0x200, scoped, tag = 'scoped memory for actor_critic_forward.1']
  %s0 = inlined_call_operand.vmem [shape: f32[144,2], index: 0, kind: input, shape index: {}]
  %s1 = inlined_call_operand.vmem [shape: f32[144,1], index: 1, kind: input, shape index: {}]
  %s2 = inlined_call_operand.hbm [shape: f32[2,256], index: 2, kind: input, shape index: {}]
  %s3 = inlined_call_operand.hbm [shape: f32[1,256], index: 3, kind: input, shape index: {}]
  %s4 = inlined_call_operand.hbm [shape: bf16[8,9,256,256], index: 4, kind: input, shape index: {}]
  %s5 = inlined_call_operand.hbm [shape: f32[8,1,256], index: 5, kind: input, shape index: {}]
  %s6 = inlined_call_operand.hbm [shape: f32[8,1,256], index: 6, kind: input, shape index: {}]
  %s7 = inlined_call_operand.vmem [shape: bf16[256,3], index: 7, kind: input, shape index: {}]
  %s8 = inlined_call_operand.hbm [shape: f32[1,3], index: 8, kind: input, shape index: {}]
  %s9 = inlined_call_operand.hbm [shape: f32[1,3], index: 9, kind: input, shape index: {}]
  %s10 = inlined_call_operand.vmem [shape: f32[144,7], index: 10, kind: input, shape index: {}]
  %s11 = inlined_call_operand.vmem [shape: f32[144,7], index: 11, kind: input, shape index: {}]
  %s12 = inlined_call_operand.vmem [shape: f32[2,144], index: 12, kind: input, shape index: {}]
  %s13 = inlined_call_operand.hbm [shape: f32[1,7], index: 13, kind: input, shape index: {}]
  %s14 = inlined_call_operand.hbm [shape: f32[2,7], index: 14, kind: input, shape index: {}]
  %s15 = inlined_call_operand.vmem [shape: f32[144,256], index: 15, kind: input, shape index: {}]
  %s16 = inlined_call_operand.hbm [shape: f32[1,256], index: 16, kind: input, shape index: {}]
  %s17 = inlined_call_operand.vmem [shape: f32[256,1], index: 17, kind: input, shape index: {}]
  %s18 = inlined_call_operand.<no memory space> [shape: f32[1,1], index: 18, kind: input, shape index: {}]
  %s19 = inlined_call_operand.hbm [shape: f32[2,7], index: 19, kind: output, shape index: {0}]
  %s20 = inlined_call_operand.vmem [shape: f32[2,1], index: 20, kind: output, shape index: {1}]
  %21 = xla_tuple %s19, %s20
  %s22 = sld [smem:[#allocation0]]
  $region169: #{actor_critic_forward.1} parent=0
    _
  %s24 = ssub.s32 1, %s22
  %s25 = scalar_select 0, %s24, %s22
  %v26 = vstv %s18
  %27 = vst [vmem:[#allocation4] sm:$0x1] %v26
  $region1: #{actor_critic_forward.1} parent=0
    #allocation5 [shape = 'u8[2048]{0}', space=vmem, size = 0x800, scoped, tag = 'input window, operand 2, single buffered']
    #allocation6 [shape = 's32[2]{0}', space=sflag, size = 0x8, scoped, tag = 'scoped memory for actor_critic_forward.1']
    #allocation7 [shape = 's32[2]{0}', space=sflag, size = 0x8, scoped, tag = 'scoped memory for actor_critic_forward.1']
    #allocation8 [shape = 'u8[1024]{0}', space=vmem, size = 0x400, scoped, tag = 'input window, operand 3, single buffered']
    #allocation9 [shape = 's32[1]{0}', space=sflag, size = 0x4, scoped, tag = 'scoped memory for actor_critic_forward.1']
    #allocation10 [shape = 'u8[2359296]{0}', space=vmem, size = 0x240000, scoped, tag = 'input window, operand 4']
    #allocation11 [shape = 'u8[2048]{0}', space=vmem, size = 0x800, scoped, tag = 'input window, operand 5']
    #allocation12 [shape = 'u8[2048]{0}', space=vmem, size = 0x800, scoped, tag = 'input window, operand 6']
    #allocation13 [shape = 'u8[512]{0}', space=vmem, size = 0x400, scoped, tag = 'input window, operand 8, single buffered']
    #allocation14 [shape = 'u8[512]{0}', space=vmem, size = 0x400, scoped, tag = 'input window, operand 9, single buffered']
    #allocation15 [shape = 's32[1]{0}', space=sflag, size = 0x4, scoped, tag = 'scoped memory for actor_critic_forward.1']
    #allocation16 [shape = 'u8[512]{0}', space=vmem, size = 0x400, scoped, tag = 'input window, operand 13, single buffered']
    #allocation17 [shape = 'u8[1024]{0}', space=vmem, size = 0x400, scoped, tag = 'input window, operand 14, single buffered']
    #allocation18 [shape = 's32[1]{0}', space=sflag, size = 0x4, scoped, tag = 'scoped memory for actor_critic_forward.1']
    #allocation19 [shape = 'u8[1024]{0}', space=vmem, size = 0x400, scoped, tag = 'input window, operand 16, single buffered']
    #allocation20 [shape = 'u8[1024]{0}', space=vmem, size = 0x400, scoped, tag = 'output window, operand 0, single buffered']
    %28 = vsyncpa [#allocation6], 0
    %29 = vsyncpa [#allocation9], 0
    %30 = vsyncpa [#allocation15], 0
    %31 = vsyncpa [#allocation18], 0
    %32 = vsyncpa [#allocation7], 0
    loop: start=0, step=1, limit=10
    $region2: #{actor_critic_forward.1} parent=1 // loop_pre_header
      _
    $region3: #{actor_critic_forward.1} parent=1 // loop_header
      %s34 = sphi 0, %s38
      %p35 = scmp.ge.s32.totalorder %s34, 10
      %s42 = sphi 0, %s42
      %s44 = sphi 0, %s42
      %s45 = sphi 0, %s44
      %s59 = sphi 0, %s45
      %s63 = sphi 0, %s63
      %s65 = sphi 0, %s63
      %s66 = sphi 0, %s65
      %s80 = sphi 0, %s66
      %s84 = sphi 0, %s84
      %s86 = sphi 0, %s84
      %s87 = sphi 0, %s86
      %s101 = sphi 0, %s87
      %s105 = sphi 0, %s105
      %s107 = sphi 0, %s105
      %s108 = sphi 0, %s107
      %s122 = sphi 0, %s108
      %s128 = sphi 0, %s130
      %s131 = sphi 0, %s128
      %s132 = sphi 0, %s131
      %s148 = sphi 0, %s132
      %s154 = sphi 0, %s156
      %s157 = sphi 0, %s154
      %s158 = sphi 0, %s157
      %s174 = sphi 0, %s158
      %s180 = sphi 0, %s182
      %s183 = sphi 0, %s180
      %s184 = sphi 0, %s183
      %s200 = sphi 0, %s184
      %s204 = sphi 0, %s204
      %s206 = sphi 0, %s204
      %s207 = sphi 0, %s206
      %s221 = sphi 0, %s207
      %s225 = sphi 0, %s225
      %s227 = sphi 0, %s225
      %s228 = sphi 0, %s227
      %s242 = sphi 0, %s228
      %s246 = sphi 0, %s246
      %s248 = sphi 0, %s246
      %s249 = sphi 0, %s248
      %s263 = sphi 0, %s249
      %s267 = sphi 0, %s267
      %s269 = sphi 0, %s267
      %s270 = sphi 0, %s269
      %s284 = sphi 0, %s270
      %s288 = sphi 0, %s288
      %s290 = sphi 0, %s288
      %s291 = sphi 0, %s290
      %s305 = sphi 0, %s291
      %s309 = sphi 0, %s309
      %s311 = sphi 0, %s309
      %s312 = sphi 0, %s311
      %s326 = sphi 0, %s312
      %s330 = sphi 0, %s330
      %s332 = sphi 0, %s330
      %s333 = sphi 0, %s332
      %s347 = sphi 0, %s333
      %s351 = sphi 0, %s351
      %s353 = sphi 0, %s351
      %s354 = sphi 0, %s353
      %s368 = sphi 0, %s354
      %s372 = sphi 0, %s372
      %s374 = sphi 0, %s372
      %s375 = sphi 0, %s374
      %s389 = sphi 0, %s375
      %s393 = sphi 0, %s393
      %s395 = sphi 0, %s393
      %s396 = sphi 0, %s395
      %s410 = sphi 0, %s396
      %s414 = sphi 0, %s414
      %s416 = sphi 0, %s414
      %s417 = sphi 0, %s416
      %s431 = sphi 0, %s417
      %s435 = sphi 0, %s435
      %s437 = sphi 0, %s435
      %s438 = sphi 0, %s437
      %s452 = sphi 0, %s438
      %s456 = sphi 0, %s456
      %s458 = sphi 0, %s456
      %s459 = sphi 0, %s458
      %s473 = sphi 0, %s459
      %s477 = sphi 0, %s477
      %s479 = sphi 0, %s477
      %s480 = sphi 0, %s479
      %s494 = sphi 0, %s480
    $region4: #{actor_critic_forward.1} parent=1 // loop_header_branch
      %37 = sbr.rel (%p35) target = $region8
    $region5: #{actor_critic_forward.1} parent=1 // loop_body
      %s39 = ssub.s32 %s34, 1
      %s40 = ssub.s32 %s34, 2
      %s41 = sadd.s32 %s34, 1
      %s43 = sadd.s32 %s42, 1
      %p46 = scmp.eq.s32.totalorder %s34, 7
      %p47 = scmp.ne.s32.totalorder %s42, %s44
      %p48 = scmp.eq.s32.totalorder %s34, 0
      %p49 = por %p47, %p48
      %p50 = scmp.ne.s32.totalorder %s42, %s44
      %p51 = scmp.eq.s32.totalorder %s39, 7
      %p52 = por %p50, %p51
      %p53 = scmp.ne.s32.totalorder %s44, %s45
      %p54 = scmp.eq.s32.totalorder %s39, 0
      %p55 = por %p53, %p54
      %p56 = scmp.ne.s32.totalorder %s44, %s45
      %p57 = scmp.eq.s32.totalorder %s40, 7
      %p58 = por %p56, %p57
      %p60 = scmp.ne.s32.totalorder %s45, %s59
      %p61 = scmp.eq.s32.totalorder %s40, 0
      %p62 = por %p60, %p61
      %s64 = sadd.s32 %s63, 1
      %p67 = scmp.eq.s32.totalorder %s34, 7
      %p68 = scmp.ne.s32.totalorder %s63, %s65
      %p69 = scmp.eq.s32.totalorder %s34, 0
      %p70 = por %p68, %p69
      %p71 = scmp.ne.s32.totalorder %s63, %s65
      %p72 = scmp.eq.s32.totalorder %s39, 7
      %p73 = por %p71, %p72
      %p74 = scmp.ne.s32.totalorder %s65, %s66
      %p75 = scmp.eq.s32.totalorder %s39, 0
      %p76 = por %p74, %p75
      %p77 = scmp.ne.s32.totalorder %s65, %s66
      %p78 = scmp.eq.s32.totalorder %s40, 7
      %p79 = por %p77, %p78
      %p81 = scmp.ne.s32.totalorder %s66, %s80
      %p82 = scmp.eq.s32.totalorder %s40, 0
      %p83 = por %p81, %p82
      %s85 = sadd.s32 %s84, 1
      %p88 = scmp.eq.s32.totalorder %s34, 7
      %p89 = scmp.ne.s32.totalorder %s84, %s86
      %p90 = scmp.eq.s32.totalorder %s34, 0
      %p91 = por %p89, %p90
      %p92 = scmp.ne.s32.totalorder %s84, %s86
      %p93 = scmp.eq.s32.totalorder %s39, 7
      %p94 = por %p92, %p93
      %p95 = scmp.ne.s32.totalorder %s86, %s87
      %p96 = scmp.eq.s32.totalorder %s39, 0
      %p97 = por %p95, %p96
      %p98 = scmp.ne.s32.totalorder %s86, %s87
      %p99 = scmp.eq.s32.totalorder %s40, 7
      %p100 = por %p98, %p99
      %p102 = scmp.ne.s32.totalorder %s87, %s101
      %p103 = scmp.eq.s32.totalorder %s40, 0
      %p104 = por %p102, %p103
      %s106 = sadd.s32 %s105, 1
      %p109 = scmp.eq.s32.totalorder %s34, 7
      %p110 = scmp.ne.s32.totalorder %s105, %s107
      %p111 = scmp.eq.s32.totalorder %s34, 0
      %p112 = por %p110, %p111
      %p113 = scmp.ne.s32.totalorder %s105, %s107
      %p114 = scmp.eq.s32.totalorder %s39, 7
      %p115 = por %p113, %p114
      %p116 = scmp.ne.s32.totalorder %s107, %s108
      %p117 = scmp.eq.s32.totalorder %s39, 0
      %p118 = por %p116, %p117
      %p119 = scmp.ne.s32.totalorder %s107, %s108
      %p120 = scmp.eq.s32.totalorder %s40, 7
      %p121 = por %p119, %p120
      %p123 = scmp.ne.s32.totalorder %s108, %s122
      %p124 = scmp.eq.s32.totalorder %s40, 0
      %p125 = por %p123, %p124
      %s126 = ssub.s32 %s34, %s41
      %p127 = scmp.eq.s32.totalorder %s126, 0
      %s129 = sadd.s32 %s128, 1
      %s130 = scalar_select %p127, %s128, %s129
      %p133 = pneg %p127
      %p134 = scmp.eq.s32.totalorder %s34, 7
      %p135 = por %p133, %p134
      %p136 = scmp.ne.s32.totalorder %s128, %s131
      %p137 = scmp.eq.s32.totalorder %s34, 0
      %p138 = por %p136, %p137
      %p139 = scmp.ne.s32.totalorder %s128, %s131
      %p140 = scmp.eq.s32.totalorder %s39, 7
      %p141 = por %p139, %p140
      %p142 = scmp.ne.s32.totalorder %s131, %s132
      %p143 = scmp.eq.s32.totalorder %s39, 0
      %p144 = por %p142, %p143
      %p145 = scmp.ne.s32.totalorder %s131, %s132
      %p146 = scmp.eq.s32.totalorder %s40, 7
      %p147 = por %p145, %p146
      %p149 = scmp.ne.s32.totalorder %s132, %s148
      %p150 = scmp.eq.s32.totalorder %s40, 0
      %p151 = por %p149, %p150
      %s152 = ssub.s32 %s34, %s41
      %p153 = scmp.eq.s32.totalorder %s152, 0
      %s155 = sadd.s32 %s154, 1
      %s156 = scalar_select %p153, %s154, %s155
      %p159 = pneg %p153
      %p160 = scmp.eq.s32.totalorder %s34, 7
      %p161 = por %p159, %p160
      %p162 = scmp.ne.s32.totalorder %s154, %s157
      %p163 = scmp.eq.s32.totalorder %s34, 0
      %p164 = por %p162, %p163
      %p165 = scmp.ne.s32.totalorder %s154, %s157
      %p166 = scmp.eq.s32.totalorder %s39, 7
      %p167 = por %p165, %p166
      %p168 = scmp.ne.s32.totalorder %s157, %s158
      %p169 = scmp.eq.s32.totalorder %s39, 0
      %p170 = por %p168, %p169
      %p171 = scmp.ne.s32.totalorder %s157, %s158
      %p172 = scmp.eq.s32.totalorder %s40, 7
      %p173 = por %p171, %p172
      %p175 = scmp.ne.s32.totalorder %s158, %s174
      %p176 = scmp.eq.s32.totalorder %s40, 0
      %p177 = por %p175, %p176
      %s178 = ssub.s32 %s34, %s41
      %p179 = scmp.eq.s32.totalorder %s178, 0
      %s181 = sadd.s32 %s180, 1
      %s182 = scalar_select %p179, %s180, %s181
      %p185 = pneg %p179
      %p186 = scmp.eq.s32.totalorder %s34, 7
      %p187 = por %p185, %p186
      %p188 = scmp.ne.s32.totalorder %s180, %s183
      %p189 = scmp.eq.s32.totalorder %s34, 0
      %p190 = por %p188, %p189
      %p191 = scmp.ne.s32.totalorder %s180, %s183
      %p192 = scmp.eq.s32.totalorder %s39, 7
      %p193 = por %p191, %p192
      %p194 = scmp.ne.s32.totalorder %s183, %s184
      %p195 = scmp.eq.s32.totalorder %s39, 0
      %p196 = por %p194, %p195
      %p197 = scmp.ne.s32.totalorder %s183, %s184
      %p198 = scmp.eq.s32.totalorder %s40, 7
      %p199 = por %p197, %p198
      %p201 = scmp.ne.s32.totalorder %s184, %s200
      %p202 = scmp.eq.s32.totalorder %s40, 0
      %p203 = por %p201, %p202
      %s205 = sadd.s32 %s204, 1
      %p208 = scmp.eq.s32.totalorder %s34, 7
      %p209 = scmp.ne.s32.totalorder %s204, %s206
      %p210 = scmp.eq.s32.totalorder %s34, 0
      %p211 = por %p209, %p210
      %p212 = scmp.ne.s32.totalorder %s204, %s206
      %p213 = scmp.eq.s32.totalorder %s39, 7
      %p214 = por %p212, %p213
      %p215 = scmp.ne.s32.totalorder %s206, %s207
      %p216 = scmp.eq.s32.totalorder %s39, 0
      %p217 = por %p215, %p216
      %p218 = scmp.ne.s32.totalorder %s206, %s207
      %p219 = scmp.eq.s32.totalorder %s40, 7
      %p220 = por %p218, %p219
      %p222 = scmp.ne.s32.totalorder %s207, %s221
      %p223 = scmp.eq.s32.totalorder %s40, 0
      %p224 = por %p222, %p223
      %s226 = sadd.s32 %s225, 1
      %p229 = scmp.eq.s32.totalorder %s34, 7
      %p230 = scmp.ne.s32.totalorder %s225, %s227
      %p231 = scmp.eq.s32.totalorder %s34, 0
      %p232 = por %p230, %p231
      %p233 = scmp.ne.s32.totalorder %s225, %s227
      %p234 = scmp.eq.s32.totalorder %s39, 7
      %p235 = por %p233, %p234
      %p236 = scmp.ne.s32.totalorder %s227, %s228
      %p237 = scmp.eq.s32.totalorder %s39, 0
      %p238 = por %p236, %p237
      %p239 = scmp.ne.s32.totalorder %s227, %s228
      %p240 = scmp.eq.s32.totalorder %s40, 7
      %p241 = por %p239, %p240
      %p243 = scmp.ne.s32.totalorder %s228, %s242
      %p244 = scmp.eq.s32.totalorder %s40, 0
      %p245 = por %p243, %p244
      %s247 = sadd.s32 %s246, 1
      %p250 = scmp.eq.s32.totalorder %s34, 7
      %p251 = scmp.ne.s32.totalorder %s246, %s248
      %p252 = scmp.eq.s32.totalorder %s34, 0
      %p253 = por %p251, %p252
      %p254 = scmp.ne.s32.totalorder %s246, %s248
      %p255 = scmp.eq.s32.totalorder %s39, 7
      %p256 = por %p254, %p255
      %p257 = scmp.ne.s32.totalorder %s248, %s249
      %p258 = scmp.eq.s32.totalorder %s39, 0
      %p259 = por %p257, %p258
      %p260 = scmp.ne.s32.totalorder %s248, %s249
      %p261 = scmp.eq.s32.totalorder %s40, 7
      %p262 = por %p260, %p261
      %p264 = scmp.ne.s32.totalorder %s249, %s263
      %p265 = scmp.eq.s32.totalorder %s40, 0
      %p266 = por %p264, %p265
      %s268 = sadd.s32 %s267, 1
      %p271 = scmp.eq.s32.totalorder %s34, 7
      %p272 = scmp.ne.s32.totalorder %s267, %s269
      %p273 = scmp.eq.s32.totalorder %s34, 0
      %p274 = por %p272, %p273
      %p275 = scmp.ne.s32.totalorder %s267, %s269
      %p276 = scmp.eq.s32.totalorder %s39, 7
      %p277 = por %p275, %p276
      %p278 = scmp.ne.s32.totalorder %s269, %s270
      %p279 = scmp.eq.s32.totalorder %s39, 0
      %p280 = por %p278, %p279
      %p281 = scmp.ne.s32.totalorder %s269, %s270
      %p282 = scmp.eq.s32.totalorder %s40, 7
      %p283 = por %p281, %p282
      %p285 = scmp.ne.s32.totalorder %s270, %s284
      %p286 = scmp.eq.s32.totalorder %s40, 0
      %p287 = por %p285, %p286
      %s289 = sadd.s32 %s288, 1
      %p292 = scmp.eq.s32.totalorder %s34, 7
      %p293 = scmp.ne.s32.totalorder %s288, %s290
      %p294 = scmp.eq.s32.totalorder %s34, 0
      %p295 = por %p293, %p294
      %p296 = scmp.ne.s32.totalorder %s288, %s290
      %p297 = scmp.eq.s32.totalorder %s39, 7
      %p298 = por %p296, %p297
      %p299 = scmp.ne.s32.totalorder %s290, %s291
      %p300 = scmp.eq.s32.totalorder %s39, 0
      %p301 = por %p299, %p300
      %p302 = scmp.ne.s32.totalorder %s290, %s291
      %p303 = scmp.eq.s32.totalorder %s40, 7
      %p304 = por %p302, %p303
      %p306 = scmp.ne.s32.totalorder %s291, %s305
      %p307 = scmp.eq.s32.totalorder %s40, 0
      %p308 = por %p306, %p307
      %s310 = sadd.s32 %s309, 1
      %p313 = scmp.eq.s32.totalorder %s34, 7
      %p314 = scmp.ne.s32.totalorder %s309, %s311
      %p315 = scmp.eq.s32.totalorder %s34, 0
      %p316 = por %p314, %p315
      %p317 = scmp.ne.s32.totalorder %s309, %s311
      %p318 = scmp.eq.s32.totalorder %s39, 7
      %p319 = por %p317, %p318
      %p320 = scmp.ne.s32.totalorder %s311, %s312
      %p321 = scmp.eq.s32.totalorder %s39, 0
      %p322 = por %p320, %p321
      %p323 = scmp.ne.s32.totalorder %s311, %s312
      %p324 = scmp.eq.s32.totalorder %s40, 7
      %p325 = por %p323, %p324
      %p327 = scmp.ne.s32.totalorder %s312, %s326
      %p328 = scmp.eq.s32.totalorder %s40, 0
      %p329 = por %p327, %p328
      %s331 = sadd.s32 %s330, 1
      %p334 = scmp.eq.s32.totalorder %s34, 7
      %p335 = scmp.ne.s32.totalorder %s330, %s332
      %p336 = scmp.eq.s32.totalorder %s34, 0
      %p337 = por %p335, %p336
      %p338 = scmp.ne.s32.totalorder %s330, %s332
      %p339 = scmp.eq.s32.totalorder %s39, 7
      %p340 = por %p338, %p339
      %p341 = scmp.ne.s32.totalorder %s332, %s333
      %p342 = scmp.eq.s32.totalorder %s39, 0
      %p343 = por %p341, %p342
      %p344 = scmp.ne.s32.totalorder %s332, %s333
      %p345 = scmp.eq.s32.totalorder %s40, 7
      %p346 = por %p344, %p345
      %p348 = scmp.ne.s32.totalorder %s333, %s347
      %p349 = scmp.eq.s32.totalorder %s40, 0
      %p350 = por %p348, %p349
      %s352 = sadd.s32 %s351, 1
      %p355 = scmp.eq.s32.totalorder %s34, 7
      %p356 = scmp.ne.s32.totalorder %s351, %s353
      %p357 = scmp.eq.s32.totalorder %s34, 0
      %p358 = por %p356, %p357
      %p359 = scmp.ne.s32.totalorder %s351, %s353
      %p360 = scmp.eq.s32.totalorder %s39, 7
      %p361 = por %p359, %p360
      %p362 = scmp.ne.s32.totalorder %s353, %s354
      %p363 = scmp.eq.s32.totalorder %s39, 0
      %p364 = por %p362, %p363
      %p365 = scmp.ne.s32.totalorder %s353, %s354
      %p366 = scmp.eq.s32.totalorder %s40, 7
      %p367 = por %p365, %p366
      %p369 = scmp.ne.s32.totalorder %s354, %s368
      %p370 = scmp.eq.s32.totalorder %s40, 0
      %p371 = por %p369, %p370
      %s373 = sadd.s32 %s372, 1
      %p376 = scmp.eq.s32.totalorder %s34, 7
      %p377 = scmp.ne.s32.totalorder %s372, %s374
      %p378 = scmp.eq.s32.totalorder %s34, 0
      %p379 = por %p377, %p378
      %p380 = scmp.ne.s32.totalorder %s372, %s374
      %p381 = scmp.eq.s32.totalorder %s39, 7
      %p382 = por %p380, %p381
      %p383 = scmp.ne.s32.totalorder %s374, %s375
      %p384 = scmp.eq.s32.totalorder %s39, 0
      %p385 = por %p383, %p384
      %p386 = scmp.ne.s32.totalorder %s374, %s375
      %p387 = scmp.eq.s32.totalorder %s40, 7
      %p388 = por %p386, %p387
      %p390 = scmp.ne.s32.totalorder %s375, %s389
      %p391 = scmp.eq.s32.totalorder %s40, 0
      %p392 = por %p390, %p391
      %s394 = sadd.s32 %s393, 1
      %p397 = scmp.eq.s32.totalorder %s34, 7
      %p398 = scmp.ne.s32.totalorder %s393, %s395
      %p399 = scmp.eq.s32.totalorder %s34, 0
      %p400 = por %p398, %p399
      %p401 = scmp.ne.s32.totalorder %s393, %s395
      %p402 = scmp.eq.s32.totalorder %s39, 7
      %p403 = por %p401, %p402
      %p404 = scmp.ne.s32.totalorder %s395, %s396
      %p405 = scmp.eq.s32.totalorder %s39, 0
      %p406 = por %p404, %p405
      %p407 = scmp.ne.s32.totalorder %s395, %s396
      %p408 = scmp.eq.s32.totalorder %s40, 7
      %p409 = por %p407, %p408
      %p411 = scmp.ne.s32.totalorder %s396, %s410
      %p412 = scmp.eq.s32.totalorder %s40, 0
      %p413 = por %p411, %p412
      %s415 = sadd.s32 %s414, 1
      %p418 = scmp.eq.s32.totalorder %s34, 7
      %p419 = scmp.ne.s32.totalorder %s414, %s416
      %p420 = scmp.eq.s32.totalorder %s34, 0
      %p421 = por %p419, %p420
      %p422 = scmp.ne.s32.totalorder %s414, %s416
      %p423 = scmp.eq.s32.totalorder %s39, 7
      %p424 = por %p422, %p423
      %p425 = scmp.ne.s32.totalorder %s416, %s417
      %p426 = scmp.eq.s32.totalorder %s39, 0
      %p427 = por %p425, %p426
      %p428 = scmp.ne.s32.totalorder %s416, %s417
      %p429 = scmp.eq.s32.totalorder %s40, 7
      %p430 = por %p428, %p429
      %p432 = scmp.ne.s32.totalorder %s417, %s431
      %p433 = scmp.eq.s32.totalorder %s40, 0
      %p434 = por %p432, %p433
      %s436 = sadd.s32 %s435, 1
      %p439 = scmp.eq.s32.totalorder %s34, 7
      %p440 = scmp.ne.s32.totalorder %s435, %s437
      %p441 = scmp.eq.s32.totalorder %s34, 0
      %p442 = por %p440, %p441
      %p443 = scmp.ne.s32.totalorder %s435, %s437
      %p444 = scmp.eq.s32.totalorder %s39, 7
      %p445 = por %p443, %p444
      %p446 = scmp.ne.s32.totalorder %s437, %s438
      %p447 = scmp.eq.s32.totalorder %s39, 0
      %p448 = por %p446, %p447
      %p449 = scmp.ne.s32.totalorder %s437, %s438
      %p450 = scmp.eq.s32.totalorder %s40, 7
      %p451 = por %p449, %p450
      %p453 = scmp.ne.s32.totalorder %s438, %s452
      %p454 = scmp.eq.s32.totalorder %s40, 0
      %p455 = por %p453, %p454
      %s457 = sadd.s32 %s456, 1
      %p460 = scmp.eq.s32.totalorder %s34, 7
      %p461 = scmp.ne.s32.totalorder %s456, %s458
      %p462 = scmp.eq.s32.totalorder %s34, 0
      %p463 = por %p461, %p462
      %p464 = scmp.ne.s32.totalorder %s456, %s458
      %p465 = scmp.eq.s32.totalorder %s39, 7
      %p466 = por %p464, %p465
      %p467 = scmp.ne.s32.totalorder %s458, %s459
      %p468 = scmp.eq.s32.totalorder %s39, 0
      %p469 = por %p467, %p468
      %p470 = scmp.ne.s32.totalorder %s458, %s459
      %p471 = scmp.eq.s32.totalorder %s40, 7
      %p472 = por %p470, %p471
      %p474 = scmp.ne.s32.totalorder %s459, %s473
      %p475 = scmp.eq.s32.totalorder %s40, 0
      %p476 = por %p474, %p475
      %s478 = sadd.s32 %s477, 1
      %p481 = scmp.eq.s32.totalorder %s34, 7
      %p482 = scmp.ne.s32.totalorder %s477, %s479
      %p483 = scmp.eq.s32.totalorder %s34, 0
      %p484 = por %p482, %p483
      %p485 = scmp.ne.s32.totalorder %s477, %s479
      %p486 = scmp.eq.s32.totalorder %s39, 7
      %p487 = por %p485, %p486
      %p488 = scmp.ne.s32.totalorder %s479, %s480
      %p489 = scmp.eq.s32.totalorder %s39, 0
      %p490 = por %p488, %p489
      %p491 = scmp.ne.s32.totalorder %s479, %s480
      %p492 = scmp.eq.s32.totalorder %s40, 7
      %p493 = por %p491, %p492
      %p495 = scmp.ne.s32.totalorder %s480, %s494
      %p496 = scmp.eq.s32.totalorder %s40, 0
      %p497 = por %p495, %p496
      %p498 = scmp.le.s32.totalorder 1, %s34
      %p499 = scmp.lt.s32.totalorder %s34, 9
      %p500 = pnand %p498, %p499
      %p501 = pneg %p500
      // Predicated region
      $region9: #{actor_critic_forward.1} parent=5 // pred_check
        _
      $region10: #{actor_critic_forward.1} parent=5 // pred_check_branch
        %503 = sbr.rel (%p500) target = $region12
      $region11: #{actor_critic_forward.1} parent=5 // pred_region
        %s504 = ssub.s32 %s34, 1
        // Predicated region
        $region13: #{actor_critic_forward.1} parent=11 // pred_check
          %p505 = pneg %p55
        $region14: #{actor_critic_forward.1} parent=11 // pred_check_branch
          %507 = sbr.rel (%p505) target = $region16
        $region15: #{actor_critic_forward.1} parent=11 // pred_region
          _
        $region16: #{actor_critic_forward.1} parent=11 // pred_fallthru
          _
        // Predicated region
        $region17: #{actor_critic_forward.1} parent=11 // pred_check
          %p508 = pneg %p76
        $region18: #{actor_critic_forward.1} parent=11 // pred_check_branch
          %510 = sbr.rel (%p508) target = $region20
        $region19: #{actor_critic_forward.1} parent=11 // pred_region
          _
        $region20: #{actor_critic_forward.1} parent=11 // pred_fallthru
          _
        // Predicated region
        $region21: #{actor_critic_forward.1} parent=11 // pred_check
          %p511 = pneg %p97
        $region22: #{actor_critic_forward.1} parent=11 // pred_check_branch
          %513 = sbr.rel (%p511) target = $region24
        $region23: #{actor_critic_forward.1} parent=11 // pred_region
          %515 = vsyncadd [#allocation6], 0
          %s517 = sshll.u32 %s2, 4
          %s518 = int_to_ptr.hbm [resolvable:$true] %s517
          %s519 = sshll.u32 [#allocation5], 4
          %s520 = int_to_ptr.vmem [resolvable:$true] %s519
          %522 = dma.hbm_to_vmem [thread:$0]  %s518, 64, %s520, [#allocation6]
        $region24: #{actor_critic_forward.1} parent=11 // pred_fallthru
          _
        // Predicated region
        $region25: #{actor_critic_forward.1} parent=11 // pred_check
          %p523 = pneg %p118
        $region26: #{actor_critic_forward.1} parent=11 // pred_check_branch
          %525 = sbr.rel (%p523) target = $region28
        $region27: #{actor_critic_forward.1} parent=11 // pred_region
          %527 = vsyncadd [#allocation9], 0
          %s529 = sshll.u32 %s3, 4
          %s530 = int_to_ptr.hbm [resolvable:$true] %s529
          %s531 = sshll.u32 [#allocation8], 4
          %s532 = int_to_ptr.vmem [resolvable:$true] %s531
          %534 = dma.hbm_to_vmem [thread:$0]  %s530, 32, %s532, [#allocation9]
        $region28: #{actor_critic_forward.1} parent=11 // pred_fallthru
          _
        // Predicated region
        $region29: #{actor_critic_forward.1} parent=11 // pred_check
          %p535 = pneg %p217
        $region30: #{actor_critic_forward.1} parent=11 // pred_check_branch
          %537 = sbr.rel (%p535) target = $region32
        $region31: #{actor_critic_forward.1} parent=11 // pred_region
          _
        $region32: #{actor_critic_forward.1} parent=11 // pred_fallthru
          _
        // Predicated region
        $region33: #{actor_critic_forward.1} parent=11 // pred_check
          %p538 = pneg %p238
        $region34: #{actor_critic_forward.1} parent=11 // pred_check_branch
          %540 = sbr.rel (%p538) target = $region36
        $region35: #{actor_critic_forward.1} parent=11 // pred_region
          %542 = vsyncadd [#allocation9], 0
          %s544 = sshll.u32 %s8, 4
          %s545 = int_to_ptr.hbm [resolvable:$true] %s544
          %s546 = sshll.u32 [#allocation13], 4
          %s547 = int_to_ptr.vmem [resolvable:$true] %s546
          %549 = dma.hbm_to_vmem [thread:$0]  %s545, 16, %s547, [#allocation9]
        $region36: #{actor_critic_forward.1} parent=11 // pred_fallthru
          _
        // Predicated region
        $region37: #{actor_critic_forward.1} parent=11 // pred_check
          %p550 = pneg %p259
        $region38: #{actor_critic_forward.1} parent=11 // pred_check_branch
          %552 = sbr.rel (%p550) target = $region40
        $region39: #{actor_critic_forward.1} parent=11 // pred_region
          %554 = vsyncadd [#allocation15], 0
          %s556 = sshll.u32 %s9, 4
          %s557 = int_to_ptr.hbm [resolvable:$true] %s556
          %s558 = sshll.u32 [#allocation14], 4
          %s559 = int_to_ptr.vmem [resolvable:$true] %s558
          %561 = dma.hbm_to_vmem [thread:$0]  %s557, 16, %s559, [#allocation15]
        $region40: #{actor_critic_forward.1} parent=11 // pred_fallthru
          _
        // Predicated region
        $region41: #{actor_critic_forward.1} parent=11 // pred_check
          %p562 = pneg %p280
        $region42: #{actor_critic_forward.1} parent=11 // pred_check_branch
          %564 = sbr.rel (%p562) target = $region44
        $region43: #{actor_critic_forward.1} parent=11 // pred_region
          _
        $region44: #{actor_critic_forward.1} parent=11 // pred_fallthru
          _
        // Predicated region
        $region45: #{actor_critic_forward.1} parent=11 // pred_check
          %p565 = pneg %p301
        $region46: #{actor_critic_forward.1} parent=11 // pred_check_branch
          %567 = sbr.rel (%p565) target = $region48
        $region47: #{actor_critic_forward.1} parent=11 // pred_region
          _
        $region48: #{actor_critic_forward.1} parent=11 // pred_fallthru
          _
        // Predicated region
        $region49: #{actor_critic_forward.1} parent=11 // pred_check
          %p568 = pneg %p322
        $region50: #{actor_critic_forward.1} parent=11 // pred_check_branch
          %570 = sbr.rel (%p568) target = $region52
        $region51: #{actor_critic_forward.1} parent=11 // pred_region
          _
        $region52: #{actor_critic_forward.1} parent=11 // pred_fallthru
          _
        // Predicated region
        $region53: #{actor_critic_forward.1} parent=11 // pred_check
          %p571 = pneg %p343
        $region54: #{actor_critic_forward.1} parent=11 // pred_check_branch
          %573 = sbr.rel (%p571) target = $region56
        $region55: #{actor_critic_forward.1} parent=11 // pred_region
          %575 = vsyncadd [#allocation15], 0
          %s577 = sshll.u32 %s13, 4
          %s578 = int_to_ptr.hbm [resolvable:$true] %s577
          %s579 = sshll.u32 [#allocation16], 4
          %s580 = int_to_ptr.vmem [resolvable:$true] %s579
          %582 = dma.hbm_to_vmem [thread:$0]  %s578, 16, %s580, [#allocation15]
        $region56: #{actor_critic_forward.1} parent=11 // pred_fallthru
          _
        // Predicated region
        $region57: #{actor_critic_forward.1} parent=11 // pred_check
          %p583 = pneg %p364
        $region58: #{actor_critic_forward.1} parent=11 // pred_check_branch
          %585 = sbr.rel (%p583) target = $region60
        $region59: #{actor_critic_forward.1} parent=11 // pred_region
          %587 = vsyncadd [#allocation18], 0
          %s589 = sshll.u32 %s14, 4
          %s590 = int_to_ptr.hbm [resolvable:$true] %s589
          %s591 = sshll.u32 [#allocation17], 4
          %s592 = int_to_ptr.vmem [resolvable:$true] %s591
          %594 = dma.hbm_to_vmem [thread:$0]  %s590, 32, %s592, [#allocation18]
        $region60: #{actor_critic_forward.1} parent=11 // pred_fallthru
          _
        // Predicated region
        $region61: #{actor_critic_forward.1} parent=11 // pred_check
          %p595 = pneg %p385
        $region62: #{actor_critic_forward.1} parent=11 // pred_check_branch
          %597 = sbr.rel (%p595) target = $region64
        $region63: #{actor_critic_forward.1} parent=11 // pred_region
          _
        $region64: #{actor_critic_forward.1} parent=11 // pred_fallthru
          _
        // Predicated region
        $region65: #{actor_critic_forward.1} parent=11 // pred_check
          %p598 = pneg %p406
        $region66: #{actor_critic_forward.1} parent=11 // pred_check_branch
          %600 = sbr.rel (%p598) target = $region68
        $region67: #{actor_critic_forward.1} parent=11 // pred_region
          %602 = vsyncadd [#allocation18], 0
          %s604 = sshll.u32 %s16, 4
          %s605 = int_to_ptr.hbm [resolvable:$true] %s604
          %s606 = sshll.u32 [#allocation19], 4
          %s607 = int_to_ptr.vmem [resolvable:$true] %s606
          %609 = dma.hbm_to_vmem [thread:$0]  %s605, 32, %s607, [#allocation18]
        $region68: #{actor_critic_forward.1} parent=11 // pred_fallthru
          _
        // Predicated region
        $region69: #{actor_critic_forward.1} parent=11 // pred_check
          %p610 = pneg %p427
        $region70: #{actor_critic_forward.1} parent=11 // pred_check_branch
          %612 = sbr.rel (%p610) target = $region72
        $region71: #{actor_critic_forward.1} parent=11 // pred_region
          _
        $region72: #{actor_critic_forward.1} parent=11 // pred_fallthru
          _
        // Predicated region
        $region73: #{actor_critic_forward.1} parent=11 // pred_check
          %p613 = pneg %p448
        $region74: #{actor_critic_forward.1} parent=11 // pred_check_branch
          %615 = sbr.rel (%p613) target = $region76
        $region75: #{actor_critic_forward.1} parent=11 // pred_region
          _
        $region76: #{actor_critic_forward.1} parent=11 // pred_fallthru
          _
      $region12: #{actor_critic_forward.1} parent=5 // pred_fallthru
        _
      %p616 = scmp.lt.s32.totalorder %s34, 8
      // Predicated region
      $region77: #{actor_critic_forward.1} parent=5 // pred_check
        %p617 = pneg %p616
      $region78: #{actor_critic_forward.1} parent=5 // pred_check_branch
        %619 = sbr.rel (%p617) target = $region80
      $region79: #{actor_critic_forward.1} parent=5 // pred_region
        // Predicated region
        $region81: #{actor_critic_forward.1} parent=79 // pred_check
          %p620 = pneg %p138
        $region82: #{actor_critic_forward.1} parent=79 // pred_check_branch
          %622 = sbr.rel (%p620) target = $region84
        $region83: #{actor_critic_forward.1} parent=79 // pred_region
          %s623 = sand.u32 %s34, 1
          %s624 = scalar_lea.sflag [#allocation6], %s623
          %s625 = sand.u32 %s128, 1
          %s626 = smul.addr %s625, 2304
          %s627 = scalar_lea.vmem [#allocation10], %s626
          %629 = vsyncadd %s624, 0
          %s630 = smul.addr %s34, 576
          %s631 = smul.addr %s630, 4
          %s632 = scalar_lea.hbm %s4, %s631
          %s633 = sshll.u32 %s632, 4
          %s634 = int_to_ptr.hbm [resolvable:$true] %s633
          %s635 = sshll.u32 %s627, 4
          %s636 = int_to_ptr.vmem [resolvable:$true] %s635
          %641 = dma.hbm_to_vmem [thread:$0]  %s634, 36864, %s636, %s624, 128, 128, 8
        $region84: #{actor_critic_forward.1} parent=79 // pred_fallthru
          _
        // Predicated region
        $region85: #{actor_critic_forward.1} parent=79 // pred_check
          %p642 = pneg %p164
        $region86: #{actor_critic_forward.1} parent=79 // pred_check_branch
          %644 = sbr.rel (%p642) target = $region88
        $region87: #{actor_critic_forward.1} parent=79 // pred_region
          %s645 = sand.u32 %s34, 1
          %s646 = scalar_lea.sflag [#allocation6], %s645
          %s647 = sand.u32 %s154, 1
          %s648 = smul.addr %s647, 2
          %s649 = scalar_lea.vmem [#allocation11], %s648
          %651 = vsyncadd %s646, 0
          %s652 = smul.addr %s34, 2
          %s653 = scalar_lea.hbm %s5, %s652
          %s655 = sshll.u32 %s653, 4
          %s656 = int_to_ptr.hbm [resolvable:$true] %s655
          %s657 = sshll.u32 %s649, 4
          %s658 = int_to_ptr.vmem [resolvable:$true] %s657
          %660 = dma.hbm_to_vmem [thread:$0]  %s656, 32, %s658, %s646
        $region88: #{actor_critic_forward.1} parent=79 // pred_fallthru
          _
        // Predicated region
        $region89: #{actor_critic_forward.1} parent=79 // pred_check
          %p661 = pneg %p190
        $region90: #{actor_critic_forward.1} parent=79 // pred_check_branch
          %663 = sbr.rel (%p661) target = $region92
        $region91: #{actor_critic_forward.1} parent=79 // pred_region
          %s664 = sand.u32 %s34, 1
          %s665 = scalar_lea.sflag [#allocation6], %s664
          %s666 = sand.u32 %s180, 1
          %s667 = smul.addr %s666, 2
          %s668 = scalar_lea.vmem [#allocation12], %s667
          %670 = vsyncadd %s665, 0
          %s671 = smul.addr %s34, 2
          %s672 = scalar_lea.hbm %s6, %s671
          %s674 = sshll.u32 %s672, 4
          %s675 = int_to_ptr.hbm [resolvable:$true] %s674
          %s676 = sshll.u32 %s668, 4
          %s677 = int_to_ptr.vmem [resolvable:$true] %s676
          %679 = dma.hbm_to_vmem [thread:$0]  %s675, 32, %s677, %s665
        $region92: #{actor_critic_forward.1} parent=79 // pred_fallthru
          _
      $region80: #{actor_critic_forward.1} parent=5 // pred_fallthru
        _
      %p680 = scmp.le.s32.totalorder 1, %s34
      %p681 = scmp.lt.s32.totalorder %s34, 9
      %p682 = pnand %p680, %p681
      %p683 = pneg %p682
      // Predicated region
      $region93: #{actor_critic_forward.1} parent=5 // pred_check
        _
      $region94: #{actor_critic_forward.1} parent=5 // pred_check_branch
        %685 = sbr.rel (%p682) target = $region96
      $region95: #{actor_critic_forward.1} parent=5 // pred_region
        %s686 = ssub.s32 %s34, 1
        // Predicated region
        $region97: #{actor_critic_forward.1} parent=95 // pred_check
          %p687 = pneg %p97
        $region98: #{actor_critic_forward.1} parent=95 // pred_check_branch
          %689 = sbr.rel (%p687) target = $region100
        $region99: #{actor_critic_forward.1} parent=95 // pred_region
          %691 = dma.done [#allocation6], 64
        $region100: #{actor_critic_forward.1} parent=95 // pred_fallthru
          _
        // Predicated region
        $region101: #{actor_critic_forward.1} parent=95 // pred_check
          %p692 = pneg %p118
        $region102: #{actor_critic_forward.1} parent=95 // pred_check_branch
          %694 = sbr.rel (%p692) target = $region104
        $region103: #{actor_critic_forward.1} parent=95 // pred_region
          %696 = dma.done [#allocation9], 32
        $region104: #{actor_critic_forward.1} parent=95 // pred_fallthru
          _
        %s697 = sand.u32 %s39, 1
        %s698 = scalar_lea.sflag [#allocation6], %s697
        %s699 = sand.u32 %s131, 1
        %s700 = smul.addr %s699, 2304
        %s701 = scalar_lea.vmem [#allocation10], %s700
        // Predicated region
        $region105: #{actor_critic_forward.1} parent=95 // pred_check
          %p702 = pneg %p144
        $region106: #{actor_critic_forward.1} parent=95 // pred_check_branch
          %704 = sbr.rel (%p702) target = $region108
        $region107: #{actor_critic_forward.1} parent=95 // pred_region
          %706 = dma.done %s698, 36864
        $region108: #{actor_critic_forward.1} parent=95 // pred_fallthru
          _
        %s707 = sand.u32 %s39, 1
        %s708 = scalar_lea.sflag [#allocation6], %s707
        %s709 = sand.u32 %s157, 1
        %s710 = smul.addr %s709, 2
        %s711 = scalar_lea.vmem [#allocation11], %s710
        // Predicated region
        $region109: #{actor_critic_forward.1} parent=95 // pred_check
          %p712 = pneg %p170
        $region110: #{actor_critic_forward.1} parent=95 // pred_check_branch
          %714 = sbr.rel (%p712) target = $region112
        $region111: #{actor_critic_forward.1} parent=95 // pred_region
          %716 = dma.done %s708, 32
        $region112: #{actor_critic_forward.1} parent=95 // pred_fallthru
          _
        %s717 = sand.u32 %s39, 1
        %s718 = scalar_lea.sflag [#allocation6], %s717
        %s719 = sand.u32 %s183, 1
        %s720 = smul.addr %s719, 2
        %s721 = scalar_lea.vmem [#allocation12], %s720
        // Predicated region
        $region113: #{actor_critic_forward.1} parent=95 // pred_check
          %p722 = pneg %p196
        $region114: #{actor_critic_forward.1} parent=95 // pred_check_branch
          %724 = sbr.rel (%p722) target = $region116
        $region115: #{actor_critic_forward.1} parent=95 // pred_region
          %726 = dma.done %s718, 32
        $region116: #{actor_critic_forward.1} parent=95 // pred_fallthru
          _
        // Predicated region
        $region117: #{actor_critic_forward.1} parent=95 // pred_check
          %p727 = pneg %p238
        $region118: #{actor_critic_forward.1} parent=95 // pred_check_branch
          %729 = sbr.rel (%p727) target = $region120
        $region119: #{actor_critic_forward.1} parent=95 // pred_region
          %731 = dma.done [#allocation9], 16
        $region120: #{actor_critic_forward.1} parent=95 // pred_fallthru
          _
        // Predicated region
        $region121: #{actor_critic_forward.1} parent=95 // pred_check
          %p732 = pneg %p259
        $region122: #{actor_critic_forward.1} parent=95 // pred_check_branch
          %734 = sbr.rel (%p732) target = $region124
        $region123: #{actor_critic_forward.1} parent=95 // pred_region
          %736 = dma.done [#allocation15], 16
        $region124: #{actor_critic_forward.1} parent=95 // pred_fallthru
          _
        // Predicated region
        $region125: #{actor_critic_forward.1} parent=95 // pred_check
          %p737 = pneg %p343
        $region126: #{actor_critic_forward.1} parent=95 // pred_check_branch
          %739 = sbr.rel (%p737) target = $region128
        $region127: #{actor_critic_forward.1} parent=95 // pred_region
          %741 = dma.done [#allocation15], 16
        $region128: #{actor_critic_forward.1} parent=95 // pred_fallthru
          _
        // Predicated region
        $region129: #{actor_critic_forward.1} parent=95 // pred_check
          %p742 = pneg %p364
        $region130: #{actor_critic_forward.1} parent=95 // pred_check_branch
          %744 = sbr.rel (%p742) target = $region132
        $region131: #{actor_critic_forward.1} parent=95 // pred_region
          %746 = dma.done [#allocation18], 32
        $region132: #{actor_critic_forward.1} parent=95 // pred_fallthru
          _
        // Predicated region
        $region133: #{actor_critic_forward.1} parent=95 // pred_check
          %p747 = pneg %p406
        $region134: #{actor_critic_forward.1} parent=95 // pred_check_branch
          %749 = sbr.rel (%p747) target = $region136
        $region135: #{actor_critic_forward.1} parent=95 // pred_region
          %751 = dma.done [#allocation18], 32
        $region136: #{actor_critic_forward.1} parent=95 // pred_fallthru
          _
        %p752 = pneg %p55
        %p753 = pneg %p52
        %p754 = pneg %p76
        %p755 = pneg %p73
        %p756 = pneg %p97
        %p757 = pneg %p94
        %p758 = pneg %p118
        %p759 = pneg %p115
        %s760 = sand.u32 %s39, 1
        %s761 = scalar_lea.sflag [#allocation6], %s760
        %s762 = sand.u32 %s131, 1
        %s763 = smul.addr %s762, 2304
        %s764 = scalar_lea.vmem [#allocation10], %s763
        %p765 = pneg %p144
        %p766 = pneg %p141
        %s767 = sand.u32 %s39, 1
        %s768 = scalar_lea.sflag [#allocation6], %s767
        %s769 = sand.u32 %s157, 1
        %s770 = smul.addr %s769, 2
        %s771 = scalar_lea.vmem [#allocation11], %s770
        %p772 = pneg %p170
        %p773 = pneg %p167
        %s774 = sand.u32 %s39, 1
        %s775 = scalar_lea.sflag [#allocation6], %s774
        %s776 = sand.u32 %s183, 1
        %s777 = smul.addr %s776, 2
        %s778 = scalar_lea.vmem [#allocation12], %s777
        %p779 = pneg %p196
        %p780 = pneg %p193
        %p781 = pneg %p217
        %p782 = pneg %p214
        %p783 = pneg %p238
        %p784 = pneg %p235
        %p785 = pneg %p259
        %p786 = pneg %p256
        %p787 = pneg %p280
        %p788 = pneg %p277
        %p789 = pneg %p301
        %p790 = pneg %p298
        %p791 = pneg %p322
        %p792 = pneg %p319
        %p793 = pneg %p343
        %p794 = pneg %p340
        %p795 = pneg %p364
        %p796 = pneg %p361
        %p797 = pneg %p385
        %p798 = pneg %p382
        %p799 = pneg %p406
        %p800 = pneg %p403
        %p801 = pneg %p427
        %p802 = pneg %p424
        %p803 = pneg %p448
        %p804 = pneg %p445
        %p805 = pneg %p469
        %p806 = pneg %p466
        %p807 = pneg %p490
        %p808 = pneg %p487
        %v809 = vld [vmem:[%s1] sm:$0xff]
        %v810 = vld [vmem:[%s1 + $0x8] sm:$0xff]
        %v811 = vld [vmem:[%s1 + $0x10] sm:$0xff]
        %v812 = vld [vmem:[%s1 + $0x18] sm:$0xff]
        %v813 = vld [vmem:[%s1 + $0x20] sm:$0xff]
        %v814 = vld [vmem:[%s1 + $0x28] sm:$0xff]
        %v815 = vld [vmem:[%s1 + $0x30] sm:$0xff]
        %v816 = vld [vmem:[%s1 + $0x38] sm:$0xff]
        %v817 = vld [vmem:[%s1 + $0x40] sm:$0xff]
        %v818 = vld [vmem:[%s1 + $0x48] sm:$0xff]
        %v819 = vld [vmem:[%s1 + $0x50] sm:$0xff]
        %v820 = vld [vmem:[%s1 + $0x58] sm:$0xff]
        %v821 = vld [vmem:[%s1 + $0x60] sm:$0xff]
        %v822 = vld [vmem:[%s1 + $0x68] sm:$0xff]
        %v823 = vld [vmem:[%s1 + $0x70] sm:$0xff]
        %v824 = vld [vmem:[%s1 + $0x78] sm:$0xff]
        %v825 = vld [vmem:[%s1 + $0x80] sm:$0xff]
        %v826 = vld [vmem:[%s1 + $0x88] sm:$0xff]
        %p827 = scmp.eq.s32.totalorder %s39, 0
        // Predicated region
        $region137: #{actor_critic_forward.1} parent=95 // pred_check
          %p828 = pneg %p827
        $region138: #{actor_critic_forward.1} parent=95 // pred_check_branch
          %830 = sbr.rel (%p828) target = $region140
        $region139: #{actor_critic_forward.1} parent=95 // pred_region
          %831 = vst [vmem:[#allocation2] sm:$0xff] 0.0
          %832 = vst [vmem:[#allocation2 + $0x8] sm:$0xff] 0.0
          %833 = vst [vmem:[#allocation2 + $0x10] sm:$0xff] 0.0
          %834 = vst [vmem:[#allocation2 + $0x18] sm:$0xff] 0.0
          %835 = vst [vmem:[#allocation2 + $0x20] sm:$0xff] 0.0
          %836 = vst [vmem:[#allocation2 + $0x28] sm:$0xff] 0.0
          %837 = vst [vmem:[#allocation2 + $0x30] sm:$0xff] 0.0
          %838 = vst [vmem:[#allocation2 + $0x38] sm:$0xff] 0.0
          %839 = vst [vmem:[#allocation2 + $0x40] sm:$0xff] 0.0
          %840 = vst [vmem:[#allocation2 + $0x48] sm:$0xff] 0.0
          %841 = vst [vmem:[#allocation2 + $0x50] sm:$0xff] 0.0
          %842 = vst [vmem:[#allocation2 + $0x58] sm:$0xff] 0.0
          %843 = vst [vmem:[#allocation2 + $0x60] sm:$0xff] 0.0
          %844 = vst [vmem:[#allocation2 + $0x68] sm:$0xff] 0.0
          %845 = vst [vmem:[#allocation2 + $0x70] sm:$0xff] 0.0
          %846 = vst [vmem:[#allocation2 + $0x78] sm:$0xff] 0.0
          %847 = vst [vmem:[#allocation2 + $0x80] sm:$0xff] 0.0
          %848 = vst [vmem:[#allocation2 + $0x88] sm:$0xff] 0.0
          %849 = vst [vmem:[#allocation2 + $0x90] sm:$0xff] 0.0
          %850 = vst [vmem:[#allocation2 + $0x98] sm:$0xff] 0.0
          %851 = vst [vmem:[#allocation2 + $0xa0] sm:$0xff] 0.0
          %852 = vst [vmem:[#allocation2 + $0xa8] sm:$0xff] 0.0
          %853 = vst [vmem:[#allocation2 + $0xb0] sm:$0xff] 0.0
          %854 = vst [vmem:[#allocation2 + $0xb8] sm:$0xff] 0.0
          %855 = vst [vmem:[#allocation2 + $0xc0] sm:$0xff] 0.0
          %856 = vst [vmem:[#allocation2 + $0xc8] sm:$0xff] 0.0
          %857 = vst [vmem:[#allocation2 + $0xd0] sm:$0xff] 0.0
          %858 = vst [vmem:[#allocation2 + $0xd8] sm:$0xff] 0.0
          %859 = vst [vmem:[#allocation2 + $0xe0] sm:$0xff] 0.0
          %860 = vst [vmem:[#allocation2 + $0xe8] sm:$0xff] 0.0
          %861 = vst [vmem:[#allocation2 + $0xf0] sm:$0xff] 0.0
          %862 = vst [vmem:[#allocation2 + $0xf8] sm:$0xff] 0.0
          %863 = vst [vmem:[#allocation2 + $0x100] sm:$0xff] 0.0
          %864 = vst [vmem:[#allocation2 + $0x108] sm:$0xff] 0.0
          %865 = vst [vmem:[#allocation2 + $0x110] sm:$0xff] 0.0
          %866 = vst [vmem:[#allocation2 + $0x118] sm:$0xff] 0.0
          %867 = vst [vmem:[#allocation2 + $0x120] sm:$0xff] 0.0
          %868 = vst [vmem:[#allocation2 + $0x128] sm:$0xff] 0.0
          %869 = vst [vmem:[#allocation2 + $0x130] sm:$0xff] 0.0
          %870 = vst [vmem:[#allocation2 + $0x138] sm:$0xff] 0.0
          %871 = vst [vmem:[#allocation2 + $0x140] sm:$0xff] 0.0
          %872 = vst [vmem:[#allocation2 + $0x148] sm:$0xff] 0.0
          %873 = vst [vmem:[#allocation2 + $0x150] sm:$0xff] 0.0
          %874 = vst [vmem:[#allocation2 + $0x158] sm:$0xff] 0.0
          %v875 = vld [vmem:[%s0] sm:$0xff]
          %v876 = vld [vmem:[%s0 + $0x8] sm:$0xff]
          %v877 = vld [vmem:[%s0 + $0x10] sm:$0xff]
          %v878 = vld [vmem:[%s0 + $0x18] sm:$0xff]
          %v879 = vld [vmem:[%s0 + $0x20] sm:$0xff]
          %v880 = vld [vmem:[%s0 + $0x28] sm:$0xff]
          %v881 = vld [vmem:[%s0 + $0x30] sm:$0xff]
          %v882 = vld [vmem:[%s0 + $0x38] sm:$0xff]
          %v883 = vld [vmem:[%s0 + $0x40] sm:$0xff]
          %v884 = vld [vmem:[%s0 + $0x48] sm:$0xff]
          %v885 = vld [vmem:[%s0 + $0x50] sm:$0xff]
          %v886 = vld [vmem:[%s0 + $0x58] sm:$0xff]
          %v887 = vld [vmem:[%s0 + $0x60] sm:$0xff]
          %v888 = vld [vmem:[%s0 + $0x68] sm:$0xff]
          %v889 = vld [vmem:[%s0 + $0x70] sm:$0xff]
          %v890 = vld [vmem:[%s0 + $0x78] sm:$0xff]
          %v891 = vld [vmem:[%s0 + $0x80] sm:$0xff]
          %v892 = vld [vmem:[%s0 + $0x88] sm:$0xff]
          %v893 = vld [vmem:[#allocation5] sm:$0xf]
          %895 = vset.pattern.permute.xlu0 0
          %896 = vperm.xlu0 %895, %v875
          %v897 = vpop.permute.xlu0 %896
          %900 = vset.pattern.permute.xlu0 0
          %901 = vperm.xlu0 %900, %v876
          %v902 = vpop.permute.xlu0 %901
          %905 = vset.pattern.permute.xlu0 0
          %906 = vperm.xlu0 %905, %v877
          %v907 = vpop.permute.xlu0 %906
          %910 = vset.pattern.permute.xlu0 0
          %911 = vperm.xlu0 %910, %v878
          %v912 = vpop.permute.xlu0 %911
          %915 = vset.pattern.permute.xlu0 0
          %916 = vperm.xlu0 %915, %v879
          %v917 = vpop.permute.xlu0 %916
          %920 = vset.pattern.permute.xlu0 0
          %921 = vperm.xlu0 %920, %v880
          %v922 = vpop.permute.xlu0 %921
          %925 = vset.pattern.permute.xlu0 0
          %926 = vperm.xlu0 %925, %v881
          %v927 = vpop.permute.xlu0 %926
          %930 = vset.pattern.permute.xlu0 0
          %931 = vperm.xlu0 %930, %v882
          %v932 = vpop.permute.xlu0 %931
          %935 = vset.pattern.permute.xlu0 0
          %936 = vperm.xlu0 %935, %v883
          %v937 = vpop.permute.xlu0 %936
          %940 = vset.pattern.permute.xlu0 0
          %941 = vperm.xlu0 %940, %v884
          %v942 = vpop.permute.xlu0 %941
          %945 = vset.pattern.permute.xlu0 0
          %946 = vperm.xlu0 %945, %v885
          %v947 = vpop.permute.xlu0 %946
          %950 = vset.pattern.permute.xlu0 0
          %951 = vperm.xlu0 %950, %v886
          %v952 = vpop.permute.xlu0 %951
          %955 = vset.pattern.permute.xlu0 0
          %956 = vperm.xlu0 %955, %v887
          %v957 = vpop.permute.xlu0 %956
          %960 = vset.pattern.permute.xlu0 0
          %961 = vperm.xlu0 %960, %v888
          %v962 = vpop.permute.xlu0 %961
          %965 = vset.pattern.permute.xlu0 0
          %966 = vperm.xlu0 %965, %v889
          %v967 = vpop.permute.xlu0 %966
          %970 = vset.pattern.permute.xlu0 0
          %971 = vperm.xlu0 %970, %v890
          %v972 = vpop.permute.xlu0 %971
          %975 = vset.pattern.permute.xlu0 0
          %976 = vperm.xlu0 %975, %v891
          %v977 = vpop.permute.xlu0 %976
          %980 = vset.pattern.permute.xlu0 0
          %981 = vperm.xlu0 %980, %v892
          %v982 = vpop.permute.xlu0 %981
          %v985 = vperm.slane %v893, 0
          %v986 = vperm.slane %v893, 2
          %v989 = vperm.slane %v985, 0
          %v990 = vperm.slane %v986, 0
          %v991 = vmul.f32 %v897, %v989
          %v992 = vmul.f32 %v897, %v990
          %v993 = vmul.f32 %v902, %v989
          %v994 = vmul.f32 %v902, %v990
          %v995 = vmul.f32 %v907, %v989
          %v996 = vmul.f32 %v907, %v990
          %v997 = vmul.f32 %v912, %v989
          %v998 = vmul.f32 %v912, %v990
          %v999 = vmul.f32 %v917, %v989
          %v1000 = vmul.f32 %v917, %v990
          %v1001 = vmul.f32 %v922, %v989
          %v1002 = vmul.f32 %v922, %v990
          %v1003 = vmul.f32 %v927, %v989
          %v1004 = vmul.f32 %v927, %v990
          %v1005 = vmul.f32 %v932, %v989
          %v1006 = vmul.f32 %v932, %v990
          %v1007 = vmul.f32 %v937, %v989
          %v1008 = vmul.f32 %v937, %v990
          %v1009 = vmul.f32 %v942, %v989
          %v1010 = vmul.f32 %v942, %v990
          %v1011 = vmul.f32 %v947, %v989
          %v1012 = vmul.f32 %v947, %v990
          %v1013 = vmul.f32 %v952, %v989
          %v1014 = vmul.f32 %v952, %v990
          %v1015 = vmul.f32 %v957, %v989
          %v1016 = vmul.f32 %v957, %v990
          %v1017 = vmul.f32 %v962, %v989
          %v1018 = vmul.f32 %v962, %v990
          %v1019 = vmul.f32 %v967, %v989
          %v1020 = vmul.f32 %v967, %v990
          %v1021 = vmul.f32 %v972, %v989
          %v1022 = vmul.f32 %v972, %v990
          %v1023 = vmul.f32 %v977, %v989
          %v1024 = vmul.f32 %v977, %v990
          %v1025 = vmul.f32 %v982, %v989
          %v1026 = vmul.f32 %v982, %v990
          %1027 = vset.pattern.permute.xlu0 1
          %1028 = vperm.xlu0 %1027, %v875
          %v1029 = vpop.permute.xlu0 %1028
          %1031 = vset.pattern.permute.xlu0 1
          %1032 = vperm.xlu0 %1031, %v876
          %v1033 = vpop.permute.xlu0 %1032
          %1035 = vset.pattern.permute.xlu0 1
          %1036 = vperm.xlu0 %1035, %v877
          %v1037 = vpop.permute.xlu0 %1036
          %1039 = vset.pattern.permute.xlu0 1
          %1040 = vperm.xlu0 %1039, %v878
          %v1041 = vpop.permute.xlu0 %1040
          %1043 = vset.pattern.permute.xlu0 1
          %1044 = vperm.xlu0 %1043, %v879
          %v1045 = vpop.permute.xlu0 %1044
          %1047 = vset.pattern.permute.xlu0 1
          %1048 = vperm.xlu0 %1047, %v880
          %v1049 = vpop.permute.xlu0 %1048
          %1051 = vset.pattern.permute.xlu0 1
          %1052 = vperm.xlu0 %1051, %v881
          %v1053 = vpop.permute.xlu0 %1052
          %1055 = vset.pattern.permute.xlu0 1
          %1056 = vperm.xlu0 %1055, %v882
          %v1057 = vpop.permute.xlu0 %1056
          %1059 = vset.pattern.permute.xlu0 1
          %1060 = vperm.xlu0 %1059, %v883
          %v1061 = vpop.permute.xlu0 %1060
          %1063 = vset.pattern.permute.xlu0 1
          %1064 = vperm.xlu0 %1063, %v884
          %v1065 = vpop.permute.xlu0 %1064
          %1067 = vset.pattern.permute.xlu0 1
          %1068 = vperm.xlu0 %1067, %v885
          %v1069 = vpop.permute.xlu0 %1068
          %1071 = vset.pattern.permute.xlu0 1
          %1072 = vperm.xlu0 %1071, %v886
          %v1073 = vpop.permute.xlu0 %1072
          %1075 = vset.pattern.permute.xlu0 1
          %1076 = vperm.xlu0 %1075, %v887
          %v1077 = vpop.permute.xlu0 %1076
          %1079 = vset.pattern.permute.xlu0 1
          %1080 = vperm.xlu0 %1079, %v888
          %v1081 = vpop.permute.xlu0 %1080
          %1083 = vset.pattern.permute.xlu0 1
          %1084 = vperm.xlu0 %1083, %v889
          %v1085 = vpop.permute.xlu0 %1084
          %1087 = vset.pattern.permute.xlu0 1
          %1088 = vperm.xlu0 %1087, %v890
          %v1089 = vpop.permute.xlu0 %1088
          %1091 = vset.pattern.permute.xlu0 1
          %1092 = vperm.xlu0 %1091, %v891
          %v1093 = vpop.permute.xlu0 %1092
          %1095 = vset.pattern.permute.xlu0 1
          %1096 = vperm.xlu0 %1095, %v892
          %v1097 = vpop.permute.xlu0 %1096
          %v1099 = vperm.slane %v893, 1
          %v1100 = vperm.slane %v893, 3
          %v1103 = vperm.slane %v1099, 1
          %v1104 = vperm.slane %v1100, 1
          %v1105 = vmul.f32 %v1029, %v1103
          %v1106 = vmul.f32 %v1029, %v1104
          %v1107 = vmul.f32 %v1033, %v1103
          %v1108 = vmul.f32 %v1033, %v1104
          %v1109 = vmul.f32 %v1037, %v1103
          %v1110 = vmul.f32 %v1037, %v1104
          %v1111 = vmul.f32 %v1041, %v1103
          %v1112 = vmul.f32 %v1041, %v1104
          %v1113 = vmul.f32 %v1045, %v1103
          %v1114 = vmul.f32 %v1045, %v1104
          %v1115 = vmul.f32 %v1049, %v1103
          %v1116 = vmul.f32 %v1049, %v1104
          %v1117 = vmul.f32 %v1053, %v1103
          %v1118 = vmul.f32 %v1053, %v1104
          %v1119 = vmul.f32 %v1057, %v1103
          %v1120 = vmul.f32 %v1057, %v1104
          %v1121 = vmul.f32 %v1061, %v1103
          %v1122 = vmul.f32 %v1061, %v1104
          %v1123 = vmul.f32 %v1065, %v1103
          %v1124 = vmul.f32 %v1065, %v1104
          %v1125 = vmul.f32 %v1069, %v1103
          %v1126 = vmul.f32 %v1069, %v1104
          %v1127 = vmul.f32 %v1073, %v1103
          %v1128 = vmul.f32 %v1073, %v1104
          %v1129 = vmul.f32 %v1077, %v1103
          %v1130 = vmul.f32 %v1077, %v1104
          %v1131 = vmul.f32 %v1081, %v1103
          %v1132 = vmul.f32 %v1081, %v1104
          %v1133 = vmul.f32 %v1085, %v1103
          %v1134 = vmul.f32 %v1085, %v1104
          %v1135 = vmul.f32 %v1089, %v1103
          %v1136 = vmul.f32 %v1089, %v1104
          %v1137 = vmul.f32 %v1093, %v1103
          %v1138 = vmul.f32 %v1093, %v1104
          %v1139 = vmul.f32 %v1097, %v1103
          %v1140 = vmul.f32 %v1097, %v1104
          %v1141 = vadd.f32 %v991, %v1105
          %v1142 = vadd.f32 %v992, %v1106
          %v1143 = vadd.f32 %v993, %v1107
          %v1144 = vadd.f32 %v994, %v1108
          %v1145 = vadd.f32 %v995, %v1109
          %v1146 = vadd.f32 %v996, %v1110
          %v1147 = vadd.f32 %v997, %v1111
          %v1148 = vadd.f32 %v998, %v1112
          %v1149 = vadd.f32 %v999, %v1113
          %v1150 = vadd.f32 %v1000, %v1114
          %v1151 = vadd.f32 %v1001, %v1115
          %v1152 = vadd.f32 %v1002, %v1116
          %v1153 = vadd.f32 %v1003, %v1117
          %v1154 = vadd.f32 %v1004, %v1118
          %v1155 = vadd.f32 %v1005, %v1119
          %v1156 = vadd.f32 %v1006, %v1120
          %v1157 = vadd.f32 %v1007, %v1121
          %v1158 = vadd.f32 %v1008, %v1122
          %v1159 = vadd.f32 %v1009, %v1123
          %v1160 = vadd.f32 %v1010, %v1124
          %v1161 = vadd.f32 %v1011, %v1125
          %v1162 = vadd.f32 %v1012, %v1126
          %v1163 = vadd.f32 %v1013, %v1127
          %v1164 = vadd.f32 %v1014, %v1128
          %v1165 = vadd.f32 %v1015, %v1129
          %v1166 = vadd.f32 %v1016, %v1130
          %v1167 = vadd.f32 %v1017, %v1131
          %v1168 = vadd.f32 %v1018, %v1132
          %v1169 = vadd.f32 %v1019, %v1133
          %v1170 = vadd.f32 %v1020, %v1134
          %v1171 = vadd.f32 %v1021, %v1135
          %v1172 = vadd.f32 %v1022, %v1136
          %v1173 = vadd.f32 %v1023, %v1137
          %v1174 = vadd.f32 %v1024, %v1138
          %v1175 = vadd.f32 %v1025, %v1139
          %v1176 = vadd.f32 %v1026, %v1140
          %v1177 = vld [vmem:[#allocation8] sm:$0x3]
          %v1179 = vperm.slane %v1177, 0
          %v1180 = vperm.slane %v1177, 1
          %v1183 = vadd.f32 %v1141, %v1179
          %v1184 = vadd.f32 %v1142, %v1180
          %v1185 = vadd.f32 %v1143, %v1179
          %v1186 = vadd.f32 %v1144, %v1180
          %v1187 = vadd.f32 %v1145, %v1179
          %v1188 = vadd.f32 %v1146, %v1180
          %v1189 = vadd.f32 %v1147, %v1179
          %v1190 = vadd.f32 %v1148, %v1180
          %v1191 = vadd.f32 %v1149, %v1179
          %v1192 = vadd.f32 %v1150, %v1180
          %v1193 = vadd.f32 %v1151, %v1179
          %v1194 = vadd.f32 %v1152, %v1180
          %v1195 = vadd.f32 %v1153, %v1179
          %v1196 = vadd.f32 %v1154, %v1180
          %v1197 = vadd.f32 %v1155, %v1179
          %v1198 = vadd.f32 %v1156, %v1180
          %v1199 = vadd.f32 %v1157, %v1179
          %v1200 = vadd.f32 %v1158, %v1180
          %v1201 = vadd.f32 %v1159, %v1179
          %v1202 = vadd.f32 %v1160, %v1180
          %v1203 = vadd.f32 %v1161, %v1179
          %v1204 = vadd.f32 %v1162, %v1180
          %v1205 = vadd.f32 %v1163, %v1179
          %v1206 = vadd.f32 %v1164, %v1180
          %v1207 = vadd.f32 %v1165, %v1179
          %v1208 = vadd.f32 %v1166, %v1180
          %v1209 = vadd.f32 %v1167, %v1179
          %v1210 = vadd.f32 %v1168, %v1180
          %v1211 = vadd.f32 %v1169, %v1179
          %v1212 = vadd.f32 %v1170, %v1180
          %v1213 = vadd.f32 %v1171, %v1179
          %v1214 = vadd.f32 %v1172, %v1180
          %v1215 = vadd.f32 %v1173, %v1179
          %v1216 = vadd.f32 %v1174, %v1180
          %v1217 = vadd.f32 %v1175, %v1179
          %v1218 = vadd.f32 %v1176, %v1180
          %1220 = vset.pattern.permute.xlu0 0
          %1221 = vperm.xlu0 %1220, %v809
          %v1222 = vpop.permute.xlu0 %1221
          %1225 = vset.pattern.permute.xlu0 0
          %1226 = vperm.xlu0 %1225, %v810
          %v1227 = vpop.permute.xlu0 %1226
          %1230 = vset.pattern.permute.xlu0 0
          %1231 = vperm.xlu0 %1230, %v811
          %v1232 = vpop.permute.xlu0 %1231
          %1235 = vset.pattern.permute.xlu0 0
          %1236 = vperm.xlu0 %1235, %v812
          %v1237 = vpop.permute.xlu0 %1236
          %1240 = vset.pattern.permute.xlu0 0
          %1241 = vperm.xlu0 %1240, %v813
          %v1242 = vpop.permute.xlu0 %1241
          %1245 = vset.pattern.permute.xlu0 0
          %1246 = vperm.xlu0 %1245, %v814
          %v1247 = vpop.permute.xlu0 %1246
          %1250 = vset.pattern.permute.xlu0 0
          %1251 = vperm.xlu0 %1250, %v815
          %v1252 = vpop.permute.xlu0 %1251
          %1255 = vset.pattern.permute.xlu0 0
          %1256 = vperm.xlu0 %1255, %v816
          %v1257 = vpop.permute.xlu0 %1256
          %1260 = vset.pattern.permute.xlu0 0
          %1261 = vperm.xlu0 %1260, %v817
          %v1262 = vpop.permute.xlu0 %1261
          %1265 = vset.pattern.permute.xlu0 0
          %1266 = vperm.xlu0 %1265, %v818
          %v1267 = vpop.permute.xlu0 %1266
          %1270 = vset.pattern.permute.xlu0 0
          %1271 = vperm.xlu0 %1270, %v819
          %v1272 = vpop.permute.xlu0 %1271
          %1275 = vset.pattern.permute.xlu0 0
          %1276 = vperm.xlu0 %1275, %v820
          %v1277 = vpop.permute.xlu0 %1276
          %1280 = vset.pattern.permute.xlu0 0
          %1281 = vperm.xlu0 %1280, %v821
          %v1282 = vpop.permute.xlu0 %1281
          %1285 = vset.pattern.permute.xlu0 0
          %1286 = vperm.xlu0 %1285, %v822
          %v1287 = vpop.permute.xlu0 %1286
          %1290 = vset.pattern.permute.xlu0 0
          %1291 = vperm.xlu0 %1290, %v823
          %v1292 = vpop.permute.xlu0 %1291
          %1295 = vset.pattern.permute.xlu0 0
          %1296 = vperm.xlu0 %1295, %v824
          %v1297 = vpop.permute.xlu0 %1296
          %1300 = vset.pattern.permute.xlu0 0
          %1301 = vperm.xlu0 %1300, %v825
          %v1302 = vpop.permute.xlu0 %1301
          %1305 = vset.pattern.permute.xlu0 0
          %1306 = vperm.xlu0 %1305, %v826
          %v1307 = vpop.permute.xlu0 %1306
          %v1309 = vmul.f32 %v1183, %v1222
          %v1310 = vmul.f32 %v1184, %v1222
          %v1311 = vmul.f32 %v1185, %v1227
          %v1312 = vmul.f32 %v1186, %v1227
          %v1313 = vmul.f32 %v1187, %v1232
          %v1314 = vmul.f32 %v1188, %v1232
          %v1315 = vmul.f32 %v1189, %v1237
          %v1316 = vmul.f32 %v1190, %v1237
          %v1317 = vmul.f32 %v1191, %v1242
          %v1318 = vmul.f32 %v1192, %v1242
          %v1319 = vmul.f32 %v1193, %v1247
          %v1320 = vmul.f32 %v1194, %v1247
          %v1321 = vmul.f32 %v1195, %v1252
          %v1322 = vmul.f32 %v1196, %v1252
          %v1323 = vmul.f32 %v1197, %v1257
          %v1324 = vmul.f32 %v1198, %v1257
          %v1325 = vmul.f32 %v1199, %v1262
          %v1326 = vmul.f32 %v1200, %v1262
          %v1327 = vmul.f32 %v1201, %v1267
          %v1328 = vmul.f32 %v1202, %v1267
          %v1329 = vmul.f32 %v1203, %v1272
          %v1330 = vmul.f32 %v1204, %v1272
          %v1331 = vmul.f32 %v1205, %v1277
          %v1332 = vmul.f32 %v1206, %v1277
          %v1333 = vmul.f32 %v1207, %v1282
          %v1334 = vmul.f32 %v1208, %v1282
          %v1335 = vmul.f32 %v1209, %v1287
          %v1336 = vmul.f32 %v1210, %v1287
          %v1337 = vmul.f32 %v1211, %v1292
          %v1338 = vmul.f32 %v1212, %v1292
          %v1339 = vmul.f32 %v1213, %v1297
          %v1340 = vmul.f32 %v1214, %v1297
          %v1341 = vmul.f32 %v1215, %v1302
          %v1342 = vmul.f32 %v1216, %v1302
          %v1343 = vmul.f32 %v1217, %v1307
          %v1344 = vmul.f32 %v1218, %v1307
          %1345 = vst [vmem:[#allocation2 + $0x20] sm:$0xff] %v1309
          %1346 = vst [vmem:[#allocation2 + $0x28] sm:$0xff] %v1310
          %1347 = vst [vmem:[#allocation2 + $0x30] sm:$0xff] %v1311
          %1348 = vst [vmem:[#allocation2 + $0x38] sm:$0xff] %v1312
          %1349 = vst [vmem:[#allocation2 + $0x40] sm:$0xff] %v1313
          %1350 = vst [vmem:[#allocation2 + $0x48] sm:$0xff] %v1314
          %1351 = vst [vmem:[#allocation2 + $0x50] sm:$0xff] %v1315
          %1352 = vst [vmem:[#allocation2 + $0x58] sm:$0xff] %v1316
          %1353 = vst [vmem:[#allocation2 + $0x60] sm:$0xff] %v1317
          %1354 = vst [vmem:[#allocation2 + $0x68] sm:$0xff] %v1318
          %1355 = vst [vmem:[#allocation2 + $0x70] sm:$0xff] %v1319
          %1356 = vst [vmem:[#allocation2 + $0x78] sm:$0xff] %v1320
          %1357 = vst [vmem:[#allocation2 + $0x80] sm:$0xff] %v1321
          %1358 = vst [vmem:[#allocation2 + $0x88] sm:$0xff] %v1322
          %1359 = vst [vmem:[#allocation2 + $0x90] sm:$0xff] %v1323
          %1360 = vst [vmem:[#allocation2 + $0x98] sm:$0xff] %v1324
          %1361 = vst [vmem:[#allocation2 + $0xa0] sm:$0xff] %v1325
          %1362 = vst [vmem:[#allocation2 + $0xa8] sm:$0xff] %v1326
          %1363 = vst [vmem:[#allocation2 + $0xb0] sm:$0xff] %v1327
          %1364 = vst [vmem:[#allocation2 + $0xb8] sm:$0xff] %v1328
          %1365 = vst [vmem:[#allocation2 + $0xc0] sm:$0xff] %v1329
          %1366 = vst [vmem:[#allocation2 + $0xc8] sm:$0xff] %v1330
          %1367 = vst [vmem:[#allocation2 + $0xd0] sm:$0xff] %v1331
          %1368 = vst [vmem:[#allocation2 + $0xd8] sm:$0xff] %v1332
          %1369 = vst [vmem:[#allocation2 + $0xe0] sm:$0xff] %v1333
          %1370 = vst [vmem:[#allocation2 + $0xe8] sm:$0xff] %v1334
          %1371 = vst [vmem:[#allocation2 + $0xf0] sm:$0xff] %v1335
          %1372 = vst [vmem:[#allocation2 + $0xf8] sm:$0xff] %v1336
          %1373 = vst [vmem:[#allocation2 + $0x100] sm:$0xff] %v1337
          %1374 = vst [vmem:[#allocation2 + $0x108] sm:$0xff] %v1338
          %1375 = vst [vmem:[#allocation2 + $0x110] sm:$0xff] %v1339
          %1376 = vst [vmem:[#allocation2 + $0x118] sm:$0xff] %v1340
          %1377 = vst [vmem:[#allocation2 + $0x120] sm:$0xff] %v1341
          %1378 = vst [vmem:[#allocation2 + $0x128] sm:$0xff] %v1342
          %1379 = vst [vmem:[#allocation2 + $0x130] sm:$0xff] %v1343
          %1380 = vst [vmem:[#allocation2 + $0x138] sm:$0xff] %v1344
        $region140: #{actor_critic_forward.1} parent=95 // pred_fallthru
          _
        %p1381 = scmp.lt.s32.totalorder %s39, 0
        %s1382 = ssub.s32 0, %s39
        %s1383 = scalar_select %p1381, %s1382, %s39
        %s1384 = sand.u32 %s1383, 1
        %s1385 = ssub.s32 0, %s1384
        %s1386 = scalar_select %p1381, %s1385, %s1384
        %p1387 = scmp.ne.s32.totalorder %s1386, 0
        %p1388 = scmp.lt.s32.totalorder %s1386, 0
        %p1389 = pnand %p1388, %p1387
        %p1390 = pneg %p1389
        %s1391 = sadd.s32 %s1386, 2
        %s1392 = scalar_select %p1390, %s1391, %s1386
        %p1393 = scmp.eq.s32.totalorder %s1392, 0
        // Predicated region
        $region141: #{actor_critic_forward.1} parent=95 // pred_check
          %p1394 = pneg %p1393
        $region142: #{actor_critic_forward.1} parent=95 // pred_check_branch
          %1396 = sbr.rel (%p1394) target = $region144
        $region143: #{actor_critic_forward.1} parent=95 // pred_region
          %v1397 = vld [vmem:[#allocation2 + $0x20] sm:$0xff]
          %v1398 = vld [vmem:[#allocation2 + $0x28] sm:$0xff]
          %v1399 = vld [vmem:[#allocation2 + $0x30] sm:$0xff]
          %v1400 = vld [vmem:[#allocation2 + $0x38] sm:$0xff]
          %v1401 = vld [vmem:[#allocation2 + $0x40] sm:$0xff]
          %v1402 = vld [vmem:[#allocation2 + $0x48] sm:$0xff]
          %v1403 = vld [vmem:[#allocation2 + $0x50] sm:$0xff]
          %v1404 = vld [vmem:[#allocation2 + $0x58] sm:$0xff]
          %v1405 = vld [vmem:[#allocation2 + $0x60] sm:$0xff]
          %v1406 = vld [vmem:[#allocation2 + $0x68] sm:$0xff]
          %v1407 = vld [vmem:[#allocation2 + $0x70] sm:$0xff]
          %v1408 = vld [vmem:[#allocation2 + $0x78] sm:$0xff]
          %v1409 = vld [vmem:[#allocation2 + $0x80] sm:$0xff]
          %v1410 = vld [vmem:[#allocation2 + $0x88] sm:$0xff]
          %v1411 = vld [vmem:[#allocation2 + $0x90] sm:$0xff]
          %v1412 = vld [vmem:[#allocation2 + $0x98] sm:$0xff]
          %v1413 = vld [vmem:[#allocation2 + $0xa0] sm:$0xff]
          %v1414 = vld [vmem:[#allocation2 + $0xa8] sm:$0xff]
          %v1415 = vld [vmem:[#allocation2 + $0xb0] sm:$0xff]
          %v1416 = vld [vmem:[#allocation2 + $0xb8] sm:$0xff]
          %v1417 = vld [vmem:[#allocation2 + $0xc0] sm:$0xff]
          %v1418 = vld [vmem:[#allocation2 + $0xc8] sm:$0xff]
          %v1419 = vld [vmem:[#allocation2 + $0xd0] sm:$0xff]
          %v1420 = vld [vmem:[#allocation2 + $0xd8] sm:$0xff]
          %v1421 = vld [vmem:[#allocation2 + $0xe0] sm:$0xff]
          %v1422 = vld [vmem:[#allocation2 + $0xe8] sm:$0xff]
          %v1423 = vld [vmem:[#allocation2 + $0xf0] sm:$0xff]
          %v1424 = vld [vmem:[#allocation2 + $0xf8] sm:$0xff]
          %v1425 = vld [vmem:[#allocation2 + $0x100] sm:$0xff]
          %v1426 = vld [vmem:[#allocation2 + $0x108] sm:$0xff]
          %v1427 = vld [vmem:[#allocation2 + $0x110] sm:$0xff]
          %v1428 = vld [vmem:[#allocation2 + $0x118] sm:$0xff]
          %v1429 = vld [vmem:[#allocation2 + $0x120] sm:$0xff]
          %v1430 = vld [vmem:[#allocation2 + $0x128] sm:$0xff]
          %v1431 = vld [vmem:[#allocation2 + $0x130] sm:$0xff]
          %v1432 = vld [vmem:[#allocation2 + $0x138] sm:$0xff]
          %1433 = vst [vmem:[#allocation3] sm:$0xff] %v1397
          %1434 = vst [vmem:[#allocation3 + $0x8] sm:$0xff] %v1398
          %1435 = vst [vmem:[#allocation3 + $0x10] sm:$0xff] %v1399
          %1436 = vst [vmem:[#allocation3 + $0x18] sm:$0xff] %v1400
          %1437 = vst [vmem:[#allocation3 + $0x20] sm:$0xff] %v1401
          %1438 = vst [vmem:[#allocation3 + $0x28] sm:$0xff] %v1402
          %1439 = vst [vmem:[#allocation3 + $0x30] sm:$0xff] %v1403
          %1440 = vst [vmem:[#allocation3 + $0x38] sm:$0xff] %v1404
          %1441 = vst [vmem:[#allocation3 + $0x40] sm:$0xff] %v1405
          %1442 = vst [vmem:[#allocation3 + $0x48] sm:$0xff] %v1406
          %1443 = vst [vmem:[#allocation3 + $0x50] sm:$0xff] %v1407
          %1444 = vst [vmem:[#allocation3 + $0x58] sm:$0xff] %v1408
          %1445 = vst [vmem:[#allocation3 + $0x60] sm:$0xff] %v1409
          %1446 = vst [vmem:[#allocation3 + $0x68] sm:$0xff] %v1410
          %1447 = vst [vmem:[#allocation3 + $0x70] sm:$0xff] %v1411
          %1448 = vst [vmem:[#allocation3 + $0x78] sm:$0xff] %v1412
          %1449 = vst [vmem:[#allocation3 + $0x80] sm:$0xff] %v1413
          %1450 = vst [vmem:[#allocation3 + $0x88] sm:$0xff] %v1414
          %1451 = vst [vmem:[#allocation3 + $0x90] sm:$0xff] %v1415
          %1452 = vst [vmem:[#allocation3 + $0x98] sm:$0xff] %v1416
          %1453 = vst [vmem:[#allocation3 + $0xa0] sm:$0xff] %v1417
          %1454 = vst [vmem:[#allocation3 + $0xa8] sm:$0xff] %v1418
          %1455 = vst [vmem:[#allocation3 + $0xb0] sm:$0xff] %v1419
          %1456 = vst [vmem:[#allocation3 + $0xb8] sm:$0xff] %v1420
          %1457 = vst [vmem:[#allocation3 + $0xc0] sm:$0xff] %v1421
          %1458 = vst [vmem:[#allocation3 + $0xc8] sm:$0xff] %v1422
          %1459 = vst [vmem:[#allocation3 + $0xd0] sm:$0xff] %v1423
          %1460 = vst [vmem:[#allocation3 + $0xd8] sm:$0xff] %v1424
          %1461 = vst [vmem:[#allocation3 + $0xe0] sm:$0xff] %v1425
          %1462 = vst [vmem:[#allocation3 + $0xe8] sm:$0xff] %v1426
          %1463 = vst [vmem:[#allocation3 + $0xf0] sm:$0xff] %v1427
          %1464 = vst [vmem:[#allocation3 + $0xf8] sm:$0xff] %v1428
          %1465 = vst [vmem:[#allocation3 + $0x100] sm:$0xff] %v1429
          %1466 = vst [vmem:[#allocation3 + $0x108] sm:$0xff] %v1430
          %1467 = vst [vmem:[#allocation3 + $0x110] sm:$0xff] %v1431
          %1468 = vst [vmem:[#allocation3 + $0x118] sm:$0xff] %v1432
        $region144: #{actor_critic_forward.1} parent=95 // pred_fallthru
          _
        %v1469 = vld [vmem:[#allocation2] sm:$0xc0]
        %v1470 = vld [vmem:[#allocation2 + $0x8] sm:$0xc0]
        %v1471 = vld [vmem:[#allocation2 + $0x10] sm:$0xff]
        %v1472 = vld [vmem:[#allocation2 + $0x18] sm:$0xff]
        %v1473 = vld [vmem:[#allocation2 + $0x20] sm:$0xff]
        %v1474 = vld [vmem:[#allocation2 + $0x28] sm:$0xff]
        %v1475 = vld [vmem:[#allocation2 + $0x30] sm:$0xff]
        %v1476 = vld [vmem:[#allocation2 + $0x38] sm:$0xff]
        %v1477 = vld [vmem:[#allocation2 + $0x40] sm:$0xff]
        %v1478 = vld [vmem:[#allocation2 + $0x48] sm:$0xff]
        %v1479 = vld [vmem:[#allocation2 + $0x50] sm:$0xff]
        %v1480 = vld [vmem:[#allocation2 + $0x58] sm:$0xff]
        %v1481 = vld [vmem:[#allocation2 + $0x60] sm:$0xff]
        %v1482 = vld [vmem:[#allocation2 + $0x68] sm:$0xff]
        %v1483 = vld [vmem:[#allocation2 + $0x70] sm:$0xff]
        %v1484 = vld [vmem:[#allocation2 + $0x78] sm:$0xff]
        %v1485 = vld [vmem:[#allocation2 + $0x80] sm:$0xff]
        %v1486 = vld [vmem:[#allocation2 + $0x88] sm:$0xff]
        %v1487 = vld [vmem:[#allocation2 + $0x90] sm:$0xff]
        %v1488 = vld [vmem:[#allocation2 + $0x98] sm:$0xff]
        %v1489 = vld [vmem:[#allocation2 + $0xa0] sm:$0xff]
        %v1490 = vld [vmem:[#allocation2 + $0xa8] sm:$0xff]
        %v1491 = vld [vmem:[#allocation2 + $0xb0] sm:$0xff]
        %v1492 = vld [vmem:[#allocation2 + $0xb8] sm:$0xff]
        %v1493 = vld [vmem:[#allocation2 + $0xc0] sm:$0xff]
        %v1494 = vld [vmem:[#allocation2 + $0xc8] sm:$0xff]
        %v1495 = vld [vmem:[#allocation2 + $0xd0] sm:$0xff]
        %v1496 = vld [vmem:[#allocation2 + $0xd8] sm:$0xff]
        %v1497 = vld [vmem:[#allocation2 + $0xe0] sm:$0xff]
        %v1498 = vld [vmem:[#allocation2 + $0xe8] sm:$0xff]
        %v1499 = vld [vmem:[#allocation2 + $0xf0] sm:$0xff]
        %v1500 = vld [vmem:[#allocation2 + $0xf8] sm:$0xff]
        %v1501 = vld [vmem:[#allocation2 + $0x100] sm:$0xff]
        %v1502 = vld [vmem:[#allocation2 + $0x108] sm:$0xff]
        %v1503 = vld [vmem:[#allocation2 + $0x110] sm:$0xff]
        %v1504 = vld [vmem:[#allocation2 + $0x118] sm:$0xff]
        %v1505 = vld [vmem:[#allocation2 + $0x120] sm:$0x3f]
        %v1506 = vld [vmem:[#allocation2 + $0x128] sm:$0x3f]
        %v1507 = vpack.c.bf16 %v1471, %v1469
        %v1508 = vpack.c.bf16 %v1472, %v1470
        %v1509 = vpack.c.bf16 %v1475, %v1473
        %v1510 = vpack.c.bf16 %v1476, %v1474
        %v1511 = vpack.c.bf16 %v1479, %v1477
        %v1512 = vpack.c.bf16 %v1480, %v1478
        %v1513 = vpack.c.bf16 %v1483, %v1481
        %v1514 = vpack.c.bf16 %v1484, %v1482
        %v1515 = vpack.c.bf16 %v1487, %v1485
        %v1516 = vpack.c.bf16 %v1488, %v1486
        %v1517 = vpack.c.bf16 %v1491, %v1489
        %v1518 = vpack.c.bf16 %v1492, %v1490
        %v1519 = vpack.c.bf16 %v1495, %v1493
        %v1520 = vpack.c.bf16 %v1496, %v1494
        %v1521 = vpack.c.bf16 %v1499, %v1497
        %v1522 = vpack.c.bf16 %v1500, %v1498
        %v1523 = vpack.c.bf16 %v1503, %v1501
        %v1524 = vpack.c.bf16 %v1504, %v1502
        %v1525 = vpack.c.bf16 %v1505, %v1505
        %v1526 = vpack.c.bf16 %v1506, %v1506
        %v1527 = vld [vmem:[%s701] sm:$0xff]
        %v1528 = vld [vmem:[%s701 + $0x8] sm:$0xff]
        %v1529 = vld [vmem:[%s701 + $0x10] sm:$0xff]
        %v1530 = vld [vmem:[%s701 + $0x18] sm:$0xff]
        %v1531 = vld [vmem:[%s701 + $0x20] sm:$0xff]
        %v1532 = vld [vmem:[%s701 + $0x28] sm:$0xff]
        %v1533 = vld [vmem:[%s701 + $0x30] sm:$0xff]
        %v1534 = vld [vmem:[%s701 + $0x38] sm:$0xff]
        %v1535 = vld [vmem:[%s701 + $0x40] sm:$0xff]
        %v1536 = vld [vmem:[%s701 + $0x48] sm:$0xff]
        %v1537 = vld [vmem:[%s701 + $0x50] sm:$0xff]
        %v1538 = vld [vmem:[%s701 + $0x58] sm:$0xff]
        %v1539 = vld [vmem:[%s701 + $0x60] sm:$0xff]
        %v1540 = vld [vmem:[%s701 + $0x68] sm:$0xff]
        %v1541 = vld [vmem:[%s701 + $0x70] sm:$0xff]
        %v1542 = vld [vmem:[%s701 + $0x78] sm:$0xff]
        %v1543 = vld [vmem:[%s701 + $0x80] sm:$0xff]
        %v1544 = vld [vmem:[%s701 + $0x88] sm:$0xff]
        %v1545 = vld [vmem:[%s701 + $0x90] sm:$0xff]
        %v1546 = vld [vmem:[%s701 + $0x98] sm:$0xff]
        %v1547 = vld [vmem:[%s701 + $0xa0] sm:$0xff]
        %v1548 = vld [vmem:[%s701 + $0xa8] sm:$0xff]
        %v1549 = vld [vmem:[%s701 + $0xb0] sm:$0xff]
        %v1550 = vld [vmem:[%s701 + $0xb8] sm:$0xff]
        %v1551 = vld [vmem:[%s701 + $0xc0] sm:$0xff]
        %v1552 = vld [vmem:[%s701 + $0xc8] sm:$0xff]
        %v1553 = vld [vmem:[%s701 + $0xd0] sm:$0xff]
        %v1554 = vld [vmem:[%s701 + $0xd8] sm:$0xff]
        %v1555 = vld [vmem:[%s701 + $0xe0] sm:$0xff]
        %v1556 = vld [vmem:[%s701 + $0xe8] sm:$0xff]
        %v1557 = vld [vmem:[%s701 + $0xf0] sm:$0xff]
        %v1558 = vld [vmem:[%s701 + $0xf8] sm:$0xff]
        %v1559 = vld [vmem:[#allocation2] sm:$0x80]
        %v1560 = vld [vmem:[#allocation2 + $0x8] sm:$0x80]
        %v1561 = vld [vmem:[#allocation2 + $0x120] sm:$0x7f]
        %v1562 = vld [vmem:[#allocation2 + $0x128] sm:$0x7f]
        %v1563 = vpack.c.bf16 %v1471, %v1559
        %v1564 = vpack.c.bf16 %v1472, %v1560
        %v1565 = vpack.c.bf16 %v1561, %v1561
        %v1566 = vpack.c.bf16 %v1562, %v1562
        %s1567 = scalar_lea.vmem %s701, 256 [#allocation10]
        %v1568 = vld [vmem:[%s1567] sm:$0xff]
        %v1569 = vld [vmem:[%s1567 + $0x8] sm:$0xff]
        %v1570 = vld [vmem:[%s1567 + $0x10] sm:$0xff]
        %v1571 = vld [vmem:[%s1567 + $0x18] sm:$0xff]
        %v1572 = vld [vmem:[%s1567 + $0x20] sm:$0xff]
        %v1573 = vld [vmem:[%s1567 + $0x28] sm:$0xff]
        %v1574 = vld [vmem:[%s1567 + $0x30] sm:$0xff]
        %v1575 = vld [vmem:[%s1567 + $0x38] sm:$0xff]
        %v1576 = vld [vmem:[%s1567 + $0x40] sm:$0xff]
        %v1577 = vld [vmem:[%s1567 + $0x48] sm:$0xff]
        %v1578 = vld [vmem:[%s1567 + $0x50] sm:$0xff]
        %v1579 = vld [vmem:[%s1567 + $0x58] sm:$0xff]
        %v1580 = vld [vmem:[%s1567 + $0x60] sm:$0xff]
        %v1581 = vld [vmem:[%s1567 + $0x68] sm:$0xff]
        %v1582 = vld [vmem:[%s1567 + $0x70] sm:$0xff]
        %v1583 = vld [vmem:[%s1567 + $0x78] sm:$0xff]
        %v1584 = vld [vmem:[%s1567 + $0x80] sm:$0xff]
        %v1585 = vld [vmem:[%s1567 + $0x88] sm:$0xff]
        %v1586 = vld [vmem:[%s1567 + $0x90] sm:$0xff]
        %v1587 = vld [vmem:[%s1567 + $0x98] sm:$0xff]
        %v1588 = vld [vmem:[%s1567 + $0xa0] sm:$0xff]
        %v1589 = vld [vmem:[%s1567 + $0xa8] sm:$0xff]
        %v1590 = vld [vmem:[%s1567 + $0xb0] sm:$0xff]
        %v1591 = vld [vmem:[%s1567 + $0xb8] sm:$0xff]
        %v1592 = vld [vmem:[%s1567 + $0xc0] sm:$0xff]
        %v1593 = vld [vmem:[%s1567 + $0xc8] sm:$0xff]
        %v1594 = vld [vmem:[%s1567 + $0xd0] sm:$0xff]
        %v1595 = vld [vmem:[%s1567 + $0xd8] sm:$0xff]
        %v1596 = vld [vmem:[%s1567 + $0xe0] sm:$0xff]
        %v1597 = vld [vmem:[%s1567 + $0xe8] sm:$0xff]
        %v1598 = vld [vmem:[%s1567 + $0xf0] sm:$0xff]
        %v1599 = vld [vmem:[%s1567 + $0xf8] sm:$0xff]
        %vm1600 = vsmask.f32 4352
        %v1602 = vshrl.u32 %v1563, 16
        %v1604 = vrot.slane %v1602, 3
        %v1605 = vshll.u32 %v1563, 16
        %v1607 = vrot.slane %v1605, 4
        %v1608 = vor.u32 %v1604, %v1607
        %v1610 = vshrl.u32 %v1509, 16
        %v1612 = vrot.slane %v1610, 3
        %v1613 = vshll.u32 %v1509, 16
        %v1615 = vrot.slane %v1613, 4
        %v1616 = vor.u32 %v1612, %v1615
        %v1617 = vsel %vm1600, %v1608, %v1616
        %v1619 = vshrl.u32 %v1564, 16
        %v1621 = vrot.slane %v1619, 3
        %v1622 = vshll.u32 %v1564, 16
        %v1624 = vrot.slane %v1622, 4
        %v1625 = vor.u32 %v1621, %v1624
        %v1627 = vshrl.u32 %v1510, 16
        %v1629 = vrot.slane %v1627, 3
        %v1630 = vshll.u32 %v1510, 16
        %v1632 = vrot.slane %v1630, 4
        %v1633 = vor.u32 %v1629, %v1632
        %v1634 = vsel %vm1600, %v1625, %v1633
        %v1636 = vshrl.u32 %v1511, 16
        %v1638 = vrot.slane %v1636, 3
        %v1639 = vshll.u32 %v1511, 16
        %v1641 = vrot.slane %v1639, 4
        %v1642 = vor.u32 %v1638, %v1641
        %v1643 = vsel %vm1600, %v1616, %v1642
        %v1645 = vshrl.u32 %v1512, 16
        %v1647 = vrot.slane %v1645, 3
        %v1648 = vshll.u32 %v1512, 16
        %v1650 = vrot.slane %v1648, 4
        %v1651 = vor.u32 %v1647, %v1650
        %v1652 = vsel %vm1600, %v1633, %v1651
        %v1654 = vshrl.u32 %v1513, 16
        %v1656 = vrot.slane %v1654, 3
        %v1657 = vshll.u32 %v1513, 16
        %v1659 = vrot.slane %v1657, 4
        %v1660 = vor.u32 %v1656, %v1659
        %v1661 = vsel %vm1600, %v1642, %v1660
        %v1663 = vshrl.u32 %v1514, 16
        %v1665 = vrot.slane %v1663, 3
        %v1666 = vshll.u32 %v1514, 16
        %v1668 = vrot.slane %v1666, 4
        %v1669 = vor.u32 %v1665, %v1668
        %v1670 = vsel %vm1600, %v1651, %v1669
        %v1672 = vshrl.u32 %v1515, 16
        %v1674 = vrot.slane %v1672, 3
        %v1675 = vshll.u32 %v1515, 16
        %v1677 = vrot.slane %v1675, 4
        %v1678 = vor.u32 %v1674, %v1677
        %v1679 = vsel %vm1600, %v1660, %v1678
        %v1681 = vshrl.u32 %v1516, 16
        %v1683 = vrot.slane %v1681, 3
        %v1684 = vshll.u32 %v1516, 16
        %v1686 = vrot.slane %v1684, 4
        %v1687 = vor.u32 %v1683, %v1686
        %v1688 = vsel %vm1600, %v1669, %v1687
        %v1690 = vshrl.u32 %v1517, 16
        %v1692 = vrot.slane %v1690, 3
        %v1693 = vshll.u32 %v1517, 16
        %v1695 = vrot.slane %v1693, 4
        %v1696 = vor.u32 %v1692, %v1695
        %v1697 = vsel %vm1600, %v1678, %v1696
        %v1699 = vshrl.u32 %v1518, 16
        %v1701 = vrot.slane %v1699, 3
        %v1702 = vshll.u32 %v1518, 16
        %v1704 = vrot.slane %v1702, 4
        %v1705 = vor.u32 %v1701, %v1704
        %v1706 = vsel %vm1600, %v1687, %v1705
        %v1708 = vshrl.u32 %v1519, 16
        %v1710 = vrot.slane %v1708, 3
        %v1711 = vshll.u32 %v1519, 16
        %v1713 = vrot.slane %v1711, 4
        %v1714 = vor.u32 %v1710, %v1713
        %v1715 = vsel %vm1600, %v1696, %v1714
        %v1717 = vshrl.u32 %v1520, 16
        %v1719 = vrot.slane %v1717, 3
        %v1720 = vshll.u32 %v1520, 16
        %v1722 = vrot.slane %v1720, 4
        %v1723 = vor.u32 %v1719, %v1722
        %v1724 = vsel %vm1600, %v1705, %v1723
        %v1726 = vshrl.u32 %v1521, 16
        %v1728 = vrot.slane %v1726, 3
        %v1729 = vshll.u32 %v1521, 16
        %v1731 = vrot.slane %v1729, 4
        %v1732 = vor.u32 %v1728, %v1731
        %v1733 = vsel %vm1600, %v1714, %v1732
        %v1735 = vshrl.u32 %v1522, 16
        %v1737 = vrot.slane %v1735, 3
        %v1738 = vshll.u32 %v1522, 16
        %v1740 = vrot.slane %v1738, 4
        %v1741 = vor.u32 %v1737, %v1740
        %v1742 = vsel %vm1600, %v1723, %v1741
        %v1744 = vshrl.u32 %v1523, 16
        %v1746 = vrot.slane %v1744, 3
        %v1747 = vshll.u32 %v1523, 16
        %v1749 = vrot.slane %v1747, 4
        %v1750 = vor.u32 %v1746, %v1749
        %v1751 = vsel %vm1600, %v1732, %v1750
        %v1753 = vshrl.u32 %v1524, 16
        %v1755 = vrot.slane %v1753, 3
        %v1756 = vshll.u32 %v1524, 16
        %v1758 = vrot.slane %v1756, 4
        %v1759 = vor.u32 %v1755, %v1758
        %v1760 = vsel %vm1600, %v1741, %v1759
        %v1762 = vshrl.u32 %v1565, 16
        %v1764 = vrot.slane %v1762, 3
        %v1765 = vshll.u32 %v1565, 16
        %v1767 = vrot.slane %v1765, 4
        %v1768 = vor.u32 %v1764, %v1767
        %v1769 = vsel %vm1600, %v1750, %v1768
        %v1771 = vshrl.u32 %v1566, 16
        %v1773 = vrot.slane %v1771, 3
        %v1774 = vshll.u32 %v1566, 16
        %v1776 = vrot.slane %v1774, 4
        %v1777 = vor.u32 %v1773, %v1776
        %v1778 = vsel %vm1600, %v1759, %v1777
        %v1829 = vunpack.c.l.b16 %v1568
        %v1830 = vunpack.c.h.b16 %v1568
        %v1831 = vunpack.c.l.b16 %v1569
        %v1832 = vunpack.c.h.b16 %v1569
        %v1833 = vunpack.c.l.b16 %v1570
        %v1834 = vunpack.c.h.b16 %v1570
        %v1835 = vunpack.c.l.b16 %v1571
        %v1836 = vunpack.c.h.b16 %v1571
        %v1837 = vunpack.c.l.b16 %v1572
        %v1838 = vunpack.c.h.b16 %v1572
        %v1839 = vunpack.c.l.b16 %v1573
        %v1840 = vunpack.c.h.b16 %v1573
        %v1841 = vunpack.c.l.b16 %v1574
        %v1842 = vunpack.c.h.b16 %v1574
        %v1843 = vunpack.c.l.b16 %v1575
        %v1844 = vunpack.c.h.b16 %v1575
        %v1845 = vunpack.c.l.b16 %v1576
        %v1846 = vunpack.c.h.b16 %v1576
        %v1847 = vunpack.c.l.b16 %v1577
        %v1848 = vunpack.c.h.b16 %v1577
        %v1849 = vunpack.c.l.b16 %v1578
        %v1850 = vunpack.c.h.b16 %v1578
        %v1851 = vunpack.c.l.b16 %v1579
        %v1852 = vunpack.c.h.b16 %v1579
        %v1853 = vunpack.c.l.b16 %v1580
        %v1854 = vunpack.c.h.b16 %v1580
        %v1855 = vunpack.c.l.b16 %v1581
        %v1856 = vunpack.c.h.b16 %v1581
        %v1857 = vunpack.c.l.b16 %v1582
        %v1858 = vunpack.c.h.b16 %v1582
        %v1859 = vunpack.c.l.b16 %v1583
        %v1860 = vunpack.c.h.b16 %v1583
        %v1861 = vunpack.c.l.b16 %v1584
        %v1862 = vunpack.c.h.b16 %v1584
        %v1863 = vunpack.c.l.b16 %v1585
        %v1864 = vunpack.c.h.b16 %v1585
        %v1865 = vunpack.c.l.b16 %v1586
        %v1866 = vunpack.c.h.b16 %v1586
        %v1867 = vunpack.c.l.b16 %v1587
        %v1868 = vunpack.c.h.b16 %v1587
        %v1869 = vunpack.c.l.b16 %v1588
        %v1870 = vunpack.c.h.b16 %v1588
        %v1871 = vunpack.c.l.b16 %v1589
        %v1872 = vunpack.c.h.b16 %v1589
        %v1873 = vunpack.c.l.b16 %v1590
        %v1874 = vunpack.c.h.b16 %v1590
        %v1875 = vunpack.c.l.b16 %v1591
        %v1876 = vunpack.c.h.b16 %v1591
        %v1877 = vunpack.c.l.b16 %v1592
        %v1878 = vunpack.c.h.b16 %v1592
        %v1879 = vunpack.c.l.b16 %v1593
        %v1880 = vunpack.c.h.b16 %v1593
        %v1881 = vunpack.c.l.b16 %v1594
        %v1882 = vunpack.c.h.b16 %v1594
        %v1883 = vunpack.c.l.b16 %v1595
        %v1884 = vunpack.c.h.b16 %v1595
        %v1885 = vunpack.c.l.b16 %v1596
        %v1886 = vunpack.c.h.b16 %v1596
        %v1887 = vunpack.c.l.b16 %v1597
        %v1888 = vunpack.c.h.b16 %v1597
        %v1889 = vunpack.c.l.b16 %v1598
        %v1890 = vunpack.c.h.b16 %v1598
        %v1891 = vunpack.c.l.b16 %v1599
        %v1892 = vunpack.c.h.b16 %v1599
        %v1893 = vpack.c.b16 %v1831, %v1829
        %v1894 = vpack.c.b16 %v1832, %v1830
        %v1895 = vpack.c.b16 %v1835, %v1833
        %v1896 = vpack.c.b16 %v1836, %v1834
        %v1897 = vpack.c.b16 %v1839, %v1837
        %v1898 = vpack.c.b16 %v1840, %v1838
        %v1899 = vpack.c.b16 %v1843, %v1841
        %v1900 = vpack.c.b16 %v1844, %v1842
        %v1901 = vpack.c.b16 %v1847, %v1845
        %v1902 = vpack.c.b16 %v1848, %v1846
        %v1903 = vpack.c.b16 %v1851, %v1849
        %v1904 = vpack.c.b16 %v1852, %v1850
        %v1905 = vpack.c.b16 %v1855, %v1853
        %v1906 = vpack.c.b16 %v1856, %v1854
        %v1907 = vpack.c.b16 %v1859, %v1857
        %v1908 = vpack.c.b16 %v1860, %v1858
        %v1909 = vpack.c.b16 %v1863, %v1861
        %v1910 = vpack.c.b16 %v1864, %v1862
        %v1911 = vpack.c.b16 %v1867, %v1865
        %v1912 = vpack.c.b16 %v1868, %v1866
        %v1913 = vpack.c.b16 %v1871, %v1869
        %v1914 = vpack.c.b16 %v1872, %v1870
        %v1915 = vpack.c.b16 %v1875, %v1873
        %v1916 = vpack.c.b16 %v1876, %v1874
        %v1917 = vpack.c.b16 %v1879, %v1877
        %v1918 = vpack.c.b16 %v1880, %v1878
        %v1919 = vpack.c.b16 %v1883, %v1881
        %v1920 = vpack.c.b16 %v1884, %v1882
        %v1921 = vpack.c.b16 %v1887, %v1885
        %v1922 = vpack.c.b16 %v1888, %v1886
        %v1923 = vpack.c.b16 %v1891, %v1889
        %v1924 = vpack.c.b16 %v1892, %v1890
        %1957 = vmatpush.bf16.msra.mxu0 %v1907
        %1958 = vmatpush.bf16.msra.mxu0 %v1905
        %1959 = vmatpush.bf16.msra.mxu0 %v1903
        %1960 = vmatpush.bf16.msra.mxu0 %v1901
        %1961 = vmatpush.bf16.msra.mxu0 %v1899
        %1962 = vmatpush.bf16.msra.mxu0 %v1897
        %1963 = vmatpush.bf16.msra.mxu0 %v1895
        %1964 = vmatpush.bf16.msra.mxu0 %v1893
        %1965 = vmatmul.bf16.gmra.mxu0 %v1617
        %v1966 = vpop.f32.mrf.mxu0
        %v1967 = vadd.f32 0.0, %v1966
        %v1968 = vpop.f32.mrf.mxu0
        %v1969 = vadd.f32 0.0, %v1968
        %1970 = vmatmul.bf16.gmra.mxu0 %v1643
        %v1971 = vpop.f32.mrf.mxu0
        %v1972 = vadd.f32 0.0, %v1971
        %v1973 = vpop.f32.mrf.mxu0
        %v1974 = vadd.f32 0.0, %v1973
        %1975 = vmatmul.bf16.gmra.mxu0 %v1661
        %v1976 = vpop.f32.mrf.mxu0
        %v1977 = vadd.f32 0.0, %v1976
        %v1978 = vpop.f32.mrf.mxu0
        %v1979 = vadd.f32 0.0, %v1978
        %1980 = vmatmul.bf16.gmra.mxu0 %v1679
        %v1981 = vpop.f32.mrf.mxu0
        %v1982 = vadd.f32 0.0, %v1981
        %v1983 = vpop.f32.mrf.mxu0
        %v1984 = vadd.f32 0.0, %v1983
        %1985 = vmatmul.bf16.gmra.mxu0 %v1697
        %v1986 = vpop.f32.mrf.mxu0
        %v1987 = vadd.f32 0.0, %v1986
        %v1988 = vpop.f32.mrf.mxu0
        %v1989 = vadd.f32 0.0, %v1988
        %1990 = vmatmul.bf16.gmra.mxu0 %v1715
        %v1991 = vpop.f32.mrf.mxu0
        %v1992 = vadd.f32 0.0, %v1991
        %v1993 = vpop.f32.mrf.mxu0
        %v1994 = vadd.f32 0.0, %v1993
        %1995 = vmatmul.bf16.gmra.mxu0 %v1733
        %v1996 = vpop.f32.mrf.mxu0
        %v1997 = vadd.f32 0.0, %v1996
        %v1998 = vpop.f32.mrf.mxu0
        %v1999 = vadd.f32 0.0, %v1998
        %2000 = vmatmul.bf16.gmra.mxu0 %v1751
        %v2001 = vpop.f32.mrf.mxu0
        %v2002 = vadd.f32 0.0, %v2001
        %v2003 = vpop.f32.mrf.mxu0
        %v2004 = vadd.f32 0.0, %v2003
        %2005 = vmatmul.bf16.gmra.mxu0 %v1769
        %v2006 = vpop.f32.mrf.mxu0
        %v2007 = vadd.f32 0.0, %v2006
        %v2008 = vpop.f32.mrf.mxu0
        %v2009 = vadd.f32 0.0, %v2008
        %2010 = vdwg.mxu0
        %2011 = vmatpush.bf16.msra.mxu0 %v1923
        %2012 = vmatpush.bf16.msra.mxu0 %v1921
        %2013 = vmatpush.bf16.msra.mxu0 %v1919
        %2014 = vmatpush.bf16.msra.mxu0 %v1917
        %2015 = vmatpush.bf16.msra.mxu0 %v1915
        %2016 = vmatpush.bf16.msra.mxu0 %v1913
        %2017 = vmatpush.bf16.msra.mxu0 %v1911
        %2018 = vmatpush.bf16.msra.mxu0 %v1909
        %2019 = vmatmul.bf16.gmra.mxu0 %v1634
        %v2020 = vpop.f32.mrf.mxu0
        %v2021 = vadd.f32 %v1967, %v2020
        %v2022 = vpop.f32.mrf.mxu0
        %v2023 = vadd.f32 %v1969, %v2022
        %2024 = vmatmul.bf16.gmra.mxu0 %v1652
        %v2025 = vpop.f32.mrf.mxu0
        %v2026 = vadd.f32 %v1972, %v2025
        %v2027 = vpop.f32.mrf.mxu0
        %v2028 = vadd.f32 %v1974, %v2027
        %2029 = vmatmul.bf16.gmra.mxu0 %v1670
        %v2030 = vpop.f32.mrf.mxu0
        %v2031 = vadd.f32 %v1977, %v2030
        %v2032 = vpop.f32.mrf.mxu0
        %v2033 = vadd.f32 %v1979, %v2032
        %2034 = vmatmul.bf16.gmra.mxu0 %v1688
        %v2035 = vpop.f32.mrf.mxu0
        %v2036 = vadd.f32 %v1982, %v2035
        %v2037 = vpop.f32.mrf.mxu0
        %v2038 = vadd.f32 %v1984, %v2037
        %2039 = vmatmul.bf16.gmra.mxu0 %v1706
        %v2040 = vpop.f32.mrf.mxu0
        %v2041 = vadd.f32 %v1987, %v2040
        %v2042 = vpop.f32.mrf.mxu0
        %v2043 = vadd.f32 %v1989, %v2042
        %2044 = vmatmul.bf16.gmra.mxu0 %v1724
        %v2045 = vpop.f32.mrf.mxu0
        %v2046 = vadd.f32 %v1992, %v2045
        %v2047 = vpop.f32.mrf.mxu0
        %v2048 = vadd.f32 %v1994, %v2047
        %2049 = vmatmul.bf16.gmra.mxu0 %v1742
        %v2050 = vpop.f32.mrf.mxu0
        %v2051 = vadd.f32 %v1997, %v2050
        %v2052 = vpop.f32.mrf.mxu0
        %v2053 = vadd.f32 %v1999, %v2052
        %2054 = vmatmul.bf16.gmra.mxu0 %v1760
        %v2055 = vpop.f32.mrf.mxu0
        %v2056 = vadd.f32 %v2002, %v2055
        %v2057 = vpop.f32.mrf.mxu0
        %v2058 = vadd.f32 %v2004, %v2057
        %2059 = vmatmul.bf16.gmra.mxu0 %v1778
        %v2060 = vpop.f32.mrf.mxu0
        %v2061 = vadd.f32 %v2007, %v2060
        %v2062 = vpop.f32.mrf.mxu0
        %v2063 = vadd.f32 %v2009, %v2062
        %2064 = vdwg.mxu0
        %2065 = vmatpush.bf16.msra.mxu0 %v1908
        %2066 = vmatpush.bf16.msra.mxu0 %v1906
        %2067 = vmatpush.bf16.msra.mxu0 %v1904
        %2068 = vmatpush.bf16.msra.mxu0 %v1902
        %2069 = vmatpush.bf16.msra.mxu0 %v1900
        %2070 = vmatpush.bf16.msra.mxu0 %v1898
        %2071 = vmatpush.bf16.msra.mxu0 %v1896
        %2072 = vmatpush.bf16.msra.mxu0 %v1894
        %2073 = vmatmul.bf16.gmra.mxu0 %v1617
        %v2074 = vpop.f32.mrf.mxu0
        %v2075 = vadd.f32 0.0, %v2074
        %v2076 = vpop.f32.mrf.mxu0
        %v2077 = vadd.f32 0.0, %v2076
        %2078 = vmatmul.bf16.gmra.mxu0 %v1643
        %v2079 = vpop.f32.mrf.mxu0
        %v2080 = vadd.f32 0.0, %v2079
        %v2081 = vpop.f32.mrf.mxu0
        %v2082 = vadd.f32 0.0, %v2081
        %2083 = vmatmul.bf16.gmra.mxu0 %v1661
        %v2084 = vpop.f32.mrf.mxu0
        %v2085 = vadd.f32 0.0, %v2084
        %v2086 = vpop.f32.mrf.mxu0
        %v2087 = vadd.f32 0.0, %v2086
        %2088 = vmatmul.bf16.gmra.mxu0 %v1679
        %v2089 = vpop.f32.mrf.mxu0
        %v2090 = vadd.f32 0.0, %v2089
        %v2091 = vpop.f32.mrf.mxu0
        %v2092 = vadd.f32 0.0, %v2091
        %2093 = vmatmul.bf16.gmra.mxu0 %v1697
        %v2094 = vpop.f32.mrf.mxu0
        %v2095 = vadd.f32 0.0, %v2094
        %v2096 = vpop.f32.mrf.mxu0
        %v2097 = vadd.f32 0.0, %v2096
        %2098 = vmatmul.bf16.gmra.mxu0 %v1715
        %v2099 = vpop.f32.mrf.mxu0
        %v2100 = vadd.f32 0.0, %v2099
        %v2101 = vpop.f32.mrf.mxu0
        %v2102 = vadd.f32 0.0, %v2101
        %2103 = vmatmul.bf16.gmra.mxu0 %v1733
        %v2104 = vpop.f32.mrf.mxu0
        %v2105 = vadd.f32 0.0, %v2104
        %v2106 = vpop.f32.mrf.mxu0
        %v2107 = vadd.f32 0.0, %v2106
        %2108 = vmatmul.bf16.gmra.mxu0 %v1751
        %v2109 = vpop.f32.mrf.mxu0
        %v2110 = vadd.f32 0.0, %v2109
        %v2111 = vpop.f32.mrf.mxu0
        %v2112 = vadd.f32 0.0, %v2111
        %2113 = vmatmul.bf16.gmra.mxu0 %v1769
        %v2114 = vpop.f32.mrf.mxu0
        %v2115 = vadd.f32 0.0, %v2114
        %v2116 = vpop.f32.mrf.mxu0
        %v2117 = vadd.f32 0.0, %v2116
        %2118 = vdwg.mxu0
        %2119 = vmatpush.bf16.msra.mxu0 %v1924
        %2120 = vmatpush.bf16.msra.mxu0 %v1922
        %2121 = vmatpush.bf16.msra.mxu0 %v1920
        %2122 = vmatpush.bf16.msra.mxu0 %v1918
        %2123 = vmatpush.bf16.msra.mxu0 %v1916
        %2124 = vmatpush.bf16.msra.mxu0 %v1914
        %2125 = vmatpush.bf16.msra.mxu0 %v1912
        %2126 = vmatpush.bf16.msra.mxu0 %v1910
        %2127 = vmatmul.bf16.gmra.mxu0 %v1634
        %v2128 = vpop.f32.mrf.mxu0
        %v2129 = vadd.f32 %v2075, %v2128
        %v2130 = vpop.f32.mrf.mxu0
        %v2131 = vadd.f32 %v2077, %v2130
        %2132 = vmatmul.bf16.gmra.mxu0 %v1652
        %v2133 = vpop.f32.mrf.mxu0
        %v2134 = vadd.f32 %v2080, %v2133
        %v2135 = vpop.f32.mrf.mxu0
        %v2136 = vadd.f32 %v2082, %v2135
        %2137 = vmatmul.bf16.gmra.mxu0 %v1670
        %v2138 = vpop.f32.mrf.mxu0
        %v2139 = vadd.f32 %v2085, %v2138
        %v2140 = vpop.f32.mrf.mxu0
        %v2141 = vadd.f32 %v2087, %v2140
        %2142 = vmatmul.bf16.gmra.mxu0 %v1688
        %v2143 = vpop.f32.mrf.mxu0
        %v2144 = vadd.f32 %v2090, %v2143
        %v2145 = vpop.f32.mrf.mxu0
        %v2146 = vadd.f32 %v2092, %v2145
        %2147 = vmatmul.bf16.gmra.mxu0 %v1706
        %v2148 = vpop.f32.mrf.mxu0
        %v2149 = vadd.f32 %v2095, %v2148
        %v2150 = vpop.f32.mrf.mxu0
        %v2151 = vadd.f32 %v2097, %v2150
        %2152 = vmatmul.bf16.gmra.mxu0 %v1724
        %v2153 = vpop.f32.mrf.mxu0
        %v2154 = vadd.f32 %v2100, %v2153
        %v2155 = vpop.f32.mrf.mxu0
        %v2156 = vadd.f32 %v2102, %v2155
        %2157 = vmatmul.bf16.gmra.mxu0 %v1742
        %v2158 = vpop.f32.mrf.mxu0
        %v2159 = vadd.f32 %v2105, %v2158
        %v2160 = vpop.f32.mrf.mxu0
        %v2161 = vadd.f32 %v2107, %v2160
        %2162 = vmatmul.bf16.gmra.mxu0 %v1760
        %v2163 = vpop.f32.mrf.mxu0
        %v2164 = vadd.f32 %v2110, %v2163
        %v2165 = vpop.f32.mrf.mxu0
        %v2166 = vadd.f32 %v2112, %v2165
        %2167 = vmatmul.bf16.gmra.mxu0 %v1778
        %v2168 = vpop.f32.mrf.mxu0
        %v2169 = vadd.f32 %v2115, %v2168
        %v2170 = vpop.f32.mrf.mxu0
        %v2171 = vadd.f32 %v2117, %v2170
        %2172 = vdwg.mxu0
        %vm2193 = vcmask 1044480
        %v2194 = vrot.slane %v1507, 3
        %v2195 = vrot.slane %v1509, 3
        %v2196 = vsel %vm2193, %v2194, %v2195
        %v2197 = vrot.slane %v1508, 3
        %v2198 = vrot.slane %v1510, 3
        %v2199 = vsel %vm2193, %v2197, %v2198
        %v2200 = vrot.slane %v1511, 3
        %v2201 = vsel %vm2193, %v2195, %v2200
        %v2202 = vrot.slane %v1512, 3
        %v2203 = vsel %vm2193, %v2198, %v2202
        %v2204 = vrot.slane %v1513, 3
        %v2205 = vsel %vm2193, %v2200, %v2204
        %v2206 = vrot.slane %v1514, 3
        %v2207 = vsel %vm2193, %v2202, %v2206
        %v2208 = vrot.slane %v1515, 3
        %v2209 = vsel %vm2193, %v2204, %v2208
        %v2210 = vrot.slane %v1516, 3
        %v2211 = vsel %vm2193, %v2206, %v2210
        %v2212 = vrot.slane %v1517, 3
        %v2213 = vsel %vm2193, %v2208, %v2212
        %v2214 = vrot.slane %v1518, 3
        %v2215 = vsel %vm2193, %v2210, %v2214
        %v2216 = vrot.slane %v1519, 3
        %v2217 = vsel %vm2193, %v2212, %v2216
        %v2218 = vrot.slane %v1520, 3
        %v2219 = vsel %vm2193, %v2214, %v2218
        %v2220 = vrot.slane %v1521, 3
        %v2221 = vsel %vm2193, %v2216, %v2220
        %v2222 = vrot.slane %v1522, 3
        %v2223 = vsel %vm2193, %v2218, %v2222
        %v2224 = vrot.slane %v1523, 3
        %v2225 = vsel %vm2193, %v2220, %v2224
        %v2226 = vrot.slane %v1524, 3
        %v2227 = vsel %vm2193, %v2222, %v2226
        %v2228 = vrot.slane %v1525, 3
        %v2229 = vsel %vm2193, %v2224, %v2228
        %v2230 = vrot.slane %v1526, 3
        %v2231 = vsel %vm2193, %v2226, %v2230
        %v2282 = vunpack.c.l.b16 %v1527
        %v2283 = vunpack.c.h.b16 %v1527
        %v2284 = vunpack.c.l.b16 %v1528
        %v2285 = vunpack.c.h.b16 %v1528
        %v2286 = vunpack.c.l.b16 %v1529
        %v2287 = vunpack.c.h.b16 %v1529
        %v2288 = vunpack.c.l.b16 %v1530
        %v2289 = vunpack.c.h.b16 %v1530
        %v2290 = vunpack.c.l.b16 %v1531
        %v2291 = vunpack.c.h.b16 %v1531
        %v2292 = vunpack.c.l.b16 %v1532
        %v2293 = vunpack.c.h.b16 %v1532
        %v2294 = vunpack.c.l.b16 %v1533
        %v2295 = vunpack.c.h.b16 %v1533
        %v2296 = vunpack.c.l.b16 %v1534
        %v2297 = vunpack.c.h.b16 %v1534
        %v2298 = vunpack.c.l.b16 %v1535
        %v2299 = vunpack.c.h.b16 %v1535
        %v2300 = vunpack.c.l.b16 %v1536
        %v2301 = vunpack.c.h.b16 %v1536
        %v2302 = vunpack.c.l.b16 %v1537
        %v2303 = vunpack.c.h.b16 %v1537
        %v2304 = vunpack.c.l.b16 %v1538
        %v2305 = vunpack.c.h.b16 %v1538
        %v2306 = vunpack.c.l.b16 %v1539
        %v2307 = vunpack.c.h.b16 %v1539
        %v2308 = vunpack.c.l.b16 %v1540
        %v2309 = vunpack.c.h.b16 %v1540
        %v2310 = vunpack.c.l.b16 %v1541
        %v2311 = vunpack.c.h.b16 %v1541
        %v2312 = vunpack.c.l.b16 %v1542
        %v2313 = vunpack.c.h.b16 %v1542
        %v2314 = vunpack.c.l.b16 %v1543
        %v2315 = vunpack.c.h.b16 %v1543
        %v2316 = vunpack.c.l.b16 %v1544
        %v2317 = vunpack.c.h.b16 %v1544
        %v2318 = vunpack.c.l.b16 %v1545
        %v2319 = vunpack.c.h.b16 %v1545
        %v2320 = vunpack.c.l.b16 %v1546
        %v2321 = vunpack.c.h.b16 %v1546
        %v2322 = vunpack.c.l.b16 %v1547
        %v2323 = vunpack.c.h.b16 %v1547
        %v2324 = vunpack.c.l.b16 %v1548
        %v2325 = vunpack.c.h.b16 %v1548
        %v2326 = vunpack.c.l.b16 %v1549
        %v2327 = vunpack.c.h.b16 %v1549
        %v2328 = vunpack.c.l.b16 %v1550
        %v2329 = vunpack.c.h.b16 %v1550
        %v2330 = vunpack.c.l.b16 %v1551
        %v2331 = vunpack.c.h.b16 %v1551
        %v2332 = vunpack.c.l.b16 %v1552
        %v2333 = vunpack.c.h.b16 %v1552
        %v2334 = vunpack.c.l.b16 %v1553
        %v2335 = vunpack.c.h.b16 %v1553
        %v2336 = vunpack.c.l.b16 %v1554
        %v2337 = vunpack.c.h.b16 %v1554
        %v2338 = vunpack.c.l.b16 %v1555
        %v2339 = vunpack.c.h.b16 %v1555
        %v2340 = vunpack.c.l.b16 %v1556
        %v2341 = vunpack.c.h.b16 %v1556
        %v2342 = vunpack.c.l.b16 %v1557
        %v2343 = vunpack.c.h.b16 %v1557
        %v2344 = vunpack.c.l.b16 %v1558
        %v2345 = vunpack.c.h.b16 %v1558
        %v2346 = vpack.c.b16 %v2284, %v2282
        %v2347 = vpack.c.b16 %v2285, %v2283
        %v2348 = vpack.c.b16 %v2288, %v2286
        %v2349 = vpack.c.b16 %v2289, %v2287
        %v2350 = vpack.c.b16 %v2292, %v2290
        %v2351 = vpack.c.b16 %v2293, %v2291
        %v2352 = vpack.c.b16 %v2296, %v2294
        %v2353 = vpack.c.b16 %v2297, %v2295
        %v2354 = vpack.c.b16 %v2300, %v2298
        %v2355 = vpack.c.b16 %v2301, %v2299
        %v2356 = vpack.c.b16 %v2304, %v2302
        %v2357 = vpack.c.b16 %v2305, %v2303
        %v2358 = vpack.c.b16 %v2308, %v2306
        %v2359 = vpack.c.b16 %v2309, %v2307
        %v2360 = vpack.c.b16 %v2312, %v2310
        %v2361 = vpack.c.b16 %v2313, %v2311
        %v2362 = vpack.c.b16 %v2316, %v2314
        %v2363 = vpack.c.b16 %v2317, %v2315
        %v2364 = vpack.c.b16 %v2320, %v2318
        %v2365 = vpack.c.b16 %v2321, %v2319
        %v2366 = vpack.c.b16 %v2324, %v2322
        %v2367 = vpack.c.b16 %v2325, %v2323
        %v2368 = vpack.c.b16 %v2328, %v2326
        %v2369 = vpack.c.b16 %v2329, %v2327
        %v2370 = vpack.c.b16 %v2332, %v2330
        %v2371 = vpack.c.b16 %v2333, %v2331
        %v2372 = vpack.c.b16 %v2336, %v2334
        %v2373 = vpack.c.b16 %v2337, %v2335
        %v2374 = vpack.c.b16 %v2340, %v2338
        %v2375 = vpack.c.b16 %v2341, %v2339
        %v2376 = vpack.c.b16 %v2344, %v2342
        %v2377 = vpack.c.b16 %v2345, %v2343
        %2410 = vmatpush.bf16.msra.mxu0 %v2360
        %2411 = vmatpush.bf16.msra.mxu0 %v2358
        %2412 = vmatpush.bf16.msra.mxu0 %v2356
        %2413 = vmatpush.bf16.msra.mxu0 %v2354
        %2414 = vmatpush.bf16.msra.mxu0 %v2352
        %2415 = vmatpush.bf16.msra.mxu0 %v2350
        %2416 = vmatpush.bf16.msra.mxu0 %v2348
        %2417 = vmatpush.bf16.msra.mxu0 %v2346
        %2418 = vmatmul.bf16.gmra.mxu0 %v2196
        %v2419 = vpop.f32.mrf.mxu0
        %v2420 = vadd.f32 %v2021, %v2419
        %v2421 = vpop.f32.mrf.mxu0
        %v2422 = vadd.f32 %v2023, %v2421
        %2423 = vmatmul.bf16.gmra.mxu0 %v2201
        %v2424 = vpop.f32.mrf.mxu0
        %v2425 = vadd.f32 %v2026, %v2424
        %v2426 = vpop.f32.mrf.mxu0
        %v2427 = vadd.f32 %v2028, %v2426
        %2428 = vmatmul.bf16.gmra.mxu0 %v2205
        %v2429 = vpop.f32.mrf.mxu0
        %v2430 = vadd.f32 %v2031, %v2429
        %v2431 = vpop.f32.mrf.mxu0
        %v2432 = vadd.f32 %v2033, %v2431
        %2433 = vmatmul.bf16.gmra.mxu0 %v2209
        %v2434 = vpop.f32.mrf.mxu0
        %v2435 = vadd.f32 %v2036, %v2434
        %v2436 = vpop.f32.mrf.mxu0
        %v2437 = vadd.f32 %v2038, %v2436
        %2438 = vmatmul.bf16.gmra.mxu0 %v2213
        %v2439 = vpop.f32.mrf.mxu0
        %v2440 = vadd.f32 %v2041, %v2439
        %v2441 = vpop.f32.mrf.mxu0
        %v2442 = vadd.f32 %v2043, %v2441
        %2443 = vmatmul.bf16.gmra.mxu0 %v2217
        %v2444 = vpop.f32.mrf.mxu0
        %v2445 = vadd.f32 %v2046, %v2444
        %v2446 = vpop.f32.mrf.mxu0
        %v2447 = vadd.f32 %v2048, %v2446
        %2448 = vmatmul.bf16.gmra.mxu0 %v2221
        %v2449 = vpop.f32.mrf.mxu0
        %v2450 = vadd.f32 %v2051, %v2449
        %v2451 = vpop.f32.mrf.mxu0
        %v2452 = vadd.f32 %v2053, %v2451
        %2453 = vmatmul.bf16.gmra.mxu0 %v2225
        %v2454 = vpop.f32.mrf.mxu0
        %v2455 = vadd.f32 %v2056, %v2454
        %v2456 = vpop.f32.mrf.mxu0
        %v2457 = vadd.f32 %v2058, %v2456
        %2458 = vmatmul.bf16.gmra.mxu0 %v2229
        %v2459 = vpop.f32.mrf.mxu0
        %v2460 = vadd.f32 %v2061, %v2459
        %v2461 = vpop.f32.mrf.mxu0
        %v2462 = vadd.f32 %v2063, %v2461
        %2463 = vdwg.mxu0
        %2464 = vmatpush.bf16.msra.mxu0 %v2376
        %2465 = vmatpush.bf16.msra.mxu0 %v2374
        %2466 = vmatpush.bf16.msra.mxu0 %v2372
        %2467 = vmatpush.bf16.msra.mxu0 %v2370
        %2468 = vmatpush.bf16.msra.mxu0 %v2368
        %2469 = vmatpush.bf16.msra.mxu0 %v2366
        %2470 = vmatpush.bf16.msra.mxu0 %v2364
        %2471 = vmatpush.bf16.msra.mxu0 %v2362
        %2472 = vmatmul.bf16.gmra.mxu0 %v2199
        %v2473 = vpop.f32.mrf.mxu0
        %v2474 = vadd.f32 %v2420, %v2473
        %v2475 = vpop.f32.mrf.mxu0
        %v2476 = vadd.f32 %v2422, %v2475
        %2477 = vmatmul.bf16.gmra.mxu0 %v2203
        %v2478 = vpop.f32.mrf.mxu0
        %v2479 = vadd.f32 %v2425, %v2478
        %v2480 = vpop.f32.mrf.mxu0
        %v2481 = vadd.f32 %v2427, %v2480
        %2482 = vmatmul.bf16.gmra.mxu0 %v2207
        %v2483 = vpop.f32.mrf.mxu0
        %v2484 = vadd.f32 %v2430, %v2483
        %v2485 = vpop.f32.mrf.mxu0
        %v2486 = vadd.f32 %v2432, %v2485
        %2487 = vmatmul.bf16.gmra.mxu0 %v2211
        %v2488 = vpop.f32.mrf.mxu0
        %v2489 = vadd.f32 %v2435, %v2488
        %v2490 = vpop.f32.mrf.mxu0
        %v2491 = vadd.f32 %v2437, %v2490
        %2492 = vmatmul.bf16.gmra.mxu0 %v2215
        %v2493 = vpop.f32.mrf.mxu0
        %v2494 = vadd.f32 %v2440, %v2493
        %v2495 = vpop.f32.mrf.mxu0
        %v2496 = vadd.f32 %v2442, %v2495
        %2497 = vmatmul.bf16.gmra.mxu0 %v2219
        %v2498 = vpop.f32.mrf.mxu0
        %v2499 = vadd.f32 %v2445, %v2498
        %v2500 = vpop.f32.mrf.mxu0
        %v2501 = vadd.f32 %v2447, %v2500
        %2502 = vmatmul.bf16.gmra.mxu0 %v2223
        %v2503 = vpop.f32.mrf.mxu0
        %v2504 = vadd.f32 %v2450, %v2503
        %v2505 = vpop.f32.mrf.mxu0
        %v2506 = vadd.f32 %v2452, %v2505
        %2507 = vmatmul.bf16.gmra.mxu0 %v2227
        %v2508 = vpop.f32.mrf.mxu0
        %v2509 = vadd.f32 %v2455, %v2508
        %v2510 = vpop.f32.mrf.mxu0
        %v2511 = vadd.f32 %v2457, %v2510
        %2512 = vmatmul.bf16.gmra.mxu0 %v2231
        %v2513 = vpop.f32.mrf.mxu0
        %v2514 = vadd.f32 %v2460, %v2513
        %v2515 = vpop.f32.mrf.mxu0
        %v2516 = vadd.f32 %v2462, %v2515
        %2517 = vdwg.mxu0
        %2518 = vmatpush.bf16.msra.mxu0 %v2361
        %2519 = vmatpush.bf16.msra.mxu0 %v2359
        %2520 = vmatpush.bf16.msra.mxu0 %v2357
        %2521 = vmatpush.bf16.msra.mxu0 %v2355
        %2522 = vmatpush.bf16.msra.mxu0 %v2353
        %2523 = vmatpush.bf16.msra.mxu0 %v2351
        %2524 = vmatpush.bf16.msra.mxu0 %v2349
        %2525 = vmatpush.bf16.msra.mxu0 %v2347
        %2526 = vmatmul.bf16.gmra.mxu0 %v2196
        %v2527 = vpop.f32.mrf.mxu0
        %v2528 = vadd.f32 %v2129, %v2527
        %v2529 = vpop.f32.mrf.mxu0
        %v2530 = vadd.f32 %v2131, %v2529
        %2531 = vmatmul.bf16.gmra.mxu0 %v2201
        %v2532 = vpop.f32.mrf.mxu0
        %v2533 = vadd.f32 %v2134, %v2532
        %v2534 = vpop.f32.mrf.mxu0
        %v2535 = vadd.f32 %v2136, %v2534
        %2536 = vmatmul.bf16.gmra.mxu0 %v2205
        %v2537 = vpop.f32.mrf.mxu0
        %v2538 = vadd.f32 %v2139, %v2537
        %v2539 = vpop.f32.mrf.mxu0
        %v2540 = vadd.f32 %v2141, %v2539
        %2541 = vmatmul.bf16.gmra.mxu0 %v2209
        %v2542 = vpop.f32.mrf.mxu0
        %v2543 = vadd.f32 %v2144, %v2542
        %v2544 = vpop.f32.mrf.mxu0
        %v2545 = vadd.f32 %v2146, %v2544
        %2546 = vmatmul.bf16.gmra.mxu0 %v2213
        %v2547 = vpop.f32.mrf.mxu0
        %v2548 = vadd.f32 %v2149, %v2547
        %v2549 = vpop.f32.mrf.mxu0
        %v2550 = vadd.f32 %v2151, %v2549
        %2551 = vmatmul.bf16.gmra.mxu0 %v2217
        %v2552 = vpop.f32.mrf.mxu0
        %v2553 = vadd.f32 %v2154, %v2552
        %v2554 = vpop.f32.mrf.mxu0
        %v2555 = vadd.f32 %v2156, %v2554
        %2556 = vmatmul.bf16.gmra.mxu0 %v2221
        %v2557 = vpop.f32.mrf.mxu0
        %v2558 = vadd.f32 %v2159, %v2557
        %v2559 = vpop.f32.mrf.mxu0
        %v2560 = vadd.f32 %v2161, %v2559
        %2561 = vmatmul.bf16.gmra.mxu0 %v2225
        %v2562 = vpop.f32.mrf.mxu0
        %v2563 = vadd.f32 %v2164, %v2562
        %v2564 = vpop.f32.mrf.mxu0
        %v2565 = vadd.f32 %v2166, %v2564
        %2566 = vmatmul.bf16.gmra.mxu0 %v2229
        %v2567 = vpop.f32.mrf.mxu0
        %v2568 = vadd.f32 %v2169, %v2567
        %v2569 = vpop.f32.mrf.mxu0
        %v2570 = vadd.f32 %v2171, %v2569
        %2571 = vdwg.mxu0
        %2572 = vmatpush.bf16.msra.mxu0 %v2377
        %2573 = vmatpush.bf16.msra.mxu0 %v2375
        %2574 = vmatpush.bf16.msra.mxu0 %v2373
        %2575 = vmatpush.bf16.msra.mxu0 %v2371
        %2576 = vmatpush.bf16.msra.mxu0 %v2369
        %2577 = vmatpush.bf16.msra.mxu0 %v2367
        %2578 = vmatpush.bf16.msra.mxu0 %v2365
        %2579 = vmatpush.bf16.msra.mxu0 %v2363
        %2580 = vmatmul.bf16.gmra.mxu0 %v2199
        %v2581 = vpop.f32.mrf.mxu0
        %v2582 = vadd.f32 %v2528, %v2581
        %v2583 = vpop.f32.mrf.mxu0
        %v2584 = vadd.f32 %v2530, %v2583
        %2585 = vmatmul.bf16.gmra.mxu0 %v2203
        %v2586 = vpop.f32.mrf.mxu0
        %v2587 = vadd.f32 %v2533, %v2586
        %v2588 = vpop.f32.mrf.mxu0
        %v2589 = vadd.f32 %v2535, %v2588
        %2590 = vmatmul.bf16.gmra.mxu0 %v2207
        %v2591 = vpop.f32.mrf.mxu0
        %v2592 = vadd.f32 %v2538, %v2591
        %v2593 = vpop.f32.mrf.mxu0
        %v2594 = vadd.f32 %v2540, %v2593
        %2595 = vmatmul.bf16.gmra.mxu0 %v2211
        %v2596 = vpop.f32.mrf.mxu0
        %v2597 = vadd.f32 %v2543, %v2596
        %v2598 = vpop.f32.mrf.mxu0
        %v2599 = vadd.f32 %v2545, %v2598
        %2600 = vmatmul.bf16.gmra.mxu0 %v2215
        %v2601 = vpop.f32.mrf.mxu0
        %v2602 = vadd.f32 %v2548, %v2601
        %v2603 = vpop.f32.mrf.mxu0
        %v2604 = vadd.f32 %v2550, %v2603
        %2605 = vmatmul.bf16.gmra.mxu0 %v2219
        %v2606 = vpop.f32.mrf.mxu0
        %v2607 = vadd.f32 %v2553, %v2606
        %v2608 = vpop.f32.mrf.mxu0
        %v2609 = vadd.f32 %v2555, %v2608
        %2610 = vmatmul.bf16.gmra.mxu0 %v2223
        %v2611 = vpop.f32.mrf.mxu0
        %v2612 = vadd.f32 %v2558, %v2611
        %v2613 = vpop.f32.mrf.mxu0
        %v2614 = vadd.f32 %v2560, %v2613
        %2615 = vmatmul.bf16.gmra.mxu0 %v2227
        %v2616 = vpop.f32.mrf.mxu0
        %v2617 = vadd.f32 %v2563, %v2616
        %v2618 = vpop.f32.mrf.mxu0
        %v2619 = vadd.f32 %v2565, %v2618
        %2620 = vmatmul.bf16.gmra.mxu0 %v2231
        %v2621 = vpop.f32.mrf.mxu0
        %v2622 = vadd.f32 %v2568, %v2621
        %v2623 = vpop.f32.mrf.mxu0
        %v2624 = vadd.f32 %v2570, %v2623
        %2625 = vdwg.mxu0
        %v2626 = vld [vmem:[#allocation2 + $0x120] sm:$0xff]
        %v2627 = vld [vmem:[#allocation2 + $0x128] sm:$0xff]
        %v2628 = vpack.c.bf16 %v1473, %v1471
        %v2629 = vpack.c.bf16 %v1474, %v1472
        %v2630 = vpack.c.bf16 %v1477, %v1475
        %v2631 = vpack.c.bf16 %v1478, %v1476
        %v2632 = vpack.c.bf16 %v1481, %v1479
        %v2633 = vpack.c.bf16 %v1482, %v1480
        %v2634 = vpack.c.bf16 %v1485, %v1483
        %v2635 = vpack.c.bf16 %v1486, %v1484
        %v2636 = vpack.c.bf16 %v1489, %v1487
        %v2637 = vpack.c.bf16 %v1490, %v1488
        %v2638 = vpack.c.bf16 %v1493, %v1491
        %v2639 = vpack.c.bf16 %v1494, %v1492
        %v2640 = vpack.c.bf16 %v1497, %v1495
        %v2641 = vpack.c.bf16 %v1498, %v1496
        %v2642 = vpack.c.bf16 %v1501, %v1499
        %v2643 = vpack.c.bf16 %v1502, %v1500
        %v2644 = vpack.c.bf16 %v2626, %v1503
        %v2645 = vpack.c.bf16 %v2627, %v1504
        %s2646 = scalar_lea.vmem %s701, 512 [#allocation10]
        %v2647 = vld [vmem:[%s2646] sm:$0xff]
        %v2648 = vld [vmem:[%s2646 + $0x8] sm:$0xff]
        %v2649 = vld [vmem:[%s2646 + $0x10] sm:$0xff]
        %v2650 = vld [vmem:[%s2646 + $0x18] sm:$0xff]
        %v2651 = vld [vmem:[%s2646 + $0x20] sm:$0xff]
        %v2652 = vld [vmem:[%s2646 + $0x28] sm:$0xff]
        %v2653 = vld [vmem:[%s2646 + $0x30] sm:$0xff]
        %v2654 = vld [vmem:[%s2646 + $0x38] sm:$0xff]
        %v2655 = vld [vmem:[%s2646 + $0x40] sm:$0xff]
        %v2656 = vld [vmem:[%s2646 + $0x48] sm:$0xff]
        %v2657 = vld [vmem:[%s2646 + $0x50] sm:$0xff]
        %v2658 = vld [vmem:[%s2646 + $0x58] sm:$0xff]
        %v2659 = vld [vmem:[%s2646 + $0x60] sm:$0xff]
        %v2660 = vld [vmem:[%s2646 + $0x68] sm:$0xff]
        %v2661 = vld [vmem:[%s2646 + $0x70] sm:$0xff]
        %v2662 = vld [vmem:[%s2646 + $0x78] sm:$0xff]
        %v2663 = vld [vmem:[%s2646 + $0x80] sm:$0xff]
        %v2664 = vld [vmem:[%s2646 + $0x88] sm:$0xff]
        %v2665 = vld [vmem:[%s2646 + $0x90] sm:$0xff]
        %v2666 = vld [vmem:[%s2646 + $0x98] sm:$0xff]
        %v2667 = vld [vmem:[%s2646 + $0xa0] sm:$0xff]
        %v2668 = vld [vmem:[%s2646 + $0xa8] sm:$0xff]
        %v2669 = vld [vmem:[%s2646 + $0xb0] sm:$0xff]
        %v2670 = vld [vmem:[%s2646 + $0xb8] sm:$0xff]
        %v2671 = vld [vmem:[%s2646 + $0xc0] sm:$0xff]
        %v2672 = vld [vmem:[%s2646 + $0xc8] sm:$0xff]
        %v2673 = vld [vmem:[%s2646 + $0xd0] sm:$0xff]
        %v2674 = vld [vmem:[%s2646 + $0xd8] sm:$0xff]
        %v2675 = vld [vmem:[%s2646 + $0xe0] sm:$0xff]
        %v2676 = vld [vmem:[%s2646 + $0xe8] sm:$0xff]
        %v2677 = vld [vmem:[%s2646 + $0xf0] sm:$0xff]
        %v2678 = vld [vmem:[%s2646 + $0xf8] sm:$0xff]
        %v2711 = vunpack.c.l.b16 %v2647
        %v2712 = vunpack.c.h.b16 %v2647
        %v2713 = vunpack.c.l.b16 %v2648
        %v2714 = vunpack.c.h.b16 %v2648
        %v2715 = vunpack.c.l.b16 %v2649
        %v2716 = vunpack.c.h.b16 %v2649
        %v2717 = vunpack.c.l.b16 %v2650
        %v2718 = vunpack.c.h.b16 %v2650
        %v2719 = vunpack.c.l.b16 %v2651
        %v2720 = vunpack.c.h.b16 %v2651
        %v2721 = vunpack.c.l.b16 %v2652
        %v2722 = vunpack.c.h.b16 %v2652
        %v2723 = vunpack.c.l.b16 %v2653
        %v2724 = vunpack.c.h.b16 %v2653
        %v2725 = vunpack.c.l.b16 %v2654
        %v2726 = vunpack.c.h.b16 %v2654
        %v2727 = vunpack.c.l.b16 %v2655
        %v2728 = vunpack.c.h.b16 %v2655
        %v2729 = vunpack.c.l.b16 %v2656
        %v2730 = vunpack.c.h.b16 %v2656
        %v2731 = vunpack.c.l.b16 %v2657
        %v2732 = vunpack.c.h.b16 %v2657
        %v2733 = vunpack.c.l.b16 %v2658
        %v2734 = vunpack.c.h.b16 %v2658
        %v2735 = vunpack.c.l.b16 %v2659
        %v2736 = vunpack.c.h.b16 %v2659
        %v2737 = vunpack.c.l.b16 %v2660
        %v2738 = vunpack.c.h.b16 %v2660
        %v2739 = vunpack.c.l.b16 %v2661
        %v2740 = vunpack.c.h.b16 %v2661
        %v2741 = vunpack.c.l.b16 %v2662
        %v2742 = vunpack.c.h.b16 %v2662
        %v2743 = vunpack.c.l.b16 %v2663
        %v2744 = vunpack.c.h.b16 %v2663
        %v2745 = vunpack.c.l.b16 %v2664
        %v2746 = vunpack.c.h.b16 %v2664
        %v2747 = vunpack.c.l.b16 %v2665
        %v2748 = vunpack.c.h.b16 %v2665
        %v2749 = vunpack.c.l.b16 %v2666
        %v2750 = vunpack.c.h.b16 %v2666
        %v2751 = vunpack.c.l.b16 %v2667
        %v2752 = vunpack.c.h.b16 %v2667
        %v2753 = vunpack.c.l.b16 %v2668
        %v2754 = vunpack.c.h.b16 %v2668
        %v2755 = vunpack.c.l.b16 %v2669
        %v2756 = vunpack.c.h.b16 %v2669
        %v2757 = vunpack.c.l.b16 %v2670
        %v2758 = vunpack.c.h.b16 %v2670
        %v2759 = vunpack.c.l.b16 %v2671
        %v2760 = vunpack.c.h.b16 %v2671
        %v2761 = vunpack.c.l.b16 %v2672
        %v2762 = vunpack.c.h.b16 %v2672
        %v2763 = vunpack.c.l.b16 %v2673
        %v2764 = vunpack.c.h.b16 %v2673
        %v2765 = vunpack.c.l.b16 %v2674
        %v2766 = vunpack.c.h.b16 %v2674
        %v2767 = vunpack.c.l.b16 %v2675
        %v2768 = vunpack.c.h.b16 %v2675
        %v2769 = vunpack.c.l.b16 %v2676
        %v2770 = vunpack.c.h.b16 %v2676
        %v2771 = vunpack.c.l.b16 %v2677
        %v2772 = vunpack.c.h.b16 %v2677
        %v2773 = vunpack.c.l.b16 %v2678
        %v2774 = vunpack.c.h.b16 %v2678
        %v2775 = vpack.c.b16 %v2713, %v2711
        %v2776 = vpack.c.b16 %v2714, %v2712
        %v2777 = vpack.c.b16 %v2717, %v2715
        %v2778 = vpack.c.b16 %v2718, %v2716
        %v2779 = vpack.c.b16 %v2721, %v2719
        %v2780 = vpack.c.b16 %v2722, %v2720
        %v2781 = vpack.c.b16 %v2725, %v2723
        %v2782 = vpack.c.b16 %v2726, %v2724
        %v2783 = vpack.c.b16 %v2729, %v2727
        %v2784 = vpack.c.b16 %v2730, %v2728
        %v2785 = vpack.c.b16 %v2733, %v2731
        %v2786 = vpack.c.b16 %v2734, %v2732
        %v2787 = vpack.c.b16 %v2737, %v2735
        %v2788 = vpack.c.b16 %v2738, %v2736
        %v2789 = vpack.c.b16 %v2741, %v2739
        %v2790 = vpack.c.b16 %v2742, %v2740
        %v2791 = vpack.c.b16 %v2745, %v2743
        %v2792 = vpack.c.b16 %v2746, %v2744
        %v2793 = vpack.c.b16 %v2749, %v2747
        %v2794 = vpack.c.b16 %v2750, %v2748
        %v2795 = vpack.c.b16 %v2753, %v2751
        %v2796 = vpack.c.b16 %v2754, %v2752
        %v2797 = vpack.c.b16 %v2757, %v2755
        %v2798 = vpack.c.b16 %v2758, %v2756
        %v2799 = vpack.c.b16 %v2761, %v2759
        %v2800 = vpack.c.b16 %v2762, %v2760
        %v2801 = vpack.c.b16 %v2765, %v2763
        %v2802 = vpack.c.b16 %v2766, %v2764
        %v2803 = vpack.c.b16 %v2769, %v2767
        %v2804 = vpack.c.b16 %v2770, %v2768
        %v2805 = vpack.c.b16 %v2773, %v2771
        %v2806 = vpack.c.b16 %v2774, %v2772
        %2839 = vmatpush.bf16.msra.mxu0 %v2789
        %2840 = vmatpush.bf16.msra.mxu0 %v2787
        %2841 = vmatpush.bf16.msra.mxu0 %v2785
        %2842 = vmatpush.bf16.msra.mxu0 %v2783
        %2843 = vmatpush.bf16.msra.mxu0 %v2781
        %2844 = vmatpush.bf16.msra.mxu0 %v2779
        %2845 = vmatpush.bf16.msra.mxu0 %v2777
        %2846 = vmatpush.bf16.msra.mxu0 %v2775
        %2847 = vmatmul.bf16.gmra.mxu0 %v2628
        %v2848 = vpop.f32.mrf.mxu0
        %v2849 = vadd.f32 0.0, %v2848
        %v2850 = vpop.f32.mrf.mxu0
        %v2851 = vadd.f32 0.0, %v2850
        %2852 = vmatmul.bf16.gmra.mxu0 %v2630
        %v2853 = vpop.f32.mrf.mxu0
        %v2854 = vadd.f32 0.0, %v2853
        %v2855 = vpop.f32.mrf.mxu0
        %v2856 = vadd.f32 0.0, %v2855
        %2857 = vmatmul.bf16.gmra.mxu0 %v2632
        %v2858 = vpop.f32.mrf.mxu0
        %v2859 = vadd.f32 0.0, %v2858
        %v2860 = vpop.f32.mrf.mxu0
        %v2861 = vadd.f32 0.0, %v2860
        %2862 = vmatmul.bf16.gmra.mxu0 %v2634
        %v2863 = vpop.f32.mrf.mxu0
        %v2864 = vadd.f32 0.0, %v2863
        %v2865 = vpop.f32.mrf.mxu0
        %v2866 = vadd.f32 0.0, %v2865
        %2867 = vmatmul.bf16.gmra.mxu0 %v2636
        %v2868 = vpop.f32.mrf.mxu0
        %v2869 = vadd.f32 0.0, %v2868
        %v2870 = vpop.f32.mrf.mxu0
        %v2871 = vadd.f32 0.0, %v2870
        %2872 = vmatmul.bf16.gmra.mxu0 %v2638
        %v2873 = vpop.f32.mrf.mxu0
        %v2874 = vadd.f32 0.0, %v2873
        %v2875 = vpop.f32.mrf.mxu0
        %v2876 = vadd.f32 0.0, %v2875
        %2877 = vmatmul.bf16.gmra.mxu0 %v2640
        %v2878 = vpop.f32.mrf.mxu0
        %v2879 = vadd.f32 0.0, %v2878
        %v2880 = vpop.f32.mrf.mxu0
        %v2881 = vadd.f32 0.0, %v2880
        %2882 = vmatmul.bf16.gmra.mxu0 %v2642
        %v2883 = vpop.f32.mrf.mxu0
        %v2884 = vadd.f32 0.0, %v2883
        %v2885 = vpop.f32.mrf.mxu0
        %v2886 = vadd.f32 0.0, %v2885
        %2887 = vmatmul.bf16.gmra.mxu0 %v2644
        %v2888 = vpop.f32.mrf.mxu0
        %v2889 = vadd.f32 0.0, %v2888
        %v2890 = vpop.f32.mrf.mxu0
        %v2891 = vadd.f32 0.0, %v2890
        %2892 = vdwg.mxu0
        %2893 = vmatpush.bf16.msra.mxu0 %v2805
        %2894 = vmatpush.bf16.msra.mxu0 %v2803
        %2895 = vmatpush.bf16.msra.mxu0 %v2801
        %2896 = vmatpush.bf16.msra.mxu0 %v2799
        %2897 = vmatpush.bf16.msra.mxu0 %v2797
        %2898 = vmatpush.bf16.msra.mxu0 %v2795
        %2899 = vmatpush.bf16.msra.mxu0 %v2793
        %2900 = vmatpush.bf16.msra.mxu0 %v2791
        %2901 = vmatmul.bf16.gmra.mxu0 %v2629
        %v2902 = vpop.f32.mrf.mxu0
        %v2903 = vadd.f32 %v2849, %v2902
        %v2904 = vpop.f32.mrf.mxu0
        %v2905 = vadd.f32 %v2851, %v2904
        %2906 = vmatmul.bf16.gmra.mxu0 %v2631
        %v2907 = vpop.f32.mrf.mxu0
        %v2908 = vadd.f32 %v2854, %v2907
        %v2909 = vpop.f32.mrf.mxu0
        %v2910 = vadd.f32 %v2856, %v2909
        %2911 = vmatmul.bf16.gmra.mxu0 %v2633
        %v2912 = vpop.f32.mrf.mxu0
        %v2913 = vadd.f32 %v2859, %v2912
        %v2914 = vpop.f32.mrf.mxu0
        %v2915 = vadd.f32 %v2861, %v2914
        %2916 = vmatmul.bf16.gmra.mxu0 %v2635
        %v2917 = vpop.f32.mrf.mxu0
        %v2918 = vadd.f32 %v2864, %v2917
        %v2919 = vpop.f32.mrf.mxu0
        %v2920 = vadd.f32 %v2866, %v2919
        %2921 = vmatmul.bf16.gmra.mxu0 %v2637
        %v2922 = vpop.f32.mrf.mxu0
        %v2923 = vadd.f32 %v2869, %v2922
        %v2924 = vpop.f32.mrf.mxu0
        %v2925 = vadd.f32 %v2871, %v2924
        %2926 = vmatmul.bf16.gmra.mxu0 %v2639
        %v2927 = vpop.f32.mrf.mxu0
        %v2928 = vadd.f32 %v2874, %v2927
        %v2929 = vpop.f32.mrf.mxu0
        %v2930 = vadd.f32 %v2876, %v2929
        %2931 = vmatmul.bf16.gmra.mxu0 %v2641
        %v2932 = vpop.f32.mrf.mxu0
        %v2933 = vadd.f32 %v2879, %v2932
        %v2934 = vpop.f32.mrf.mxu0
        %v2935 = vadd.f32 %v2881, %v2934
        %2936 = vmatmul.bf16.gmra.mxu0 %v2643
        %v2937 = vpop.f32.mrf.mxu0
        %v2938 = vadd.f32 %v2884, %v2937
        %v2939 = vpop.f32.mrf.mxu0
        %v2940 = vadd.f32 %v2886, %v2939
        %2941 = vmatmul.bf16.gmra.mxu0 %v2645
        %v2942 = vpop.f32.mrf.mxu0
        %v2943 = vadd.f32 %v2889, %v2942
        %v2944 = vpop.f32.mrf.mxu0
        %v2945 = vadd.f32 %v2891, %v2944
        %2946 = vdwg.mxu0
        %2947 = vmatpush.bf16.msra.mxu0 %v2790
        %2948 = vmatpush.bf16.msra.mxu0 %v2788
        %2949 = vmatpush.bf16.msra.mxu0 %v2786
        %2950 = vmatpush.bf16.msra.mxu0 %v2784
        %2951 = vmatpush.bf16.msra.mxu0 %v2782
        %2952 = vmatpush.bf16.msra.mxu0 %v2780
        %2953 = vmatpush.bf16.msra.mxu0 %v2778
        %2954 = vmatpush.bf16.msra.mxu0 %v2776
        %2955 = vmatmul.bf16.gmra.mxu0 %v2628
        %v2956 = vpop.f32.mrf.mxu0
        %v2957 = vadd.f32 0.0, %v2956
        %v2958 = vpop.f32.mrf.mxu0
        %v2959 = vadd.f32 0.0, %v2958
        %2960 = vmatmul.bf16.gmra.mxu0 %v2630
        %v2961 = vpop.f32.mrf.mxu0
        %v2962 = vadd.f32 0.0, %v2961
        %v2963 = vpop.f32.mrf.mxu0
        %v2964 = vadd.f32 0.0, %v2963
        %2965 = vmatmul.bf16.gmra.mxu0 %v2632
        %v2966 = vpop.f32.mrf.mxu0
        %v2967 = vadd.f32 0.0, %v2966
        %v2968 = vpop.f32.mrf.mxu0
        %v2969 = vadd.f32 0.0, %v2968
        %2970 = vmatmul.bf16.gmra.mxu0 %v2634
        %v2971 = vpop.f32.mrf.mxu0
        %v2972 = vadd.f32 0.0, %v2971
        %v2973 = vpop.f32.mrf.mxu0
        %v2974 = vadd.f32 0.0, %v2973
        %2975 = vmatmul.bf16.gmra.mxu0 %v2636
        %v2976 = vpop.f32.mrf.mxu0
        %v2977 = vadd.f32 0.0, %v2976
        %v2978 = vpop.f32.mrf.mxu0
        %v2979 = vadd.f32 0.0, %v2978
        %2980 = vmatmul.bf16.gmra.mxu0 %v2638
        %v2981 = vpop.f32.mrf.mxu0
        %v2982 = vadd.f32 0.0, %v2981
        %v2983 = vpop.f32.mrf.mxu0
        %v2984 = vadd.f32 0.0, %v2983
        %2985 = vmatmul.bf16.gmra.mxu0 %v2640
        %v2986 = vpop.f32.mrf.mxu0
        %v2987 = vadd.f32 0.0, %v2986
        %v2988 = vpop.f32.mrf.mxu0
        %v2989 = vadd.f32 0.0, %v2988
        %2990 = vmatmul.bf16.gmra.mxu0 %v2642
        %v2991 = vpop.f32.mrf.mxu0
        %v2992 = vadd.f32 0.0, %v2991
        %v2993 = vpop.f32.mrf.mxu0
        %v2994 = vadd.f32 0.0, %v2993
        %2995 = vmatmul.bf16.gmra.mxu0 %v2644
        %v2996 = vpop.f32.mrf.mxu0
        %v2997 = vadd.f32 0.0, %v2996
        %v2998 = vpop.f32.mrf.mxu0
        %v2999 = vadd.f32 0.0, %v2998
        %3000 = vdwg.mxu0
        %3001 = vmatpush.bf16.msra.mxu0 %v2806
        %3002 = vmatpush.bf16.msra.mxu0 %v2804
        %3003 = vmatpush.bf16.msra.mxu0 %v2802
        %3004 = vmatpush.bf16.msra.mxu0 %v2800
        %3005 = vmatpush.bf16.msra.mxu0 %v2798
        %3006 = vmatpush.bf16.msra.mxu0 %v2796
        %3007 = vmatpush.bf16.msra.mxu0 %v2794
        %3008 = vmatpush.bf16.msra.mxu0 %v2792
        %3009 = vmatmul.bf16.gmra.mxu0 %v2629
        %v3010 = vpop.f32.mrf.mxu0
        %v3011 = vadd.f32 %v2957, %v3010
        %v3012 = vpop.f32.mrf.mxu0
        %v3013 = vadd.f32 %v2959, %v3012
        %3014 = vmatmul.bf16.gmra.mxu0 %v2631
        %v3015 = vpop.f32.mrf.mxu0
        %v3016 = vadd.f32 %v2962, %v3015
        %v3017 = vpop.f32.mrf.mxu0
        %v3018 = vadd.f32 %v2964, %v3017
        %3019 = vmatmul.bf16.gmra.mxu0 %v2633
        %v3020 = vpop.f32.mrf.mxu0
        %v3021 = vadd.f32 %v2967, %v3020
        %v3022 = vpop.f32.mrf.mxu0
        %v3023 = vadd.f32 %v2969, %v3022
        %3024 = vmatmul.bf16.gmra.mxu0 %v2635
        %v3025 = vpop.f32.mrf.mxu0
        %v3026 = vadd.f32 %v2972, %v3025
        %v3027 = vpop.f32.mrf.mxu0
        %v3028 = vadd.f32 %v2974, %v3027
        %3029 = vmatmul.bf16.gmra.mxu0 %v2637
        %v3030 = vpop.f32.mrf.mxu0
        %v3031 = vadd.f32 %v2977, %v3030
        %v3032 = vpop.f32.mrf.mxu0
        %v3033 = vadd.f32 %v2979, %v3032
        %3034 = vmatmul.bf16.gmra.mxu0 %v2639
        %v3035 = vpop.f32.mrf.mxu0
        %v3036 = vadd.f32 %v2982, %v3035
        %v3037 = vpop.f32.mrf.mxu0
        %v3038 = vadd.f32 %v2984, %v3037
        %3039 = vmatmul.bf16.gmra.mxu0 %v2641
        %v3040 = vpop.f32.mrf.mxu0
        %v3041 = vadd.f32 %v2987, %v3040
        %v3042 = vpop.f32.mrf.mxu0
        %v3043 = vadd.f32 %v2989, %v3042
        %3044 = vmatmul.bf16.gmra.mxu0 %v2643
        %v3045 = vpop.f32.mrf.mxu0
        %v3046 = vadd.f32 %v2992, %v3045
        %v3047 = vpop.f32.mrf.mxu0
        %v3048 = vadd.f32 %v2994, %v3047
        %3049 = vmatmul.bf16.gmra.mxu0 %v2645
        %v3050 = vpop.f32.mrf.mxu0
        %v3051 = vadd.f32 %v2997, %v3050
        %v3052 = vpop.f32.mrf.mxu0
        %v3053 = vadd.f32 %v2999, %v3052
        %3054 = vdwg.mxu0
        %v3055 = vadd.f32 %v2474, %v2903
        %v3056 = vadd.f32 %v2582, %v3011
        %v3057 = vadd.f32 %v2476, %v2905
        %v3058 = vadd.f32 %v2584, %v3013
        %v3059 = vadd.f32 %v2479, %v2908
        %v3060 = vadd.f32 %v2587, %v3016
        %v3061 = vadd.f32 %v2481, %v2910
        %v3062 = vadd.f32 %v2589, %v3018
        %v3063 = vadd.f32 %v2484, %v2913
        %v3064 = vadd.f32 %v2592, %v3021
        %v3065 = vadd.f32 %v2486, %v2915
        %v3066 = vadd.f32 %v2594, %v3023
        %v3067 = vadd.f32 %v2489, %v2918
        %v3068 = vadd.f32 %v2597, %v3026
        %v3069 = vadd.f32 %v2491, %v2920
        %v3070 = vadd.f32 %v2599, %v3028
        %v3071 = vadd.f32 %v2494, %v2923
        %v3072 = vadd.f32 %v2602, %v3031
        %v3073 = vadd.f32 %v2496, %v2925
        %v3074 = vadd.f32 %v2604, %v3033
        %v3075 = vadd.f32 %v2499, %v2928
        %v3076 = vadd.f32 %v2607, %v3036
        %v3077 = vadd.f32 %v2501, %v2930
        %v3078 = vadd.f32 %v2609, %v3038
        %v3079 = vadd.f32 %v2504, %v2933
        %v3080 = vadd.f32 %v2612, %v3041
        %v3081 = vadd.f32 %v2506, %v2935
        %v3082 = vadd.f32 %v2614, %v3043
        %v3083 = vadd.f32 %v2509, %v2938
        %v3084 = vadd.f32 %v2617, %v3046
        %v3085 = vadd.f32 %v2511, %v2940
        %v3086 = vadd.f32 %v2619, %v3048
        %v3087 = vadd.f32 %v2514, %v2943
        %v3088 = vadd.f32 %v2622, %v3051
        %v3089 = vadd.f32 %v2516, %v2945
        %v3090 = vadd.f32 %v2624, %v3053
        %v3091 = vld [vmem:[#allocation2 + $0x10] sm:$0x80]
        %v3092 = vld [vmem:[#allocation2 + $0x18] sm:$0x80]
        %v3093 = vld [vmem:[#allocation2 + $0x20] sm:$0xff]
        %v3094 = vld [vmem:[#allocation2 + $0x28] sm:$0xff]
        %v3095 = vld [vmem:[#allocation2 + $0x30] sm:$0xff]
        %v3096 = vld [vmem:[#allocation2 + $0x38] sm:$0xff]
        %v3097 = vld [vmem:[#allocation2 + $0x40] sm:$0xff]
        %v3098 = vld [vmem:[#allocation2 + $0x48] sm:$0xff]
        %v3099 = vld [vmem:[#allocation2 + $0x50] sm:$0xff]
        %v3100 = vld [vmem:[#allocation2 + $0x58] sm:$0xff]
        %v3101 = vld [vmem:[#allocation2 + $0x60] sm:$0xff]
        %v3102 = vld [vmem:[#allocation2 + $0x68] sm:$0xff]
        %v3103 = vld [vmem:[#allocation2 + $0x70] sm:$0xff]
        %v3104 = vld [vmem:[#allocation2 + $0x78] sm:$0xff]
        %v3105 = vld [vmem:[#allocation2 + $0x80] sm:$0xff]
        %v3106 = vld [vmem:[#allocation2 + $0x88] sm:$0xff]
        %v3107 = vld [vmem:[#allocation2 + $0x90] sm:$0xff]
        %v3108 = vld [vmem:[#allocation2 + $0x98] sm:$0xff]
        %v3109 = vld [vmem:[#allocation2 + $0xa0] sm:$0xff]
        %v3110 = vld [vmem:[#allocation2 + $0xa8] sm:$0xff]
        %v3111 = vld [vmem:[#allocation2 + $0xb0] sm:$0xff]
        %v3112 = vld [vmem:[#allocation2 + $0xb8] sm:$0xff]
        %v3113 = vld [vmem:[#allocation2 + $0xc0] sm:$0xff]
        %v3114 = vld [vmem:[#allocation2 + $0xc8] sm:$0xff]
        %v3115 = vld [vmem:[#allocation2 + $0xd0] sm:$0xff]
        %v3116 = vld [vmem:[#allocation2 + $0xd8] sm:$0xff]
        %v3117 = vld [vmem:[#allocation2 + $0xe0] sm:$0xff]
        %v3118 = vld [vmem:[#allocation2 + $0xe8] sm:$0xff]
        %v3119 = vld [vmem:[#allocation2 + $0xf0] sm:$0xff]
        %v3120 = vld [vmem:[#allocation2 + $0xf8] sm:$0xff]
        %v3121 = vld [vmem:[#allocation2 + $0x100] sm:$0xff]
        %v3122 = vld [vmem:[#allocation2 + $0x108] sm:$0xff]
        %v3123 = vld [vmem:[#allocation2 + $0x110] sm:$0xff]
        %v3124 = vld [vmem:[#allocation2 + $0x118] sm:$0xff]
        %v3125 = vld [vmem:[#allocation2 + $0x120] sm:$0xff]
        %v3126 = vld [vmem:[#allocation2 + $0x128] sm:$0xff]
        %v3127 = vld [vmem:[#allocation2 + $0x130] sm:$0x7f]
        %v3128 = vld [vmem:[#allocation2 + $0x138] sm:$0x7f]
        %v3129 = vpack.c.bf16 %v3093, %v3091
        %v3130 = vpack.c.bf16 %v3094, %v3092
        %v3131 = vpack.c.bf16 %v3097, %v3095
        %v3132 = vpack.c.bf16 %v3098, %v3096
        %v3133 = vpack.c.bf16 %v3101, %v3099
        %v3134 = vpack.c.bf16 %v3102, %v3100
        %v3135 = vpack.c.bf16 %v3105, %v3103
        %v3136 = vpack.c.bf16 %v3106, %v3104
        %v3137 = vpack.c.bf16 %v3109, %v3107
        %v3138 = vpack.c.bf16 %v3110, %v3108
        %v3139 = vpack.c.bf16 %v3113, %v3111
        %v3140 = vpack.c.bf16 %v3114, %v3112
        %v3141 = vpack.c.bf16 %v3117, %v3115
        %v3142 = vpack.c.bf16 %v3118, %v3116
        %v3143 = vpack.c.bf16 %v3121, %v3119
        %v3144 = vpack.c.bf16 %v3122, %v3120
        %v3145 = vpack.c.bf16 %v3125, %v3123
        %v3146 = vpack.c.bf16 %v3126, %v3124
        %v3147 = vpack.c.bf16 %v3127, %v3127
        %v3148 = vpack.c.bf16 %v3128, %v3128
        %s3149 = scalar_lea.vmem %s701, 768 [#allocation10]
        %v3150 = vld [vmem:[%s3149] sm:$0xff]
        %v3151 = vld [vmem:[%s3149 + $0x8] sm:$0xff]
        %v3152 = vld [vmem:[%s3149 + $0x10] sm:$0xff]
        %v3153 = vld [vmem:[%s3149 + $0x18] sm:$0xff]
        %v3154 = vld [vmem:[%s3149 + $0x20] sm:$0xff]
        %v3155 = vld [vmem:[%s3149 + $0x28] sm:$0xff]
        %v3156 = vld [vmem:[%s3149 + $0x30] sm:$0xff]
        %v3157 = vld [vmem:[%s3149 + $0x38] sm:$0xff]
        %v3158 = vld [vmem:[%s3149 + $0x40] sm:$0xff]
        %v3159 = vld [vmem:[%s3149 + $0x48] sm:$0xff]
        %v3160 = vld [vmem:[%s3149 + $0x50] sm:$0xff]
        %v3161 = vld [vmem:[%s3149 + $0x58] sm:$0xff]
        %v3162 = vld [vmem:[%s3149 + $0x60] sm:$0xff]
        %v3163 = vld [vmem:[%s3149 + $0x68] sm:$0xff]
        %v3164 = vld [vmem:[%s3149 + $0x70] sm:$0xff]
        %v3165 = vld [vmem:[%s3149 + $0x78] sm:$0xff]
        %v3166 = vld [vmem:[%s3149 + $0x80] sm:$0xff]
        %v3167 = vld [vmem:[%s3149 + $0x88] sm:$0xff]
        %v3168 = vld [vmem:[%s3149 + $0x90] sm:$0xff]
        %v3169 = vld [vmem:[%s3149 + $0x98] sm:$0xff]
        %v3170 = vld [vmem:[%s3149 + $0xa0] sm:$0xff]
        %v3171 = vld [vmem:[%s3149 + $0xa8] sm:$0xff]
        %v3172 = vld [vmem:[%s3149 + $0xb0] sm:$0xff]
        %v3173 = vld [vmem:[%s3149 + $0xb8] sm:$0xff]
        %v3174 = vld [vmem:[%s3149 + $0xc0] sm:$0xff]
        %v3175 = vld [vmem:[%s3149 + $0xc8] sm:$0xff]
        %v3176 = vld [vmem:[%s3149 + $0xd0] sm:$0xff]
        %v3177 = vld [vmem:[%s3149 + $0xd8] sm:$0xff]
        %v3178 = vld [vmem:[%s3149 + $0xe0] sm:$0xff]
        %v3179 = vld [vmem:[%s3149 + $0xe8] sm:$0xff]
        %v3180 = vld [vmem:[%s3149 + $0xf0] sm:$0xff]
        %v3181 = vld [vmem:[%s3149 + $0xf8] sm:$0xff]
        %v3183 = vshrl.u32 %v3129, 16
        %v3185 = vrot.slane %v3183, 3
        %v3186 = vshll.u32 %v3129, 16
        %v3188 = vrot.slane %v3186, 4
        %v3189 = vor.u32 %v3185, %v3188
        %v3191 = vshrl.u32 %v3131, 16
        %v3193 = vrot.slane %v3191, 3
        %v3194 = vshll.u32 %v3131, 16
        %v3196 = vrot.slane %v3194, 4
        %v3197 = vor.u32 %v3193, %v3196
        %v3198 = vsel %vm1600, %v3189, %v3197
        %v3200 = vshrl.u32 %v3130, 16
        %v3202 = vrot.slane %v3200, 3
        %v3203 = vshll.u32 %v3130, 16
        %v3205 = vrot.slane %v3203, 4
        %v3206 = vor.u32 %v3202, %v3205
        %v3208 = vshrl.u32 %v3132, 16
        %v3210 = vrot.slane %v3208, 3
        %v3211 = vshll.u32 %v3132, 16
        %v3213 = vrot.slane %v3211, 4
        %v3214 = vor.u32 %v3210, %v3213
        %v3215 = vsel %vm1600, %v3206, %v3214
        %v3217 = vshrl.u32 %v3133, 16
        %v3219 = vrot.slane %v3217, 3
        %v3220 = vshll.u32 %v3133, 16
        %v3222 = vrot.slane %v3220, 4
        %v3223 = vor.u32 %v3219, %v3222
        %v3224 = vsel %vm1600, %v3197, %v3223
        %v3226 = vshrl.u32 %v3134, 16
        %v3228 = vrot.slane %v3226, 3
        %v3229 = vshll.u32 %v3134, 16
        %v3231 = vrot.slane %v3229, 4
        %v3232 = vor.u32 %v3228, %v3231
        %v3233 = vsel %vm1600, %v3214, %v3232
        %v3235 = vshrl.u32 %v3135, 16
        %v3237 = vrot.slane %v3235, 3
        %v3238 = vshll.u32 %v3135, 16
        %v3240 = vrot.slane %v3238, 4
        %v3241 = vor.u32 %v3237, %v3240
        %v3242 = vsel %vm1600, %v3223, %v3241
        %v3244 = vshrl.u32 %v3136, 16
        %v3246 = vrot.slane %v3244, 3
        %v3247 = vshll.u32 %v3136, 16
        %v3249 = vrot.slane %v3247, 4
        %v3250 = vor.u32 %v3246, %v3249
        %v3251 = vsel %vm1600, %v3232, %v3250
        %v3253 = vshrl.u32 %v3137, 16
        %v3255 = vrot.slane %v3253, 3
        %v3256 = vshll.u32 %v3137, 16
        %v3258 = vrot.slane %v3256, 4
        %v3259 = vor.u32 %v3255, %v3258
        %v3260 = vsel %vm1600, %v3241, %v3259
        %v3262 = vshrl.u32 %v3138, 16
        %v3264 = vrot.slane %v3262, 3
        %v3265 = vshll.u32 %v3138, 16
        %v3267 = vrot.slane %v3265, 4
        %v3268 = vor.u32 %v3264, %v3267
        %v3269 = vsel %vm1600, %v3250, %v3268
        %v3271 = vshrl.u32 %v3139, 16
        %v3273 = vrot.slane %v3271, 3
        %v3274 = vshll.u32 %v3139, 16
        %v3276 = vrot.slane %v3274, 4
        %v3277 = vor.u32 %v3273, %v3276
        %v3278 = vsel %vm1600, %v3259, %v3277
        %v3280 = vshrl.u32 %v3140, 16
        %v3282 = vrot.slane %v3280, 3
        %v3283 = vshll.u32 %v3140, 16
        %v3285 = vrot.slane %v3283, 4
        %v3286 = vor.u32 %v3282, %v3285
        %v3287 = vsel %vm1600, %v3268, %v3286
        %v3289 = vshrl.u32 %v3141, 16
        %v3291 = vrot.slane %v3289, 3
        %v3292 = vshll.u32 %v3141, 16
        %v3294 = vrot.slane %v3292, 4
        %v3295 = vor.u32 %v3291, %v3294
        %v3296 = vsel %vm1600, %v3277, %v3295
        %v3298 = vshrl.u32 %v3142, 16
        %v3300 = vrot.slane %v3298, 3
        %v3301 = vshll.u32 %v3142, 16
        %v3303 = vrot.slane %v3301, 4
        %v3304 = vor.u32 %v3300, %v3303
        %v3305 = vsel %vm1600, %v3286, %v3304
        %v3307 = vshrl.u32 %v3143, 16
        %v3309 = vrot.slane %v3307, 3
        %v3310 = vshll.u32 %v3143, 16
        %v3312 = vrot.slane %v3310, 4
        %v3313 = vor.u32 %v3309, %v3312
        %v3314 = vsel %vm1600, %v3295, %v3313
        %v3316 = vshrl.u32 %v3144, 16
        %v3318 = vrot.slane %v3316, 3
        %v3319 = vshll.u32 %v3144, 16
        %v3321 = vrot.slane %v3319, 4
        %v3322 = vor.u32 %v3318, %v3321
        %v3323 = vsel %vm1600, %v3304, %v3322
        %v3325 = vshrl.u32 %v3145, 16
        %v3327 = vrot.slane %v3325, 3
        %v3328 = vshll.u32 %v3145, 16
        %v3330 = vrot.slane %v3328, 4
        %v3331 = vor.u32 %v3327, %v3330
        %v3332 = vsel %vm1600, %v3313, %v3331
        %v3334 = vshrl.u32 %v3146, 16
        %v3336 = vrot.slane %v3334, 3
        %v3337 = vshll.u32 %v3146, 16
        %v3339 = vrot.slane %v3337, 4
        %v3340 = vor.u32 %v3336, %v3339
        %v3341 = vsel %vm1600, %v3322, %v3340
        %v3343 = vshrl.u32 %v3147, 16
        %v3345 = vrot.slane %v3343, 3
        %v3346 = vshll.u32 %v3147, 16
        %v3348 = vrot.slane %v3346, 4
        %v3349 = vor.u32 %v3345, %v3348
        %v3350 = vsel %vm1600, %v3331, %v3349
        %v3352 = vshrl.u32 %v3148, 16
        %v3354 = vrot.slane %v3352, 3
        %v3355 = vshll.u32 %v3148, 16
        %v3357 = vrot.slane %v3355, 4
        %v3358 = vor.u32 %v3354, %v3357
        %v3359 = vsel %vm1600, %v3340, %v3358
        %v3410 = vunpack.c.l.b16 %v3150
        %v3411 = vunpack.c.h.b16 %v3150
        %v3412 = vunpack.c.l.b16 %v3151
        %v3413 = vunpack.c.h.b16 %v3151
        %v3414 = vunpack.c.l.b16 %v3152
        %v3415 = vunpack.c.h.b16 %v3152
        %v3416 = vunpack.c.l.b16 %v3153
        %v3417 = vunpack.c.h.b16 %v3153
        %v3418 = vunpack.c.l.b16 %v3154
        %v3419 = vunpack.c.h.b16 %v3154
        %v3420 = vunpack.c.l.b16 %v3155
        %v3421 = vunpack.c.h.b16 %v3155
        %v3422 = vunpack.c.l.b16 %v3156
        %v3423 = vunpack.c.h.b16 %v3156
        %v3424 = vunpack.c.l.b16 %v3157
        %v3425 = vunpack.c.h.b16 %v3157
        %v3426 = vunpack.c.l.b16 %v3158
        %v3427 = vunpack.c.h.b16 %v3158
        %v3428 = vunpack.c.l.b16 %v3159
        %v3429 = vunpack.c.h.b16 %v3159
        %v3430 = vunpack.c.l.b16 %v3160
        %v3431 = vunpack.c.h.b16 %v3160
        %v3432 = vunpack.c.l.b16 %v3161
        %v3433 = vunpack.c.h.b16 %v3161
        %v3434 = vunpack.c.l.b16 %v3162
        %v3435 = vunpack.c.h.b16 %v3162
        %v3436 = vunpack.c.l.b16 %v3163
        %v3437 = vunpack.c.h.b16 %v3163
        %v3438 = vunpack.c.l.b16 %v3164
        %v3439 = vunpack.c.h.b16 %v3164
        %v3440 = vunpack.c.l.b16 %v3165
        %v3441 = vunpack.c.h.b16 %v3165
        %v3442 = vunpack.c.l.b16 %v3166
        %v3443 = vunpack.c.h.b16 %v3166
        %v3444 = vunpack.c.l.b16 %v3167
        %v3445 = vunpack.c.h.b16 %v3167
        %v3446 = vunpack.c.l.b16 %v3168
        %v3447 = vunpack.c.h.b16 %v3168
        %v3448 = vunpack.c.l.b16 %v3169
        %v3449 = vunpack.c.h.b16 %v3169
        %v3450 = vunpack.c.l.b16 %v3170
        %v3451 = vunpack.c.h.b16 %v3170
        %v3452 = vunpack.c.l.b16 %v3171
        %v3453 = vunpack.c.h.b16 %v3171
        %v3454 = vunpack.c.l.b16 %v3172
        %v3455 = vunpack.c.h.b16 %v3172
        %v3456 = vunpack.c.l.b16 %v3173
        %v3457 = vunpack.c.h.b16 %v3173
        %v3458 = vunpack.c.l.b16 %v3174
        %v3459 = vunpack.c.h.b16 %v3174
        %v3460 = vunpack.c.l.b16 %v3175
        %v3461 = vunpack.c.h.b16 %v3175
        %v3462 = vunpack.c.l.b16 %v3176
        %v3463 = vunpack.c.h.b16 %v3176
        %v3464 = vunpack.c.l.b16 %v3177
        %v3465 = vunpack.c.h.b16 %v3177
        %v3466 = vunpack.c.l.b16 %v3178
        %v3467 = vunpack.c.h.b16 %v3178
        %v3468 = vunpack.c.l.b16 %v3179
        %v3469 = vunpack.c.h.b16 %v3179
        %v3470 = vunpack.c.l.b16 %v3180
        %v3471 = vunpack.c.h.b16 %v3180
        %v3472 = vunpack.c.l.b16 %v3181
        %v3473 = vunpack.c.h.b16 %v3181
        %v3474 = vpack.c.b16 %v3412, %v3410
        %v3475 = vpack.c.b16 %v3413, %v3411
        %v3476 = vpack.c.b16 %v3416, %v3414
        %v3477 = vpack.c.b16 %v3417, %v3415
        %v3478 = vpack.c.b16 %v3420, %v3418
        %v3479 = vpack.c.b16 %v3421, %v3419
        %v3480 = vpack.c.b16 %v3424, %v3422
        %v3481 = vpack.c.b16 %v3425, %v3423
        %v3482 = vpack.c.b16 %v3428, %v3426
        %v3483 = vpack.c.b16 %v3429, %v3427
        %v3484 = vpack.c.b16 %v3432, %v3430
        %v3485 = vpack.c.b16 %v3433, %v3431
        %v3486 = vpack.c.b16 %v3436, %v3434
        %v3487 = vpack.c.b16 %v3437, %v3435
        %v3488 = vpack.c.b16 %v3440, %v3438
        %v3489 = vpack.c.b16 %v3441, %v3439
        %v3490 = vpack.c.b16 %v3444, %v3442
        %v3491 = vpack.c.b16 %v3445, %v3443
        %v3492 = vpack.c.b16 %v3448, %v3446
        %v3493 = vpack.c.b16 %v3449, %v3447
        %v3494 = vpack.c.b16 %v3452, %v3450
        %v3495 = vpack.c.b16 %v3453, %v3451
        %v3496 = vpack.c.b16 %v3456, %v3454
        %v3497 = vpack.c.b16 %v3457, %v3455
        %v3498 = vpack.c.b16 %v3460, %v3458
        %v3499 = vpack.c.b16 %v3461, %v3459
        %v3500 = vpack.c.b16 %v3464, %v3462
        %v3501 = vpack.c.b16 %v3465, %v3463
        %v3502 = vpack.c.b16 %v3468, %v3466
        %v3503 = vpack.c.b16 %v3469, %v3467
        %v3504 = vpack.c.b16 %v3472, %v3470
        %v3505 = vpack.c.b16 %v3473, %v3471
        %3538 = vmatpush.bf16.msra.mxu0 %v3488
        %3539 = vmatpush.bf16.msra.mxu0 %v3486
        %3540 = vmatpush.bf16.msra.mxu0 %v3484
        %3541 = vmatpush.bf16.msra.mxu0 %v3482
        %3542 = vmatpush.bf16.msra.mxu0 %v3480
        %3543 = vmatpush.bf16.msra.mxu0 %v3478
        %3544 = vmatpush.bf16.msra.mxu0 %v3476
        %3545 = vmatpush.bf16.msra.mxu0 %v3474
        %3546 = vmatmul.bf16.gmra.mxu0 %v3198
        %v3547 = vpop.f32.mrf.mxu0
        %v3548 = vadd.f32 0.0, %v3547
        %v3549 = vpop.f32.mrf.mxu0
        %v3550 = vadd.f32 0.0, %v3549
        %3551 = vmatmul.bf16.gmra.mxu0 %v3224
        %v3552 = vpop.f32.mrf.mxu0
        %v3553 = vadd.f32 0.0, %v3552
        %v3554 = vpop.f32.mrf.mxu0
        %v3555 = vadd.f32 0.0, %v3554
        %3556 = vmatmul.bf16.gmra.mxu0 %v3242
        %v3557 = vpop.f32.mrf.mxu0
        %v3558 = vadd.f32 0.0, %v3557
        %v3559 = vpop.f32.mrf.mxu0
        %v3560 = vadd.f32 0.0, %v3559
        %3561 = vmatmul.bf16.gmra.mxu0 %v3260
        %v3562 = vpop.f32.mrf.mxu0
        %v3563 = vadd.f32 0.0, %v3562
        %v3564 = vpop.f32.mrf.mxu0
        %v3565 = vadd.f32 0.0, %v3564
        %3566 = vmatmul.bf16.gmra.mxu0 %v3278
        %v3567 = vpop.f32.mrf.mxu0
        %v3568 = vadd.f32 0.0, %v3567
        %v3569 = vpop.f32.mrf.mxu0
        %v3570 = vadd.f32 0.0, %v3569
        %3571 = vmatmul.bf16.gmra.mxu0 %v3296
        %v3572 = vpop.f32.mrf.mxu0
        %v3573 = vadd.f32 0.0, %v3572
        %v3574 = vpop.f32.mrf.mxu0
        %v3575 = vadd.f32 0.0, %v3574
        %3576 = vmatmul.bf16.gmra.mxu0 %v3314
        %v3577 = vpop.f32.mrf.mxu0
        %v3578 = vadd.f32 0.0, %v3577
        %v3579 = vpop.f32.mrf.mxu0
        %v3580 = vadd.f32 0.0, %v3579
        %3581 = vmatmul.bf16.gmra.mxu0 %v3332
        %v3582 = vpop.f32.mrf.mxu0
        %v3583 = vadd.f32 0.0, %v3582
        %v3584 = vpop.f32.mrf.mxu0
        %v3585 = vadd.f32 0.0, %v3584
        %3586 = vmatmul.bf16.gmra.mxu0 %v3350
        %v3587 = vpop.f32.mrf.mxu0
        %v3588 = vadd.f32 0.0, %v3587
        %v3589 = vpop.f32.mrf.mxu0
        %v3590 = vadd.f32 0.0, %v3589
        %3591 = vdwg.mxu0
        %3592 = vmatpush.bf16.msra.mxu0 %v3504
        %3593 = vmatpush.bf16.msra.mxu0 %v3502
        %3594 = vmatpush.bf16.msra.mxu0 %v3500
        %3595 = vmatpush.bf16.msra.mxu0 %v3498
        %3596 = vmatpush.bf16.msra.mxu0 %v3496
        %3597 = vmatpush.bf16.msra.mxu0 %v3494
        %3598 = vmatpush.bf16.msra.mxu0 %v3492
        %3599 = vmatpush.bf16.msra.mxu0 %v3490
        %3600 = vmatmul.bf16.gmra.mxu0 %v3215
        %v3601 = vpop.f32.mrf.mxu0
        %v3602 = vadd.f32 %v3548, %v3601
        %v3603 = vpop.f32.mrf.mxu0
        %v3604 = vadd.f32 %v3550, %v3603
        %3605 = vmatmul.bf16.gmra.mxu0 %v3233
        %v3606 = vpop.f32.mrf.mxu0
        %v3607 = vadd.f32 %v3553, %v3606
        %v3608 = vpop.f32.mrf.mxu0
        %v3609 = vadd.f32 %v3555, %v3608
        %3610 = vmatmul.bf16.gmra.mxu0 %v3251
        %v3611 = vpop.f32.mrf.mxu0
        %v3612 = vadd.f32 %v3558, %v3611
        %v3613 = vpop.f32.mrf.mxu0
        %v3614 = vadd.f32 %v3560, %v3613
        %3615 = vmatmul.bf16.gmra.mxu0 %v3269
        %v3616 = vpop.f32.mrf.mxu0
        %v3617 = vadd.f32 %v3563, %v3616
        %v3618 = vpop.f32.mrf.mxu0
        %v3619 = vadd.f32 %v3565, %v3618
        %3620 = vmatmul.bf16.gmra.mxu0 %v3287
        %v3621 = vpop.f32.mrf.mxu0
        %v3622 = vadd.f32 %v3568, %v3621
        %v3623 = vpop.f32.mrf.mxu0
        %v3624 = vadd.f32 %v3570, %v3623
        %3625 = vmatmul.bf16.gmra.mxu0 %v3305
        %v3626 = vpop.f32.mrf.mxu0
        %v3627 = vadd.f32 %v3573, %v3626
        %v3628 = vpop.f32.mrf.mxu0
        %v3629 = vadd.f32 %v3575, %v3628
        %3630 = vmatmul.bf16.gmra.mxu0 %v3323
        %v3631 = vpop.f32.mrf.mxu0
        %v3632 = vadd.f32 %v3578, %v3631
        %v3633 = vpop.f32.mrf.mxu0
        %v3634 = vadd.f32 %v3580, %v3633
        %3635 = vmatmul.bf16.gmra.mxu0 %v3341
        %v3636 = vpop.f32.mrf.mxu0
        %v3637 = vadd.f32 %v3583, %v3636
        %v3638 = vpop.f32.mrf.mxu0
        %v3639 = vadd.f32 %v3585, %v3638
        %3640 = vmatmul.bf16.gmra.mxu0 %v3359
        %v3641 = vpop.f32.mrf.mxu0
        %v3642 = vadd.f32 %v3588, %v3641
        %v3643 = vpop.f32.mrf.mxu0
        %v3644 = vadd.f32 %v3590, %v3643
        %3645 = vdwg.mxu0
        %3646 = vmatpush.bf16.msra.mxu0 %v3489
        %3647 = vmatpush.bf16.msra.mxu0 %v3487
        %3648 = vmatpush.bf16.msra.mxu0 %v3485
        %3649 = vmatpush.bf16.msra.mxu0 %v3483
        %3650 = vmatpush.bf16.msra.mxu0 %v3481
        %3651 = vmatpush.bf16.msra.mxu0 %v3479
        %3652 = vmatpush.bf16.msra.mxu0 %v3477
        %3653 = vmatpush.bf16.msra.mxu0 %v3475
        %3654 = vmatmul.bf16.gmra.mxu0 %v3198
        %v3655 = vpop.f32.mrf.mxu0
        %v3656 = vadd.f32 0.0, %v3655
        %v3657 = vpop.f32.mrf.mxu0
        %v3658 = vadd.f32 0.0, %v3657
        %3659 = vmatmul.bf16.gmra.mxu0 %v3224
        %v3660 = vpop.f32.mrf.mxu0
        %v3661 = vadd.f32 0.0, %v3660
        %v3662 = vpop.f32.mrf.mxu0
        %v3663 = vadd.f32 0.0, %v3662
        %3664 = vmatmul.bf16.gmra.mxu0 %v3242
        %v3665 = vpop.f32.mrf.mxu0
        %v3666 = vadd.f32 0.0, %v3665
        %v3667 = vpop.f32.mrf.mxu0
        %v3668 = vadd.f32 0.0, %v3667
        %3669 = vmatmul.bf16.gmra.mxu0 %v3260
        %v3670 = vpop.f32.mrf.mxu0
        %v3671 = vadd.f32 0.0, %v3670
        %v3672 = vpop.f32.mrf.mxu0
        %v3673 = vadd.f32 0.0, %v3672
        %3674 = vmatmul.bf16.gmra.mxu0 %v3278
        %v3675 = vpop.f32.mrf.mxu0
        %v3676 = vadd.f32 0.0, %v3675
        %v3677 = vpop.f32.mrf.mxu0
        %v3678 = vadd.f32 0.0, %v3677
        %3679 = vmatmul.bf16.gmra.mxu0 %v3296
        %v3680 = vpop.f32.mrf.mxu0
        %v3681 = vadd.f32 0.0, %v3680
        %v3682 = vpop.f32.mrf.mxu0
        %v3683 = vadd.f32 0.0, %v3682
        %3684 = vmatmul.bf16.gmra.mxu0 %v3314
        %v3685 = vpop.f32.mrf.mxu0
        %v3686 = vadd.f32 0.0, %v3685
        %v3687 = vpop.f32.mrf.mxu0
        %v3688 = vadd.f32 0.0, %v3687
        %3689 = vmatmul.bf16.gmra.mxu0 %v3332
        %v3690 = vpop.f32.mrf.mxu0
        %v3691 = vadd.f32 0.0, %v3690
        %v3692 = vpop.f32.mrf.mxu0
        %v3693 = vadd.f32 0.0, %v3692
        %3694 = vmatmul.bf16.gmra.mxu0 %v3350
        %v3695 = vpop.f32.mrf.mxu0
        %v3696 = vadd.f32 0.0, %v3695
        %v3697 = vpop.f32.mrf.mxu0
        %v3698 = vadd.f32 0.0, %v3697
        %3699 = vdwg.mxu0
        %3700 = vmatpush.bf16.msra.mxu0 %v3505
        %3701 = vmatpush.bf16.msra.mxu0 %v3503
        %3702 = vmatpush.bf16.msra.mxu0 %v3501
        %3703 = vmatpush.bf16.msra.mxu0 %v3499
        %3704 = vmatpush.bf16.msra.mxu0 %v3497
        %3705 = vmatpush.bf16.msra.mxu0 %v3495
        %3706 = vmatpush.bf16.msra.mxu0 %v3493
        %3707 = vmatpush.bf16.msra.mxu0 %v3491
        %3708 = vmatmul.bf16.gmra.mxu0 %v3215
        %v3709 = vpop.f32.mrf.mxu0
        %v3710 = vadd.f32 %v3656, %v3709
        %v3711 = vpop.f32.mrf.mxu0
        %v3712 = vadd.f32 %v3658, %v3711
        %3713 = vmatmul.bf16.gmra.mxu0 %v3233
        %v3714 = vpop.f32.mrf.mxu0
        %v3715 = vadd.f32 %v3661, %v3714
        %v3716 = vpop.f32.mrf.mxu0
        %v3717 = vadd.f32 %v3663, %v3716
        %3718 = vmatmul.bf16.gmra.mxu0 %v3251
        %v3719 = vpop.f32.mrf.mxu0
        %v3720 = vadd.f32 %v3666, %v3719
        %v3721 = vpop.f32.mrf.mxu0
        %v3722 = vadd.f32 %v3668, %v3721
        %3723 = vmatmul.bf16.gmra.mxu0 %v3269
        %v3724 = vpop.f32.mrf.mxu0
        %v3725 = vadd.f32 %v3671, %v3724
        %v3726 = vpop.f32.mrf.mxu0
        %v3727 = vadd.f32 %v3673, %v3726
        %3728 = vmatmul.bf16.gmra.mxu0 %v3287
        %v3729 = vpop.f32.mrf.mxu0
        %v3730 = vadd.f32 %v3676, %v3729
        %v3731 = vpop.f32.mrf.mxu0
        %v3732 = vadd.f32 %v3678, %v3731
        %3733 = vmatmul.bf16.gmra.mxu0 %v3305
        %v3734 = vpop.f32.mrf.mxu0
        %v3735 = vadd.f32 %v3681, %v3734
        %v3736 = vpop.f32.mrf.mxu0
        %v3737 = vadd.f32 %v3683, %v3736
        %3738 = vmatmul.bf16.gmra.mxu0 %v3323
        %v3739 = vpop.f32.mrf.mxu0
        %v3740 = vadd.f32 %v3686, %v3739
        %v3741 = vpop.f32.mrf.mxu0
        %v3742 = vadd.f32 %v3688, %v3741
        %3743 = vmatmul.bf16.gmra.mxu0 %v3341
        %v3744 = vpop.f32.mrf.mxu0
        %v3745 = vadd.f32 %v3691, %v3744
        %v3746 = vpop.f32.mrf.mxu0
        %v3747 = vadd.f32 %v3693, %v3746
        %3748 = vmatmul.bf16.gmra.mxu0 %v3359
        %v3749 = vpop.f32.mrf.mxu0
        %v3750 = vadd.f32 %v3696, %v3749
        %v3751 = vpop.f32.mrf.mxu0
        %v3752 = vadd.f32 %v3698, %v3751
        %3753 = vdwg.mxu0
        %v3754 = vadd.f32 %v3055, %v3602
        %v3755 = vadd.f32 %v3056, %v3710
        %v3756 = vadd.f32 %v3057, %v3604
        %v3757 = vadd.f32 %v3058, %v3712
        %v3758 = vadd.f32 %v3059, %v3607
        %v3759 = vadd.f32 %v3060, %v3715
        %v3760 = vadd.f32 %v3061, %v3609
        %v3761 = vadd.f32 %v3062, %v3717
        %v3762 = vadd.f32 %v3063, %v3612
        %v3763 = vadd.f32 %v3064, %v3720
        %v3764 = vadd.f32 %v3065, %v3614
        %v3765 = vadd.f32 %v3066, %v3722
        %v3766 = vadd.f32 %v3067, %v3617
        %v3767 = vadd.f32 %v3068, %v3725
        %v3768 = vadd.f32 %v3069, %v3619
        %v3769 = vadd.f32 %v3070, %v3727
        %v3770 = vadd.f32 %v3071, %v3622
        %v3771 = vadd.f32 %v3072, %v3730
        %v3772 = vadd.f32 %v3073, %v3624
        %v3773 = vadd.f32 %v3074, %v3732
        %v3774 = vadd.f32 %v3075, %v3627
        %v3775 = vadd.f32 %v3076, %v3735
        %v3776 = vadd.f32 %v3077, %v3629
        %v3777 = vadd.f32 %v3078, %v3737
        %v3778 = vadd.f32 %v3079, %v3632
        %v3779 = vadd.f32 %v3080, %v3740
        %v3780 = vadd.f32 %v3081, %v3634
        %v3781 = vadd.f32 %v3082, %v3742
        %v3782 = vadd.f32 %v3083, %v3637
        %v3783 = vadd.f32 %v3084, %v3745
        %v3784 = vadd.f32 %v3085, %v3639
        %v3785 = vadd.f32 %v3086, %v3747
        %v3786 = vadd.f32 %v3087, %v3642
        %v3787 = vadd.f32 %v3088, %v3750
        %v3788 = vadd.f32 %v3089, %v3644
        %v3789 = vadd.f32 %v3090, %v3752
        %v3790 = vld [vmem:[#allocation2 + $0x130] sm:$0xff]
        %v3791 = vld [vmem:[#allocation2 + $0x138] sm:$0xff]
        %v3792 = vpack.c.bf16 %v3095, %v3093
        %v3793 = vpack.c.bf16 %v3096, %v3094
        %v3794 = vpack.c.bf16 %v3099, %v3097
        %v3795 = vpack.c.bf16 %v3100, %v3098
        %v3796 = vpack.c.bf16 %v3103, %v3101
        %v3797 = vpack.c.bf16 %v3104, %v3102
        %v3798 = vpack.c.bf16 %v3107, %v3105
        %v3799 = vpack.c.bf16 %v3108, %v3106
        %v3800 = vpack.c.bf16 %v3111, %v3109
        %v3801 = vpack.c.bf16 %v3112, %v3110
        %v3802 = vpack.c.bf16 %v3115, %v3113
        %v3803 = vpack.c.bf16 %v3116, %v3114
        %v3804 = vpack.c.bf16 %v3119, %v3117
        %v3805 = vpack.c.bf16 %v3120, %v3118
        %v3806 = vpack.c.bf16 %v3123, %v3121
        %v3807 = vpack.c.bf16 %v3124, %v3122
        %v3808 = vpack.c.bf16 %v3790, %v3125
        %v3809 = vpack.c.bf16 %v3791, %v3126
        %s3810 = scalar_lea.vmem %s701, 1024 [#allocation10]
        %v3811 = vld [vmem:[%s3810] sm:$0xff]
        %v3812 = vld [vmem:[%s3810 + $0x8] sm:$0xff]
        %v3813 = vld [vmem:[%s3810 + $0x10] sm:$0xff]
        %v3814 = vld [vmem:[%s3810 + $0x18] sm:$0xff]
        %v3815 = vld [vmem:[%s3810 + $0x20] sm:$0xff]
        %v3816 = vld [vmem:[%s3810 + $0x28] sm:$0xff]
        %v3817 = vld [vmem:[%s3810 + $0x30] sm:$0xff]
        %v3818 = vld [vmem:[%s3810 + $0x38] sm:$0xff]
        %v3819 = vld [vmem:[%s3810 + $0x40] sm:$0xff]
        %v3820 = vld [vmem:[%s3810 + $0x48] sm:$0xff]
        %v3821 = vld [vmem:[%s3810 + $0x50] sm:$0xff]
        %v3822 = vld [vmem:[%s3810 + $0x58] sm:$0xff]
        %v3823 = vld [vmem:[%s3810 + $0x60] sm:$0xff]
        %v3824 = vld [vmem:[%s3810 + $0x68] sm:$0xff]
        %v3825 = vld [vmem:[%s3810 + $0x70] sm:$0xff]
        %v3826 = vld [vmem:[%s3810 + $0x78] sm:$0xff]
        %v3827 = vld [vmem:[%s3810 + $0x80] sm:$0xff]
        %v3828 = vld [vmem:[%s3810 + $0x88] sm:$0xff]
        %v3829 = vld [vmem:[%s3810 + $0x90] sm:$0xff]
        %v3830 = vld [vmem:[%s3810 + $0x98] sm:$0xff]
        %v3831 = vld [vmem:[%s3810 + $0xa0] sm:$0xff]
        %v3832 = vld [vmem:[%s3810 + $0xa8] sm:$0xff]
        %v3833 = vld [vmem:[%s3810 + $0xb0] sm:$0xff]
        %v3834 = vld [vmem:[%s3810 + $0xb8] sm:$0xff]
        %v3835 = vld [vmem:[%s3810 + $0xc0] sm:$0xff]
        %v3836 = vld [vmem:[%s3810 + $0xc8] sm:$0xff]
        %v3837 = vld [vmem:[%s3810 + $0xd0] sm:$0xff]
        %v3838 = vld [vmem:[%s3810 + $0xd8] sm:$0xff]
        %v3839 = vld [vmem:[%s3810 + $0xe0] sm:$0xff]
        %v3840 = vld [vmem:[%s3810 + $0xe8] sm:$0xff]
        %v3841 = vld [vmem:[%s3810 + $0xf0] sm:$0xff]
        %v3842 = vld [vmem:[%s3810 + $0xf8] sm:$0xff]
        %v3875 = vunpack.c.l.b16 %v3811
        %v3876 = vunpack.c.h.b16 %v3811
        %v3877 = vunpack.c.l.b16 %v3812
        %v3878 = vunpack.c.h.b16 %v3812
        %v3879 = vunpack.c.l.b16 %v3813
        %v3880 = vunpack.c.h.b16 %v3813
        %v3881 = vunpack.c.l.b16 %v3814
        %v3882 = vunpack.c.h.b16 %v3814
        %v3883 = vunpack.c.l.b16 %v3815
        %v3884 = vunpack.c.h.b16 %v3815
        %v3885 = vunpack.c.l.b16 %v3816
        %v3886 = vunpack.c.h.b16 %v3816
        %v3887 = vunpack.c.l.b16 %v3817
        %v3888 = vunpack.c.h.b16 %v3817
        %v3889 = vunpack.c.l.b16 %v3818
        %v3890 = vunpack.c.h.b16 %v3818
        %v3891 = vunpack.c.l.b16 %v3819
        %v3892 = vunpack.c.h.b16 %v3819
        %v3893 = vunpack.c.l.b16 %v3820
        %v3894 = vunpack.c.h.b16 %v3820
        %v3895 = vunpack.c.l.b16 %v3821
        %v3896 = vunpack.c.h.b16 %v3821
        %v3897 = vunpack.c.l.b16 %v3822
        %v3898 = vunpack.c.h.b16 %v3822
        %v3899 = vunpack.c.l.b16 %v3823
        %v3900 = vunpack.c.h.b16 %v3823
        %v3901 = vunpack.c.l.b16 %v3824
        %v3902 = vunpack.c.h.b16 %v3824
        %v3903 = vunpack.c.l.b16 %v3825
        %v3904 = vunpack.c.h.b16 %v3825
        %v3905 = vunpack.c.l.b16 %v3826
        %v3906 = vunpack.c.h.b16 %v3826
        %v3907 = vunpack.c.l.b16 %v3827
        %v3908 = vunpack.c.h.b16 %v3827
        %v3909 = vunpack.c.l.b16 %v3828
        %v3910 = vunpack.c.h.b16 %v3828
        %v3911 = vunpack.c.l.b16 %v3829
        %v3912 = vunpack.c.h.b16 %v3829
        %v3913 = vunpack.c.l.b16 %v3830
        %v3914 = vunpack.c.h.b16 %v3830
        %v3915 = vunpack.c.l.b16 %v3831
        %v3916 = vunpack.c.h.b16 %v3831
        %v3917 = vunpack.c.l.b16 %v3832
        %v3918 = vunpack.c.h.b16 %v3832
        %v3919 = vunpack.c.l.b16 %v3833
        %v3920 = vunpack.c.h.b16 %v3833
        %v3921 = vunpack.c.l.b16 %v3834
        %v3922 = vunpack.c.h.b16 %v3834
        %v3923 = vunpack.c.l.b16 %v3835
        %v3924 = vunpack.c.h.b16 %v3835
        %v3925 = vunpack.c.l.b16 %v3836
        %v3926 = vunpack.c.h.b16 %v3836
        %v3927 = vunpack.c.l.b16 %v3837
        %v3928 = vunpack.c.h.b16 %v3837
        %v3929 = vunpack.c.l.b16 %v3838
        %v3930 = vunpack.c.h.b16 %v3838
        %v3931 = vunpack.c.l.b16 %v3839
        %v3932 = vunpack.c.h.b16 %v3839
        %v3933 = vunpack.c.l.b16 %v3840
        %v3934 = vunpack.c.h.b16 %v3840
        %v3935 = vunpack.c.l.b16 %v3841
        %v3936 = vunpack.c.h.b16 %v3841
        %v3937 = vunpack.c.l.b16 %v3842
        %v3938 = vunpack.c.h.b16 %v3842
        %v3939 = vpack.c.b16 %v3877, %v3875
        %v3940 = vpack.c.b16 %v3878, %v3876
        %v3941 = vpack.c.b16 %v3881, %v3879
        %v3942 = vpack.c.b16 %v3882, %v3880
        %v3943 = vpack.c.b16 %v3885, %v3883
        %v3944 = vpack.c.b16 %v3886, %v3884
        %v3945 = vpack.c.b16 %v3889, %v3887
        %v3946 = vpack.c.b16 %v3890, %v3888
        %v3947 = vpack.c.b16 %v3893, %v3891
        %v3948 = vpack.c.b16 %v3894, %v3892
        %v3949 = vpack.c.b16 %v3897, %v3895
        %v3950 = vpack.c.b16 %v3898, %v3896
        %v3951 = vpack.c.b16 %v3901, %v3899
        %v3952 = vpack.c.b16 %v3902, %v3900
        %v3953 = vpack.c.b16 %v3905, %v3903
        %v3954 = vpack.c.b16 %v3906, %v3904
        %v3955 = vpack.c.b16 %v3909, %v3907
        %v3956 = vpack.c.b16 %v3910, %v3908
        %v3957 = vpack.c.b16 %v3913, %v3911
        %v3958 = vpack.c.b16 %v3914, %v3912
        %v3959 = vpack.c.b16 %v3917, %v3915
        %v3960 = vpack.c.b16 %v3918, %v3916
        %v3961 = vpack.c.b16 %v3921, %v3919
        %v3962 = vpack.c.b16 %v3922, %v3920
        %v3963 = vpack.c.b16 %v3925, %v3923
        %v3964 = vpack.c.b16 %v3926, %v3924
        %v3965 = vpack.c.b16 %v3929, %v3927
        %v3966 = vpack.c.b16 %v3930, %v3928
        %v3967 = vpack.c.b16 %v3933, %v3931
        %v3968 = vpack.c.b16 %v3934, %v3932
        %v3969 = vpack.c.b16 %v3937, %v3935
        %v3970 = vpack.c.b16 %v3938, %v3936
        %4003 = vmatpush.bf16.msra.mxu0 %v3953
        %4004 = vmatpush.bf16.msra.mxu0 %v3951
        %4005 = vmatpush.bf16.msra.mxu0 %v3949
        %4006 = vmatpush.bf16.msra.mxu0 %v3947
        %4007 = vmatpush.bf16.msra.mxu0 %v3945
        %4008 = vmatpush.bf16.msra.mxu0 %v3943
        %4009 = vmatpush.bf16.msra.mxu0 %v3941
        %4010 = vmatpush.bf16.msra.mxu0 %v3939
        %4011 = vmatmul.bf16.gmra.mxu0 %v3792
        %v4012 = vpop.f32.mrf.mxu0
        %v4013 = vadd.f32 0.0, %v4012
        %v4014 = vpop.f32.mrf.mxu0
        %v4015 = vadd.f32 0.0, %v4014
        %4016 = vmatmul.bf16.gmra.mxu0 %v3794
        %v4017 = vpop.f32.mrf.mxu0
        %v4018 = vadd.f32 0.0, %v4017
        %v4019 = vpop.f32.mrf.mxu0
        %v4020 = vadd.f32 0.0, %v4019
        %4021 = vmatmul.bf16.gmra.mxu0 %v3796
        %v4022 = vpop.f32.mrf.mxu0
        %v4023 = vadd.f32 0.0, %v4022
        %v4024 = vpop.f32.mrf.mxu0
        %v4025 = vadd.f32 0.0, %v4024
        %4026 = vmatmul.bf16.gmra.mxu0 %v3798
        %v4027 = vpop.f32.mrf.mxu0
        %v4028 = vadd.f32 0.0, %v4027
        %v4029 = vpop.f32.mrf.mxu0
        %v4030 = vadd.f32 0.0, %v4029
        %4031 = vmatmul.bf16.gmra.mxu0 %v3800
        %v4032 = vpop.f32.mrf.mxu0
        %v4033 = vadd.f32 0.0, %v4032
        %v4034 = vpop.f32.mrf.mxu0
        %v4035 = vadd.f32 0.0, %v4034
        %4036 = vmatmul.bf16.gmra.mxu0 %v3802
        %v4037 = vpop.f32.mrf.mxu0
        %v4038 = vadd.f32 0.0, %v4037
        %v4039 = vpop.f32.mrf.mxu0
        %v4040 = vadd.f32 0.0, %v4039
        %4041 = vmatmul.bf16.gmra.mxu0 %v3804
        %v4042 = vpop.f32.mrf.mxu0
        %v4043 = vadd.f32 0.0, %v4042
        %v4044 = vpop.f32.mrf.mxu0
        %v4045 = vadd.f32 0.0, %v4044
        %4046 = vmatmul.bf16.gmra.mxu0 %v3806
        %v4047 = vpop.f32.mrf.mxu0
        %v4048 = vadd.f32 0.0, %v4047
        %v4049 = vpop.f32.mrf.mxu0
        %v4050 = vadd.f32 0.0, %v4049
        %4051 = vmatmul.bf16.gmra.mxu0 %v3808
        %v4052 = vpop.f32.mrf.mxu0
        %v4053 = vadd.f32 0.0, %v4052
        %v4054 = vpop.f32.mrf.mxu0
        %v4055 = vadd.f32 0.0, %v4054
        %4056 = vdwg.mxu0
        %4057 = vmatpush.bf16.msra.mxu0 %v3969
        %4058 = vmatpush.bf16.msra.mxu0 %v3967
        %4059 = vmatpush.bf16.msra.mxu0 %v3965
        %4060 = vmatpush.bf16.msra.mxu0 %v3963
        %4061 = vmatpush.bf16.msra.mxu0 %v3961
        %4062 = vmatpush.bf16.msra.mxu0 %v3959
        %4063 = vmatpush.bf16.msra.mxu0 %v3957
        %4064 = vmatpush.bf16.msra.mxu0 %v3955
        %4065 = vmatmul.bf16.gmra.mxu0 %v3793
        %v4066 = vpop.f32.mrf.mxu0
        %v4067 = vadd.f32 %v4013, %v4066
        %v4068 = vpop.f32.mrf.mxu0
        %v4069 = vadd.f32 %v4015, %v4068
        %4070 = vmatmul.bf16.gmra.mxu0 %v3795
        %v4071 = vpop.f32.mrf.mxu0
        %v4072 = vadd.f32 %v4018, %v4071
        %v4073 = vpop.f32.mrf.mxu0
        %v4074 = vadd.f32 %v4020, %v4073
        %4075 = vmatmul.bf16.gmra.mxu0 %v3797
        %v4076 = vpop.f32.mrf.mxu0
        %v4077 = vadd.f32 %v4023, %v4076
        %v4078 = vpop.f32.mrf.mxu0
        %v4079 = vadd.f32 %v4025, %v4078
        %4080 = vmatmul.bf16.gmra.mxu0 %v3799
        %v4081 = vpop.f32.mrf.mxu0
        %v4082 = vadd.f32 %v4028, %v4081
        %v4083 = vpop.f32.mrf.mxu0
        %v4084 = vadd.f32 %v4030, %v4083
        %4085 = vmatmul.bf16.gmra.mxu0 %v3801
        %v4086 = vpop.f32.mrf.mxu0
        %v4087 = vadd.f32 %v4033, %v4086
        %v4088 = vpop.f32.mrf.mxu0
        %v4089 = vadd.f32 %v4035, %v4088
        %4090 = vmatmul.bf16.gmra.mxu0 %v3803
        %v4091 = vpop.f32.mrf.mxu0
        %v4092 = vadd.f32 %v4038, %v4091
        %v4093 = vpop.f32.mrf.mxu0
        %v4094 = vadd.f32 %v4040, %v4093
        %4095 = vmatmul.bf16.gmra.mxu0 %v3805
        %v4096 = vpop.f32.mrf.mxu0
        %v4097 = vadd.f32 %v4043, %v4096
        %v4098 = vpop.f32.mrf.mxu0
        %v4099 = vadd.f32 %v4045, %v4098
        %4100 = vmatmul.bf16.gmra.mxu0 %v3807
        %v4101 = vpop.f32.mrf.mxu0
        %v4102 = vadd.f32 %v4048, %v4101
        %v4103 = vpop.f32.mrf.mxu0
        %v4104 = vadd.f32 %v4050, %v4103
        %4105 = vmatmul.bf16.gmra.mxu0 %v3809
        %v4106 = vpop.f32.mrf.mxu0
        %v4107 = vadd.f32 %v4053, %v4106
        %v4108 = vpop.f32.mrf.mxu0
        %v4109 = vadd.f32 %v4055, %v4108
        %4110 = vdwg.mxu0
        %4111 = vmatpush.bf16.msra.mxu0 %v3954
        %4112 = vmatpush.bf16.msra.mxu0 %v3952
        %4113 = vmatpush.bf16.msra.mxu0 %v3950
        %4114 = vmatpush.bf16.msra.mxu0 %v3948
        %4115 = vmatpush.bf16.msra.mxu0 %v3946
        %4116 = vmatpush.bf16.msra.mxu0 %v3944
        %4117 = vmatpush.bf16.msra.mxu0 %v3942
        %4118 = vmatpush.bf16.msra.mxu0 %v3940
        %4119 = vmatmul.bf16.gmra.mxu0 %v3792
        %v4120 = vpop.f32.mrf.mxu0
        %v4121 = vadd.f32 0.0, %v4120
        %v4122 = vpop.f32.mrf.mxu0
        %v4123 = vadd.f32 0.0, %v4122
        %4124 = vmatmul.bf16.gmra.mxu0 %v3794
        %v4125 = vpop.f32.mrf.mxu0
        %v4126 = vadd.f32 0.0, %v4125
        %v4127 = vpop.f32.mrf.mxu0
        %v4128 = vadd.f32 0.0, %v4127
        %4129 = vmatmul.bf16.gmra.mxu0 %v3796
        %v4130 = vpop.f32.mrf.mxu0
        %v4131 = vadd.f32 0.0, %v4130
        %v4132 = vpop.f32.mrf.mxu0
        %v4133 = vadd.f32 0.0, %v4132
        %4134 = vmatmul.bf16.gmra.mxu0 %v3798
        %v4135 = vpop.f32.mrf.mxu0
        %v4136 = vadd.f32 0.0, %v4135
        %v4137 = vpop.f32.mrf.mxu0
        %v4138 = vadd.f32 0.0, %v4137
        %4139 = vmatmul.bf16.gmra.mxu0 %v3800
        %v4140 = vpop.f32.mrf.mxu0
        %v4141 = vadd.f32 0.0, %v4140
        %v4142 = vpop.f32.mrf.mxu0
        %v4143 = vadd.f32 0.0, %v4142
        %4144 = vmatmul.bf16.gmra.mxu0 %v3802
        %v4145 = vpop.f32.mrf.mxu0
        %v4146 = vadd.f32 0.0, %v4145
        %v4147 = vpop.f32.mrf.mxu0
        %v4148 = vadd.f32 0.0, %v4147
        %4149 = vmatmul.bf16.gmra.mxu0 %v3804
        %v4150 = vpop.f32.mrf.mxu0
        %v4151 = vadd.f32 0.0, %v4150
        %v4152 = vpop.f32.mrf.mxu0
        %v4153 = vadd.f32 0.0, %v4152
        %4154 = vmatmul.bf16.gmra.mxu0 %v3806
        %v4155 = vpop.f32.mrf.mxu0
        %v4156 = vadd.f32 0.0, %v4155
        %v4157 = vpop.f32.mrf.mxu0
        %v4158 = vadd.f32 0.0, %v4157
        %4159 = vmatmul.bf16.gmra.mxu0 %v3808
        %v4160 = vpop.f32.mrf.mxu0
        %v4161 = vadd.f32 0.0, %v4160
        %v4162 = vpop.f32.mrf.mxu0
        %v4163 = vadd.f32 0.0, %v4162
        %4164 = vdwg.mxu0
        %4165 = vmatpush.bf16.msra.mxu0 %v3970
        %4166 = vmatpush.bf16.msra.mxu0 %v3968
        %4167 = vmatpush.bf16.msra.mxu0 %v3966
        %4168 = vmatpush.bf16.msra.mxu0 %v3964
        %4169 = vmatpush.bf16.msra.mxu0 %v3962
        %4170 = vmatpush.bf16.msra.mxu0 %v3960
        %4171 = vmatpush.bf16.msra.mxu0 %v3958
        %4172 = vmatpush.bf16.msra.mxu0 %v3956
        %4173 = vmatmul.bf16.gmra.mxu0 %v3793
        %v4174 = vpop.f32.mrf.mxu0
        %v4175 = vadd.f32 %v4121, %v4174
        %v4176 = vpop.f32.mrf.mxu0
        %v4177 = vadd.f32 %v4123, %v4176
        %4178 = vmatmul.bf16.gmra.mxu0 %v3795
        %v4179 = vpop.f32.mrf.mxu0
        %v4180 = vadd.f32 %v4126, %v4179
        %v4181 = vpop.f32.mrf.mxu0
        %v4182 = vadd.f32 %v4128, %v4181
        %4183 = vmatmul.bf16.gmra.mxu0 %v3797
        %v4184 = vpop.f32.mrf.mxu0
        %v4185 = vadd.f32 %v4131, %v4184
        %v4186 = vpop.f32.mrf.mxu0
        %v4187 = vadd.f32 %v4133, %v4186
        %4188 = vmatmul.bf16.gmra.mxu0 %v3799
        %v4189 = vpop.f32.mrf.mxu0
        %v4190 = vadd.f32 %v4136, %v4189
        %v4191 = vpop.f32.mrf.mxu0
        %v4192 = vadd.f32 %v4138, %v4191
        %4193 = vmatmul.bf16.gmra.mxu0 %v3801
        %v4194 = vpop.f32.mrf.mxu0
        %v4195 = vadd.f32 %v4141, %v4194
        %v4196 = vpop.f32.mrf.mxu0
        %v4197 = vadd.f32 %v4143, %v4196
        %4198 = vmatmul.bf16.gmra.mxu0 %v3803
        %v4199 = vpop.f32.mrf.mxu0
        %v4200 = vadd.f32 %v4146, %v4199
        %v4201 = vpop.f32.mrf.mxu0
        %v4202 = vadd.f32 %v4148, %v4201
        %4203 = vmatmul.bf16.gmra.mxu0 %v3805
        %v4204 = vpop.f32.mrf.mxu0
        %v4205 = vadd.f32 %v4151, %v4204
        %v4206 = vpop.f32.mrf.mxu0
        %v4207 = vadd.f32 %v4153, %v4206
        %4208 = vmatmul.bf16.gmra.mxu0 %v3807
        %v4209 = vpop.f32.mrf.mxu0
        %v4210 = vadd.f32 %v4156, %v4209
        %v4211 = vpop.f32.mrf.mxu0
        %v4212 = vadd.f32 %v4158, %v4211
        %4213 = vmatmul.bf16.gmra.mxu0 %v3809
        %v4214 = vpop.f32.mrf.mxu0
        %v4215 = vadd.f32 %v4161, %v4214
        %v4216 = vpop.f32.mrf.mxu0
        %v4217 = vadd.f32 %v4163, %v4216
        %4218 = vdwg.mxu0
        %v4219 = vadd.f32 %v3754, %v4067
        %v4220 = vadd.f32 %v3755, %v4175
        %v4221 = vadd.f32 %v3756, %v4069
        %v4222 = vadd.f32 %v3757, %v4177
        %v4223 = vadd.f32 %v3758, %v4072
        %v4224 = vadd.f32 %v3759, %v4180
        %v4225 = vadd.f32 %v3760, %v4074
        %v4226 = vadd.f32 %v3761, %v4182
        %v4227 = vadd.f32 %v3762, %v4077
        %v4228 = vadd.f32 %v3763, %v4185
        %v4229 = vadd.f32 %v3764, %v4079
        %v4230 = vadd.f32 %v3765, %v4187
        %v4231 = vadd.f32 %v3766, %v4082
        %v4232 = vadd.f32 %v3767, %v4190
        %v4233 = vadd.f32 %v3768, %v4084
        %v4234 = vadd.f32 %v3769, %v4192
        %v4235 = vadd.f32 %v3770, %v4087
        %v4236 = vadd.f32 %v3771, %v4195
        %v4237 = vadd.f32 %v3772, %v4089
        %v4238 = vadd.f32 %v3773, %v4197
        %v4239 = vadd.f32 %v3774, %v4092
        %v4240 = vadd.f32 %v3775, %v4200
        %v4241 = vadd.f32 %v3776, %v4094
        %v4242 = vadd.f32 %v3777, %v4202
        %v4243 = vadd.f32 %v3778, %v4097
        %v4244 = vadd.f32 %v3779, %v4205
        %v4245 = vadd.f32 %v3780, %v4099
        %v4246 = vadd.f32 %v3781, %v4207
        %v4247 = vadd.f32 %v3782, %v4102
        %v4248 = vadd.f32 %v3783, %v4210
        %v4249 = vadd.f32 %v3784, %v4104
        %v4250 = vadd.f32 %v3785, %v4212
        %v4251 = vadd.f32 %v3786, %v4107
        %v4252 = vadd.f32 %v3787, %v4215
        %v4253 = vadd.f32 %v3788, %v4109
        %v4254 = vadd.f32 %v3789, %v4217
        %v4255 = vld [vmem:[#allocation2 + $0x20] sm:$0xfe]
        %v4256 = vld [vmem:[#allocation2 + $0x28] sm:$0xfe]
        %v4257 = vld [vmem:[#allocation2 + $0x30] sm:$0xff]
        %v4258 = vld [vmem:[#allocation2 + $0x38] sm:$0xff]
        %v4259 = vld [vmem:[#allocation2 + $0x40] sm:$0xff]
        %v4260 = vld [vmem:[#allocation2 + $0x48] sm:$0xff]
        %v4261 = vld [vmem:[#allocation2 + $0x50] sm:$0xff]
        %v4262 = vld [vmem:[#allocation2 + $0x58] sm:$0xff]
        %v4263 = vld [vmem:[#allocation2 + $0x60] sm:$0xff]
        %v4264 = vld [vmem:[#allocation2 + $0x68] sm:$0xff]
        %v4265 = vld [vmem:[#allocation2 + $0x70] sm:$0xff]
        %v4266 = vld [vmem:[#allocation2 + $0x78] sm:$0xff]
        %v4267 = vld [vmem:[#allocation2 + $0x80] sm:$0xff]
        %v4268 = vld [vmem:[#allocation2 + $0x88] sm:$0xff]
        %v4269 = vld [vmem:[#allocation2 + $0x90] sm:$0xff]
        %v4270 = vld [vmem:[#allocation2 + $0x98] sm:$0xff]
        %v4271 = vld [vmem:[#allocation2 + $0xa0] sm:$0xff]
        %v4272 = vld [vmem:[#allocation2 + $0xa8] sm:$0xff]
        %v4273 = vld [vmem:[#allocation2 + $0xb0] sm:$0xff]
        %v4274 = vld [vmem:[#allocation2 + $0xb8] sm:$0xff]
        %v4275 = vld [vmem:[#allocation2 + $0xc0] sm:$0xff]
        %v4276 = vld [vmem:[#allocation2 + $0xc8] sm:$0xff]
        %v4277 = vld [vmem:[#allocation2 + $0xd0] sm:$0xff]
        %v4278 = vld [vmem:[#allocation2 + $0xd8] sm:$0xff]
        %v4279 = vld [vmem:[#allocation2 + $0xe0] sm:$0xff]
        %v4280 = vld [vmem:[#allocation2 + $0xe8] sm:$0xff]
        %v4281 = vld [vmem:[#allocation2 + $0xf0] sm:$0xff]
        %v4282 = vld [vmem:[#allocation2 + $0xf8] sm:$0xff]
        %v4283 = vld [vmem:[#allocation2 + $0x100] sm:$0xff]
        %v4284 = vld [vmem:[#allocation2 + $0x108] sm:$0xff]
        %v4285 = vld [vmem:[#allocation2 + $0x110] sm:$0xff]
        %v4286 = vld [vmem:[#allocation2 + $0x118] sm:$0xff]
        %v4287 = vld [vmem:[#allocation2 + $0x120] sm:$0xff]
        %v4288 = vld [vmem:[#allocation2 + $0x128] sm:$0xff]
        %v4289 = vld [vmem:[#allocation2 + $0x130] sm:$0xff]
        %v4290 = vld [vmem:[#allocation2 + $0x138] sm:$0xff]
        %v4291 = vld [vmem:[#allocation2 + $0x140] sm:$0x1]
        %v4292 = vld [vmem:[#allocation2 + $0x148] sm:$0x1]
        %v4293 = vpack.c.bf16 %v4257, %v4255
        %v4294 = vpack.c.bf16 %v4258, %v4256
        %v4295 = vpack.c.bf16 %v4261, %v4259
        %v4296 = vpack.c.bf16 %v4262, %v4260
        %v4297 = vpack.c.bf16 %v4265, %v4263
        %v4298 = vpack.c.bf16 %v4266, %v4264
        %v4299 = vpack.c.bf16 %v4269, %v4267
        %v4300 = vpack.c.bf16 %v4270, %v4268
        %v4301 = vpack.c.bf16 %v4273, %v4271
        %v4302 = vpack.c.bf16 %v4274, %v4272
        %v4303 = vpack.c.bf16 %v4277, %v4275
        %v4304 = vpack.c.bf16 %v4278, %v4276
        %v4305 = vpack.c.bf16 %v4281, %v4279
        %v4306 = vpack.c.bf16 %v4282, %v4280
        %v4307 = vpack.c.bf16 %v4285, %v4283
        %v4308 = vpack.c.bf16 %v4286, %v4284
        %v4309 = vpack.c.bf16 %v4289, %v4287
        %v4310 = vpack.c.bf16 %v4290, %v4288
        %v4311 = vpack.c.bf16 %v4291, %v4291
        %v4312 = vpack.c.bf16 %v4292, %v4292
        %s4313 = scalar_lea.vmem %s701, 1280 [#allocation10]
        %v4314 = vld [vmem:[%s4313] sm:$0xff]
        %v4315 = vld [vmem:[%s4313 + $0x8] sm:$0xff]
        %v4316 = vld [vmem:[%s4313 + $0x10] sm:$0xff]
        %v4317 = vld [vmem:[%s4313 + $0x18] sm:$0xff]
        %v4318 = vld [vmem:[%s4313 + $0x20] sm:$0xff]
        %v4319 = vld [vmem:[%s4313 + $0x28] sm:$0xff]
        %v4320 = vld [vmem:[%s4313 + $0x30] sm:$0xff]
        %v4321 = vld [vmem:[%s4313 + $0x38] sm:$0xff]
        %v4322 = vld [vmem:[%s4313 + $0x40] sm:$0xff]
        %v4323 = vld [vmem:[%s4313 + $0x48] sm:$0xff]
        %v4324 = vld [vmem:[%s4313 + $0x50] sm:$0xff]
        %v4325 = vld [vmem:[%s4313 + $0x58] sm:$0xff]
        %v4326 = vld [vmem:[%s4313 + $0x60] sm:$0xff]
        %v4327 = vld [vmem:[%s4313 + $0x68] sm:$0xff]
        %v4328 = vld [vmem:[%s4313 + $0x70] sm:$0xff]
        %v4329 = vld [vmem:[%s4313 + $0x78] sm:$0xff]
        %v4330 = vld [vmem:[%s4313 + $0x80] sm:$0xff]
        %v4331 = vld [vmem:[%s4313 + $0x88] sm:$0xff]
        %v4332 = vld [vmem:[%s4313 + $0x90] sm:$0xff]
        %v4333 = vld [vmem:[%s4313 + $0x98] sm:$0xff]
        %v4334 = vld [vmem:[%s4313 + $0xa0] sm:$0xff]
        %v4335 = vld [vmem:[%s4313 + $0xa8] sm:$0xff]
        %v4336 = vld [vmem:[%s4313 + $0xb0] sm:$0xff]
        %v4337 = vld [vmem:[%s4313 + $0xb8] sm:$0xff]
        %v4338 = vld [vmem:[%s4313 + $0xc0] sm:$0xff]
        %v4339 = vld [vmem:[%s4313 + $0xc8] sm:$0xff]
        %v4340 = vld [vmem:[%s4313 + $0xd0] sm:$0xff]
        %v4341 = vld [vmem:[%s4313 + $0xd8] sm:$0xff]
        %v4342 = vld [vmem:[%s4313 + $0xe0] sm:$0xff]
        %v4343 = vld [vmem:[%s4313 + $0xe8] sm:$0xff]
        %v4344 = vld [vmem:[%s4313 + $0xf0] sm:$0xff]
        %v4345 = vld [vmem:[%s4313 + $0xf8] sm:$0xff]
        %vm4346 = vsmask.f32 7424
        %v4348 = vshrl.u32 %v4293, 16
        %v4350 = vshll.u32 %v4293, 16
        %v4352 = vrot.slane %v4350, 1
        %v4353 = vor.u32 %v4348, %v4352
        %v4355 = vshll.u32 %v4295, 16
        %v4357 = vrot.slane %v4355, 1
        %v4358 = vsel %vm4346, %v4353, %v4357
        %v4360 = vshrl.u32 %v4294, 16
        %v4362 = vshll.u32 %v4294, 16
        %v4364 = vrot.slane %v4362, 1
        %v4365 = vor.u32 %v4360, %v4364
        %v4367 = vshll.u32 %v4296, 16
        %v4369 = vrot.slane %v4367, 1
        %v4370 = vsel %vm4346, %v4365, %v4369
        %v4371 = vshrl.u32 %v4295, 16
        %v4373 = vor.u32 %v4371, %v4357
        %v4375 = vshll.u32 %v4297, 16
        %v4377 = vrot.slane %v4375, 1
        %v4378 = vsel %vm4346, %v4373, %v4377
        %v4379 = vshrl.u32 %v4296, 16
        %v4381 = vor.u32 %v4379, %v4369
        %v4383 = vshll.u32 %v4298, 16
        %v4385 = vrot.slane %v4383, 1
        %v4386 = vsel %vm4346, %v4381, %v4385
        %v4387 = vshrl.u32 %v4297, 16
        %v4389 = vor.u32 %v4387, %v4377
        %v4391 = vshll.u32 %v4299, 16
        %v4393 = vrot.slane %v4391, 1
        %v4394 = vsel %vm4346, %v4389, %v4393
        %v4395 = vshrl.u32 %v4298, 16
        %v4397 = vor.u32 %v4395, %v4385
        %v4399 = vshll.u32 %v4300, 16
        %v4401 = vrot.slane %v4399, 1
        %v4402 = vsel %vm4346, %v4397, %v4401
        %v4403 = vshrl.u32 %v4299, 16
        %v4405 = vor.u32 %v4403, %v4393
        %v4407 = vshll.u32 %v4301, 16
        %v4409 = vrot.slane %v4407, 1
        %v4410 = vsel %vm4346, %v4405, %v4409
        %v4411 = vshrl.u32 %v4300, 16
        %v4413 = vor.u32 %v4411, %v4401
        %v4415 = vshll.u32 %v4302, 16
        %v4417 = vrot.slane %v4415, 1
        %v4418 = vsel %vm4346, %v4413, %v4417
        %v4419 = vshrl.u32 %v4301, 16
        %v4421 = vor.u32 %v4419, %v4409
        %v4423 = vshll.u32 %v4303, 16
        %v4425 = vrot.slane %v4423, 1
        %v4426 = vsel %vm4346, %v4421, %v4425
        %v4427 = vshrl.u32 %v4302, 16
        %v4429 = vor.u32 %v4427, %v4417
        %v4431 = vshll.u32 %v4304, 16
        %v4433 = vrot.slane %v4431, 1
        %v4434 = vsel %vm4346, %v4429, %v4433
        %v4435 = vshrl.u32 %v4303, 16
        %v4437 = vor.u32 %v4435, %v4425
        %v4439 = vshll.u32 %v4305, 16
        %v4441 = vrot.slane %v4439, 1
        %v4442 = vsel %vm4346, %v4437, %v4441
        %v4443 = vshrl.u32 %v4304, 16
        %v4445 = vor.u32 %v4443, %v4433
        %v4447 = vshll.u32 %v4306, 16
        %v4449 = vrot.slane %v4447, 1
        %v4450 = vsel %vm4346, %v4445, %v4449
        %v4451 = vshrl.u32 %v4305, 16
        %v4453 = vor.u32 %v4451, %v4441
        %v4455 = vshll.u32 %v4307, 16
        %v4457 = vrot.slane %v4455, 1
        %v4458 = vsel %vm4346, %v4453, %v4457
        %v4459 = vshrl.u32 %v4306, 16
        %v4461 = vor.u32 %v4459, %v4449
        %v4463 = vshll.u32 %v4308, 16
        %v4465 = vrot.slane %v4463, 1
        %v4466 = vsel %vm4346, %v4461, %v4465
        %v4467 = vshrl.u32 %v4307, 16
        %v4469 = vor.u32 %v4467, %v4457
        %v4471 = vshll.u32 %v4309, 16
        %v4473 = vrot.slane %v4471, 1
        %v4474 = vsel %vm4346, %v4469, %v4473
        %v4475 = vshrl.u32 %v4308, 16
        %v4477 = vor.u32 %v4475, %v4465
        %v4479 = vshll.u32 %v4310, 16
        %v4481 = vrot.slane %v4479, 1
        %v4482 = vsel %vm4346, %v4477, %v4481
        %v4483 = vshrl.u32 %v4309, 16
        %v4485 = vor.u32 %v4483, %v4473
        %v4487 = vshll.u32 %v4311, 16
        %v4489 = vrot.slane %v4487, 1
        %v4490 = vsel %vm4346, %v4485, %v4489
        %v4491 = vshrl.u32 %v4310, 16
        %v4493 = vor.u32 %v4491, %v4481
        %v4495 = vshll.u32 %v4312, 16
        %v4497 = vrot.slane %v4495, 1
        %v4498 = vsel %vm4346, %v4493, %v4497
        %v4549 = vunpack.c.l.b16 %v4314
        %v4550 = vunpack.c.h.b16 %v4314
        %v4551 = vunpack.c.l.b16 %v4315
        %v4552 = vunpack.c.h.b16 %v4315
        %v4553 = vunpack.c.l.b16 %v4316
        %v4554 = vunpack.c.h.b16 %v4316
        %v4555 = vunpack.c.l.b16 %v4317
        %v4556 = vunpack.c.h.b16 %v4317
        %v4557 = vunpack.c.l.b16 %v4318
        %v4558 = vunpack.c.h.b16 %v4318
        %v4559 = vunpack.c.l.b16 %v4319
        %v4560 = vunpack.c.h.b16 %v4319
        %v4561 = vunpack.c.l.b16 %v4320
        %v4562 = vunpack.c.h.b16 %v4320
        %v4563 = vunpack.c.l.b16 %v4321
        %v4564 = vunpack.c.h.b16 %v4321
        %v4565 = vunpack.c.l.b16 %v4322
        %v4566 = vunpack.c.h.b16 %v4322
        %v4567 = vunpack.c.l.b16 %v4323
        %v4568 = vunpack.c.h.b16 %v4323
        %v4569 = vunpack.c.l.b16 %v4324
        %v4570 = vunpack.c.h.b16 %v4324
        %v4571 = vunpack.c.l.b16 %v4325
        %v4572 = vunpack.c.h.b16 %v4325
        %v4573 = vunpack.c.l.b16 %v4326
        %v4574 = vunpack.c.h.b16 %v4326
        %v4575 = vunpack.c.l.b16 %v4327
        %v4576 = vunpack.c.h.b16 %v4327
        %v4577 = vunpack.c.l.b16 %v4328
        %v4578 = vunpack.c.h.b16 %v4328
        %v4579 = vunpack.c.l.b16 %v4329
        %v4580 = vunpack.c.h.b16 %v4329
        %v4581 = vunpack.c.l.b16 %v4330
        %v4582 = vunpack.c.h.b16 %v4330
        %v4583 = vunpack.c.l.b16 %v4331
        %v4584 = vunpack.c.h.b16 %v4331
        %v4585 = vunpack.c.l.b16 %v4332
        %v4586 = vunpack.c.h.b16 %v4332
        %v4587 = vunpack.c.l.b16 %v4333
        %v4588 = vunpack.c.h.b16 %v4333
        %v4589 = vunpack.c.l.b16 %v4334
        %v4590 = vunpack.c.h.b16 %v4334
        %v4591 = vunpack.c.l.b16 %v4335
        %v4592 = vunpack.c.h.b16 %v4335
        %v4593 = vunpack.c.l.b16 %v4336
        %v4594 = vunpack.c.h.b16 %v4336
        %v4595 = vunpack.c.l.b16 %v4337
        %v4596 = vunpack.c.h.b16 %v4337
        %v4597 = vunpack.c.l.b16 %v4338
        %v4598 = vunpack.c.h.b16 %v4338
        %v4599 = vunpack.c.l.b16 %v4339
        %v4600 = vunpack.c.h.b16 %v4339
        %v4601 = vunpack.c.l.b16 %v4340
        %v4602 = vunpack.c.h.b16 %v4340
        %v4603 = vunpack.c.l.b16 %v4341
        %v4604 = vunpack.c.h.b16 %v4341
        %v4605 = vunpack.c.l.b16 %v4342
        %v4606 = vunpack.c.h.b16 %v4342
        %v4607 = vunpack.c.l.b16 %v4343
        %v4608 = vunpack.c.h.b16 %v4343
        %v4609 = vunpack.c.l.b16 %v4344
        %v4610 = vunpack.c.h.b16 %v4344
        %v4611 = vunpack.c.l.b16 %v4345
        %v4612 = vunpack.c.h.b16 %v4345
        %v4613 = vpack.c.b16 %v4551, %v4549
        %v4614 = vpack.c.b16 %v4552, %v4550
        %v4615 = vpack.c.b16 %v4555, %v4553
        %v4616 = vpack.c.b16 %v4556, %v4554
        %v4617 = vpack.c.b16 %v4559, %v4557
        %v4618 = vpack.c.b16 %v4560, %v4558
        %v4619 = vpack.c.b16 %v4563, %v4561
        %v4620 = vpack.c.b16 %v4564, %v4562
        %v4621 = vpack.c.b16 %v4567, %v4565
        %v4622 = vpack.c.b16 %v4568, %v4566
        %v4623 = vpack.c.b16 %v4571, %v4569
        %v4624 = vpack.c.b16 %v4572, %v4570
        %v4625 = vpack.c.b16 %v4575, %v4573
        %v4626 = vpack.c.b16 %v4576, %v4574
        %v4627 = vpack.c.b16 %v4579, %v4577
        %v4628 = vpack.c.b16 %v4580, %v4578
        %v4629 = vpack.c.b16 %v4583, %v4581
        %v4630 = vpack.c.b16 %v4584, %v4582
        %v4631 = vpack.c.b16 %v4587, %v4585
        %v4632 = vpack.c.b16 %v4588, %v4586
        %v4633 = vpack.c.b16 %v4591, %v4589
        %v4634 = vpack.c.b16 %v4592, %v4590
        %v4635 = vpack.c.b16 %v4595, %v4593
        %v4636 = vpack.c.b16 %v4596, %v4594
        %v4637 = vpack.c.b16 %v4599, %v4597
        %v4638 = vpack.c.b16 %v4600, %v4598
        %v4639 = vpack.c.b16 %v4603, %v4601
        %v4640 = vpack.c.b16 %v4604, %v4602
        %v4641 = vpack.c.b16 %v4607, %v4605
        %v4642 = vpack.c.b16 %v4608, %v4606
        %v4643 = vpack.c.b16 %v4611, %v4609
        %v4644 = vpack.c.b16 %v4612, %v4610
        %4677 = vmatpush.bf16.msra.mxu0 %v4627
        %4678 = vmatpush.bf16.msra.mxu0 %v4625
        %4679 = vmatpush.bf16.msra.mxu0 %v4623
        %4680 = vmatpush.bf16.msra.mxu0 %v4621
        %4681 = vmatpush.bf16.msra.mxu0 %v4619
        %4682 = vmatpush.bf16.msra.mxu0 %v4617
        %4683 = vmatpush.bf16.msra.mxu0 %v4615
        %4684 = vmatpush.bf16.msra.mxu0 %v4613
        %4685 = vmatmul.bf16.gmra.mxu0 %v4358
        %v4686 = vpop.f32.mrf.mxu0
        %v4687 = vadd.f32 0.0, %v4686
        %v4688 = vpop.f32.mrf.mxu0
        %v4689 = vadd.f32 0.0, %v4688
        %4690 = vmatmul.bf16.gmra.mxu0 %v4378
        %v4691 = vpop.f32.mrf.mxu0
        %v4692 = vadd.f32 0.0, %v4691
        %v4693 = vpop.f32.mrf.mxu0
        %v4694 = vadd.f32 0.0, %v4693
        %4695 = vmatmul.bf16.gmra.mxu0 %v4394
        %v4696 = vpop.f32.mrf.mxu0
        %v4697 = vadd.f32 0.0, %v4696
        %v4698 = vpop.f32.mrf.mxu0
        %v4699 = vadd.f32 0.0, %v4698
        %4700 = vmatmul.bf16.gmra.mxu0 %v4410
        %v4701 = vpop.f32.mrf.mxu0
        %v4702 = vadd.f32 0.0, %v4701
        %v4703 = vpop.f32.mrf.mxu0
        %v4704 = vadd.f32 0.0, %v4703
        %4705 = vmatmul.bf16.gmra.mxu0 %v4426
        %v4706 = vpop.f32.mrf.mxu0
        %v4707 = vadd.f32 0.0, %v4706
        %v4708 = vpop.f32.mrf.mxu0
        %v4709 = vadd.f32 0.0, %v4708
        %4710 = vmatmul.bf16.gmra.mxu0 %v4442
        %v4711 = vpop.f32.mrf.mxu0
        %v4712 = vadd.f32 0.0, %v4711
        %v4713 = vpop.f32.mrf.mxu0
        %v4714 = vadd.f32 0.0, %v4713
        %4715 = vmatmul.bf16.gmra.mxu0 %v4458
        %v4716 = vpop.f32.mrf.mxu0
        %v4717 = vadd.f32 0.0, %v4716
        %v4718 = vpop.f32.mrf.mxu0
        %v4719 = vadd.f32 0.0, %v4718
        %4720 = vmatmul.bf16.gmra.mxu0 %v4474
        %v4721 = vpop.f32.mrf.mxu0
        %v4722 = vadd.f32 0.0, %v4721
        %v4723 = vpop.f32.mrf.mxu0
        %v4724 = vadd.f32 0.0, %v4723
        %4725 = vmatmul.bf16.gmra.mxu0 %v4490
        %v4726 = vpop.f32.mrf.mxu0
        %v4727 = vadd.f32 0.0, %v4726
        %v4728 = vpop.f32.mrf.mxu0
        %v4729 = vadd.f32 0.0, %v4728
        %4730 = vdwg.mxu0
        %4731 = vmatpush.bf16.msra.mxu0 %v4643
        %4732 = vmatpush.bf16.msra.mxu0 %v4641
        %4733 = vmatpush.bf16.msra.mxu0 %v4639
        %4734 = vmatpush.bf16.msra.mxu0 %v4637
        %4735 = vmatpush.bf16.msra.mxu0 %v4635
        %4736 = vmatpush.bf16.msra.mxu0 %v4633
        %4737 = vmatpush.bf16.msra.mxu0 %v4631
        %4738 = vmatpush.bf16.msra.mxu0 %v4629
        %4739 = vmatmul.bf16.gmra.mxu0 %v4370
        %v4740 = vpop.f32.mrf.mxu0
        %v4741 = vadd.f32 %v4687, %v4740
        %v4742 = vpop.f32.mrf.mxu0
        %v4743 = vadd.f32 %v4689, %v4742
        %4744 = vmatmul.bf16.gmra.mxu0 %v4386
        %v4745 = vpop.f32.mrf.mxu0
        %v4746 = vadd.f32 %v4692, %v4745
        %v4747 = vpop.f32.mrf.mxu0
        %v4748 = vadd.f32 %v4694, %v4747
        %4749 = vmatmul.bf16.gmra.mxu0 %v4402
        %v4750 = vpop.f32.mrf.mxu0
        %v4751 = vadd.f32 %v4697, %v4750
        %v4752 = vpop.f32.mrf.mxu0
        %v4753 = vadd.f32 %v4699, %v4752
        %4754 = vmatmul.bf16.gmra.mxu0 %v4418
        %v4755 = vpop.f32.mrf.mxu0
        %v4756 = vadd.f32 %v4702, %v4755
        %v4757 = vpop.f32.mrf.mxu0
        %v4758 = vadd.f32 %v4704, %v4757
        %4759 = vmatmul.bf16.gmra.mxu0 %v4434
        %v4760 = vpop.f32.mrf.mxu0
        %v4761 = vadd.f32 %v4707, %v4760
        %v4762 = vpop.f32.mrf.mxu0
        %v4763 = vadd.f32 %v4709, %v4762
        %4764 = vmatmul.bf16.gmra.mxu0 %v4450
        %v4765 = vpop.f32.mrf.mxu0
        %v4766 = vadd.f32 %v4712, %v4765
        %v4767 = vpop.f32.mrf.mxu0
        %v4768 = vadd.f32 %v4714, %v4767
        %4769 = vmatmul.bf16.gmra.mxu0 %v4466
        %v4770 = vpop.f32.mrf.mxu0
        %v4771 = vadd.f32 %v4717, %v4770
        %v4772 = vpop.f32.mrf.mxu0
        %v4773 = vadd.f32 %v4719, %v4772
        %4774 = vmatmul.bf16.gmra.mxu0 %v4482
        %v4775 = vpop.f32.mrf.mxu0
        %v4776 = vadd.f32 %v4722, %v4775
        %v4777 = vpop.f32.mrf.mxu0
        %v4778 = vadd.f32 %v4724, %v4777
        %4779 = vmatmul.bf16.gmra.mxu0 %v4498
        %v4780 = vpop.f32.mrf.mxu0
        %v4781 = vadd.f32 %v4727, %v4780
        %v4782 = vpop.f32.mrf.mxu0
        %v4783 = vadd.f32 %v4729, %v4782
        %4784 = vdwg.mxu0
        %4785 = vmatpush.bf16.msra.mxu0 %v4628
        %4786 = vmatpush.bf16.msra.mxu0 %v4626
        %4787 = vmatpush.bf16.msra.mxu0 %v4624
        %4788 = vmatpush.bf16.msra.mxu0 %v4622
        %4789 = vmatpush.bf16.msra.mxu0 %v4620
        %4790 = vmatpush.bf16.msra.mxu0 %v4618
        %4791 = vmatpush.bf16.msra.mxu0 %v4616
        %4792 = vmatpush.bf16.msra.mxu0 %v4614
        %4793 = vmatmul.bf16.gmra.mxu0 %v4358
        %v4794 = vpop.f32.mrf.mxu0
        %v4795 = vadd.f32 0.0, %v4794
        %v4796 = vpop.f32.mrf.mxu0
        %v4797 = vadd.f32 0.0, %v4796
        %4798 = vmatmul.bf16.gmra.mxu0 %v4378
        %v4799 = vpop.f32.mrf.mxu0
        %v4800 = vadd.f32 0.0, %v4799
        %v4801 = vpop.f32.mrf.mxu0
        %v4802 = vadd.f32 0.0, %v4801
        %4803 = vmatmul.bf16.gmra.mxu0 %v4394
        %v4804 = vpop.f32.mrf.mxu0
        %v4805 = vadd.f32 0.0, %v4804
        %v4806 = vpop.f32.mrf.mxu0
        %v4807 = vadd.f32 0.0, %v4806
        %4808 = vmatmul.bf16.gmra.mxu0 %v4410
        %v4809 = vpop.f32.mrf.mxu0
        %v4810 = vadd.f32 0.0, %v4809
        %v4811 = vpop.f32.mrf.mxu0
        %v4812 = vadd.f32 0.0, %v4811
        %4813 = vmatmul.bf16.gmra.mxu0 %v4426
        %v4814 = vpop.f32.mrf.mxu0
        %v4815 = vadd.f32 0.0, %v4814
        %v4816 = vpop.f32.mrf.mxu0
        %v4817 = vadd.f32 0.0, %v4816
        %4818 = vmatmul.bf16.gmra.mxu0 %v4442
        %v4819 = vpop.f32.mrf.mxu0
        %v4820 = vadd.f32 0.0, %v4819
        %v4821 = vpop.f32.mrf.mxu0
        %v4822 = vadd.f32 0.0, %v4821
        %4823 = vmatmul.bf16.gmra.mxu0 %v4458
        %v4824 = vpop.f32.mrf.mxu0
        %v4825 = vadd.f32 0.0, %v4824
        %v4826 = vpop.f32.mrf.mxu0
        %v4827 = vadd.f32 0.0, %v4826
        %4828 = vmatmul.bf16.gmra.mxu0 %v4474
        %v4829 = vpop.f32.mrf.mxu0
        %v4830 = vadd.f32 0.0, %v4829
        %v4831 = vpop.f32.mrf.mxu0
        %v4832 = vadd.f32 0.0, %v4831
        %4833 = vmatmul.bf16.gmra.mxu0 %v4490
        %v4834 = vpop.f32.mrf.mxu0
        %v4835 = vadd.f32 0.0, %v4834
        %v4836 = vpop.f32.mrf.mxu0
        %v4837 = vadd.f32 0.0, %v4836
        %4838 = vdwg.mxu0
        %4839 = vmatpush.bf16.msra.mxu0 %v4644
        %4840 = vmatpush.bf16.msra.mxu0 %v4642
        %4841 = vmatpush.bf16.msra.mxu0 %v4640
        %4842 = vmatpush.bf16.msra.mxu0 %v4638
        %4843 = vmatpush.bf16.msra.mxu0 %v4636
        %4844 = vmatpush.bf16.msra.mxu0 %v4634
        %4845 = vmatpush.bf16.msra.mxu0 %v4632
        %4846 = vmatpush.bf16.msra.mxu0 %v4630
        %4847 = vmatmul.bf16.gmra.mxu0 %v4370
        %v4848 = vpop.f32.mrf.mxu0
        %v4849 = vadd.f32 %v4795, %v4848
        %v4850 = vpop.f32.mrf.mxu0
        %v4851 = vadd.f32 %v4797, %v4850
        %4852 = vmatmul.bf16.gmra.mxu0 %v4386
        %v4853 = vpop.f32.mrf.mxu0
        %v4854 = vadd.f32 %v4800, %v4853
        %v4855 = vpop.f32.mrf.mxu0
        %v4856 = vadd.f32 %v4802, %v4855
        %4857 = vmatmul.bf16.gmra.mxu0 %v4402
        %v4858 = vpop.f32.mrf.mxu0
        %v4859 = vadd.f32 %v4805, %v4858
        %v4860 = vpop.f32.mrf.mxu0
        %v4861 = vadd.f32 %v4807, %v4860
        %4862 = vmatmul.bf16.gmra.mxu0 %v4418
        %v4863 = vpop.f32.mrf.mxu0
        %v4864 = vadd.f32 %v4810, %v4863
        %v4865 = vpop.f32.mrf.mxu0
        %v4866 = vadd.f32 %v4812, %v4865
        %4867 = vmatmul.bf16.gmra.mxu0 %v4434
        %v4868 = vpop.f32.mrf.mxu0
        %v4869 = vadd.f32 %v4815, %v4868
        %v4870 = vpop.f32.mrf.mxu0
        %v4871 = vadd.f32 %v4817, %v4870
        %4872 = vmatmul.bf16.gmra.mxu0 %v4450
        %v4873 = vpop.f32.mrf.mxu0
        %v4874 = vadd.f32 %v4820, %v4873
        %v4875 = vpop.f32.mrf.mxu0
        %v4876 = vadd.f32 %v4822, %v4875
        %4877 = vmatmul.bf16.gmra.mxu0 %v4466
        %v4878 = vpop.f32.mrf.mxu0
        %v4879 = vadd.f32 %v4825, %v4878
        %v4880 = vpop.f32.mrf.mxu0
        %v4881 = vadd.f32 %v4827, %v4880
        %4882 = vmatmul.bf16.gmra.mxu0 %v4482
        %v4883 = vpop.f32.mrf.mxu0
        %v4884 = vadd.f32 %v4830, %v4883
        %v4885 = vpop.f32.mrf.mxu0
        %v4886 = vadd.f32 %v4832, %v4885
        %4887 = vmatmul.bf16.gmra.mxu0 %v4498
        %v4888 = vpop.f32.mrf.mxu0
        %v4889 = vadd.f32 %v4835, %v4888
        %v4890 = vpop.f32.mrf.mxu0
        %v4891 = vadd.f32 %v4837, %v4890
        %4892 = vdwg.mxu0
        %v4893 = vadd.f32 %v4219, %v4741
        %v4894 = vadd.f32 %v4220, %v4849
        %v4895 = vadd.f32 %v4221, %v4743
        %v4896 = vadd.f32 %v4222, %v4851
        %v4897 = vadd.f32 %v4223, %v4746
        %v4898 = vadd.f32 %v4224, %v4854
        %v4899 = vadd.f32 %v4225, %v4748
        %v4900 = vadd.f32 %v4226, %v4856
        %v4901 = vadd.f32 %v4227, %v4751
        %v4902 = vadd.f32 %v4228, %v4859
        %v4903 = vadd.f32 %v4229, %v4753
        %v4904 = vadd.f32 %v4230, %v4861
        %v4905 = vadd.f32 %v4231, %v4756
        %v4906 = vadd.f32 %v4232, %v4864
        %v4907 = vadd.f32 %v4233, %v4758
        %v4908 = vadd.f32 %v4234, %v4866
        %v4909 = vadd.f32 %v4235, %v4761
        %v4910 = vadd.f32 %v4236, %v4869
        %v4911 = vadd.f32 %v4237, %v4763
        %v4912 = vadd.f32 %v4238, %v4871
        %v4913 = vadd.f32 %v4239, %v4766
        %v4914 = vadd.f32 %v4240, %v4874
        %v4915 = vadd.f32 %v4241, %v4768
        %v4916 = vadd.f32 %v4242, %v4876
        %v4917 = vadd.f32 %v4243, %v4771
        %v4918 = vadd.f32 %v4244, %v4879
        %v4919 = vadd.f32 %v4245, %v4773
        %v4920 = vadd.f32 %v4246, %v4881
        %v4921 = vadd.f32 %v4247, %v4776
        %v4922 = vadd.f32 %v4248, %v4884
        %v4923 = vadd.f32 %v4249, %v4778
        %v4924 = vadd.f32 %v4250, %v4886
        %v4925 = vadd.f32 %v4251, %v4781
        %v4926 = vadd.f32 %v4252, %v4889
        %v4927 = vadd.f32 %v4253, %v4783
        %v4928 = vadd.f32 %v4254, %v4891
        %v4929 = vld [vmem:[#allocation2 + $0x140] sm:$0xff]
        %v4930 = vld [vmem:[#allocation2 + $0x148] sm:$0xff]
        %v4931 = vpack.c.bf16 %v4259, %v4257
        %v4932 = vpack.c.bf16 %v4260, %v4258
        %v4933 = vpack.c.bf16 %v4263, %v4261
        %v4934 = vpack.c.bf16 %v4264, %v4262
        %v4935 = vpack.c.bf16 %v4267, %v4265
        %v4936 = vpack.c.bf16 %v4268, %v4266
        %v4937 = vpack.c.bf16 %v4271, %v4269
        %v4938 = vpack.c.bf16 %v4272, %v4270
        %v4939 = vpack.c.bf16 %v4275, %v4273
        %v4940 = vpack.c.bf16 %v4276, %v4274
        %v4941 = vpack.c.bf16 %v4279, %v4277
        %v4942 = vpack.c.bf16 %v4280, %v4278
        %v4943 = vpack.c.bf16 %v4283, %v4281
        %v4944 = vpack.c.bf16 %v4284, %v4282
        %v4945 = vpack.c.bf16 %v4287, %v4285
        %v4946 = vpack.c.bf16 %v4288, %v4286
        %v4947 = vpack.c.bf16 %v4929, %v4289
        %v4948 = vpack.c.bf16 %v4930, %v4290
        %s4949 = scalar_lea.vmem %s701, 1536 [#allocation10]
        %v4950 = vld [vmem:[%s4949] sm:$0xff]
        %v4951 = vld [vmem:[%s4949 + $0x8] sm:$0xff]
        %v4952 = vld [vmem:[%s4949 + $0x10] sm:$0xff]
        %v4953 = vld [vmem:[%s4949 + $0x18] sm:$0xff]
        %v4954 = vld [vmem:[%s4949 + $0x20] sm:$0xff]
        %v4955 = vld [vmem:[%s4949 + $0x28] sm:$0xff]
        %v4956 = vld [vmem:[%s4949 + $0x30] sm:$0xff]
        %v4957 = vld [vmem:[%s4949 + $0x38] sm:$0xff]
        %v4958 = vld [vmem:[%s4949 + $0x40] sm:$0xff]
        %v4959 = vld [vmem:[%s4949 + $0x48] sm:$0xff]
        %v4960 = vld [vmem:[%s4949 + $0x50] sm:$0xff]
        %v4961 = vld [vmem:[%s4949 + $0x58] sm:$0xff]
        %v4962 = vld [vmem:[%s4949 + $0x60] sm:$0xff]
        %v4963 = vld [vmem:[%s4949 + $0x68] sm:$0xff]
        %v4964 = vld [vmem:[%s4949 + $0x70] sm:$0xff]
        %v4965 = vld [vmem:[%s4949 + $0x78] sm:$0xff]
        %v4966 = vld [vmem:[%s4949 + $0x80] sm:$0xff]
        %v4967 = vld [vmem:[%s4949 + $0x88] sm:$0xff]
        %v4968 = vld [vmem:[%s4949 + $0x90] sm:$0xff]
        %v4969 = vld [vmem:[%s4949 + $0x98] sm:$0xff]
        %v4970 = vld [vmem:[%s4949 + $0xa0] sm:$0xff]
        %v4971 = vld [vmem:[%s4949 + $0xa8] sm:$0xff]
        %v4972 = vld [vmem:[%s4949 + $0xb0] sm:$0xff]
        %v4973 = vld [vmem:[%s4949 + $0xb8] sm:$0xff]
        %v4974 = vld [vmem:[%s4949 + $0xc0] sm:$0xff]
        %v4975 = vld [vmem:[%s4949 + $0xc8] sm:$0xff]
        %v4976 = vld [vmem:[%s4949 + $0xd0] sm:$0xff]
        %v4977 = vld [vmem:[%s4949 + $0xd8] sm:$0xff]
        %v4978 = vld [vmem:[%s4949 + $0xe0] sm:$0xff]
        %v4979 = vld [vmem:[%s4949 + $0xe8] sm:$0xff]
        %v4980 = vld [vmem:[%s4949 + $0xf0] sm:$0xff]
        %v4981 = vld [vmem:[%s4949 + $0xf8] sm:$0xff]
        %v5014 = vunpack.c.l.b16 %v4950
        %v5015 = vunpack.c.h.b16 %v4950
        %v5016 = vunpack.c.l.b16 %v4951
        %v5017 = vunpack.c.h.b16 %v4951
        %v5018 = vunpack.c.l.b16 %v4952
        %v5019 = vunpack.c.h.b16 %v4952
        %v5020 = vunpack.c.l.b16 %v4953
        %v5021 = vunpack.c.h.b16 %v4953
        %v5022 = vunpack.c.l.b16 %v4954
        %v5023 = vunpack.c.h.b16 %v4954
        %v5024 = vunpack.c.l.b16 %v4955
        %v5025 = vunpack.c.h.b16 %v4955
        %v5026 = vunpack.c.l.b16 %v4956
        %v5027 = vunpack.c.h.b16 %v4956
        %v5028 = vunpack.c.l.b16 %v4957
        %v5029 = vunpack.c.h.b16 %v4957
        %v5030 = vunpack.c.l.b16 %v4958
        %v5031 = vunpack.c.h.b16 %v4958
        %v5032 = vunpack.c.l.b16 %v4959
        %v5033 = vunpack.c.h.b16 %v4959
        %v5034 = vunpack.c.l.b16 %v4960
        %v5035 = vunpack.c.h.b16 %v4960
        %v5036 = vunpack.c.l.b16 %v4961
        %v5037 = vunpack.c.h.b16 %v4961
        %v5038 = vunpack.c.l.b16 %v4962
        %v5039 = vunpack.c.h.b16 %v4962
        %v5040 = vunpack.c.l.b16 %v4963
        %v5041 = vunpack.c.h.b16 %v4963
        %v5042 = vunpack.c.l.b16 %v4964
        %v5043 = vunpack.c.h.b16 %v4964
        %v5044 = vunpack.c.l.b16 %v4965
        %v5045 = vunpack.c.h.b16 %v4965
        %v5046 = vunpack.c.l.b16 %v4966
        %v5047 = vunpack.c.h.b16 %v4966
        %v5048 = vunpack.c.l.b16 %v4967
        %v5049 = vunpack.c.h.b16 %v4967
        %v5050 = vunpack.c.l.b16 %v4968
        %v5051 = vunpack.c.h.b16 %v4968
        %v5052 = vunpack.c.l.b16 %v4969
        %v5053 = vunpack.c.h.b16 %v4969
        %v5054 = vunpack.c.l.b16 %v4970
        %v5055 = vunpack.c.h.b16 %v4970
        %v5056 = vunpack.c.l.b16 %v4971
        %v5057 = vunpack.c.h.b16 %v4971
        %v5058 = vunpack.c.l.b16 %v4972
        %v5059 = vunpack.c.h.b16 %v4972
        %v5060 = vunpack.c.l.b16 %v4973
        %v5061 = vunpack.c.h.b16 %v4973
        %v5062 = vunpack.c.l.b16 %v4974
        %v5063 = vunpack.c.h.b16 %v4974
        %v5064 = vunpack.c.l.b16 %v4975
        %v5065 = vunpack.c.h.b16 %v4975
        %v5066 = vunpack.c.l.b16 %v4976
        %v5067 = vunpack.c.h.b16 %v4976
        %v5068 = vunpack.c.l.b16 %v4977
        %v5069 = vunpack.c.h.b16 %v4977
        %v5070 = vunpack.c.l.b16 %v4978
        %v5071 = vunpack.c.h.b16 %v4978
        %v5072 = vunpack.c.l.b16 %v4979
        %v5073 = vunpack.c.h.b16 %v4979
        %v5074 = vunpack.c.l.b16 %v4980
        %v5075 = vunpack.c.h.b16 %v4980
        %v5076 = vunpack.c.l.b16 %v4981
        %v5077 = vunpack.c.h.b16 %v4981
        %v5078 = vpack.c.b16 %v5016, %v5014
        %v5079 = vpack.c.b16 %v5017, %v5015
        %v5080 = vpack.c.b16 %v5020, %v5018
        %v5081 = vpack.c.b16 %v5021, %v5019
        %v5082 = vpack.c.b16 %v5024, %v5022
        %v5083 = vpack.c.b16 %v5025, %v5023
        %v5084 = vpack.c.b16 %v5028, %v5026
        %v5085 = vpack.c.b16 %v5029, %v5027
        %v5086 = vpack.c.b16 %v5032, %v5030
        %v5087 = vpack.c.b16 %v5033, %v5031
        %v5088 = vpack.c.b16 %v5036, %v5034
        %v5089 = vpack.c.b16 %v5037, %v5035
        %v5090 = vpack.c.b16 %v5040, %v5038
        %v5091 = vpack.c.b16 %v5041, %v5039
        %v5092 = vpack.c.b16 %v5044, %v5042
        %v5093 = vpack.c.b16 %v5045, %v5043
        %v5094 = vpack.c.b16 %v5048, %v5046
        %v5095 = vpack.c.b16 %v5049, %v5047
        %v5096 = vpack.c.b16 %v5052, %v5050
        %v5097 = vpack.c.b16 %v5053, %v5051
        %v5098 = vpack.c.b16 %v5056, %v5054
        %v5099 = vpack.c.b16 %v5057, %v5055
        %v5100 = vpack.c.b16 %v5060, %v5058
        %v5101 = vpack.c.b16 %v5061, %v5059
        %v5102 = vpack.c.b16 %v5064, %v5062
        %v5103 = vpack.c.b16 %v5065, %v5063
        %v5104 = vpack.c.b16 %v5068, %v5066
        %v5105 = vpack.c.b16 %v5069, %v5067
        %v5106 = vpack.c.b16 %v5072, %v5070
        %v5107 = vpack.c.b16 %v5073, %v5071
        %v5108 = vpack.c.b16 %v5076, %v5074
        %v5109 = vpack.c.b16 %v5077, %v5075
        %5142 = vmatpush.bf16.msra.mxu0 %v5092
        %5143 = vmatpush.bf16.msra.mxu0 %v5090
        %5144 = vmatpush.bf16.msra.mxu0 %v5088
        %5145 = vmatpush.bf16.msra.mxu0 %v5086
        %5146 = vmatpush.bf16.msra.mxu0 %v5084
        %5147 = vmatpush.bf16.msra.mxu0 %v5082
        %5148 = vmatpush.bf16.msra.mxu0 %v5080
        %5149 = vmatpush.bf16.msra.mxu0 %v5078
        %5150 = vmatmul.bf16.gmra.mxu0 %v4931
        %v5151 = vpop.f32.mrf.mxu0
        %v5152 = vadd.f32 0.0, %v5151
        %v5153 = vpop.f32.mrf.mxu0
        %v5154 = vadd.f32 0.0, %v5153
        %5155 = vmatmul.bf16.gmra.mxu0 %v4933
        %v5156 = vpop.f32.mrf.mxu0
        %v5157 = vadd.f32 0.0, %v5156
        %v5158 = vpop.f32.mrf.mxu0
        %v5159 = vadd.f32 0.0, %v5158
        %5160 = vmatmul.bf16.gmra.mxu0 %v4935
        %v5161 = vpop.f32.mrf.mxu0
        %v5162 = vadd.f32 0.0, %v5161
        %v5163 = vpop.f32.mrf.mxu0
        %v5164 = vadd.f32 0.0, %v5163
        %5165 = vmatmul.bf16.gmra.mxu0 %v4937
        %v5166 = vpop.f32.mrf.mxu0
        %v5167 = vadd.f32 0.0, %v5166
        %v5168 = vpop.f32.mrf.mxu0
        %v5169 = vadd.f32 0.0, %v5168
        %5170 = vmatmul.bf16.gmra.mxu0 %v4939
        %v5171 = vpop.f32.mrf.mxu0
        %v5172 = vadd.f32 0.0, %v5171
        %v5173 = vpop.f32.mrf.mxu0
        %v5174 = vadd.f32 0.0, %v5173
        %5175 = vmatmul.bf16.gmra.mxu0 %v4941
        %v5176 = vpop.f32.mrf.mxu0
        %v5177 = vadd.f32 0.0, %v5176
        %v5178 = vpop.f32.mrf.mxu0
        %v5179 = vadd.f32 0.0, %v5178
        %5180 = vmatmul.bf16.gmra.mxu0 %v4943
        %v5181 = vpop.f32.mrf.mxu0
        %v5182 = vadd.f32 0.0, %v5181
        %v5183 = vpop.f32.mrf.mxu0
        %v5184 = vadd.f32 0.0, %v5183
        %5185 = vmatmul.bf16.gmra.mxu0 %v4945
        %v5186 = vpop.f32.mrf.mxu0
        %v5187 = vadd.f32 0.0, %v5186
        %v5188 = vpop.f32.mrf.mxu0
        %v5189 = vadd.f32 0.0, %v5188
        %5190 = vmatmul.bf16.gmra.mxu0 %v4947
        %v5191 = vpop.f32.mrf.mxu0
        %v5192 = vadd.f32 0.0, %v5191
        %v5193 = vpop.f32.mrf.mxu0
        %v5194 = vadd.f32 0.0, %v5193
        %5195 = vdwg.mxu0
        %5196 = vmatpush.bf16.msra.mxu0 %v5108
        %5197 = vmatpush.bf16.msra.mxu0 %v5106
        %5198 = vmatpush.bf16.msra.mxu0 %v5104
        %5199 = vmatpush.bf16.msra.mxu0 %v5102
        %5200 = vmatpush.bf16.msra.mxu0 %v5100
        %5201 = vmatpush.bf16.msra.mxu0 %v5098
        %5202 = vmatpush.bf16.msra.mxu0 %v5096
        %5203 = vmatpush.bf16.msra.mxu0 %v5094
        %5204 = vmatmul.bf16.gmra.mxu0 %v4932
        %v5205 = vpop.f32.mrf.mxu0
        %v5206 = vadd.f32 %v5152, %v5205
        %v5207 = vpop.f32.mrf.mxu0
        %v5208 = vadd.f32 %v5154, %v5207
        %5209 = vmatmul.bf16.gmra.mxu0 %v4934
        %v5210 = vpop.f32.mrf.mxu0
        %v5211 = vadd.f32 %v5157, %v5210
        %v5212 = vpop.f32.mrf.mxu0
        %v5213 = vadd.f32 %v5159, %v5212
        %5214 = vmatmul.bf16.gmra.mxu0 %v4936
        %v5215 = vpop.f32.mrf.mxu0
        %v5216 = vadd.f32 %v5162, %v5215
        %v5217 = vpop.f32.mrf.mxu0
        %v5218 = vadd.f32 %v5164, %v5217
        %5219 = vmatmul.bf16.gmra.mxu0 %v4938
        %v5220 = vpop.f32.mrf.mxu0
        %v5221 = vadd.f32 %v5167, %v5220
        %v5222 = vpop.f32.mrf.mxu0
        %v5223 = vadd.f32 %v5169, %v5222
        %5224 = vmatmul.bf16.gmra.mxu0 %v4940
        %v5225 = vpop.f32.mrf.mxu0
        %v5226 = vadd.f32 %v5172, %v5225
        %v5227 = vpop.f32.mrf.mxu0
        %v5228 = vadd.f32 %v5174, %v5227
        %5229 = vmatmul.bf16.gmra.mxu0 %v4942
        %v5230 = vpop.f32.mrf.mxu0
        %v5231 = vadd.f32 %v5177, %v5230
        %v5232 = vpop.f32.mrf.mxu0
        %v5233 = vadd.f32 %v5179, %v5232
        %5234 = vmatmul.bf16.gmra.mxu0 %v4944
        %v5235 = vpop.f32.mrf.mxu0
        %v5236 = vadd.f32 %v5182, %v5235
        %v5237 = vpop.f32.mrf.mxu0
        %v5238 = vadd.f32 %v5184, %v5237
        %5239 = vmatmul.bf16.gmra.mxu0 %v4946
        %v5240 = vpop.f32.mrf.mxu0
        %v5241 = vadd.f32 %v5187, %v5240
        %v5242 = vpop.f32.mrf.mxu0
        %v5243 = vadd.f32 %v5189, %v5242
        %5244 = vmatmul.bf16.gmra.mxu0 %v4948
        %v5245 = vpop.f32.mrf.mxu0
        %v5246 = vadd.f32 %v5192, %v5245
        %v5247 = vpop.f32.mrf.mxu0
        %v5248 = vadd.f32 %v5194, %v5247
        %5249 = vdwg.mxu0
        %5250 = vmatpush.bf16.msra.mxu0 %v5093
        %5251 = vmatpush.bf16.msra.mxu0 %v5091
        %5252 = vmatpush.bf16.msra.mxu0 %v5089
        %5253 = vmatpush.bf16.msra.mxu0 %v5087
        %5254 = vmatpush.bf16.msra.mxu0 %v5085
        %5255 = vmatpush.bf16.msra.mxu0 %v5083
        %5256 = vmatpush.bf16.msra.mxu0 %v5081
        %5257 = vmatpush.bf16.msra.mxu0 %v5079
        %5258 = vmatmul.bf16.gmra.mxu0 %v4931
        %v5259 = vpop.f32.mrf.mxu0
        %v5260 = vadd.f32 0.0, %v5259
        %v5261 = vpop.f32.mrf.mxu0
        %v5262 = vadd.f32 0.0, %v5261
        %5263 = vmatmul.bf16.gmra.mxu0 %v4933
        %v5264 = vpop.f32.mrf.mxu0
        %v5265 = vadd.f32 0.0, %v5264
        %v5266 = vpop.f32.mrf.mxu0
        %v5267 = vadd.f32 0.0, %v5266
        %5268 = vmatmul.bf16.gmra.mxu0 %v4935
        %v5269 = vpop.f32.mrf.mxu0
        %v5270 = vadd.f32 0.0, %v5269
        %v5271 = vpop.f32.mrf.mxu0
        %v5272 = vadd.f32 0.0, %v5271
        %5273 = vmatmul.bf16.gmra.mxu0 %v4937
        %v5274 = vpop.f32.mrf.mxu0
        %v5275 = vadd.f32 0.0, %v5274
        %v5276 = vpop.f32.mrf.mxu0
        %v5277 = vadd.f32 0.0, %v5276
        %5278 = vmatmul.bf16.gmra.mxu0 %v4939
        %v5279 = vpop.f32.mrf.mxu0
        %v5280 = vadd.f32 0.0, %v5279
        %v5281 = vpop.f32.mrf.mxu0
        %v5282 = vadd.f32 0.0, %v5281
        %5283 = vmatmul.bf16.gmra.mxu0 %v4941
        %v5284 = vpop.f32.mrf.mxu0
        %v5285 = vadd.f32 0.0, %v5284
        %v5286 = vpop.f32.mrf.mxu0
        %v5287 = vadd.f32 0.0, %v5286
        %5288 = vmatmul.bf16.gmra.mxu0 %v4943
        %v5289 = vpop.f32.mrf.mxu0
        %v5290 = vadd.f32 0.0, %v5289
        %v5291 = vpop.f32.mrf.mxu0
        %v5292 = vadd.f32 0.0, %v5291
        %5293 = vmatmul.bf16.gmra.mxu0 %v4945
        %v5294 = vpop.f32.mrf.mxu0
        %v5295 = vadd.f32 0.0, %v5294
        %v5296 = vpop.f32.mrf.mxu0
        %v5297 = vadd.f32 0.0, %v5296
        %5298 = vmatmul.bf16.gmra.mxu0 %v4947
        %v5299 = vpop.f32.mrf.mxu0
        %v5300 = vadd.f32 0.0, %v5299
        %v5301 = vpop.f32.mrf.mxu0
        %v5302 = vadd.f32 0.0, %v5301
        %5303 = vdwg.mxu0
        %5304 = vmatpush.bf16.msra.mxu0 %v5109
        %5305 = vmatpush.bf16.msra.mxu0 %v5107
        %5306 = vmatpush.bf16.msra.mxu0 %v5105
        %5307 = vmatpush.bf16.msra.mxu0 %v5103
        %5308 = vmatpush.bf16.msra.mxu0 %v5101
        %5309 = vmatpush.bf16.msra.mxu0 %v5099
        %5310 = vmatpush.bf16.msra.mxu0 %v5097
        %5311 = vmatpush.bf16.msra.mxu0 %v5095
        %5312 = vmatmul.bf16.gmra.mxu0 %v4932
        %v5313 = vpop.f32.mrf.mxu0
        %v5314 = vadd.f32 %v5260, %v5313
        %v5315 = vpop.f32.mrf.mxu0
        %v5316 = vadd.f32 %v5262, %v5315
        %5317 = vmatmul.bf16.gmra.mxu0 %v4934
        %v5318 = vpop.f32.mrf.mxu0
        %v5319 = vadd.f32 %v5265, %v5318
        %v5320 = vpop.f32.mrf.mxu0
        %v5321 = vadd.f32 %v5267, %v5320
        %5322 = vmatmul.bf16.gmra.mxu0 %v4936
        %v5323 = vpop.f32.mrf.mxu0
        %v5324 = vadd.f32 %v5270, %v5323
        %v5325 = vpop.f32.mrf.mxu0
        %v5326 = vadd.f32 %v5272, %v5325
        %5327 = vmatmul.bf16.gmra.mxu0 %v4938
        %v5328 = vpop.f32.mrf.mxu0
        %v5329 = vadd.f32 %v5275, %v5328
        %v5330 = vpop.f32.mrf.mxu0
        %v5331 = vadd.f32 %v5277, %v5330
        %5332 = vmatmul.bf16.gmra.mxu0 %v4940
        %v5333 = vpop.f32.mrf.mxu0
        %v5334 = vadd.f32 %v5280, %v5333
        %v5335 = vpop.f32.mrf.mxu0
        %v5336 = vadd.f32 %v5282, %v5335
        %5337 = vmatmul.bf16.gmra.mxu0 %v4942
        %v5338 = vpop.f32.mrf.mxu0
        %v5339 = vadd.f32 %v5285, %v5338
        %v5340 = vpop.f32.mrf.mxu0
        %v5341 = vadd.f32 %v5287, %v5340
        %5342 = vmatmul.bf16.gmra.mxu0 %v4944
        %v5343 = vpop.f32.mrf.mxu0
        %v5344 = vadd.f32 %v5290, %v5343
        %v5345 = vpop.f32.mrf.mxu0
        %v5346 = vadd.f32 %v5292, %v5345
        %5347 = vmatmul.bf16.gmra.mxu0 %v4946
        %v5348 = vpop.f32.mrf.mxu0
        %v5349 = vadd.f32 %v5295, %v5348
        %v5350 = vpop.f32.mrf.mxu0
        %v5351 = vadd.f32 %v5297, %v5350
        %5352 = vmatmul.bf16.gmra.mxu0 %v4948
        %v5353 = vpop.f32.mrf.mxu0
        %v5354 = vadd.f32 %v5300, %v5353
        %v5355 = vpop.f32.mrf.mxu0
        %v5356 = vadd.f32 %v5302, %v5355
        %5357 = vdwg.mxu0
        %v5358 = vadd.f32 %v4893, %v5206
        %v5359 = vadd.f32 %v4894, %v5314
        %v5360 = vadd.f32 %v4895, %v5208
        %v5361 = vadd.f32 %v4896, %v5316
        %v5362 = vadd.f32 %v4897, %v5211
        %v5363 = vadd.f32 %v4898, %v5319
        %v5364 = vadd.f32 %v4899, %v5213
        %v5365 = vadd.f32 %v4900, %v5321
        %v5366 = vadd.f32 %v4901, %v5216
        %v5367 = vadd.f32 %v4902, %v5324
        %v5368 = vadd.f32 %v4903, %v5218
        %v5369 = vadd.f32 %v4904, %v5326
        %v5370 = vadd.f32 %v4905, %v5221
        %v5371 = vadd.f32 %v4906, %v5329
        %v5372 = vadd.f32 %v4907, %v5223
        %v5373 = vadd.f32 %v4908, %v5331
        %v5374 = vadd.f32 %v4909, %v5226
        %v5375 = vadd.f32 %v4910, %v5334
        %v5376 = vadd.f32 %v4911, %v5228
        %v5377 = vadd.f32 %v4912, %v5336
        %v5378 = vadd.f32 %v4913, %v5231
        %v5379 = vadd.f32 %v4914, %v5339
        %v5380 = vadd.f32 %v4915, %v5233
        %v5381 = vadd.f32 %v4916, %v5341
        %v5382 = vadd.f32 %v4917, %v5236
        %v5383 = vadd.f32 %v4918, %v5344
        %v5384 = vadd.f32 %v4919, %v5238
        %v5385 = vadd.f32 %v4920, %v5346
        %v5386 = vadd.f32 %v4921, %v5241
        %v5387 = vadd.f32 %v4922, %v5349
        %v5388 = vadd.f32 %v4923, %v5243
        %v5389 = vadd.f32 %v4924, %v5351
        %v5390 = vadd.f32 %v4925, %v5246
        %v5391 = vadd.f32 %v4926, %v5354
        %v5392 = vadd.f32 %v4927, %v5248
        %v5393 = vadd.f32 %v4928, %v5356
        %v5394 = vld [vmem:[#allocation2 + $0x30] sm:$0xfe]
        %v5395 = vld [vmem:[#allocation2 + $0x38] sm:$0xfe]
        %v5396 = vld [vmem:[#allocation2 + $0x40] sm:$0xff]
        %v5397 = vld [vmem:[#allocation2 + $0x48] sm:$0xff]
        %v5398 = vld [vmem:[#allocation2 + $0x50] sm:$0xff]
        %v5399 = vld [vmem:[#allocation2 + $0x58] sm:$0xff]
        %v5400 = vld [vmem:[#allocation2 + $0x60] sm:$0xff]
        %v5401 = vld [vmem:[#allocation2 + $0x68] sm:$0xff]
        %v5402 = vld [vmem:[#allocation2 + $0x70] sm:$0xff]
        %v5403 = vld [vmem:[#allocation2 + $0x78] sm:$0xff]
        %v5404 = vld [vmem:[#allocation2 + $0x80] sm:$0xff]
        %v5405 = vld [vmem:[#allocation2 + $0x88] sm:$0xff]
        %v5406 = vld [vmem:[#allocation2 + $0x90] sm:$0xff]
        %v5407 = vld [vmem:[#allocation2 + $0x98] sm:$0xff]
        %v5408 = vld [vmem:[#allocation2 + $0xa0] sm:$0xff]
        %v5409 = vld [vmem:[#allocation2 + $0xa8] sm:$0xff]
        %v5410 = vld [vmem:[#allocation2 + $0xb0] sm:$0xff]
        %v5411 = vld [vmem:[#allocation2 + $0xb8] sm:$0xff]
        %v5412 = vld [vmem:[#allocation2 + $0xc0] sm:$0xff]
        %v5413 = vld [vmem:[#allocation2 + $0xc8] sm:$0xff]
        %v5414 = vld [vmem:[#allocation2 + $0xd0] sm:$0xff]
        %v5415 = vld [vmem:[#allocation2 + $0xd8] sm:$0xff]
        %v5416 = vld [vmem:[#allocation2 + $0xe0] sm:$0xff]
        %v5417 = vld [vmem:[#allocation2 + $0xe8] sm:$0xff]
        %v5418 = vld [vmem:[#allocation2 + $0xf0] sm:$0xff]
        %v5419 = vld [vmem:[#allocation2 + $0xf8] sm:$0xff]
        %v5420 = vld [vmem:[#allocation2 + $0x100] sm:$0xff]
        %v5421 = vld [vmem:[#allocation2 + $0x108] sm:$0xff]
        %v5422 = vld [vmem:[#allocation2 + $0x110] sm:$0xff]
        %v5423 = vld [vmem:[#allocation2 + $0x118] sm:$0xff]
        %v5424 = vld [vmem:[#allocation2 + $0x120] sm:$0xff]
        %v5425 = vld [vmem:[#allocation2 + $0x128] sm:$0xff]
        %v5426 = vld [vmem:[#allocation2 + $0x130] sm:$0xff]
        %v5427 = vld [vmem:[#allocation2 + $0x138] sm:$0xff]
        %v5428 = vld [vmem:[#allocation2 + $0x140] sm:$0xff]
        %v5429 = vld [vmem:[#allocation2 + $0x148] sm:$0xff]
        %v5430 = vld [vmem:[#allocation2 + $0x150] sm:$0x1]
        %v5431 = vld [vmem:[#allocation2 + $0x158] sm:$0x1]
        %v5432 = vpack.c.bf16 %v5396, %v5394
        %v5433 = vpack.c.bf16 %v5397, %v5395
        %v5434 = vpack.c.bf16 %v5400, %v5398
        %v5435 = vpack.c.bf16 %v5401, %v5399
        %v5436 = vpack.c.bf16 %v5404, %v5402
        %v5437 = vpack.c.bf16 %v5405, %v5403
        %v5438 = vpack.c.bf16 %v5408, %v5406
        %v5439 = vpack.c.bf16 %v5409, %v5407
        %v5440 = vpack.c.bf16 %v5412, %v5410
        %v5441 = vpack.c.bf16 %v5413, %v5411
        %v5442 = vpack.c.bf16 %v5416, %v5414
        %v5443 = vpack.c.bf16 %v5417, %v5415
        %v5444 = vpack.c.bf16 %v5420, %v5418
        %v5445 = vpack.c.bf16 %v5421, %v5419
        %v5446 = vpack.c.bf16 %v5424, %v5422
        %v5447 = vpack.c.bf16 %v5425, %v5423
        %v5448 = vpack.c.bf16 %v5428, %v5426
        %v5449 = vpack.c.bf16 %v5429, %v5427
        %v5450 = vpack.c.bf16 %v5430, %v5430
        %v5451 = vpack.c.bf16 %v5431, %v5431
        %s5452 = scalar_lea.vmem %s701, 1792 [#allocation10]
        %v5453 = vld [vmem:[%s5452] sm:$0xff]
        %v5454 = vld [vmem:[%s5452 + $0x8] sm:$0xff]
        %v5455 = vld [vmem:[%s5452 + $0x10] sm:$0xff]
        %v5456 = vld [vmem:[%s5452 + $0x18] sm:$0xff]
        %v5457 = vld [vmem:[%s5452 + $0x20] sm:$0xff]
        %v5458 = vld [vmem:[%s5452 + $0x28] sm:$0xff]
        %v5459 = vld [vmem:[%s5452 + $0x30] sm:$0xff]
        %v5460 = vld [vmem:[%s5452 + $0x38] sm:$0xff]
        %v5461 = vld [vmem:[%s5452 + $0x40] sm:$0xff]
        %v5462 = vld [vmem:[%s5452 + $0x48] sm:$0xff]
        %v5463 = vld [vmem:[%s5452 + $0x50] sm:$0xff]
        %v5464 = vld [vmem:[%s5452 + $0x58] sm:$0xff]
        %v5465 = vld [vmem:[%s5452 + $0x60] sm:$0xff]
        %v5466 = vld [vmem:[%s5452 + $0x68] sm:$0xff]
        %v5467 = vld [vmem:[%s5452 + $0x70] sm:$0xff]
        %v5468 = vld [vmem:[%s5452 + $0x78] sm:$0xff]
        %v5469 = vld [vmem:[%s5452 + $0x80] sm:$0xff]
        %v5470 = vld [vmem:[%s5452 + $0x88] sm:$0xff]
        %v5471 = vld [vmem:[%s5452 + $0x90] sm:$0xff]
        %v5472 = vld [vmem:[%s5452 + $0x98] sm:$0xff]
        %v5473 = vld [vmem:[%s5452 + $0xa0] sm:$0xff]
        %v5474 = vld [vmem:[%s5452 + $0xa8] sm:$0xff]
        %v5475 = vld [vmem:[%s5452 + $0xb0] sm:$0xff]
        %v5476 = vld [vmem:[%s5452 + $0xb8] sm:$0xff]
        %v5477 = vld [vmem:[%s5452 + $0xc0] sm:$0xff]
        %v5478 = vld [vmem:[%s5452 + $0xc8] sm:$0xff]
        %v5479 = vld [vmem:[%s5452 + $0xd0] sm:$0xff]
        %v5480 = vld [vmem:[%s5452 + $0xd8] sm:$0xff]
        %v5481 = vld [vmem:[%s5452 + $0xe0] sm:$0xff]
        %v5482 = vld [vmem:[%s5452 + $0xe8] sm:$0xff]
        %v5483 = vld [vmem:[%s5452 + $0xf0] sm:$0xff]
        %v5484 = vld [vmem:[%s5452 + $0xf8] sm:$0xff]
        %v5486 = vshrl.u32 %v5432, 16
        %v5488 = vshll.u32 %v5432, 16
        %v5490 = vrot.slane %v5488, 1
        %v5491 = vor.u32 %v5486, %v5490
        %v5493 = vshll.u32 %v5434, 16
        %v5495 = vrot.slane %v5493, 1
        %v5496 = vsel %vm4346, %v5491, %v5495
        %v5498 = vshrl.u32 %v5433, 16
        %v5500 = vshll.u32 %v5433, 16
        %v5502 = vrot.slane %v5500, 1
        %v5503 = vor.u32 %v5498, %v5502
        %v5505 = vshll.u32 %v5435, 16
        %v5507 = vrot.slane %v5505, 1
        %v5508 = vsel %vm4346, %v5503, %v5507
        %v5509 = vshrl.u32 %v5434, 16
        %v5511 = vor.u32 %v5509, %v5495
        %v5513 = vshll.u32 %v5436, 16
        %v5515 = vrot.slane %v5513, 1
        %v5516 = vsel %vm4346, %v5511, %v5515
        %v5517 = vshrl.u32 %v5435, 16
        %v5519 = vor.u32 %v5517, %v5507
        %v5521 = vshll.u32 %v5437, 16
        %v5523 = vrot.slane %v5521, 1
        %v5524 = vsel %vm4346, %v5519, %v5523
        %v5525 = vshrl.u32 %v5436, 16
        %v5527 = vor.u32 %v5525, %v5515
        %v5529 = vshll.u32 %v5438, 16
        %v5531 = vrot.slane %v5529, 1
        %v5532 = vsel %vm4346, %v5527, %v5531
        %v5533 = vshrl.u32 %v5437, 16
        %v5535 = vor.u32 %v5533, %v5523
        %v5537 = vshll.u32 %v5439, 16
        %v5539 = vrot.slane %v5537, 1
        %v5540 = vsel %vm4346, %v5535, %v5539
        %v5541 = vshrl.u32 %v5438, 16
        %v5543 = vor.u32 %v5541, %v5531
        %v5545 = vshll.u32 %v5440, 16
        %v5547 = vrot.slane %v5545, 1
        %v5548 = vsel %vm4346, %v5543, %v5547
        %v5549 = vshrl.u32 %v5439, 16
        %v5551 = vor.u32 %v5549, %v5539
        %v5553 = vshll.u32 %v5441, 16
        %v5555 = vrot.slane %v5553, 1
        %v5556 = vsel %vm4346, %v5551, %v5555
        %v5557 = vshrl.u32 %v5440, 16
        %v5559 = vor.u32 %v5557, %v5547
        %v5561 = vshll.u32 %v5442, 16
        %v5563 = vrot.slane %v5561, 1
        %v5564 = vsel %vm4346, %v5559, %v5563
        %v5565 = vshrl.u32 %v5441, 16
        %v5567 = vor.u32 %v5565, %v5555
        %v5569 = vshll.u32 %v5443, 16
        %v5571 = vrot.slane %v5569, 1
        %v5572 = vsel %vm4346, %v5567, %v5571
        %v5573 = vshrl.u32 %v5442, 16
        %v5575 = vor.u32 %v5573, %v5563
        %v5577 = vshll.u32 %v5444, 16
        %v5579 = vrot.slane %v5577, 1
        %v5580 = vsel %vm4346, %v5575, %v5579
        %v5581 = vshrl.u32 %v5443, 16
        %v5583 = vor.u32 %v5581, %v5571
        %v5585 = vshll.u32 %v5445, 16
        %v5587 = vrot.slane %v5585, 1
        %v5588 = vsel %vm4346, %v5583, %v5587
        %v5589 = vshrl.u32 %v5444, 16
        %v5591 = vor.u32 %v5589, %v5579
        %v5593 = vshll.u32 %v5446, 16
        %v5595 = vrot.slane %v5593, 1
        %v5596 = vsel %vm4346, %v5591, %v5595
        %v5597 = vshrl.u32 %v5445, 16
        %v5599 = vor.u32 %v5597, %v5587
        %v5601 = vshll.u32 %v5447, 16
        %v5603 = vrot.slane %v5601, 1
        %v5604 = vsel %vm4346, %v5599, %v5603
        %v5605 = vshrl.u32 %v5446, 16
        %v5607 = vor.u32 %v5605, %v5595
        %v5609 = vshll.u32 %v5448, 16
        %v5611 = vrot.slane %v5609, 1
        %v5612 = vsel %vm4346, %v5607, %v5611
        %v5613 = vshrl.u32 %v5447, 16
        %v5615 = vor.u32 %v5613, %v5603
        %v5617 = vshll.u32 %v5449, 16
        %v5619 = vrot.slane %v5617, 1
        %v5620 = vsel %vm4346, %v5615, %v5619
        %v5621 = vshrl.u32 %v5448, 16
        %v5623 = vor.u32 %v5621, %v5611
        %v5625 = vshll.u32 %v5450, 16
        %v5627 = vrot.slane %v5625, 1
        %v5628 = vsel %vm4346, %v5623, %v5627
        %v5629 = vshrl.u32 %v5449, 16
        %v5631 = vor.u32 %v5629, %v5619
        %v5633 = vshll.u32 %v5451, 16
        %v5635 = vrot.slane %v5633, 1
        %v5636 = vsel %vm4346, %v5631, %v5635
        %v5687 = vunpack.c.l.b16 %v5453
        %v5688 = vunpack.c.h.b16 %v5453
        %v5689 = vunpack.c.l.b16 %v5454
        %v5690 = vunpack.c.h.b16 %v5454
        %v5691 = vunpack.c.l.b16 %v5455
        %v5692 = vunpack.c.h.b16 %v5455
        %v5693 = vunpack.c.l.b16 %v5456
        %v5694 = vunpack.c.h.b16 %v5456
        %v5695 = vunpack.c.l.b16 %v5457
        %v5696 = vunpack.c.h.b16 %v5457
        %v5697 = vunpack.c.l.b16 %v5458
        %v5698 = vunpack.c.h.b16 %v5458
        %v5699 = vunpack.c.l.b16 %v5459
        %v5700 = vunpack.c.h.b16 %v5459
        %v5701 = vunpack.c.l.b16 %v5460
        %v5702 = vunpack.c.h.b16 %v5460
        %v5703 = vunpack.c.l.b16 %v5461
        %v5704 = vunpack.c.h.b16 %v5461
        %v5705 = vunpack.c.l.b16 %v5462
        %v5706 = vunpack.c.h.b16 %v5462
        %v5707 = vunpack.c.l.b16 %v5463
        %v5708 = vunpack.c.h.b16 %v5463
        %v5709 = vunpack.c.l.b16 %v5464
        %v5710 = vunpack.c.h.b16 %v5464
        %v5711 = vunpack.c.l.b16 %v5465
        %v5712 = vunpack.c.h.b16 %v5465
        %v5713 = vunpack.c.l.b16 %v5466
        %v5714 = vunpack.c.h.b16 %v5466
        %v5715 = vunpack.c.l.b16 %v5467
        %v5716 = vunpack.c.h.b16 %v5467
        %v5717 = vunpack.c.l.b16 %v5468
        %v5718 = vunpack.c.h.b16 %v5468
        %v5719 = vunpack.c.l.b16 %v5469
        %v5720 = vunpack.c.h.b16 %v5469
        %v5721 = vunpack.c.l.b16 %v5470
        %v5722 = vunpack.c.h.b16 %v5470
        %v5723 = vunpack.c.l.b16 %v5471
        %v5724 = vunpack.c.h.b16 %v5471
        %v5725 = vunpack.c.l.b16 %v5472
        %v5726 = vunpack.c.h.b16 %v5472
        %v5727 = vunpack.c.l.b16 %v5473
        %v5728 = vunpack.c.h.b16 %v5473
        %v5729 = vunpack.c.l.b16 %v5474
        %v5730 = vunpack.c.h.b16 %v5474
        %v5731 = vunpack.c.l.b16 %v5475
        %v5732 = vunpack.c.h.b16 %v5475
        %v5733 = vunpack.c.l.b16 %v5476
        %v5734 = vunpack.c.h.b16 %v5476
        %v5735 = vunpack.c.l.b16 %v5477
        %v5736 = vunpack.c.h.b16 %v5477
        %v5737 = vunpack.c.l.b16 %v5478
        %v5738 = vunpack.c.h.b16 %v5478
        %v5739 = vunpack.c.l.b16 %v5479
        %v5740 = vunpack.c.h.b16 %v5479
        %v5741 = vunpack.c.l.b16 %v5480
        %v5742 = vunpack.c.h.b16 %v5480
        %v5743 = vunpack.c.l.b16 %v5481
        %v5744 = vunpack.c.h.b16 %v5481
        %v5745 = vunpack.c.l.b16 %v5482
        %v5746 = vunpack.c.h.b16 %v5482
        %v5747 = vunpack.c.l.b16 %v5483
        %v5748 = vunpack.c.h.b16 %v5483
        %v5749 = vunpack.c.l.b16 %v5484
        %v5750 = vunpack.c.h.b16 %v5484
        %v5751 = vpack.c.b16 %v5689, %v5687
        %v5752 = vpack.c.b16 %v5690, %v5688
        %v5753 = vpack.c.b16 %v5693, %v5691
        %v5754 = vpack.c.b16 %v5694, %v5692
        %v5755 = vpack.c.b16 %v5697, %v5695
        %v5756 = vpack.c.b16 %v5698, %v5696
        %v5757 = vpack.c.b16 %v5701, %v5699
        %v5758 = vpack.c.b16 %v5702, %v5700
        %v5759 = vpack.c.b16 %v5705, %v5703
        %v5760 = vpack.c.b16 %v5706, %v5704
        %v5761 = vpack.c.b16 %v5709, %v5707
        %v5762 = vpack.c.b16 %v5710, %v5708
        %v5763 = vpack.c.b16 %v5713, %v5711
        %v5764 = vpack.c.b16 %v5714, %v5712
        %v5765 = vpack.c.b16 %v5717, %v5715
        %v5766 = vpack.c.b16 %v5718, %v5716
        %v5767 = vpack.c.b16 %v5721, %v5719
        %v5768 = vpack.c.b16 %v5722, %v5720
        %v5769 = vpack.c.b16 %v5725, %v5723
        %v5770 = vpack.c.b16 %v5726, %v5724
        %v5771 = vpack.c.b16 %v5729, %v5727
        %v5772 = vpack.c.b16 %v5730, %v5728
        %v5773 = vpack.c.b16 %v5733, %v5731
        %v5774 = vpack.c.b16 %v5734, %v5732
        %v5775 = vpack.c.b16 %v5737, %v5735
        %v5776 = vpack.c.b16 %v5738, %v5736
        %v5777 = vpack.c.b16 %v5741, %v5739
        %v5778 = vpack.c.b16 %v5742, %v5740
        %v5779 = vpack.c.b16 %v5745, %v5743
        %v5780 = vpack.c.b16 %v5746, %v5744
        %v5781 = vpack.c.b16 %v5749, %v5747
        %v5782 = vpack.c.b16 %v5750, %v5748
        %5815 = vmatpush.bf16.msra.mxu0 %v5765
        %5816 = vmatpush.bf16.msra.mxu0 %v5763
        %5817 = vmatpush.bf16.msra.mxu0 %v5761
        %5818 = vmatpush.bf16.msra.mxu0 %v5759
        %5819 = vmatpush.bf16.msra.mxu0 %v5757
        %5820 = vmatpush.bf16.msra.mxu0 %v5755
        %5821 = vmatpush.bf16.msra.mxu0 %v5753
        %5822 = vmatpush.bf16.msra.mxu0 %v5751
        %5823 = vmatmul.bf16.gmra.mxu0 %v5496
        %v5824 = vpop.f32.mrf.mxu0
        %v5825 = vadd.f32 0.0, %v5824
        %v5826 = vpop.f32.mrf.mxu0
        %v5827 = vadd.f32 0.0, %v5826
        %5828 = vmatmul.bf16.gmra.mxu0 %v5516
        %v5829 = vpop.f32.mrf.mxu0
        %v5830 = vadd.f32 0.0, %v5829
        %v5831 = vpop.f32.mrf.mxu0
        %v5832 = vadd.f32 0.0, %v5831
        %5833 = vmatmul.bf16.gmra.mxu0 %v5532
        %v5834 = vpop.f32.mrf.mxu0
        %v5835 = vadd.f32 0.0, %v5834
        %v5836 = vpop.f32.mrf.mxu0
        %v5837 = vadd.f32 0.0, %v5836
        %5838 = vmatmul.bf16.gmra.mxu0 %v5548
        %v5839 = vpop.f32.mrf.mxu0
        %v5840 = vadd.f32 0.0, %v5839
        %v5841 = vpop.f32.mrf.mxu0
        %v5842 = vadd.f32 0.0, %v5841
        %5843 = vmatmul.bf16.gmra.mxu0 %v5564
        %v5844 = vpop.f32.mrf.mxu0
        %v5845 = vadd.f32 0.0, %v5844
        %v5846 = vpop.f32.mrf.mxu0
        %v5847 = vadd.f32 0.0, %v5846
        %5848 = vmatmul.bf16.gmra.mxu0 %v5580
        %v5849 = vpop.f32.mrf.mxu0
        %v5850 = vadd.f32 0.0, %v5849
        %v5851 = vpop.f32.mrf.mxu0
        %v5852 = vadd.f32 0.0, %v5851
        %5853 = vmatmul.bf16.gmra.mxu0 %v5596
        %v5854 = vpop.f32.mrf.mxu0
        %v5855 = vadd.f32 0.0, %v5854
        %v5856 = vpop.f32.mrf.mxu0
        %v5857 = vadd.f32 0.0, %v5856
        %5858 = vmatmul.bf16.gmra.mxu0 %v5612
        %v5859 = vpop.f32.mrf.mxu0
        %v5860 = vadd.f32 0.0, %v5859
        %v5861 = vpop.f32.mrf.mxu0
        %v5862 = vadd.f32 0.0, %v5861
        %5863 = vmatmul.bf16.gmra.mxu0 %v5628
        %v5864 = vpop.f32.mrf.mxu0
        %v5865 = vadd.f32 0.0, %v5864
        %v5866 = vpop.f32.mrf.mxu0
        %v5867 = vadd.f32 0.0, %v5866
        %5868 = vdwg.mxu0
        %5869 = vmatpush.bf16.msra.mxu0 %v5781
        %5870 = vmatpush.bf16.msra.mxu0 %v5779
        %5871 = vmatpush.bf16.msra.mxu0 %v5777
        %5872 = vmatpush.bf16.msra.mxu0 %v5775
        %5873 = vmatpush.bf16.msra.mxu0 %v5773
        %5874 = vmatpush.bf16.msra.mxu0 %v5771
        %5875 = vmatpush.bf16.msra.mxu0 %v5769
        %5876 = vmatpush.bf16.msra.mxu0 %v5767
        %5877 = vmatmul.bf16.gmra.mxu0 %v5508
        %v5878 = vpop.f32.mrf.mxu0
        %v5879 = vadd.f32 %v5825, %v5878
        %v5880 = vpop.f32.mrf.mxu0
        %v5881 = vadd.f32 %v5827, %v5880
        %5882 = vmatmul.bf16.gmra.mxu0 %v5524
        %v5883 = vpop.f32.mrf.mxu0
        %v5884 = vadd.f32 %v5830, %v5883
        %v5885 = vpop.f32.mrf.mxu0
        %v5886 = vadd.f32 %v5832, %v5885
        %5887 = vmatmul.bf16.gmra.mxu0 %v5540
        %v5888 = vpop.f32.mrf.mxu0
        %v5889 = vadd.f32 %v5835, %v5888
        %v5890 = vpop.f32.mrf.mxu0
        %v5891 = vadd.f32 %v5837, %v5890
        %5892 = vmatmul.bf16.gmra.mxu0 %v5556
        %v5893 = vpop.f32.mrf.mxu0
        %v5894 = vadd.f32 %v5840, %v5893
        %v5895 = vpop.f32.mrf.mxu0
        %v5896 = vadd.f32 %v5842, %v5895
        %5897 = vmatmul.bf16.gmra.mxu0 %v5572
        %v5898 = vpop.f32.mrf.mxu0
        %v5899 = vadd.f32 %v5845, %v5898
        %v5900 = vpop.f32.mrf.mxu0
        %v5901 = vadd.f32 %v5847, %v5900
        %5902 = vmatmul.bf16.gmra.mxu0 %v5588
        %v5903 = vpop.f32.mrf.mxu0
        %v5904 = vadd.f32 %v5850, %v5903
        %v5905 = vpop.f32.mrf.mxu0
        %v5906 = vadd.f32 %v5852, %v5905
        %5907 = vmatmul.bf16.gmra.mxu0 %v5604
        %v5908 = vpop.f32.mrf.mxu0
        %v5909 = vadd.f32 %v5855, %v5908
        %v5910 = vpop.f32.mrf.mxu0
        %v5911 = vadd.f32 %v5857, %v5910
        %5912 = vmatmul.bf16.gmra.mxu0 %v5620
        %v5913 = vpop.f32.mrf.mxu0
        %v5914 = vadd.f32 %v5860, %v5913
        %v5915 = vpop.f32.mrf.mxu0
        %v5916 = vadd.f32 %v5862, %v5915
        %5917 = vmatmul.bf16.gmra.mxu0 %v5636
        %v5918 = vpop.f32.mrf.mxu0
        %v5919 = vadd.f32 %v5865, %v5918
        %v5920 = vpop.f32.mrf.mxu0
        %v5921 = vadd.f32 %v5867, %v5920
        %5922 = vdwg.mxu0
        %5923 = vmatpush.bf16.msra.mxu0 %v5766
        %5924 = vmatpush.bf16.msra.mxu0 %v5764
        %5925 = vmatpush.bf16.msra.mxu0 %v5762
        %5926 = vmatpush.bf16.msra.mxu0 %v5760
        %5927 = vmatpush.bf16.msra.mxu0 %v5758
        %5928 = vmatpush.bf16.msra.mxu0 %v5756
        %5929 = vmatpush.bf16.msra.mxu0 %v5754
        %5930 = vmatpush.bf16.msra.mxu0 %v5752
        %5931 = vmatmul.bf16.gmra.mxu0 %v5496
        %v5932 = vpop.f32.mrf.mxu0
        %v5933 = vadd.f32 0.0, %v5932
        %v5934 = vpop.f32.mrf.mxu0
        %v5935 = vadd.f32 0.0, %v5934
        %5936 = vmatmul.bf16.gmra.mxu0 %v5516
        %v5937 = vpop.f32.mrf.mxu0
        %v5938 = vadd.f32 0.0, %v5937
        %v5939 = vpop.f32.mrf.mxu0
        %v5940 = vadd.f32 0.0, %v5939
        %5941 = vmatmul.bf16.gmra.mxu0 %v5532
        %v5942 = vpop.f32.mrf.mxu0
        %v5943 = vadd.f32 0.0, %v5942
        %v5944 = vpop.f32.mrf.mxu0
        %v5945 = vadd.f32 0.0, %v5944
        %5946 = vmatmul.bf16.gmra.mxu0 %v5548
        %v5947 = vpop.f32.mrf.mxu0
        %v5948 = vadd.f32 0.0, %v5947
        %v5949 = vpop.f32.mrf.mxu0
        %v5950 = vadd.f32 0.0, %v5949
        %5951 = vmatmul.bf16.gmra.mxu0 %v5564
        %v5952 = vpop.f32.mrf.mxu0
        %v5953 = vadd.f32 0.0, %v5952
        %v5954 = vpop.f32.mrf.mxu0
        %v5955 = vadd.f32 0.0, %v5954
        %5956 = vmatmul.bf16.gmra.mxu0 %v5580
        %v5957 = vpop.f32.mrf.mxu0
        %v5958 = vadd.f32 0.0, %v5957
        %v5959 = vpop.f32.mrf.mxu0
        %v5960 = vadd.f32 0.0, %v5959
        %5961 = vmatmul.bf16.gmra.mxu0 %v5596
        %v5962 = vpop.f32.mrf.mxu0
        %v5963 = vadd.f32 0.0, %v5962
        %v5964 = vpop.f32.mrf.mxu0
        %v5965 = vadd.f32 0.0, %v5964
        %5966 = vmatmul.bf16.gmra.mxu0 %v5612
        %v5967 = vpop.f32.mrf.mxu0
        %v5968 = vadd.f32 0.0, %v5967
        %v5969 = vpop.f32.mrf.mxu0
        %v5970 = vadd.f32 0.0, %v5969
        %5971 = vmatmul.bf16.gmra.mxu0 %v5628
        %v5972 = vpop.f32.mrf.mxu0
        %v5973 = vadd.f32 0.0, %v5972
        %v5974 = vpop.f32.mrf.mxu0
        %v5975 = vadd.f32 0.0, %v5974
        %5976 = vdwg.mxu0
        %5977 = vmatpush.bf16.msra.mxu0 %v5782
        %5978 = vmatpush.bf16.msra.mxu0 %v5780
        %5979 = vmatpush.bf16.msra.mxu0 %v5778
        %5980 = vmatpush.bf16.msra.mxu0 %v5776
        %5981 = vmatpush.bf16.msra.mxu0 %v5774
        %5982 = vmatpush.bf16.msra.mxu0 %v5772
        %5983 = vmatpush.bf16.msra.mxu0 %v5770
        %5984 = vmatpush.bf16.msra.mxu0 %v5768
        %5985 = vmatmul.bf16.gmra.mxu0 %v5508
        %v5986 = vpop.f32.mrf.mxu0
        %v5987 = vadd.f32 %v5933, %v5986
        %v5988 = vpop.f32.mrf.mxu0
        %v5989 = vadd.f32 %v5935, %v5988
        %5990 = vmatmul.bf16.gmra.mxu0 %v5524
        %v5991 = vpop.f32.mrf.mxu0
        %v5992 = vadd.f32 %v5938, %v5991
        %v5993 = vpop.f32.mrf.mxu0
        %v5994 = vadd.f32 %v5940, %v5993
        %5995 = vmatmul.bf16.gmra.mxu0 %v5540
        %v5996 = vpop.f32.mrf.mxu0
        %v5997 = vadd.f32 %v5943, %v5996
        %v5998 = vpop.f32.mrf.mxu0
        %v5999 = vadd.f32 %v5945, %v5998
        %6000 = vmatmul.bf16.gmra.mxu0 %v5556
        %v6001 = vpop.f32.mrf.mxu0
        %v6002 = vadd.f32 %v5948, %v6001
        %v6003 = vpop.f32.mrf.mxu0
        %v6004 = vadd.f32 %v5950, %v6003
        %6005 = vmatmul.bf16.gmra.mxu0 %v5572
        %v6006 = vpop.f32.mrf.mxu0
        %v6007 = vadd.f32 %v5953, %v6006
        %v6008 = vpop.f32.mrf.mxu0
        %v6009 = vadd.f32 %v5955, %v6008
        %6010 = vmatmul.bf16.gmra.mxu0 %v5588
        %v6011 = vpop.f32.mrf.mxu0
        %v6012 = vadd.f32 %v5958, %v6011
        %v6013 = vpop.f32.mrf.mxu0
        %v6014 = vadd.f32 %v5960, %v6013
        %6015 = vmatmul.bf16.gmra.mxu0 %v5604
        %v6016 = vpop.f32.mrf.mxu0
        %v6017 = vadd.f32 %v5963, %v6016
        %v6018 = vpop.f32.mrf.mxu0
        %v6019 = vadd.f32 %v5965, %v6018
        %6020 = vmatmul.bf16.gmra.mxu0 %v5620
        %v6021 = vpop.f32.mrf.mxu0
        %v6022 = vadd.f32 %v5968, %v6021
        %v6023 = vpop.f32.mrf.mxu0
        %v6024 = vadd.f32 %v5970, %v6023
        %6025 = vmatmul.bf16.gmra.mxu0 %v5636
        %v6026 = vpop.f32.mrf.mxu0
        %v6027 = vadd.f32 %v5973, %v6026
        %v6028 = vpop.f32.mrf.mxu0
        %v6029 = vadd.f32 %v5975, %v6028
        %6030 = vdwg.mxu0
        %v6031 = vadd.f32 %v5358, %v5879
        %v6032 = vadd.f32 %v5359, %v5987
        %v6033 = vadd.f32 %v5360, %v5881
        %v6034 = vadd.f32 %v5361, %v5989
        %v6035 = vadd.f32 %v5362, %v5884
        %v6036 = vadd.f32 %v5363, %v5992
        %v6037 = vadd.f32 %v5364, %v5886
        %v6038 = vadd.f32 %v5365, %v5994
        %v6039 = vadd.f32 %v5366, %v5889
        %v6040 = vadd.f32 %v5367, %v5997
        %v6041 = vadd.f32 %v5368, %v5891
        %v6042 = vadd.f32 %v5369, %v5999
        %v6043 = vadd.f32 %v5370, %v5894
        %v6044 = vadd.f32 %v5371, %v6002
        %v6045 = vadd.f32 %v5372, %v5896
        %v6046 = vadd.f32 %v5373, %v6004
        %v6047 = vadd.f32 %v5374, %v5899
        %v6048 = vadd.f32 %v5375, %v6007
        %v6049 = vadd.f32 %v5376, %v5901
        %v6050 = vadd.f32 %v5377, %v6009
        %v6051 = vadd.f32 %v5378, %v5904
        %v6052 = vadd.f32 %v5379, %v6012
        %v6053 = vadd.f32 %v5380, %v5906
        %v6054 = vadd.f32 %v5381, %v6014
        %v6055 = vadd.f32 %v5382, %v5909
        %v6056 = vadd.f32 %v5383, %v6017
        %v6057 = vadd.f32 %v5384, %v5911
        %v6058 = vadd.f32 %v5385, %v6019
        %v6059 = vadd.f32 %v5386, %v5914
        %v6060 = vadd.f32 %v5387, %v6022
        %v6061 = vadd.f32 %v5388, %v5916
        %v6062 = vadd.f32 %v5389, %v6024
        %v6063 = vadd.f32 %v5390, %v5919
        %v6064 = vadd.f32 %v5391, %v6027
        %v6065 = vadd.f32 %v5392, %v5921
        %v6066 = vadd.f32 %v5393, %v6029
        %v6067 = vld [vmem:[#allocation2 + $0x30] sm:$0xfc]
        %v6068 = vld [vmem:[#allocation2 + $0x38] sm:$0xfc]
        %v6069 = vld [vmem:[#allocation2 + $0x150] sm:$0x3]
        %v6070 = vld [vmem:[#allocation2 + $0x158] sm:$0x3]
        %v6071 = vpack.c.bf16 %v5396, %v6067
        %v6072 = vpack.c.bf16 %v5397, %v6068
        %v6073 = vpack.c.bf16 %v6069, %v6069
        %v6074 = vpack.c.bf16 %v6070, %v6070
        %s6075 = scalar_lea.vmem %s701, 2048 [#allocation10]
        %v6076 = vld [vmem:[%s6075] sm:$0xff]
        %v6077 = vld [vmem:[%s6075 + $0x8] sm:$0xff]
        %v6078 = vld [vmem:[%s6075 + $0x10] sm:$0xff]
        %v6079 = vld [vmem:[%s6075 + $0x18] sm:$0xff]
        %v6080 = vld [vmem:[%s6075 + $0x20] sm:$0xff]
        %v6081 = vld [vmem:[%s6075 + $0x28] sm:$0xff]
        %v6082 = vld [vmem:[%s6075 + $0x30] sm:$0xff]
        %v6083 = vld [vmem:[%s6075 + $0x38] sm:$0xff]
        %v6084 = vld [vmem:[%s6075 + $0x40] sm:$0xff]
        %v6085 = vld [vmem:[%s6075 + $0x48] sm:$0xff]
        %v6086 = vld [vmem:[%s6075 + $0x50] sm:$0xff]
        %v6087 = vld [vmem:[%s6075 + $0x58] sm:$0xff]
        %v6088 = vld [vmem:[%s6075 + $0x60] sm:$0xff]
        %v6089 = vld [vmem:[%s6075 + $0x68] sm:$0xff]
        %v6090 = vld [vmem:[%s6075 + $0x70] sm:$0xff]
        %v6091 = vld [vmem:[%s6075 + $0x78] sm:$0xff]
        %v6092 = vld [vmem:[%s6075 + $0x80] sm:$0xff]
        %v6093 = vld [vmem:[%s6075 + $0x88] sm:$0xff]
        %v6094 = vld [vmem:[%s6075 + $0x90] sm:$0xff]
        %v6095 = vld [vmem:[%s6075 + $0x98] sm:$0xff]
        %v6096 = vld [vmem:[%s6075 + $0xa0] sm:$0xff]
        %v6097 = vld [vmem:[%s6075 + $0xa8] sm:$0xff]
        %v6098 = vld [vmem:[%s6075 + $0xb0] sm:$0xff]
        %v6099 = vld [vmem:[%s6075 + $0xb8] sm:$0xff]
        %v6100 = vld [vmem:[%s6075 + $0xc0] sm:$0xff]
        %v6101 = vld [vmem:[%s6075 + $0xc8] sm:$0xff]
        %v6102 = vld [vmem:[%s6075 + $0xd0] sm:$0xff]
        %v6103 = vld [vmem:[%s6075 + $0xd8] sm:$0xff]
        %v6104 = vld [vmem:[%s6075 + $0xe0] sm:$0xff]
        %v6105 = vld [vmem:[%s6075 + $0xe8] sm:$0xff]
        %v6106 = vld [vmem:[%s6075 + $0xf0] sm:$0xff]
        %v6107 = vld [vmem:[%s6075 + $0xf8] sm:$0xff]
        %vm6128 = vcmask 1046528
        %v6129 = vrot.slane %v6071, 1
        %v6130 = vrot.slane %v5434, 1
        %v6131 = vsel %vm6128, %v6129, %v6130
        %v6132 = vrot.slane %v6072, 1
        %v6133 = vrot.slane %v5435, 1
        %v6134 = vsel %vm6128, %v6132, %v6133
        %v6135 = vrot.slane %v5436, 1
        %v6136 = vsel %vm6128, %v6130, %v6135
        %v6137 = vrot.slane %v5437, 1
        %v6138 = vsel %vm6128, %v6133, %v6137
        %v6139 = vrot.slane %v5438, 1
        %v6140 = vsel %vm6128, %v6135, %v6139
        %v6141 = vrot.slane %v5439, 1
        %v6142 = vsel %vm6128, %v6137, %v6141
        %v6143 = vrot.slane %v5440, 1
        %v6144 = vsel %vm6128, %v6139, %v6143
        %v6145 = vrot.slane %v5441, 1
        %v6146 = vsel %vm6128, %v6141, %v6145
        %v6147 = vrot.slane %v5442, 1
        %v6148 = vsel %vm6128, %v6143, %v6147
        %v6149 = vrot.slane %v5443, 1
        %v6150 = vsel %vm6128, %v6145, %v6149
        %v6151 = vrot.slane %v5444, 1
        %v6152 = vsel %vm6128, %v6147, %v6151
        %v6153 = vrot.slane %v5445, 1
        %v6154 = vsel %vm6128, %v6149, %v6153
        %v6155 = vrot.slane %v5446, 1
        %v6156 = vsel %vm6128, %v6151, %v6155
        %v6157 = vrot.slane %v5447, 1
        %v6158 = vsel %vm6128, %v6153, %v6157
        %v6159 = vrot.slane %v5448, 1
        %v6160 = vsel %vm6128, %v6155, %v6159
        %v6161 = vrot.slane %v5449, 1
        %v6162 = vsel %vm6128, %v6157, %v6161
        %v6163 = vrot.slane %v6073, 1
        %v6164 = vsel %vm6128, %v6159, %v6163
        %v6165 = vrot.slane %v6074, 1
        %v6166 = vsel %vm6128, %v6161, %v6165
        %v6217 = vunpack.c.l.b16 %v6076
        %v6218 = vunpack.c.h.b16 %v6076
        %v6219 = vunpack.c.l.b16 %v6077
        %v6220 = vunpack.c.h.b16 %v6077
        %v6221 = vunpack.c.l.b16 %v6078
        %v6222 = vunpack.c.h.b16 %v6078
        %v6223 = vunpack.c.l.b16 %v6079
        %v6224 = vunpack.c.h.b16 %v6079
        %v6225 = vunpack.c.l.b16 %v6080
        %v6226 = vunpack.c.h.b16 %v6080
        %v6227 = vunpack.c.l.b16 %v6081
        %v6228 = vunpack.c.h.b16 %v6081
        %v6229 = vunpack.c.l.b16 %v6082
        %v6230 = vunpack.c.h.b16 %v6082
        %v6231 = vunpack.c.l.b16 %v6083
        %v6232 = vunpack.c.h.b16 %v6083
        %v6233 = vunpack.c.l.b16 %v6084
        %v6234 = vunpack.c.h.b16 %v6084
        %v6235 = vunpack.c.l.b16 %v6085
        %v6236 = vunpack.c.h.b16 %v6085
        %v6237 = vunpack.c.l.b16 %v6086
        %v6238 = vunpack.c.h.b16 %v6086
        %v6239 = vunpack.c.l.b16 %v6087
        %v6240 = vunpack.c.h.b16 %v6087
        %v6241 = vunpack.c.l.b16 %v6088
        %v6242 = vunpack.c.h.b16 %v6088
        %v6243 = vunpack.c.l.b16 %v6089
        %v6244 = vunpack.c.h.b16 %v6089
        %v6245 = vunpack.c.l.b16 %v6090
        %v6246 = vunpack.c.h.b16 %v6090
        %v6247 = vunpack.c.l.b16 %v6091
        %v6248 = vunpack.c.h.b16 %v6091
        %v6249 = vunpack.c.l.b16 %v6092
        %v6250 = vunpack.c.h.b16 %v6092
        %v6251 = vunpack.c.l.b16 %v6093
        %v6252 = vunpack.c.h.b16 %v6093
        %v6253 = vunpack.c.l.b16 %v6094
        %v6254 = vunpack.c.h.b16 %v6094
        %v6255 = vunpack.c.l.b16 %v6095
        %v6256 = vunpack.c.h.b16 %v6095
        %v6257 = vunpack.c.l.b16 %v6096
        %v6258 = vunpack.c.h.b16 %v6096
        %v6259 = vunpack.c.l.b16 %v6097
        %v6260 = vunpack.c.h.b16 %v6097
        %v6261 = vunpack.c.l.b16 %v6098
        %v6262 = vunpack.c.h.b16 %v6098
        %v6263 = vunpack.c.l.b16 %v6099
        %v6264 = vunpack.c.h.b16 %v6099
        %v6265 = vunpack.c.l.b16 %v6100
        %v6266 = vunpack.c.h.b16 %v6100
        %v6267 = vunpack.c.l.b16 %v6101
        %v6268 = vunpack.c.h.b16 %v6101
        %v6269 = vunpack.c.l.b16 %v6102
        %v6270 = vunpack.c.h.b16 %v6102
        %v6271 = vunpack.c.l.b16 %v6103
        %v6272 = vunpack.c.h.b16 %v6103
        %v6273 = vunpack.c.l.b16 %v6104
        %v6274 = vunpack.c.h.b16 %v6104
        %v6275 = vunpack.c.l.b16 %v6105
        %v6276 = vunpack.c.h.b16 %v6105
        %v6277 = vunpack.c.l.b16 %v6106
        %v6278 = vunpack.c.h.b16 %v6106
        %v6279 = vunpack.c.l.b16 %v6107
        %v6280 = vunpack.c.h.b16 %v6107
        %v6281 = vpack.c.b16 %v6219, %v6217
        %v6282 = vpack.c.b16 %v6220, %v6218
        %v6283 = vpack.c.b16 %v6223, %v6221
        %v6284 = vpack.c.b16 %v6224, %v6222
        %v6285 = vpack.c.b16 %v6227, %v6225
        %v6286 = vpack.c.b16 %v6228, %v6226
        %v6287 = vpack.c.b16 %v6231, %v6229
        %v6288 = vpack.c.b16 %v6232, %v6230
        %v6289 = vpack.c.b16 %v6235, %v6233
        %v6290 = vpack.c.b16 %v6236, %v6234
        %v6291 = vpack.c.b16 %v6239, %v6237
        %v6292 = vpack.c.b16 %v6240, %v6238
        %v6293 = vpack.c.b16 %v6243, %v6241
        %v6294 = vpack.c.b16 %v6244, %v6242
        %v6295 = vpack.c.b16 %v6247, %v6245
        %v6296 = vpack.c.b16 %v6248, %v6246
        %v6297 = vpack.c.b16 %v6251, %v6249
        %v6298 = vpack.c.b16 %v6252, %v6250
        %v6299 = vpack.c.b16 %v6255, %v6253
        %v6300 = vpack.c.b16 %v6256, %v6254
        %v6301 = vpack.c.b16 %v6259, %v6257
        %v6302 = vpack.c.b16 %v6260, %v6258
        %v6303 = vpack.c.b16 %v6263, %v6261
        %v6304 = vpack.c.b16 %v6264, %v6262
        %v6305 = vpack.c.b16 %v6267, %v6265
        %v6306 = vpack.c.b16 %v6268, %v6266
        %v6307 = vpack.c.b16 %v6271, %v6269
        %v6308 = vpack.c.b16 %v6272, %v6270
        %v6309 = vpack.c.b16 %v6275, %v6273
        %v6310 = vpack.c.b16 %v6276, %v6274
        %v6311 = vpack.c.b16 %v6279, %v6277
        %v6312 = vpack.c.b16 %v6280, %v6278
        %6345 = vmatpush.bf16.msra.mxu0 %v6295
        %6346 = vmatpush.bf16.msra.mxu0 %v6293
        %6347 = vmatpush.bf16.msra.mxu0 %v6291
        %6348 = vmatpush.bf16.msra.mxu0 %v6289
        %6349 = vmatpush.bf16.msra.mxu0 %v6287
        %6350 = vmatpush.bf16.msra.mxu0 %v6285
        %6351 = vmatpush.bf16.msra.mxu0 %v6283
        %6352 = vmatpush.bf16.msra.mxu0 %v6281
        %6353 = vmatmul.bf16.gmra.mxu0 %v6131
        %v6354 = vpop.f32.mrf.mxu0
        %v6355 = vadd.f32 0.0, %v6354
        %v6356 = vpop.f32.mrf.mxu0
        %v6357 = vadd.f32 0.0, %v6356
        %6358 = vmatmul.bf16.gmra.mxu0 %v6136
        %v6359 = vpop.f32.mrf.mxu0
        %v6360 = vadd.f32 0.0, %v6359
        %v6361 = vpop.f32.mrf.mxu0
        %v6362 = vadd.f32 0.0, %v6361
        %6363 = vmatmul.bf16.gmra.mxu0 %v6140
        %v6364 = vpop.f32.mrf.mxu0
        %v6365 = vadd.f32 0.0, %v6364
        %v6366 = vpop.f32.mrf.mxu0
        %v6367 = vadd.f32 0.0, %v6366
        %6368 = vmatmul.bf16.gmra.mxu0 %v6144
        %v6369 = vpop.f32.mrf.mxu0
        %v6370 = vadd.f32 0.0, %v6369
        %v6371 = vpop.f32.mrf.mxu0
        %v6372 = vadd.f32 0.0, %v6371
        %6373 = vmatmul.bf16.gmra.mxu0 %v6148
        %v6374 = vpop.f32.mrf.mxu0
        %v6375 = vadd.f32 0.0, %v6374
        %v6376 = vpop.f32.mrf.mxu0
        %v6377 = vadd.f32 0.0, %v6376
        %6378 = vmatmul.bf16.gmra.mxu0 %v6152
        %v6379 = vpop.f32.mrf.mxu0
        %v6380 = vadd.f32 0.0, %v6379
        %v6381 = vpop.f32.mrf.mxu0
        %v6382 = vadd.f32 0.0, %v6381
        %6383 = vmatmul.bf16.gmra.mxu0 %v6156
        %v6384 = vpop.f32.mrf.mxu0
        %v6385 = vadd.f32 0.0, %v6384
        %v6386 = vpop.f32.mrf.mxu0
        %v6387 = vadd.f32 0.0, %v6386
        %6388 = vmatmul.bf16.gmra.mxu0 %v6160
        %v6389 = vpop.f32.mrf.mxu0
        %v6390 = vadd.f32 0.0, %v6389
        %v6391 = vpop.f32.mrf.mxu0
        %v6392 = vadd.f32 0.0, %v6391
        %6393 = vmatmul.bf16.gmra.mxu0 %v6164
        %v6394 = vpop.f32.mrf.mxu0
        %v6395 = vadd.f32 0.0, %v6394
        %v6396 = vpop.f32.mrf.mxu0
        %v6397 = vadd.f32 0.0, %v6396
        %6398 = vdwg.mxu0
        %6399 = vmatpush.bf16.msra.mxu0 %v6311
        %6400 = vmatpush.bf16.msra.mxu0 %v6309
        %6401 = vmatpush.bf16.msra.mxu0 %v6307
        %6402 = vmatpush.bf16.msra.mxu0 %v6305
        %6403 = vmatpush.bf16.msra.mxu0 %v6303
        %6404 = vmatpush.bf16.msra.mxu0 %v6301
        %6405 = vmatpush.bf16.msra.mxu0 %v6299
        %6406 = vmatpush.bf16.msra.mxu0 %v6297
        %6407 = vmatmul.bf16.gmra.mxu0 %v6134
        %v6408 = vpop.f32.mrf.mxu0
        %v6409 = vadd.f32 %v6355, %v6408
        %v6410 = vpop.f32.mrf.mxu0
        %v6411 = vadd.f32 %v6357, %v6410
        %6412 = vmatmul.bf16.gmra.mxu0 %v6138
        %v6413 = vpop.f32.mrf.mxu0
        %v6414 = vadd.f32 %v6360, %v6413
        %v6415 = vpop.f32.mrf.mxu0
        %v6416 = vadd.f32 %v6362, %v6415
        %6417 = vmatmul.bf16.gmra.mxu0 %v6142
        %v6418 = vpop.f32.mrf.mxu0
        %v6419 = vadd.f32 %v6365, %v6418
        %v6420 = vpop.f32.mrf.mxu0
        %v6421 = vadd.f32 %v6367, %v6420
        %6422 = vmatmul.bf16.gmra.mxu0 %v6146
        %v6423 = vpop.f32.mrf.mxu0
        %v6424 = vadd.f32 %v6370, %v6423
        %v6425 = vpop.f32.mrf.mxu0
        %v6426 = vadd.f32 %v6372, %v6425
        %6427 = vmatmul.bf16.gmra.mxu0 %v6150
        %v6428 = vpop.f32.mrf.mxu0
        %v6429 = vadd.f32 %v6375, %v6428
        %v6430 = vpop.f32.mrf.mxu0
        %v6431 = vadd.f32 %v6377, %v6430
        %6432 = vmatmul.bf16.gmra.mxu0 %v6154
        %v6433 = vpop.f32.mrf.mxu0
        %v6434 = vadd.f32 %v6380, %v6433
        %v6435 = vpop.f32.mrf.mxu0
        %v6436 = vadd.f32 %v6382, %v6435
        %6437 = vmatmul.bf16.gmra.mxu0 %v6158
        %v6438 = vpop.f32.mrf.mxu0
        %v6439 = vadd.f32 %v6385, %v6438
        %v6440 = vpop.f32.mrf.mxu0
        %v6441 = vadd.f32 %v6387, %v6440
        %6442 = vmatmul.bf16.gmra.mxu0 %v6162
        %v6443 = vpop.f32.mrf.mxu0
        %v6444 = vadd.f32 %v6390, %v6443
        %v6445 = vpop.f32.mrf.mxu0
        %v6446 = vadd.f32 %v6392, %v6445
        %6447 = vmatmul.bf16.gmra.mxu0 %v6166
        %v6448 = vpop.f32.mrf.mxu0
        %v6449 = vadd.f32 %v6395, %v6448
        %v6450 = vpop.f32.mrf.mxu0
        %v6451 = vadd.f32 %v6397, %v6450
        %6452 = vdwg.mxu0
        %6453 = vmatpush.bf16.msra.mxu0 %v6296
        %6454 = vmatpush.bf16.msra.mxu0 %v6294
        %6455 = vmatpush.bf16.msra.mxu0 %v6292
        %6456 = vmatpush.bf16.msra.mxu0 %v6290
        %6457 = vmatpush.bf16.msra.mxu0 %v6288
        %6458 = vmatpush.bf16.msra.mxu0 %v6286
        %6459 = vmatpush.bf16.msra.mxu0 %v6284
        %6460 = vmatpush.bf16.msra.mxu0 %v6282
        %6461 = vmatmul.bf16.gmra.mxu0 %v6131
        %v6462 = vpop.f32.mrf.mxu0
        %v6463 = vadd.f32 0.0, %v6462
        %v6464 = vpop.f32.mrf.mxu0
        %v6465 = vadd.f32 0.0, %v6464
        %6466 = vmatmul.bf16.gmra.mxu0 %v6136
        %v6467 = vpop.f32.mrf.mxu0
        %v6468 = vadd.f32 0.0, %v6467
        %v6469 = vpop.f32.mrf.mxu0
        %v6470 = vadd.f32 0.0, %v6469
        %6471 = vmatmul.bf16.gmra.mxu0 %v6140
        %v6472 = vpop.f32.mrf.mxu0
        %v6473 = vadd.f32 0.0, %v6472
        %v6474 = vpop.f32.mrf.mxu0
        %v6475 = vadd.f32 0.0, %v6474
        %6476 = vmatmul.bf16.gmra.mxu0 %v6144
        %v6477 = vpop.f32.mrf.mxu0
        %v6478 = vadd.f32 0.0, %v6477
        %v6479 = vpop.f32.mrf.mxu0
        %v6480 = vadd.f32 0.0, %v6479
        %6481 = vmatmul.bf16.gmra.mxu0 %v6148
        %v6482 = vpop.f32.mrf.mxu0
        %v6483 = vadd.f32 0.0, %v6482
        %v6484 = vpop.f32.mrf.mxu0
        %v6485 = vadd.f32 0.0, %v6484
        %6486 = vmatmul.bf16.gmra.mxu0 %v6152
        %v6487 = vpop.f32.mrf.mxu0
        %v6488 = vadd.f32 0.0, %v6487
        %v6489 = vpop.f32.mrf.mxu0
        %v6490 = vadd.f32 0.0, %v6489
        %6491 = vmatmul.bf16.gmra.mxu0 %v6156
        %v6492 = vpop.f32.mrf.mxu0
        %v6493 = vadd.f32 0.0, %v6492
        %v6494 = vpop.f32.mrf.mxu0
        %v6495 = vadd.f32 0.0, %v6494
        %6496 = vmatmul.bf16.gmra.mxu0 %v6160
        %v6497 = vpop.f32.mrf.mxu0
        %v6498 = vadd.f32 0.0, %v6497
        %v6499 = vpop.f32.mrf.mxu0
        %v6500 = vadd.f32 0.0, %v6499
        %6501 = vmatmul.bf16.gmra.mxu0 %v6164
        %v6502 = vpop.f32.mrf.mxu0
        %v6503 = vadd.f32 0.0, %v6502
        %v6504 = vpop.f32.mrf.mxu0
        %v6505 = vadd.f32 0.0, %v6504
        %6506 = vdwg.mxu0
        %6507 = vmatpush.bf16.msra.mxu0 %v6312
        %6508 = vmatpush.bf16.msra.mxu0 %v6310
        %6509 = vmatpush.bf16.msra.mxu0 %v6308
        %6510 = vmatpush.bf16.msra.mxu0 %v6306
        %6511 = vmatpush.bf16.msra.mxu0 %v6304
        %6512 = vmatpush.bf16.msra.mxu0 %v6302
        %6513 = vmatpush.bf16.msra.mxu0 %v6300
        %6514 = vmatpush.bf16.msra.mxu0 %v6298
        %6515 = vmatmul.bf16.gmra.mxu0 %v6134
        %v6516 = vpop.f32.mrf.mxu0
        %v6517 = vadd.f32 %v6463, %v6516
        %v6518 = vpop.f32.mrf.mxu0
        %v6519 = vadd.f32 %v6465, %v6518
        %6520 = vmatmul.bf16.gmra.mxu0 %v6138
        %v6521 = vpop.f32.mrf.mxu0
        %v6522 = vadd.f32 %v6468, %v6521
        %v6523 = vpop.f32.mrf.mxu0
        %v6524 = vadd.f32 %v6470, %v6523
        %6525 = vmatmul.bf16.gmra.mxu0 %v6142
        %v6526 = vpop.f32.mrf.mxu0
        %v6527 = vadd.f32 %v6473, %v6526
        %v6528 = vpop.f32.mrf.mxu0
        %v6529 = vadd.f32 %v6475, %v6528
        %6530 = vmatmul.bf16.gmra.mxu0 %v6146
        %v6531 = vpop.f32.mrf.mxu0
        %v6532 = vadd.f32 %v6478, %v6531
        %v6533 = vpop.f32.mrf.mxu0
        %v6534 = vadd.f32 %v6480, %v6533
        %6535 = vmatmul.bf16.gmra.mxu0 %v6150
        %v6536 = vpop.f32.mrf.mxu0
        %v6537 = vadd.f32 %v6483, %v6536
        %v6538 = vpop.f32.mrf.mxu0
        %v6539 = vadd.f32 %v6485, %v6538
        %6540 = vmatmul.bf16.gmra.mxu0 %v6154
        %v6541 = vpop.f32.mrf.mxu0
        %v6542 = vadd.f32 %v6488, %v6541
        %v6543 = vpop.f32.mrf.mxu0
        %v6544 = vadd.f32 %v6490, %v6543
        %6545 = vmatmul.bf16.gmra.mxu0 %v6158
        %v6546 = vpop.f32.mrf.mxu0
        %v6547 = vadd.f32 %v6493, %v6546
        %v6548 = vpop.f32.mrf.mxu0
        %v6549 = vadd.f32 %v6495, %v6548
        %6550 = vmatmul.bf16.gmra.mxu0 %v6162
        %v6551 = vpop.f32.mrf.mxu0
        %v6552 = vadd.f32 %v6498, %v6551
        %v6553 = vpop.f32.mrf.mxu0
        %v6554 = vadd.f32 %v6500, %v6553
        %6555 = vmatmul.bf16.gmra.mxu0 %v6166
        %v6556 = vpop.f32.mrf.mxu0
        %v6557 = vadd.f32 %v6503, %v6556
        %v6558 = vpop.f32.mrf.mxu0
        %v6559 = vadd.f32 %v6505, %v6558
        %6560 = vdwg.mxu0
        %v6561 = vadd.f32 %v6031, %v6409
        %v6562 = vadd.f32 %v6032, %v6517
        %v6563 = vadd.f32 %v6033, %v6411
        %v6564 = vadd.f32 %v6034, %v6519
        %v6565 = vadd.f32 %v6035, %v6414
        %v6566 = vadd.f32 %v6036, %v6522
        %v6567 = vadd.f32 %v6037, %v6416
        %v6568 = vadd.f32 %v6038, %v6524
        %v6569 = vadd.f32 %v6039, %v6419
        %v6570 = vadd.f32 %v6040, %v6527
        %v6571 = vadd.f32 %v6041, %v6421
        %v6572 = vadd.f32 %v6042, %v6529
        %v6573 = vadd.f32 %v6043, %v6424
        %v6574 = vadd.f32 %v6044, %v6532
        %v6575 = vadd.f32 %v6045, %v6426
        %v6576 = vadd.f32 %v6046, %v6534
        %v6577 = vadd.f32 %v6047, %v6429
        %v6578 = vadd.f32 %v6048, %v6537
        %v6579 = vadd.f32 %v6049, %v6431
        %v6580 = vadd.f32 %v6050, %v6539
        %v6581 = vadd.f32 %v6051, %v6434
        %v6582 = vadd.f32 %v6052, %v6542
        %v6583 = vadd.f32 %v6053, %v6436
        %v6584 = vadd.f32 %v6054, %v6544
        %v6585 = vadd.f32 %v6055, %v6439
        %v6586 = vadd.f32 %v6056, %v6547
        %v6587 = vadd.f32 %v6057, %v6441
        %v6588 = vadd.f32 %v6058, %v6549
        %v6589 = vadd.f32 %v6059, %v6444
        %v6590 = vadd.f32 %v6060, %v6552
        %v6591 = vadd.f32 %v6061, %v6446
        %v6592 = vadd.f32 %v6062, %v6554
        %v6593 = vadd.f32 %v6063, %v6449
        %v6594 = vadd.f32 %v6064, %v6557
        %v6595 = vadd.f32 %v6065, %v6451
        %v6596 = vadd.f32 %v6066, %v6559
        %v6597 = vld [vmem:[%s711] sm:$0x3]
        %v6599 = vperm.slane %v6597, 0
        %v6600 = vperm.slane %v6597, 1
        %v6603 = vmul.f32 %v6561, %v6599
        %v6604 = vmul.f32 %v6562, %v6600
        %v6605 = vmul.f32 %v6563, %v6599
        %v6606 = vmul.f32 %v6564, %v6600
        %v6607 = vmul.f32 %v6565, %v6599
        %v6608 = vmul.f32 %v6566, %v6600
        %v6609 = vmul.f32 %v6567, %v6599
        %v6610 = vmul.f32 %v6568, %v6600
        %v6611 = vmul.f32 %v6569, %v6599
        %v6612 = vmul.f32 %v6570, %v6600
        %v6613 = vmul.f32 %v6571, %v6599
        %v6614 = vmul.f32 %v6572, %v6600
        %v6615 = vmul.f32 %v6573, %v6599
        %v6616 = vmul.f32 %v6574, %v6600
        %v6617 = vmul.f32 %v6575, %v6599
        %v6618 = vmul.f32 %v6576, %v6600
        %v6619 = vmul.f32 %v6577, %v6599
        %v6620 = vmul.f32 %v6578, %v6600
        %v6621 = vmul.f32 %v6579, %v6599
        %v6622 = vmul.f32 %v6580, %v6600
        %v6623 = vmul.f32 %v6581, %v6599
        %v6624 = vmul.f32 %v6582, %v6600
        %v6625 = vmul.f32 %v6583, %v6599
        %v6626 = vmul.f32 %v6584, %v6600
        %v6627 = vmul.f32 %v6585, %v6599
        %v6628 = vmul.f32 %v6586, %v6600
        %v6629 = vmul.f32 %v6587, %v6599
        %v6630 = vmul.f32 %v6588, %v6600
        %v6631 = vmul.f32 %v6589, %v6599
        %v6632 = vmul.f32 %v6590, %v6600
        %v6633 = vmul.f32 %v6591, %v6599
        %v6634 = vmul.f32 %v6592, %v6600
        %v6635 = vmul.f32 %v6593, %v6599
        %v6636 = vmul.f32 %v6594, %v6600
        %v6637 = vmul.f32 %v6595, %v6599
        %v6638 = vmul.f32 %v6596, %v6600
        %v6639 = vld [vmem:[%s721] sm:$0x3]
        %v6641 = vperm.slane %v6639, 0
        %v6642 = vperm.slane %v6639, 1
        %v6645 = vadd.f32 %v6603, %v6641
        %v6646 = vadd.f32 %v6604, %v6642
        %v6647 = vadd.f32 %v6605, %v6641
        %v6648 = vadd.f32 %v6606, %v6642
        %v6649 = vadd.f32 %v6607, %v6641
        %v6650 = vadd.f32 %v6608, %v6642
        %v6651 = vadd.f32 %v6609, %v6641
        %v6652 = vadd.f32 %v6610, %v6642
        %v6653 = vadd.f32 %v6611, %v6641
        %v6654 = vadd.f32 %v6612, %v6642
        %v6655 = vadd.f32 %v6613, %v6641
        %v6656 = vadd.f32 %v6614, %v6642
        %v6657 = vadd.f32 %v6615, %v6641
        %v6658 = vadd.f32 %v6616, %v6642
        %v6659 = vadd.f32 %v6617, %v6641
        %v6660 = vadd.f32 %v6618, %v6642
        %v6661 = vadd.f32 %v6619, %v6641
        %v6662 = vadd.f32 %v6620, %v6642
        %v6663 = vadd.f32 %v6621, %v6641
        %v6664 = vadd.f32 %v6622, %v6642
        %v6665 = vadd.f32 %v6623, %v6641
        %v6666 = vadd.f32 %v6624, %v6642
        %v6667 = vadd.f32 %v6625, %v6641
        %v6668 = vadd.f32 %v6626, %v6642
        %v6669 = vadd.f32 %v6627, %v6641
        %v6670 = vadd.f32 %v6628, %v6642
        %v6671 = vadd.f32 %v6629, %v6641
        %v6672 = vadd.f32 %v6630, %v6642
        %v6673 = vadd.f32 %v6631, %v6641
        %v6674 = vadd.f32 %v6632, %v6642
        %v6675 = vadd.f32 %v6633, %v6641
        %v6676 = vadd.f32 %v6634, %v6642
        %v6677 = vadd.f32 %v6635, %v6641
        %v6678 = vadd.f32 %v6636, %v6642
        %v6679 = vadd.f32 %v6637, %v6641
        %v6680 = vadd.f32 %v6638, %v6642
        %v6681 = vld [vmem:[#allocation3] sm:$0xff]
        %v6682 = vld [vmem:[#allocation3 + $0x8] sm:$0xff]
        %v6683 = vld [vmem:[#allocation3 + $0x10] sm:$0xff]
        %v6684 = vld [vmem:[#allocation3 + $0x18] sm:$0xff]
        %v6685 = vld [vmem:[#allocation3 + $0x20] sm:$0xff]
        %v6686 = vld [vmem:[#allocation3 + $0x28] sm:$0xff]
        %v6687 = vld [vmem:[#allocation3 + $0x30] sm:$0xff]
        %v6688 = vld [vmem:[#allocation3 + $0x38] sm:$0xff]
        %v6689 = vld [vmem:[#allocation3 + $0x40] sm:$0xff]
        %v6690 = vld [vmem:[#allocation3 + $0x48] sm:$0xff]
        %v6691 = vld [vmem:[#allocation3 + $0x50] sm:$0xff]
        %v6692 = vld [vmem:[#allocation3 + $0x58] sm:$0xff]
        %v6693 = vld [vmem:[#allocation3 + $0x60] sm:$0xff]
        %v6694 = vld [vmem:[#allocation3 + $0x68] sm:$0xff]
        %v6695 = vld [vmem:[#allocation3 + $0x70] sm:$0xff]
        %v6696 = vld [vmem:[#allocation3 + $0x78] sm:$0xff]
        %v6697 = vld [vmem:[#allocation3 + $0x80] sm:$0xff]
        %v6698 = vld [vmem:[#allocation3 + $0x88] sm:$0xff]
        %v6699 = vld [vmem:[#allocation3 + $0x90] sm:$0xff]
        %v6700 = vld [vmem:[#allocation3 + $0x98] sm:$0xff]
        %v6701 = vld [vmem:[#allocation3 + $0xa0] sm:$0xff]
        %v6702 = vld [vmem:[#allocation3 + $0xa8] sm:$0xff]
        %v6703 = vld [vmem:[#allocation3 + $0xb0] sm:$0xff]
        %v6704 = vld [vmem:[#allocation3 + $0xb8] sm:$0xff]
        %v6705 = vld [vmem:[#allocation3 + $0xc0] sm:$0xff]
        %v6706 = vld [vmem:[#allocation3 + $0xc8] sm:$0xff]
        %v6707 = vld [vmem:[#allocation3 + $0xd0] sm:$0xff]
        %v6708 = vld [vmem:[#allocation3 + $0xd8] sm:$0xff]
        %v6709 = vld [vmem:[#allocation3 + $0xe0] sm:$0xff]
        %v6710 = vld [vmem:[#allocation3 + $0xe8] sm:$0xff]
        %v6711 = vld [vmem:[#allocation3 + $0xf0] sm:$0xff]
        %v6712 = vld [vmem:[#allocation3 + $0xf8] sm:$0xff]
        %v6713 = vld [vmem:[#allocation3 + $0x100] sm:$0xff]
        %v6714 = vld [vmem:[#allocation3 + $0x108] sm:$0xff]
        %v6715 = vld [vmem:[#allocation3 + $0x110] sm:$0xff]
        %v6716 = vld [vmem:[#allocation3 + $0x118] sm:$0xff]
        %s6717 = scvt.s32.f32 %s1392
        %v6718 = vstv %s6717
        %v6719 = vmul.f32 %v6681, %v6718
        %v6720 = vmul.f32 %v6682, %v6718
        %v6721 = vmul.f32 %v6683, %v6718
        %v6722 = vmul.f32 %v6684, %v6718
        %v6723 = vmul.f32 %v6685, %v6718
        %v6724 = vmul.f32 %v6686, %v6718
        %v6725 = vmul.f32 %v6687, %v6718
        %v6726 = vmul.f32 %v6688, %v6718
        %v6727 = vmul.f32 %v6689, %v6718
        %v6728 = vmul.f32 %v6690, %v6718
        %v6729 = vmul.f32 %v6691, %v6718
        %v6730 = vmul.f32 %v6692, %v6718
        %v6731 = vmul.f32 %v6693, %v6718
        %v6732 = vmul.f32 %v6694, %v6718
        %v6733 = vmul.f32 %v6695, %v6718
        %v6734 = vmul.f32 %v6696, %v6718
        %v6735 = vmul.f32 %v6697, %v6718
        %v6736 = vmul.f32 %v6698, %v6718
        %v6737 = vmul.f32 %v6699, %v6718
        %v6738 = vmul.f32 %v6700, %v6718
        %v6739 = vmul.f32 %v6701, %v6718
        %v6740 = vmul.f32 %v6702, %v6718
        %v6741 = vmul.f32 %v6703, %v6718
        %v6742 = vmul.f32 %v6704, %v6718
        %v6743 = vmul.f32 %v6705, %v6718
        %v6744 = vmul.f32 %v6706, %v6718
        %v6745 = vmul.f32 %v6707, %v6718
        %v6746 = vmul.f32 %v6708, %v6718
        %v6747 = vmul.f32 %v6709, %v6718
        %v6748 = vmul.f32 %v6710, %v6718
        %v6749 = vmul.f32 %v6711, %v6718
        %v6750 = vmul.f32 %v6712, %v6718
        %v6751 = vmul.f32 %v6713, %v6718
        %v6752 = vmul.f32 %v6714, %v6718
        %v6753 = vmul.f32 %v6715, %v6718
        %v6754 = vmul.f32 %v6716, %v6718
        %v6755 = vadd.f32 %v6645, %v6719
        %v6756 = vadd.f32 %v6646, %v6720
        %v6757 = vadd.f32 %v6647, %v6721
        %v6758 = vadd.f32 %v6648, %v6722
        %v6759 = vadd.f32 %v6649, %v6723
        %v6760 = vadd.f32 %v6650, %v6724
        %v6761 = vadd.f32 %v6651, %v6725
        %v6762 = vadd.f32 %v6652, %v6726
        %v6763 = vadd.f32 %v6653, %v6727
        %v6764 = vadd.f32 %v6654, %v6728
        %v6765 = vadd.f32 %v6655, %v6729
        %v6766 = vadd.f32 %v6656, %v6730
        %v6767 = vadd.f32 %v6657, %v6731
        %v6768 = vadd.f32 %v6658, %v6732
        %v6769 = vadd.f32 %v6659, %v6733
        %v6770 = vadd.f32 %v6660, %v6734
        %v6771 = vadd.f32 %v6661, %v6735
        %v6772 = vadd.f32 %v6662, %v6736
        %v6773 = vadd.f32 %v6663, %v6737
        %v6774 = vadd.f32 %v6664, %v6738
        %v6775 = vadd.f32 %v6665, %v6739
        %v6776 = vadd.f32 %v6666, %v6740
        %v6777 = vadd.f32 %v6667, %v6741
        %v6778 = vadd.f32 %v6668, %v6742
        %v6779 = vadd.f32 %v6669, %v6743
        %v6780 = vadd.f32 %v6670, %v6744
        %v6781 = vadd.f32 %v6671, %v6745
        %v6782 = vadd.f32 %v6672, %v6746
        %v6783 = vadd.f32 %v6673, %v6747
        %v6784 = vadd.f32 %v6674, %v6748
        %v6785 = vadd.f32 %v6675, %v6749
        %v6786 = vadd.f32 %v6676, %v6750
        %v6787 = vadd.f32 %v6677, %v6751
        %v6788 = vadd.f32 %v6678, %v6752
        %v6789 = vadd.f32 %v6679, %v6753
        %v6790 = vadd.f32 %v6680, %v6754
        %v6791 = vmax.f32 %v6755, 0.0
        %v6792 = vmax.f32 %v6756, 0.0
        %v6793 = vmax.f32 %v6757, 0.0
        %v6794 = vmax.f32 %v6758, 0.0
        %v6795 = vmax.f32 %v6759, 0.0
        %v6796 = vmax.f32 %v6760, 0.0
        %v6797 = vmax.f32 %v6761, 0.0
        %v6798 = vmax.f32 %v6762, 0.0
        %v6799 = vmax.f32 %v6763, 0.0
        %v6800 = vmax.f32 %v6764, 0.0
        %v6801 = vmax.f32 %v6765, 0.0
        %v6802 = vmax.f32 %v6766, 0.0
        %v6803 = vmax.f32 %v6767, 0.0
        %v6804 = vmax.f32 %v6768, 0.0
        %v6805 = vmax.f32 %v6769, 0.0
        %v6806 = vmax.f32 %v6770, 0.0
        %v6807 = vmax.f32 %v6771, 0.0
        %v6808 = vmax.f32 %v6772, 0.0
        %v6809 = vmax.f32 %v6773, 0.0
        %v6810 = vmax.f32 %v6774, 0.0
        %v6811 = vmax.f32 %v6775, 0.0
        %v6812 = vmax.f32 %v6776, 0.0
        %v6813 = vmax.f32 %v6777, 0.0
        %v6814 = vmax.f32 %v6778, 0.0
        %v6815 = vmax.f32 %v6779, 0.0
        %v6816 = vmax.f32 %v6780, 0.0
        %v6817 = vmax.f32 %v6781, 0.0
        %v6818 = vmax.f32 %v6782, 0.0
        %v6819 = vmax.f32 %v6783, 0.0
        %v6820 = vmax.f32 %v6784, 0.0
        %v6821 = vmax.f32 %v6785, 0.0
        %v6822 = vmax.f32 %v6786, 0.0
        %v6823 = vmax.f32 %v6787, 0.0
        %v6824 = vmax.f32 %v6788, 0.0
        %v6825 = vmax.f32 %v6789, 0.0
        %v6826 = vmax.f32 %v6790, 0.0
        %6828 = vset.pattern.permute.xlu0 0
        %6829 = vperm.xlu0 %6828, %v809
        %v6830 = vpop.permute.xlu0 %6829
        %6833 = vset.pattern.permute.xlu0 0
        %6834 = vperm.xlu0 %6833, %v810
        %v6835 = vpop.permute.xlu0 %6834
        %6838 = vset.pattern.permute.xlu0 0
        %6839 = vperm.xlu0 %6838, %v811
        %v6840 = vpop.permute.xlu0 %6839
        %6843 = vset.pattern.permute.xlu0 0
        %6844 = vperm.xlu0 %6843, %v812
        %v6845 = vpop.permute.xlu0 %6844
        %6848 = vset.pattern.permute.xlu0 0
        %6849 = vperm.xlu0 %6848, %v813
        %v6850 = vpop.permute.xlu0 %6849
        %6853 = vset.pattern.permute.xlu0 0
        %6854 = vperm.xlu0 %6853, %v814
        %v6855 = vpop.permute.xlu0 %6854
        %6858 = vset.pattern.permute.xlu0 0
        %6859 = vperm.xlu0 %6858, %v815
        %v6860 = vpop.permute.xlu0 %6859
        %6863 = vset.pattern.permute.xlu0 0
        %6864 = vperm.xlu0 %6863, %v816
        %v6865 = vpop.permute.xlu0 %6864
        %6868 = vset.pattern.permute.xlu0 0
        %6869 = vperm.xlu0 %6868, %v817
        %v6870 = vpop.permute.xlu0 %6869
        %6873 = vset.pattern.permute.xlu0 0
        %6874 = vperm.xlu0 %6873, %v818
        %v6875 = vpop.permute.xlu0 %6874
        %6878 = vset.pattern.permute.xlu0 0
        %6879 = vperm.xlu0 %6878, %v819
        %v6880 = vpop.permute.xlu0 %6879
        %6883 = vset.pattern.permute.xlu0 0
        %6884 = vperm.xlu0 %6883, %v820
        %v6885 = vpop.permute.xlu0 %6884
        %6888 = vset.pattern.permute.xlu0 0
        %6889 = vperm.xlu0 %6888, %v821
        %v6890 = vpop.permute.xlu0 %6889
        %6893 = vset.pattern.permute.xlu0 0
        %6894 = vperm.xlu0 %6893, %v822
        %v6895 = vpop.permute.xlu0 %6894
        %6898 = vset.pattern.permute.xlu0 0
        %6899 = vperm.xlu0 %6898, %v823
        %v6900 = vpop.permute.xlu0 %6899
        %6903 = vset.pattern.permute.xlu0 0
        %6904 = vperm.xlu0 %6903, %v824
        %v6905 = vpop.permute.xlu0 %6904
        %6908 = vset.pattern.permute.xlu0 0
        %6909 = vperm.xlu0 %6908, %v825
        %v6910 = vpop.permute.xlu0 %6909
        %6913 = vset.pattern.permute.xlu0 0
        %6914 = vperm.xlu0 %6913, %v826
        %v6915 = vpop.permute.xlu0 %6914
        %v6917 = vmul.f32 %v6791, %v6830
        %v6918 = vmul.f32 %v6792, %v6830
        %v6919 = vmul.f32 %v6793, %v6835
        %v6920 = vmul.f32 %v6794, %v6835
        %v6921 = vmul.f32 %v6795, %v6840
        %v6922 = vmul.f32 %v6796, %v6840
        %v6923 = vmul.f32 %v6797, %v6845
        %v6924 = vmul.f32 %v6798, %v6845
        %v6925 = vmul.f32 %v6799, %v6850
        %v6926 = vmul.f32 %v6800, %v6850
        %v6927 = vmul.f32 %v6801, %v6855
        %v6928 = vmul.f32 %v6802, %v6855
        %v6929 = vmul.f32 %v6803, %v6860
        %v6930 = vmul.f32 %v6804, %v6860
        %v6931 = vmul.f32 %v6805, %v6865
        %v6932 = vmul.f32 %v6806, %v6865
        %v6933 = vmul.f32 %v6807, %v6870
        %v6934 = vmul.f32 %v6808, %v6870
        %v6935 = vmul.f32 %v6809, %v6875
        %v6936 = vmul.f32 %v6810, %v6875
        %v6937 = vmul.f32 %v6811, %v6880
        %v6938 = vmul.f32 %v6812, %v6880
        %v6939 = vmul.f32 %v6813, %v6885
        %v6940 = vmul.f32 %v6814, %v6885
        %v6941 = vmul.f32 %v6815, %v6890
        %v6942 = vmul.f32 %v6816, %v6890
        %v6943 = vmul.f32 %v6817, %v6895
        %v6944 = vmul.f32 %v6818, %v6895
        %v6945 = vmul.f32 %v6819, %v6900
        %v6946 = vmul.f32 %v6820, %v6900
        %v6947 = vmul.f32 %v6821, %v6905
        %v6948 = vmul.f32 %v6822, %v6905
        %v6949 = vmul.f32 %v6823, %v6910
        %v6950 = vmul.f32 %v6824, %v6910
        %v6951 = vmul.f32 %v6825, %v6915
        %v6952 = vmul.f32 %v6826, %v6915
        %6953 = vst [vmem:[#allocation2 + $0x20] sm:$0xff] %v6917
        %6954 = vst [vmem:[#allocation2 + $0x28] sm:$0xff] %v6918
        %6955 = vst [vmem:[#allocation2 + $0x30] sm:$0xff] %v6919
        %6956 = vst [vmem:[#allocation2 + $0x38] sm:$0xff] %v6920
        %6957 = vst [vmem:[#allocation2 + $0x40] sm:$0xff] %v6921
        %6958 = vst [vmem:[#allocation2 + $0x48] sm:$0xff] %v6922
        %6959 = vst [vmem:[#allocation2 + $0x50] sm:$0xff] %v6923
        %6960 = vst [vmem:[#allocation2 + $0x58] sm:$0xff] %v6924
        %6961 = vst [vmem:[#allocation2 + $0x60] sm:$0xff] %v6925
        %6962 = vst [vmem:[#allocation2 + $0x68] sm:$0xff] %v6926
        %6963 = vst [vmem:[#allocation2 + $0x70] sm:$0xff] %v6927
        %6964 = vst [vmem:[#allocation2 + $0x78] sm:$0xff] %v6928
        %6965 = vst [vmem:[#allocation2 + $0x80] sm:$0xff] %v6929
        %6966 = vst [vmem:[#allocation2 + $0x88] sm:$0xff] %v6930
        %6967 = vst [vmem:[#allocation2 + $0x90] sm:$0xff] %v6931
        %6968 = vst [vmem:[#allocation2 + $0x98] sm:$0xff] %v6932
        %6969 = vst [vmem:[#allocation2 + $0xa0] sm:$0xff] %v6933
        %6970 = vst [vmem:[#allocation2 + $0xa8] sm:$0xff] %v6934
        %6971 = vst [vmem:[#allocation2 + $0xb0] sm:$0xff] %v6935
        %6972 = vst [vmem:[#allocation2 + $0xb8] sm:$0xff] %v6936
        %6973 = vst [vmem:[#allocation2 + $0xc0] sm:$0xff] %v6937
        %6974 = vst [vmem:[#allocation2 + $0xc8] sm:$0xff] %v6938
        %6975 = vst [vmem:[#allocation2 + $0xd0] sm:$0xff] %v6939
        %6976 = vst [vmem:[#allocation2 + $0xd8] sm:$0xff] %v6940
        %6977 = vst [vmem:[#allocation2 + $0xe0] sm:$0xff] %v6941
        %6978 = vst [vmem:[#allocation2 + $0xe8] sm:$0xff] %v6942
        %6979 = vst [vmem:[#allocation2 + $0xf0] sm:$0xff] %v6943
        %6980 = vst [vmem:[#allocation2 + $0xf8] sm:$0xff] %v6944
        %6981 = vst [vmem:[#allocation2 + $0x100] sm:$0xff] %v6945
        %6982 = vst [vmem:[#allocation2 + $0x108] sm:$0xff] %v6946
        %6983 = vst [vmem:[#allocation2 + $0x110] sm:$0xff] %v6947
        %6984 = vst [vmem:[#allocation2 + $0x118] sm:$0xff] %v6948
        %6985 = vst [vmem:[#allocation2 + $0x120] sm:$0xff] %v6949
        %6986 = vst [vmem:[#allocation2 + $0x128] sm:$0xff] %v6950
        %6987 = vst [vmem:[#allocation2 + $0x130] sm:$0xff] %v6951
        %6988 = vst [vmem:[#allocation2 + $0x138] sm:$0xff] %v6952
        %p6989 = scmp.eq.s32.totalorder %s39, 7
        // Predicated region
        $region145: #{actor_critic_forward.1} parent=95 // pred_check
          %p6990 = pneg %p6989
        $region146: #{actor_critic_forward.1} parent=95 // pred_check_branch
          %6992 = sbr.rel (%p6990) target = $region148
        $region147: #{actor_critic_forward.1} parent=95 // pred_region
          %v6993 = vld [vmem:[#allocation2 + $0x20] sm:$0xff]
          %v6994 = vld [vmem:[#allocation2 + $0x28] sm:$0xff]
          %v6995 = vld [vmem:[#allocation2 + $0x30] sm:$0xff]
          %v6996 = vld [vmem:[#allocation2 + $0x38] sm:$0xff]
          %v6997 = vld [vmem:[#allocation2 + $0x40] sm:$0xff]
          %v6998 = vld [vmem:[#allocation2 + $0x48] sm:$0xff]
          %v6999 = vld [vmem:[#allocation2 + $0x50] sm:$0xff]
          %v7000 = vld [vmem:[#allocation2 + $0x58] sm:$0xff]
          %v7001 = vld [vmem:[#allocation2 + $0x60] sm:$0xff]
          %v7002 = vld [vmem:[#allocation2 + $0x68] sm:$0xff]
          %v7003 = vld [vmem:[#allocation2 + $0x70] sm:$0xff]
          %v7004 = vld [vmem:[#allocation2 + $0x78] sm:$0xff]
          %v7005 = vld [vmem:[#allocation2 + $0x80] sm:$0xff]
          %v7006 = vld [vmem:[#allocation2 + $0x88] sm:$0xff]
          %v7007 = vld [vmem:[#allocation2 + $0x90] sm:$0xff]
          %v7008 = vld [vmem:[#allocation2 + $0x98] sm:$0xff]
          %v7009 = vld [vmem:[#allocation2 + $0xa0] sm:$0xff]
          %v7010 = vld [vmem:[#allocation2 + $0xa8] sm:$0xff]
          %v7011 = vld [vmem:[#allocation2 + $0xb0] sm:$0xff]
          %v7012 = vld [vmem:[#allocation2 + $0xb8] sm:$0xff]
          %v7013 = vld [vmem:[#allocation2 + $0xc0] sm:$0xff]
          %v7014 = vld [vmem:[#allocation2 + $0xc8] sm:$0xff]
          %v7015 = vld [vmem:[#allocation2 + $0xd0] sm:$0xff]
          %v7016 = vld [vmem:[#allocation2 + $0xd8] sm:$0xff]
          %v7017 = vld [vmem:[#allocation2 + $0xe0] sm:$0xff]
          %v7018 = vld [vmem:[#allocation2 + $0xe8] sm:$0xff]
          %v7019 = vld [vmem:[#allocation2 + $0xf0] sm:$0xff]
          %v7020 = vld [vmem:[#allocation2 + $0xf8] sm:$0xff]
          %v7021 = vld [vmem:[#allocation2 + $0x100] sm:$0xff]
          %v7022 = vld [vmem:[#allocation2 + $0x108] sm:$0xff]
          %v7023 = vld [vmem:[#allocation2 + $0x110] sm:$0xff]
          %v7024 = vld [vmem:[#allocation2 + $0x118] sm:$0xff]
          %v7025 = vld [vmem:[#allocation2 + $0x120] sm:$0xff]
          %v7026 = vld [vmem:[#allocation2 + $0x128] sm:$0xff]
          %v7027 = vld [vmem:[#allocation2 + $0x130] sm:$0xff]
          %v7028 = vld [vmem:[#allocation2 + $0x138] sm:$0xff]
          %v7029 = vpack.c.bf16 %v6995, %v6993
          %v7030 = vpack.c.bf16 %v6996, %v6994
          %v7031 = vpack.c.bf16 %v6999, %v6997
          %v7032 = vpack.c.bf16 %v7000, %v6998
          %v7033 = vpack.c.bf16 %v7003, %v7001
          %v7034 = vpack.c.bf16 %v7004, %v7002
          %v7035 = vpack.c.bf16 %v7007, %v7005
          %v7036 = vpack.c.bf16 %v7008, %v7006
          %v7037 = vpack.c.bf16 %v7011, %v7009
          %v7038 = vpack.c.bf16 %v7012, %v7010
          %v7039 = vpack.c.bf16 %v7015, %v7013
          %v7040 = vpack.c.bf16 %v7016, %v7014
          %v7041 = vpack.c.bf16 %v7019, %v7017
          %v7042 = vpack.c.bf16 %v7020, %v7018
          %v7043 = vpack.c.bf16 %v7023, %v7021
          %v7044 = vpack.c.bf16 %v7024, %v7022
          %v7045 = vpack.c.bf16 %v7027, %v7025
          %v7046 = vpack.c.bf16 %v7028, %v7026
          %v7047 = vld [vmem:[%s7] sm:$0xf]
          %v7048 = vld [vmem:[%s7 + $0x4] sm:$0xf]
          %v7049 = vld [vmem:[%s7 + $0x8] sm:$0xf]
          %v7050 = vld [vmem:[%s7 + $0xc] sm:$0xf]
          %v7051 = vld [vmem:[%s7 + $0x10] sm:$0xf]
          %v7052 = vld [vmem:[%s7 + $0x14] sm:$0xf]
          %v7053 = vld [vmem:[%s7 + $0x18] sm:$0xf]
          %v7054 = vld [vmem:[%s7 + $0x1c] sm:$0xf]
          %v7055 = vld [vmem:[%s7 + $0x20] sm:$0xf]
          %v7056 = vld [vmem:[%s7 + $0x24] sm:$0xf]
          %v7057 = vld [vmem:[%s7 + $0x28] sm:$0xf]
          %v7058 = vld [vmem:[%s7 + $0x2c] sm:$0xf]
          %v7059 = vld [vmem:[%s7 + $0x30] sm:$0xf]
          %v7060 = vld [vmem:[%s7 + $0x34] sm:$0xf]
          %v7061 = vld [vmem:[%s7 + $0x38] sm:$0xf]
          %v7062 = vld [vmem:[%s7 + $0x3c] sm:$0xf]
          %v7063 = vld [vmem:[%s7 + $0x40] sm:$0xf]
          %v7064 = vld [vmem:[%s7 + $0x44] sm:$0xf]
          %v7065 = vld [vmem:[%s7 + $0x48] sm:$0xf]
          %v7066 = vld [vmem:[%s7 + $0x4c] sm:$0xf]
          %v7067 = vld [vmem:[%s7 + $0x50] sm:$0xf]
          %v7068 = vld [vmem:[%s7 + $0x54] sm:$0xf]
          %v7069 = vld [vmem:[%s7 + $0x58] sm:$0xf]
          %v7070 = vld [vmem:[%s7 + $0x5c] sm:$0xf]
          %v7071 = vld [vmem:[%s7 + $0x60] sm:$0xf]
          %v7072 = vld [vmem:[%s7 + $0x64] sm:$0xf]
          %v7073 = vld [vmem:[%s7 + $0x68] sm:$0xf]
          %v7074 = vld [vmem:[%s7 + $0x6c] sm:$0xf]
          %v7075 = vld [vmem:[%s7 + $0x70] sm:$0xf]
          %v7076 = vld [vmem:[%s7 + $0x74] sm:$0xf]
          %v7077 = vld [vmem:[%s7 + $0x78] sm:$0xf]
          %v7078 = vld [vmem:[%s7 + $0x7c] sm:$0xf]
          %v7111 = vunpack.c.l.b16 %v7047
          %v7112 = vunpack.c.l.b16 %v7048
          %v7113 = vunpack.c.l.b16 %v7049
          %v7114 = vunpack.c.l.b16 %v7050
          %v7115 = vunpack.c.l.b16 %v7051
          %v7116 = vunpack.c.l.b16 %v7052
          %v7117 = vunpack.c.l.b16 %v7053
          %v7118 = vunpack.c.l.b16 %v7054
          %v7119 = vunpack.c.l.b16 %v7055
          %v7120 = vunpack.c.l.b16 %v7056
          %v7121 = vunpack.c.l.b16 %v7057
          %v7122 = vunpack.c.l.b16 %v7058
          %v7123 = vunpack.c.l.b16 %v7059
          %v7124 = vunpack.c.l.b16 %v7060
          %v7125 = vunpack.c.l.b16 %v7061
          %v7126 = vunpack.c.l.b16 %v7062
          %v7127 = vunpack.c.l.b16 %v7063
          %v7128 = vunpack.c.l.b16 %v7064
          %v7129 = vunpack.c.l.b16 %v7065
          %v7130 = vunpack.c.l.b16 %v7066
          %v7131 = vunpack.c.l.b16 %v7067
          %v7132 = vunpack.c.l.b16 %v7068
          %v7133 = vunpack.c.l.b16 %v7069
          %v7134 = vunpack.c.l.b16 %v7070
          %v7135 = vunpack.c.l.b16 %v7071
          %v7136 = vunpack.c.l.b16 %v7072
          %v7137 = vunpack.c.l.b16 %v7073
          %v7138 = vunpack.c.l.b16 %v7074
          %v7139 = vunpack.c.l.b16 %v7075
          %v7140 = vunpack.c.l.b16 %v7076
          %v7141 = vunpack.c.l.b16 %v7077
          %v7142 = vunpack.c.l.b16 %v7078
          %v7143 = vpack.c.b16 %v7112, %v7111
          %v7144 = vpack.c.b16 %v7114, %v7113
          %v7145 = vpack.c.b16 %v7116, %v7115
          %v7146 = vpack.c.b16 %v7118, %v7117
          %v7147 = vpack.c.b16 %v7120, %v7119
          %v7148 = vpack.c.b16 %v7122, %v7121
          %v7149 = vpack.c.b16 %v7124, %v7123
          %v7150 = vpack.c.b16 %v7126, %v7125
          %v7151 = vpack.c.b16 %v7128, %v7127
          %v7152 = vpack.c.b16 %v7130, %v7129
          %v7153 = vpack.c.b16 %v7132, %v7131
          %v7154 = vpack.c.b16 %v7134, %v7133
          %v7155 = vpack.c.b16 %v7136, %v7135
          %v7156 = vpack.c.b16 %v7138, %v7137
          %v7157 = vpack.c.b16 %v7140, %v7139
          %v7158 = vpack.c.b16 %v7142, %v7141
          %7175 = vmatpush.bf16.msra.mxu0 %v7150
          %7176 = vmatpush.bf16.msra.mxu0 %v7149
          %7177 = vmatpush.bf16.msra.mxu0 %v7148
          %7178 = vmatpush.bf16.msra.mxu0 %v7147
          %7179 = vmatpush.bf16.msra.mxu0 %v7146
          %7180 = vmatpush.bf16.msra.mxu0 %v7145
          %7181 = vmatpush.bf16.msra.mxu0 %v7144
          %7182 = vmatpush.bf16.msra.mxu0 %v7143
          %7183 = vmatmul.bf16.gmra.mxu0 %v7029
          %v7184 = vpop.f32.mrf.mxu0
          %v7185 = vadd.f32 0.0, %v7184
          %v7186 = vpop.f32.mrf.mxu0
          %v7187 = vadd.f32 0.0, %v7186
          %7188 = vmatmul.bf16.gmra.mxu0 %v7031
          %v7189 = vpop.f32.mrf.mxu0
          %v7190 = vadd.f32 0.0, %v7189
          %v7191 = vpop.f32.mrf.mxu0
          %v7192 = vadd.f32 0.0, %v7191
          %7193 = vmatmul.bf16.gmra.mxu0 %v7033
          %v7194 = vpop.f32.mrf.mxu0
          %v7195 = vadd.f32 0.0, %v7194
          %v7196 = vpop.f32.mrf.mxu0
          %v7197 = vadd.f32 0.0, %v7196
          %7198 = vmatmul.bf16.gmra.mxu0 %v7035
          %v7199 = vpop.f32.mrf.mxu0
          %v7200 = vadd.f32 0.0, %v7199
          %v7201 = vpop.f32.mrf.mxu0
          %v7202 = vadd.f32 0.0, %v7201
          %7203 = vmatmul.bf16.gmra.mxu0 %v7037
          %v7204 = vpop.f32.mrf.mxu0
          %v7205 = vadd.f32 0.0, %v7204
          %v7206 = vpop.f32.mrf.mxu0
          %v7207 = vadd.f32 0.0, %v7206
          %7208 = vmatmul.bf16.gmra.mxu0 %v7039
          %v7209 = vpop.f32.mrf.mxu0
          %v7210 = vadd.f32 0.0, %v7209
          %v7211 = vpop.f32.mrf.mxu0
          %v7212 = vadd.f32 0.0, %v7211
          %7213 = vmatmul.bf16.gmra.mxu0 %v7041
          %v7214 = vpop.f32.mrf.mxu0
          %v7215 = vadd.f32 0.0, %v7214
          %v7216 = vpop.f32.mrf.mxu0
          %v7217 = vadd.f32 0.0, %v7216
          %7218 = vmatmul.bf16.gmra.mxu0 %v7043
          %v7219 = vpop.f32.mrf.mxu0
          %v7220 = vadd.f32 0.0, %v7219
          %v7221 = vpop.f32.mrf.mxu0
          %v7222 = vadd.f32 0.0, %v7221
          %7223 = vmatmul.bf16.gmra.mxu0 %v7045
          %v7224 = vpop.f32.mrf.mxu0
          %v7225 = vadd.f32 0.0, %v7224
          %v7226 = vpop.f32.mrf.mxu0
          %v7227 = vadd.f32 0.0, %v7226
          %7228 = vdwg.mxu0
          %7229 = vmatpush.bf16.msra.mxu0 %v7158
          %7230 = vmatpush.bf16.msra.mxu0 %v7157
          %7231 = vmatpush.bf16.msra.mxu0 %v7156
          %7232 = vmatpush.bf16.msra.mxu0 %v7155
          %7233 = vmatpush.bf16.msra.mxu0 %v7154
          %7234 = vmatpush.bf16.msra.mxu0 %v7153
          %7235 = vmatpush.bf16.msra.mxu0 %v7152
          %7236 = vmatpush.bf16.msra.mxu0 %v7151
          %7237 = vmatmul.bf16.gmra.mxu0 %v7030
          %v7238 = vpop.f32.mrf.mxu0
          %v7239 = vadd.f32 %v7185, %v7238
          %v7240 = vpop.f32.mrf.mxu0
          %v7241 = vadd.f32 %v7187, %v7240
          %7242 = vmatmul.bf16.gmra.mxu0 %v7032
          %v7243 = vpop.f32.mrf.mxu0
          %v7244 = vadd.f32 %v7190, %v7243
          %v7245 = vpop.f32.mrf.mxu0
          %v7246 = vadd.f32 %v7192, %v7245
          %7247 = vmatmul.bf16.gmra.mxu0 %v7034
          %v7248 = vpop.f32.mrf.mxu0
          %v7249 = vadd.f32 %v7195, %v7248
          %v7250 = vpop.f32.mrf.mxu0
          %v7251 = vadd.f32 %v7197, %v7250
          %7252 = vmatmul.bf16.gmra.mxu0 %v7036
          %v7253 = vpop.f32.mrf.mxu0
          %v7254 = vadd.f32 %v7200, %v7253
          %v7255 = vpop.f32.mrf.mxu0
          %v7256 = vadd.f32 %v7202, %v7255
          %7257 = vmatmul.bf16.gmra.mxu0 %v7038
          %v7258 = vpop.f32.mrf.mxu0
          %v7259 = vadd.f32 %v7205, %v7258
          %v7260 = vpop.f32.mrf.mxu0
          %v7261 = vadd.f32 %v7207, %v7260
          %7262 = vmatmul.bf16.gmra.mxu0 %v7040
          %v7263 = vpop.f32.mrf.mxu0
          %v7264 = vadd.f32 %v7210, %v7263
          %v7265 = vpop.f32.mrf.mxu0
          %v7266 = vadd.f32 %v7212, %v7265
          %7267 = vmatmul.bf16.gmra.mxu0 %v7042
          %v7268 = vpop.f32.mrf.mxu0
          %v7269 = vadd.f32 %v7215, %v7268
          %v7270 = vpop.f32.mrf.mxu0
          %v7271 = vadd.f32 %v7217, %v7270
          %7272 = vmatmul.bf16.gmra.mxu0 %v7044
          %v7273 = vpop.f32.mrf.mxu0
          %v7274 = vadd.f32 %v7220, %v7273
          %v7275 = vpop.f32.mrf.mxu0
          %v7276 = vadd.f32 %v7222, %v7275
          %7277 = vmatmul.bf16.gmra.mxu0 %v7046
          %v7278 = vpop.f32.mrf.mxu0
          %v7279 = vadd.f32 %v7225, %v7278
          %v7280 = vpop.f32.mrf.mxu0
          %v7281 = vadd.f32 %v7227, %v7280
          %7282 = vdwg.mxu0
          %v7283 = vld [vmem:[#allocation13] sm:$0x1]
          %v7285 = vperm.slane %v7283, 0
          %v7287 = vmul.f32 %v7239, %v7285
          %v7288 = vmul.f32 %v7241, %v7285
          %v7289 = vmul.f32 %v7244, %v7285
          %v7290 = vmul.f32 %v7246, %v7285
          %v7291 = vmul.f32 %v7249, %v7285
          %v7292 = vmul.f32 %v7251, %v7285
          %v7293 = vmul.f32 %v7254, %v7285
          %v7294 = vmul.f32 %v7256, %v7285
          %v7295 = vmul.f32 %v7259, %v7285
          %v7296 = vmul.f32 %v7261, %v7285
          %v7297 = vmul.f32 %v7264, %v7285
          %v7298 = vmul.f32 %v7266, %v7285
          %v7299 = vmul.f32 %v7269, %v7285
          %v7300 = vmul.f32 %v7271, %v7285
          %v7301 = vmul.f32 %v7274, %v7285
          %v7302 = vmul.f32 %v7276, %v7285
          %v7303 = vmul.f32 %v7279, %v7285
          %v7304 = vmul.f32 %v7281, %v7285
          %v7305 = vld [vmem:[#allocation14] sm:$0x1]
          %v7307 = vperm.slane %v7305, 0
          %v7309 = vadd.f32 %v7287, %v7307
          %v7310 = vadd.f32 %v7288, %v7307
          %v7311 = vadd.f32 %v7289, %v7307
          %v7312 = vadd.f32 %v7290, %v7307
          %v7313 = vadd.f32 %v7291, %v7307
          %v7314 = vadd.f32 %v7292, %v7307
          %v7315 = vadd.f32 %v7293, %v7307
          %v7316 = vadd.f32 %v7294, %v7307
          %v7317 = vadd.f32 %v7295, %v7307
          %v7318 = vadd.f32 %v7296, %v7307
          %v7319 = vadd.f32 %v7297, %v7307
          %v7320 = vadd.f32 %v7298, %v7307
          %v7321 = vadd.f32 %v7299, %v7307
          %v7322 = vadd.f32 %v7300, %v7307
          %v7323 = vadd.f32 %v7301, %v7307
          %v7324 = vadd.f32 %v7302, %v7307
          %v7325 = vadd.f32 %v7303, %v7307
          %v7326 = vadd.f32 %v7304, %v7307
          %v7327 = vmax.f32 %v7309, 0.0
          %v7328 = vmax.f32 %v7310, 0.0
          %v7329 = vmax.f32 %v7311, 0.0
          %v7330 = vmax.f32 %v7312, 0.0
          %v7331 = vmax.f32 %v7313, 0.0
          %v7332 = vmax.f32 %v7314, 0.0
          %v7333 = vmax.f32 %v7315, 0.0
          %v7334 = vmax.f32 %v7316, 0.0
          %v7335 = vmax.f32 %v7317, 0.0
          %v7336 = vmax.f32 %v7318, 0.0
          %v7337 = vmax.f32 %v7319, 0.0
          %v7338 = vmax.f32 %v7320, 0.0
          %v7339 = vmax.f32 %v7321, 0.0
          %v7340 = vmax.f32 %v7322, 0.0
          %v7341 = vmax.f32 %v7323, 0.0
          %v7342 = vmax.f32 %v7324, 0.0
          %v7343 = vmax.f32 %v7325, 0.0
          %v7344 = vmax.f32 %v7326, 0.0
          %v7345 = vld [vmem:[%s12] sm:$0xf]
          %v7346 = vld [vmem:[%s10] sm:$0xff]
          %v7347 = vld [vmem:[%s10 + $0x8] sm:$0xff]
          %v7348 = vld [vmem:[%s10 + $0x10] sm:$0xff]
          %v7349 = vld [vmem:[%s10 + $0x18] sm:$0xff]
          %v7350 = vld [vmem:[%s10 + $0x20] sm:$0xff]
          %v7351 = vld [vmem:[%s10 + $0x28] sm:$0xff]
          %v7352 = vld [vmem:[%s10 + $0x30] sm:$0xff]
          %v7353 = vld [vmem:[%s10 + $0x38] sm:$0xff]
          %v7354 = vld [vmem:[%s10 + $0x40] sm:$0xff]
          %v7355 = vld [vmem:[%s10 + $0x48] sm:$0xff]
          %v7356 = vld [vmem:[%s10 + $0x50] sm:$0xff]
          %v7357 = vld [vmem:[%s10 + $0x58] sm:$0xff]
          %v7358 = vld [vmem:[%s10 + $0x60] sm:$0xff]
          %v7359 = vld [vmem:[%s10 + $0x68] sm:$0xff]
          %v7360 = vld [vmem:[%s10 + $0x70] sm:$0xff]
          %v7361 = vld [vmem:[%s10 + $0x78] sm:$0xff]
          %v7362 = vld [vmem:[%s10 + $0x80] sm:$0xff]
          %v7363 = vld [vmem:[%s10 + $0x88] sm:$0xff]
          %7365 = vset.pattern.permute.xlu0 0
          %7366 = vperm.xlu0 %7365, %v7327
          %v7367 = vpop.permute.xlu0 %7366
          %7370 = vset.pattern.permute.xlu0 0
          %7371 = vperm.xlu0 %7370, %v7328
          %v7372 = vpop.permute.xlu0 %7371
          %7375 = vset.pattern.permute.xlu0 0
          %7376 = vperm.xlu0 %7375, %v7329
          %v7377 = vpop.permute.xlu0 %7376
          %7380 = vset.pattern.permute.xlu0 0
          %7381 = vperm.xlu0 %7380, %v7330
          %v7382 = vpop.permute.xlu0 %7381
          %7385 = vset.pattern.permute.xlu0 0
          %7386 = vperm.xlu0 %7385, %v7331
          %v7387 = vpop.permute.xlu0 %7386
          %7390 = vset.pattern.permute.xlu0 0
          %7391 = vperm.xlu0 %7390, %v7332
          %v7392 = vpop.permute.xlu0 %7391
          %7395 = vset.pattern.permute.xlu0 0
          %7396 = vperm.xlu0 %7395, %v7333
          %v7397 = vpop.permute.xlu0 %7396
          %7400 = vset.pattern.permute.xlu0 0
          %7401 = vperm.xlu0 %7400, %v7334
          %v7402 = vpop.permute.xlu0 %7401
          %7405 = vset.pattern.permute.xlu0 0
          %7406 = vperm.xlu0 %7405, %v7335
          %v7407 = vpop.permute.xlu0 %7406
          %7410 = vset.pattern.permute.xlu0 0
          %7411 = vperm.xlu0 %7410, %v7336
          %v7412 = vpop.permute.xlu0 %7411
          %7415 = vset.pattern.permute.xlu0 0
          %7416 = vperm.xlu0 %7415, %v7337
          %v7417 = vpop.permute.xlu0 %7416
          %7420 = vset.pattern.permute.xlu0 0
          %7421 = vperm.xlu0 %7420, %v7338
          %v7422 = vpop.permute.xlu0 %7421
          %7425 = vset.pattern.permute.xlu0 0
          %7426 = vperm.xlu0 %7425, %v7339
          %v7427 = vpop.permute.xlu0 %7426
          %7430 = vset.pattern.permute.xlu0 0
          %7431 = vperm.xlu0 %7430, %v7340
          %v7432 = vpop.permute.xlu0 %7431
          %7435 = vset.pattern.permute.xlu0 0
          %7436 = vperm.xlu0 %7435, %v7341
          %v7437 = vpop.permute.xlu0 %7436
          %7440 = vset.pattern.permute.xlu0 0
          %7441 = vperm.xlu0 %7440, %v7342
          %v7442 = vpop.permute.xlu0 %7441
          %7445 = vset.pattern.permute.xlu0 0
          %7446 = vperm.xlu0 %7445, %v7343
          %v7447 = vpop.permute.xlu0 %7446
          %7450 = vset.pattern.permute.xlu0 0
          %7451 = vperm.xlu0 %7450, %v7344
          %v7452 = vpop.permute.xlu0 %7451
          %v7454 = vmul.f32 %v7367, %v7346
          %v7455 = vmul.f32 %v7372, %v7347
          %v7456 = vmul.f32 %v7377, %v7348
          %v7457 = vmul.f32 %v7382, %v7349
          %v7458 = vmul.f32 %v7387, %v7350
          %v7459 = vmul.f32 %v7392, %v7351
          %v7460 = vmul.f32 %v7397, %v7352
          %v7461 = vmul.f32 %v7402, %v7353
          %v7462 = vmul.f32 %v7407, %v7354
          %v7463 = vmul.f32 %v7412, %v7355
          %v7464 = vmul.f32 %v7417, %v7356
          %v7465 = vmul.f32 %v7422, %v7357
          %v7466 = vmul.f32 %v7427, %v7358
          %v7467 = vmul.f32 %v7432, %v7359
          %v7468 = vmul.f32 %v7437, %v7360
          %v7469 = vmul.f32 %v7442, %v7361
          %v7470 = vmul.f32 %v7447, %v7362
          %v7471 = vmul.f32 %v7452, %v7363
          %v7472 = vld [vmem:[%s11] sm:$0xff]
          %v7473 = vld [vmem:[%s11 + $0x8] sm:$0xff]
          %v7474 = vld [vmem:[%s11 + $0x10] sm:$0xff]
          %v7475 = vld [vmem:[%s11 + $0x18] sm:$0xff]
          %v7476 = vld [vmem:[%s11 + $0x20] sm:$0xff]
          %v7477 = vld [vmem:[%s11 + $0x28] sm:$0xff]
          %v7478 = vld [vmem:[%s11 + $0x30] sm:$0xff]
          %v7479 = vld [vmem:[%s11 + $0x38] sm:$0xff]
          %v7480 = vld [vmem:[%s11 + $0x40] sm:$0xff]
          %v7481 = vld [vmem:[%s11 + $0x48] sm:$0xff]
          %v7482 = vld [vmem:[%s11 + $0x50] sm:$0xff]
          %v7483 = vld [vmem:[%s11 + $0x58] sm:$0xff]
          %v7484 = vld [vmem:[%s11 + $0x60] sm:$0xff]
          %v7485 = vld [vmem:[%s11 + $0x68] sm:$0xff]
          %v7486 = vld [vmem:[%s11 + $0x70] sm:$0xff]
          %v7487 = vld [vmem:[%s11 + $0x78] sm:$0xff]
          %v7488 = vld [vmem:[%s11 + $0x80] sm:$0xff]
          %v7489 = vld [vmem:[%s11 + $0x88] sm:$0xff]
          %7490 = vset.pattern.permute.xlu0 1
          %7491 = vperm.xlu0 %7490, %v7327
          %v7492 = vpop.permute.xlu0 %7491
          %7494 = vset.pattern.permute.xlu0 1
          %7495 = vperm.xlu0 %7494, %v7328
          %v7496 = vpop.permute.xlu0 %7495
          %7498 = vset.pattern.permute.xlu0 1
          %7499 = vperm.xlu0 %7498, %v7329
          %v7500 = vpop.permute.xlu0 %7499
          %7502 = vset.pattern.permute.xlu0 1
          %7503 = vperm.xlu0 %7502, %v7330
          %v7504 = vpop.permute.xlu0 %7503
          %7506 = vset.pattern.permute.xlu0 1
          %7507 = vperm.xlu0 %7506, %v7331
          %v7508 = vpop.permute.xlu0 %7507
          %7510 = vset.pattern.permute.xlu0 1
          %7511 = vperm.xlu0 %7510, %v7332
          %v7512 = vpop.permute.xlu0 %7511
          %7514 = vset.pattern.permute.xlu0 1
          %7515 = vperm.xlu0 %7514, %v7333
          %v7516 = vpop.permute.xlu0 %7515
          %7518 = vset.pattern.permute.xlu0 1
          %7519 = vperm.xlu0 %7518, %v7334
          %v7520 = vpop.permute.xlu0 %7519
          %7522 = vset.pattern.permute.xlu0 1
          %7523 = vperm.xlu0 %7522, %v7335
          %v7524 = vpop.permute.xlu0 %7523
          %7526 = vset.pattern.permute.xlu0 1
          %7527 = vperm.xlu0 %7526, %v7336
          %v7528 = vpop.permute.xlu0 %7527
          %7530 = vset.pattern.permute.xlu0 1
          %7531 = vperm.xlu0 %7530, %v7337
          %v7532 = vpop.permute.xlu0 %7531
          %7534 = vset.pattern.permute.xlu0 1
          %7535 = vperm.xlu0 %7534, %v7338
          %v7536 = vpop.permute.xlu0 %7535
          %7538 = vset.pattern.permute.xlu0 1
          %7539 = vperm.xlu0 %7538, %v7339
          %v7540 = vpop.permute.xlu0 %7539
          %7542 = vset.pattern.permute.xlu0 1
          %7543 = vperm.xlu0 %7542, %v7340
          %v7544 = vpop.permute.xlu0 %7543
          %7546 = vset.pattern.permute.xlu0 1
          %7547 = vperm.xlu0 %7546, %v7341
          %v7548 = vpop.permute.xlu0 %7547
          %7550 = vset.pattern.permute.xlu0 1
          %7551 = vperm.xlu0 %7550, %v7342
          %v7552 = vpop.permute.xlu0 %7551
          %7554 = vset.pattern.permute.xlu0 1
          %7555 = vperm.xlu0 %7554, %v7343
          %v7556 = vpop.permute.xlu0 %7555
          %7558 = vset.pattern.permute.xlu0 1
          %7559 = vperm.xlu0 %7558, %v7344
          %v7560 = vpop.permute.xlu0 %7559
          %v7562 = vmul.f32 %v7492, %v7472
          %v7563 = vmul.f32 %v7496, %v7473
          %v7564 = vmul.f32 %v7500, %v7474
          %v7565 = vmul.f32 %v7504, %v7475
          %v7566 = vmul.f32 %v7508, %v7476
          %v7567 = vmul.f32 %v7512, %v7477
          %v7568 = vmul.f32 %v7516, %v7478
          %v7569 = vmul.f32 %v7520, %v7479
          %v7570 = vmul.f32 %v7524, %v7480
          %v7571 = vmul.f32 %v7528, %v7481
          %v7572 = vmul.f32 %v7532, %v7482
          %v7573 = vmul.f32 %v7536, %v7483
          %v7574 = vmul.f32 %v7540, %v7484
          %v7575 = vmul.f32 %v7544, %v7485
          %v7576 = vmul.f32 %v7548, %v7486
          %v7577 = vmul.f32 %v7552, %v7487
          %v7578 = vmul.f32 %v7556, %v7488
          %v7579 = vmul.f32 %v7560, %v7489
          %v7580 = vadd.f32 %v7454, %v7562
          %v7581 = vadd.f32 %v7455, %v7563
          %v7582 = vadd.f32 %v7456, %v7564
          %v7583 = vadd.f32 %v7457, %v7565
          %v7584 = vadd.f32 %v7458, %v7566
          %v7585 = vadd.f32 %v7459, %v7567
          %v7586 = vadd.f32 %v7460, %v7568
          %v7587 = vadd.f32 %v7461, %v7569
          %v7588 = vadd.f32 %v7462, %v7570
          %v7589 = vadd.f32 %v7463, %v7571
          %v7590 = vadd.f32 %v7464, %v7572
          %v7591 = vadd.f32 %v7465, %v7573
          %v7592 = vadd.f32 %v7466, %v7574
          %v7593 = vadd.f32 %v7467, %v7575
          %v7594 = vadd.f32 %v7468, %v7576
          %v7595 = vadd.f32 %v7469, %v7577
          %v7596 = vadd.f32 %v7470, %v7578
          %v7597 = vadd.f32 %v7471, %v7579
          %v7598 = vld [vmem:[#allocation16] sm:$0x1]
          %v7600 = vperm.slane %v7598, 0
          %7603 = vst [vmem:[#allocation1] ss:$4 sm:$0xff] %v7345
          %v7604 = vld.sshfl [vmem:[#allocation1] sm:$0xff pattern:$0x73625140]
          %v7605 = vld.sshfl [vmem:[#allocation1 + $0x8] sm:$0xff pattern:$0x73625140]
          %vm7607 = vcmask 130048
          %v7608 = vsel %vm7607, %v7605, 0
          %7610 = vmatpush.msra.mxu0 %v7595
          %7611 = vmatpush.msra.mxu0 %v7594
          %7612 = vmatpush.msra.mxu0 %v7593
          %7613 = vmatpush.msra.mxu0 %v7592
          %7614 = vmatpush.msra.mxu0 %v7591
          %7615 = vmatpush.msra.mxu0 %v7590
          %7616 = vmatpush.msra.mxu0 %v7589
          %7617 = vmatpush.msra.mxu0 %v7588
          %7618 = vmatpush.msra.mxu0 %v7587
          %7619 = vmatpush.msra.mxu0 %v7586
          %7620 = vmatpush.msra.mxu0 %v7585
          %7621 = vmatpush.msra.mxu0 %v7584
          %7622 = vmatpush.msra.mxu0 %v7583
          %7623 = vmatpush.msra.mxu0 %v7582
          %7624 = vmatpush.msra.mxu0 %v7581
          %7625 = vmatpush.msra.mxu0 %v7580
          %7626 = vmatmul.f32.gmra.mxu0 %v7604
          %v7627 = vpop.f32.mrf.mxu0
          %v7628 = vadd.f32 %v7600, %v7627
          %7629 = vdwg.mxu0
          %7630 = vmatpush.msra.mxu0 0.0
          %7631 = vmatpush.msra.mxu0 0.0
          %7632 = vmatpush.msra.mxu0 0.0
          %7633 = vmatpush.msra.mxu0 0.0
          %7634 = vmatpush.msra.mxu0 0.0
          %7635 = vmatpush.msra.mxu0 0.0
          %7636 = vmatpush.msra.mxu0 0.0
          %7637 = vmatpush.msra.mxu0 0.0
          %7638 = vmatpush.msra.mxu0 0.0
          %7639 = vmatpush.msra.mxu0 0.0
          %7640 = vmatpush.msra.mxu0 0.0
          %7641 = vmatpush.msra.mxu0 0.0
          %7642 = vmatpush.msra.mxu0 0.0
          %7643 = vmatpush.msra.mxu0 0.0
          %7644 = vmatpush.msra.mxu0 %v7597
          %7645 = vmatpush.msra.mxu0 %v7596
          %7646 = vmatmul.f32.gmra.mxu0 %v7608
          %v7647 = vpop.f32.mrf.mxu0
          %v7648 = vadd.f32 %v7628, %v7647
          %7649 = vdwg.mxu0
          %v7650 = vld [vmem:[#allocation17] sm:$0x3]
          %vm7651 = vcmp.gt.f32.partialorder %v7650, 0.0
          %v7652 = vsel %vm7651, 0.0, -3.4028235e+38
          %v7653 = vadd.f32 %v7648, %v7652
          %vm7654 = vcmask 50176
          %7655 = vst.msk [vmem:[#allocation20] sm:$0x3] %vm7654, %v7653
          %v7656 = vld [vmem:[%s15] sm:$0xff]
          %v7657 = vld [vmem:[%s15 + $0x8] sm:$0xff]
          %v7658 = vld [vmem:[%s15 + $0x10] sm:$0xff]
          %v7659 = vld [vmem:[%s15 + $0x18] sm:$0xff]
          %v7660 = vld [vmem:[%s15 + $0x20] sm:$0xff]
          %v7661 = vld [vmem:[%s15 + $0x28] sm:$0xff]
          %v7662 = vld [vmem:[%s15 + $0x30] sm:$0xff]
          %v7663 = vld [vmem:[%s15 + $0x38] sm:$0xff]
          %v7664 = vld [vmem:[%s15 + $0x40] sm:$0xff]
          %v7665 = vld [vmem:[%s15 + $0x48] sm:$0xff]
          %v7666 = vld [vmem:[%s15 + $0x50] sm:$0xff]
          %v7667 = vld [vmem:[%s15 + $0x58] sm:$0xff]
          %v7668 = vld [vmem:[%s15 + $0x60] sm:$0xff]
          %v7669 = vld [vmem:[%s15 + $0x68] sm:$0xff]
          %v7670 = vld [vmem:[%s15 + $0x70] sm:$0xff]
          %v7671 = vld [vmem:[%s15 + $0x78] sm:$0xff]
          %v7672 = vld [vmem:[%s15 + $0x80] sm:$0xff]
          %v7673 = vld [vmem:[%s15 + $0x88] sm:$0xff]
          %v7674 = vld [vmem:[%s15 + $0x90] sm:$0xff]
          %v7675 = vld [vmem:[%s15 + $0x98] sm:$0xff]
          %v7676 = vld [vmem:[%s15 + $0xa0] sm:$0xff]
          %v7677 = vld [vmem:[%s15 + $0xa8] sm:$0xff]
          %v7678 = vld [vmem:[%s15 + $0xb0] sm:$0xff]
          %v7679 = vld [vmem:[%s15 + $0xb8] sm:$0xff]
          %v7680 = vld [vmem:[%s15 + $0xc0] sm:$0xff]
          %v7681 = vld [vmem:[%s15 + $0xc8] sm:$0xff]
          %v7682 = vld [vmem:[%s15 + $0xd0] sm:$0xff]
          %v7683 = vld [vmem:[%s15 + $0xd8] sm:$0xff]
          %v7684 = vld [vmem:[%s15 + $0xe0] sm:$0xff]
          %v7685 = vld [vmem:[%s15 + $0xe8] sm:$0xff]
          %v7686 = vld [vmem:[%s15 + $0xf0] sm:$0xff]
          %v7687 = vld [vmem:[%s15 + $0xf8] sm:$0xff]
          %v7688 = vld [vmem:[%s15 + $0x100] sm:$0xff]
          %v7689 = vld [vmem:[%s15 + $0x108] sm:$0xff]
          %v7690 = vld [vmem:[%s15 + $0x110] sm:$0xff]
          %v7691 = vld [vmem:[%s15 + $0x118] sm:$0xff]
          %7692 = vset.pattern.permute.xlu0 2
          %7693 = vperm.xlu0 %7692, %v7327
          %v7694 = vpop.permute.xlu0 %7693
          %7696 = vset.pattern.permute.xlu0 2
          %7697 = vperm.xlu0 %7696, %v7328
          %v7698 = vpop.permute.xlu0 %7697
          %7700 = vset.pattern.permute.xlu0 2
          %7701 = vperm.xlu0 %7700, %v7329
          %v7702 = vpop.permute.xlu0 %7701
          %7704 = vset.pattern.permute.xlu0 2
          %7705 = vperm.xlu0 %7704, %v7330
          %v7706 = vpop.permute.xlu0 %7705
          %7708 = vset.pattern.permute.xlu0 2
          %7709 = vperm.xlu0 %7708, %v7331
          %v7710 = vpop.permute.xlu0 %7709
          %7712 = vset.pattern.permute.xlu0 2
          %7713 = vperm.xlu0 %7712, %v7332
          %v7714 = vpop.permute.xlu0 %7713
          %7716 = vset.pattern.permute.xlu0 2
          %7717 = vperm.xlu0 %7716, %v7333
          %v7718 = vpop.permute.xlu0 %7717
          %7720 = vset.pattern.permute.xlu0 2
          %7721 = vperm.xlu0 %7720, %v7334
          %v7722 = vpop.permute.xlu0 %7721
          %7724 = vset.pattern.permute.xlu0 2
          %7725 = vperm.xlu0 %7724, %v7335
          %v7726 = vpop.permute.xlu0 %7725
          %7728 = vset.pattern.permute.xlu0 2
          %7729 = vperm.xlu0 %7728, %v7336
          %v7730 = vpop.permute.xlu0 %7729
          %7732 = vset.pattern.permute.xlu0 2
          %7733 = vperm.xlu0 %7732, %v7337
          %v7734 = vpop.permute.xlu0 %7733
          %7736 = vset.pattern.permute.xlu0 2
          %7737 = vperm.xlu0 %7736, %v7338
          %v7738 = vpop.permute.xlu0 %7737
          %7740 = vset.pattern.permute.xlu0 2
          %7741 = vperm.xlu0 %7740, %v7339
          %v7742 = vpop.permute.xlu0 %7741
          %7744 = vset.pattern.permute.xlu0 2
          %7745 = vperm.xlu0 %7744, %v7340
          %v7746 = vpop.permute.xlu0 %7745
          %7748 = vset.pattern.permute.xlu0 2
          %7749 = vperm.xlu0 %7748, %v7341
          %v7750 = vpop.permute.xlu0 %7749
          %7752 = vset.pattern.permute.xlu0 2
          %7753 = vperm.xlu0 %7752, %v7342
          %v7754 = vpop.permute.xlu0 %7753
          %7756 = vset.pattern.permute.xlu0 2
          %7757 = vperm.xlu0 %7756, %v7343
          %v7758 = vpop.permute.xlu0 %7757
          %7760 = vset.pattern.permute.xlu0 2
          %7761 = vperm.xlu0 %7760, %v7344
          %v7762 = vpop.permute.xlu0 %7761
          %v7764 = vmul.f32 %v7694, %v7656
          %v7765 = vmul.f32 %v7694, %v7657
          %v7766 = vmul.f32 %v7698, %v7658
          %v7767 = vmul.f32 %v7698, %v7659
          %v7768 = vmul.f32 %v7702, %v7660
          %v7769 = vmul.f32 %v7702, %v7661
          %v7770 = vmul.f32 %v7706, %v7662
          %v7771 = vmul.f32 %v7706, %v7663
          %v7772 = vmul.f32 %v7710, %v7664
          %v7773 = vmul.f32 %v7710, %v7665
          %v7774 = vmul.f32 %v7714, %v7666
          %v7775 = vmul.f32 %v7714, %v7667
          %v7776 = vmul.f32 %v7718, %v7668
          %v7777 = vmul.f32 %v7718, %v7669
          %v7778 = vmul.f32 %v7722, %v7670
          %v7779 = vmul.f32 %v7722, %v7671
          %v7780 = vmul.f32 %v7726, %v7672
          %v7781 = vmul.f32 %v7726, %v7673
          %v7782 = vmul.f32 %v7730, %v7674
          %v7783 = vmul.f32 %v7730, %v7675
          %v7784 = vmul.f32 %v7734, %v7676
          %v7785 = vmul.f32 %v7734, %v7677
          %v7786 = vmul.f32 %v7738, %v7678
          %v7787 = vmul.f32 %v7738, %v7679
          %v7788 = vmul.f32 %v7742, %v7680
          %v7789 = vmul.f32 %v7742, %v7681
          %v7790 = vmul.f32 %v7746, %v7682
          %v7791 = vmul.f32 %v7746, %v7683
          %v7792 = vmul.f32 %v7750, %v7684
          %v7793 = vmul.f32 %v7750, %v7685
          %v7794 = vmul.f32 %v7754, %v7686
          %v7795 = vmul.f32 %v7754, %v7687
          %v7796 = vmul.f32 %v7758, %v7688
          %v7797 = vmul.f32 %v7758, %v7689
          %v7798 = vmul.f32 %v7762, %v7690
          %v7799 = vmul.f32 %v7762, %v7691
          %v7800 = vld [vmem:[#allocation19] sm:$0x3]
          %v7802 = vperm.slane %v7800, 0
          %v7803 = vperm.slane %v7800, 1
          %7806 = vst [vmem:[#allocation1] ss:$4 sm:$0xff] %v7345
          %v7807 = vld.sshfl [vmem:[#allocation1] sm:$0xff pattern:$0x73625140]
          %v7808 = vld.sshfl [vmem:[#allocation1 + $0x8] sm:$0xff pattern:$0x73625140]
          %v7810 = vsel %vm7607, %v7808, 0
          %7812 = vmatpush.msra.mxu0 %v7794
          %7813 = vmatpush.msra.mxu0 %v7792
          %7814 = vmatpush.msra.mxu0 %v7790
          %7815 = vmatpush.msra.mxu0 %v7788
          %7816 = vmatpush.msra.mxu0 %v7786
          %7817 = vmatpush.msra.mxu0 %v7784
          %7818 = vmatpush.msra.mxu0 %v7782
          %7819 = vmatpush.msra.mxu0 %v7780
          %7820 = vmatpush.msra.mxu0 %v7778
          %7821 = vmatpush.msra.mxu0 %v7776
          %7822 = vmatpush.msra.mxu0 %v7774
          %7823 = vmatpush.msra.mxu0 %v7772
          %7824 = vmatpush.msra.mxu0 %v7770
          %7825 = vmatpush.msra.mxu0 %v7768
          %7826 = vmatpush.msra.mxu0 %v7766
          %7827 = vmatpush.msra.mxu0 %v7764
          %7828 = vmatmul.f32.gmra.mxu0 %v7807
          %v7829 = vpop.f32.mrf.mxu0
          %v7830 = vadd.f32 %v7802, %v7829
          %7831 = vdwg.mxu0
          %7832 = vmatpush.msra.mxu0 0.0
          %7833 = vmatpush.msra.mxu0 0.0
          %7834 = vmatpush.msra.mxu0 0.0
          %7835 = vmatpush.msra.mxu0 0.0
          %7836 = vmatpush.msra.mxu0 0.0
          %7837 = vmatpush.msra.mxu0 0.0
          %7838 = vmatpush.msra.mxu0 0.0
          %7839 = vmatpush.msra.mxu0 0.0
          %7840 = vmatpush.msra.mxu0 0.0
          %7841 = vmatpush.msra.mxu0 0.0
          %7842 = vmatpush.msra.mxu0 0.0
          %7843 = vmatpush.msra.mxu0 0.0
          %7844 = vmatpush.msra.mxu0 0.0
          %7845 = vmatpush.msra.mxu0 0.0
          %7846 = vmatpush.msra.mxu0 %v7798
          %7847 = vmatpush.msra.mxu0 %v7796
          %7848 = vmatmul.f32.gmra.mxu0 %v7810
          %v7849 = vpop.f32.mrf.mxu0
          %v7850 = vadd.f32 %v7830, %v7849
          %7851 = vdwg.mxu0
          %7852 = vmatpush.msra.mxu0 %v7795
          %7853 = vmatpush.msra.mxu0 %v7793
          %7854 = vmatpush.msra.mxu0 %v7791
          %7855 = vmatpush.msra.mxu0 %v7789
          %7856 = vmatpush.msra.mxu0 %v7787
          %7857 = vmatpush.msra.mxu0 %v7785
          %7858 = vmatpush.msra.mxu0 %v7783
          %7859 = vmatpush.msra.mxu0 %v7781
          %7860 = vmatpush.msra.mxu0 %v7779
          %7861 = vmatpush.msra.mxu0 %v7777
          %7862 = vmatpush.msra.mxu0 %v7775
          %7863 = vmatpush.msra.mxu0 %v7773
          %7864 = vmatpush.msra.mxu0 %v7771
          %7865 = vmatpush.msra.mxu0 %v7769
          %7866 = vmatpush.msra.mxu0 %v7767
          %7867 = vmatpush.msra.mxu0 %v7765
          %7868 = vmatmul.f32.gmra.mxu0 %v7807
          %v7869 = vpop.f32.mrf.mxu0
          %v7870 = vadd.f32 %v7803, %v7869
          %7871 = vdwg.mxu0
          %7872 = vmatpush.msra.mxu0 0.0
          %7873 = vmatpush.msra.mxu0 0.0
          %7874 = vmatpush.msra.mxu0 0.0
          %7875 = vmatpush.msra.mxu0 0.0
          %7876 = vmatpush.msra.mxu0 0.0
          %7877 = vmatpush.msra.mxu0 0.0
          %7878 = vmatpush.msra.mxu0 0.0
          %7879 = vmatpush.msra.mxu0 0.0
          %7880 = vmatpush.msra.mxu0 0.0
          %7881 = vmatpush.msra.mxu0 0.0
          %7882 = vmatpush.msra.mxu0 0.0
          %7883 = vmatpush.msra.mxu0 0.0
          %7884 = vmatpush.msra.mxu0 0.0
          %7885 = vmatpush.msra.mxu0 0.0
          %7886 = vmatpush.msra.mxu0 %v7799
          %7887 = vmatpush.msra.mxu0 %v7797
          %7888 = vmatmul.f32.gmra.mxu0 %v7810
          %v7889 = vpop.f32.mrf.mxu0
          %v7890 = vadd.f32 %v7870, %v7889
          %7891 = vdwg.mxu0
          %v7892 = vmax.f32 %v7850, 0.0
          %v7893 = vmax.f32 %v7890, 0.0
          %v7894 = vld [vmem:[%s17] sm:$0xff]
          %v7895 = vld [vmem:[%s17 + $0x8] sm:$0xff]
          %v7896 = vld [vmem:[%s17 + $0x10] sm:$0xff]
          %v7897 = vld [vmem:[%s17 + $0x18] sm:$0xff]
          %v7898 = vld [vmem:[%s17 + $0x20] sm:$0xff]
          %v7899 = vld [vmem:[%s17 + $0x28] sm:$0xff]
          %v7900 = vld [vmem:[%s17 + $0x30] sm:$0xff]
          %v7901 = vld [vmem:[%s17 + $0x38] sm:$0xff]
          %v7902 = vld [vmem:[%s17 + $0x40] sm:$0xff]
          %v7903 = vld [vmem:[%s17 + $0x48] sm:$0xff]
          %v7904 = vld [vmem:[%s17 + $0x50] sm:$0xff]
          %v7905 = vld [vmem:[%s17 + $0x58] sm:$0xff]
          %v7906 = vld [vmem:[%s17 + $0x60] sm:$0xff]
          %v7907 = vld [vmem:[%s17 + $0x68] sm:$0xff]
          %v7908 = vld [vmem:[%s17 + $0x70] sm:$0xff]
          %v7909 = vld [vmem:[%s17 + $0x78] sm:$0xff]
          %v7910 = vld [vmem:[%s17 + $0x80] sm:$0xff]
          %v7911 = vld [vmem:[%s17 + $0x88] sm:$0xff]
          %v7912 = vld [vmem:[%s17 + $0x90] sm:$0xff]
          %v7913 = vld [vmem:[%s17 + $0x98] sm:$0xff]
          %v7914 = vld [vmem:[%s17 + $0xa0] sm:$0xff]
          %v7915 = vld [vmem:[%s17 + $0xa8] sm:$0xff]
          %v7916 = vld [vmem:[%s17 + $0xb0] sm:$0xff]
          %v7917 = vld [vmem:[%s17 + $0xb8] sm:$0xff]
          %v7918 = vld [vmem:[%s17 + $0xc0] sm:$0xff]
          %v7919 = vld [vmem:[%s17 + $0xc8] sm:$0xff]
          %v7920 = vld [vmem:[%s17 + $0xd0] sm:$0xff]
          %v7921 = vld [vmem:[%s17 + $0xd8] sm:$0xff]
          %v7922 = vld [vmem:[%s17 + $0xe0] sm:$0xff]
          %v7923 = vld [vmem:[%s17 + $0xe8] sm:$0xff]
          %v7924 = vld [vmem:[%s17 + $0xf0] sm:$0xff]
          %v7925 = vld [vmem:[%s17 + $0xf8] sm:$0xff]
          %v7926 = vld [vmem:[#allocation4] sm:$0x1]
          %v7928 = vperm.slane %v7926, 0
          %7930 = vmatpush.msra.mxu0 %v7909
          %7931 = vmatpush.msra.mxu0 %v7908
          %7932 = vmatpush.msra.mxu0 %v7907
          %7933 = vmatpush.msra.mxu0 %v7906
          %7934 = vmatpush.msra.mxu0 %v7905
          %7935 = vmatpush.msra.mxu0 %v7904
          %7936 = vmatpush.msra.mxu0 %v7903
          %7937 = vmatpush.msra.mxu0 %v7902
          %7938 = vmatpush.msra.mxu0 %v7901
          %7939 = vmatpush.msra.mxu0 %v7900
          %7940 = vmatpush.msra.mxu0 %v7899
          %7941 = vmatpush.msra.mxu0 %v7898
          %7942 = vmatpush.msra.mxu0 %v7897
          %7943 = vmatpush.msra.mxu0 %v7896
          %7944 = vmatpush.msra.mxu0 %v7895
          %7945 = vmatpush.msra.mxu0 %v7894
          %7946 = vmatmul.f32.gmra.mxu0 %v7892
          %v7947 = vpop.f32.mrf.mxu0
          %v7948 = vadd.f32 %v7928, %v7947
          %7949 = vdwg.mxu0
          %7950 = vmatpush.msra.mxu0 %v7925
          %7951 = vmatpush.msra.mxu0 %v7924
          %7952 = vmatpush.msra.mxu0 %v7923
          %7953 = vmatpush.msra.mxu0 %v7922
          %7954 = vmatpush.msra.mxu0 %v7921
          %7955 = vmatpush.msra.mxu0 %v7920
          %7956 = vmatpush.msra.mxu0 %v7919
          %7957 = vmatpush.msra.mxu0 %v7918
          %7958 = vmatpush.msra.mxu0 %v7917
          %7959 = vmatpush.msra.mxu0 %v7916
          %7960 = vmatpush.msra.mxu0 %v7915
          %7961 = vmatpush.msra.mxu0 %v7914
          %7962 = vmatpush.msra.mxu0 %v7913
          %7963 = vmatpush.msra.mxu0 %v7912
          %7964 = vmatpush.msra.mxu0 %v7911
          %7965 = vmatpush.msra.mxu0 %v7910
          %7966 = vmatmul.f32.gmra.mxu0 %v7893
          %v7967 = vpop.f32.mrf.mxu0
          %v7968 = vadd.f32 %v7948, %v7967
          %7969 = vdwg.mxu0
          %v7970 = vtanh.pop %v7968
          %vm7971 = vcmask 1024
          %7972 = vst.msk [vmem:[%s20] sm:$0x3] %vm7971, %v7970
        $region148: #{actor_critic_forward.1} parent=95 // pred_fallthru
          _
        // Predicated region
        $region149: #{actor_critic_forward.1} parent=95 // pred_check
          %p7973 = pneg %p466
        $region150: #{actor_critic_forward.1} parent=95 // pred_check_branch
          %7975 = sbr.rel (%p7973) target = $region152
        $region151: #{actor_critic_forward.1} parent=95 // pred_region
          %7977 = vsyncadd [#allocation7], 0
          %s7979 = sshll.u32 [#allocation20], 4
          %s7980 = int_to_ptr.vmem [resolvable:$true] %s7979
          %s7981 = sshll.u32 %s19, 4
          %s7982 = int_to_ptr.hbm [resolvable:$true] %s7981
          %7984 = dma.vmem_to_hbm [thread:$0]  %s7980, 32, %s7982, [#allocation7]
        $region152: #{actor_critic_forward.1} parent=95 // pred_fallthru
          _
        // Predicated region
        $region153: #{actor_critic_forward.1} parent=95 // pred_check
          %p7985 = pneg %p487
        $region154: #{actor_critic_forward.1} parent=95 // pred_check_branch
          %7987 = sbr.rel (%p7985) target = $region156
        $region155: #{actor_critic_forward.1} parent=95 // pred_region
          _
        $region156: #{actor_critic_forward.1} parent=95 // pred_fallthru
          _
        // Predicated region
        $region157: #{actor_critic_forward.1} parent=95 // pred_check
          %p7988 = pneg %p466
        $region158: #{actor_critic_forward.1} parent=95 // pred_check_branch
          %7990 = sbr.rel (%p7988) target = $region160
        $region159: #{actor_critic_forward.1} parent=95 // pred_region
          %7992 = dma.done [#allocation7], 32
        $region160: #{actor_critic_forward.1} parent=95 // pred_fallthru
          _
        // Predicated region
        $region161: #{actor_critic_forward.1} parent=95 // pred_check
          %p7993 = pneg %p487
        $region162: #{actor_critic_forward.1} parent=95 // pred_check_branch
          %7995 = sbr.rel (%p7993) target = $region164
        $region163: #{actor_critic_forward.1} parent=95 // pred_region
          _
        $region164: #{actor_critic_forward.1} parent=95 // pred_fallthru
          _
      $region96: #{actor_critic_forward.1} parent=5 // pred_fallthru
        _
      %p7996 = scmp.le.s32.totalorder 2, %s34
      // Predicated region
      $region165: #{actor_critic_forward.1} parent=5 // pred_check
        %p7997 = pneg %p7996
      $region166: #{actor_critic_forward.1} parent=5 // pred_check_branch
        %7999 = sbr.rel (%p7997) target = $region168
      $region167: #{actor_critic_forward.1} parent=5 // pred_region
        %s8000 = ssub.s32 %s34, 2
      $region168: #{actor_critic_forward.1} parent=5 // pred_fallthru
        _
    $region6: #{actor_critic_forward.1} parent=1 // loop_footer
      %s38 = sadd.s32 1, %s34
    $region7: #{actor_critic_forward.1} parent=1 // loop_footer_branch
      %33 = sbr.rel target = $region3
    $region8: #{actor_critic_forward.1} parent=1 // loop_exit
      _
    %8001 = vsyncpa [#allocation6], 1
    %s8002 = scalar_lea.sflag [#allocation6], 1
    %8003 = vsyncpa %s8002, 1
    %8004 = vsyncpa [#allocation9], 1
    %8005 = vsyncpa [#allocation15], 1
    %8006 = vsyncpa [#allocation18], 1
    %8007 = vsyncpa [#allocation7], 1
    %s8008 = scalar_lea.sflag [#allocation7], 1
    %8009 = vsyncpa %s8008, 1

</llo_original>
